<compile_context>
chip_gen: v7x
topology: tpu7x:2x2x1
jax: 0.10.0
libtpu: 0.0.40
codegen_flags: <defaults>
</compile_context>

<pallas_src>
import functools

import jax
import jax.numpy as jnp
from jax.experimental import pallas as pl
from jax.experimental.pallas import tpu as pltpu


# ----------------------------- Pallas kernel ------------------------------ #

def _matmul_lrelu_kernel(x_ref, w_ref, o_ref, *, negative_slope, apply_act):
    # x_ref: (TM, K) bf16 patches tile, w_ref: (K, Np) bf16 with Np % 128 == 0,
    # o_ref: (TM, Np) f32.  MXU matmul with f32 accumulation, LeakyReLU applied
    # on the f32 accumulator, lane-dense (unmasked) store.
    acc = jnp.dot(x_ref[...], w_ref[...], preferred_element_type=jnp.float32)
    if apply_act:
        acc = jnp.where(acc >= 0.0, acc, negative_slope * acc)
    o_ref[...] = acc.astype(o_ref.dtype)


def pallas_matmul_lrelu(x, w, *, apply_act, negative_slope=0.2):
    """x: (M, K) bf16, w: (K, Np) bf16 (Np % 128 == 0) -> (M, Np) f32."""
    M, K = x.shape
    K2, Np = w.shape
    assert K == K2 and Np % 128 == 0

    # Fat M tiles: a single grid step for small layers, two steps for the big
    # ones (M >= 2048) so the parallel axis can shard across 2 TensorCores.
    if M >= 2048 and M % 2 == 0 and (M // 2) % 8 == 0:
        grid_m = 2
    else:
        grid_m = 1
    TM = M // grid_m

    kernel = functools.partial(
        _matmul_lrelu_kernel, negative_slope=negative_slope, apply_act=apply_act
    )
    return pl.pallas_call(
        kernel,
        out_shape=jax.ShapeDtypeStruct((M, Np), jnp.float32),
        grid_spec=pltpu.PrefetchScalarGridSpec(
            num_scalar_prefetch=0,
            grid=(grid_m,),
            in_specs=[
                pl.BlockSpec((TM, K), lambda i: (i, 0)),
                # Weight tile is grid-invariant (constant index_map), so the
                # pipeline only fetches it once.
                pl.BlockSpec((K, Np), lambda i: (0, 0)),
            ],
            out_specs=pl.BlockSpec((TM, Np), lambda i: (i, 0)),
        ),
        compiler_params=pltpu.CompilerParams(dimension_semantics=("parallel",)),
    )(x, w)


# ----------------------------- Conv via im2col ----------------------------- #

def _im2col(x_nhwc, ksize, stride, pad):
    """Extract ksize x ksize patches. Returns ((N*Ho*Wo, k*k*C), (N, Ho, Wo))."""
    N, H, W, C = x_nhwc.shape
    xp = jnp.pad(x_nhwc, ((0, 0), (pad, pad), (pad, pad), (0, 0)))
    Ho = (H + 2 * pad - ksize) // stride + 1
    Wo = (W + 2 * pad - ksize) // stride + 1
    cols = []
    for kh in range(ksize):
        for kw in range(ksize):
            cols.append(
                xp[:, kh:kh + Ho * stride:stride, kw:kw + Wo * stride:stride, :]
            )
    patches = jnp.concatenate(cols, axis=-1)  # (N, Ho, Wo, k*k*C) — (kh, kw, ci)
    return patches.reshape(N * Ho * Wo, ksize * ksize * C), (N, Ho, Wo)


def _conv_layer(x_nhwc, w_oihw, stride, pad, apply_act):
    """Strided 4x4 conv (no bias) + optional LeakyReLU via im2col + Pallas matmul."""
    Cout, Cin, kh, kw = w_oihw.shape

    # bf16 operands for the MXU; accumulation stays f32 inside the kernel.
    x_bf = x_nhwc.astype(jnp.bfloat16)
    w_bf = w_oihw.astype(jnp.bfloat16)

    # Pad Cin to a multiple of 4 (layer 1: 3 -> 4 => K = 64) for cleaner K packing.
    cin_pad = (-Cin) % 4
    if cin_pad:
        x_bf = jnp.pad(x_bf, ((0, 0), (0, 0), (0, 0), (0, cin_pad)))
        w_bf = jnp.pad(w_bf, ((0, 0), (0, cin_pad), (0, 0), (0, 0)))

    patches, (N, Ho, Wo) = _im2col(x_bf, kh, stride, pad)
    # (Cout, Cin', kh, kw) -> (kh, kw, Cin', Cout) -> (K, Cout); matches im2col.
    w_mat = jnp.transpose(w_bf, (2, 3, 1, 0)).reshape(kh * kw * (Cin + cin_pad), Cout)

    # Pad Cout up to 128 so the kernel's output stores are lane-dense (unmasked).
    cout_pad = (-Cout) % 128
    if cout_pad:
        w_mat = jnp.pad(w_mat, ((0, 0), (0, cout_pad)))

    y = pallas_matmul_lrelu(patches, w_mat, apply_act=apply_act)
    return y[:, :Cout].reshape(N, Ho, Wo, Cout)


def _final_conv(x_nhwc, w_oihw):
    """Final 4x4 'valid' conv to a single logit. M = batch, N = 1 is both lane-
    and sublane-sparse, so a Pallas launch is pure overhead — use a plain dot."""
    Cout, Cin, kh, kw = w_oihw.shape
    N, H, W, C = x_nhwc.shape
    assert (H, W, C) == (kh, kw, Cin), "critic architecture expects 128x128 input"
    w_mat = jnp.transpose(w_oihw, (2, 3, 1, 0)).reshape(kh * kw * Cin, Cout)
    y = jnp.dot(
        x_nhwc.reshape(N, -1).astype(jnp.bfloat16),   # NHWC reshape == (kh,kw,ci)
        w_mat.astype(jnp.bfloat16),
        preferred_element_type=jnp.float32,
    )
    return y.reshape(N, 1, 1, Cout)


# ------------------------------- Critic model ------------------------------ #

_LAYER_CFG = [(2, 1, True)] * 5 + [(1, 0, False)]  # (stride, pad, leaky_relu)


def init_critic_params(key, num_channels, feature_maps_d):
    """DCGAN-style deterministic init: N(0, 0.02). Weights in PyTorch OIHW layout."""
    chans = [
        num_channels,
        feature_maps_d,
        feature_maps_d * 2,
        feature_maps_d * 4,
        feature_maps_d * 8,
        feature_maps_d * 16,
        1,
    ]
    params = []
    for i in range(6):
        key, sub = jax.random.split(key)
        params.append(
            0.02 * jax.random.normal(sub, (chans[i + 1], chans[i], 4, 4), jnp.float32)
        )
    return params


@jax.jit
def critic_forward(x_nchw, params):
    """Pallas-backed forward. Input NCHW (PyTorch convention), output (N,1,1,1)."""
    # TODO(synk): layers 3-5 (activations + weights all fit in VMEM) could be
    # fused into a single pallas_call with the im2col gather done in-kernel via
    # pl.ds; kept as separate jit-fused layers here for lowering robustness.
    x = jnp.transpose(x_nchw, (0, 2, 3, 1))  # NCHW -> NHWC
    for w, (stride, pad, act) in zip(params[:-1], _LAYER_CFG[:-1]):
        x = _conv_layer(x, w, stride, pad, act)
    y = _final_conv(x, params[-1])
    return jnp.transpose(y, (0, 3, 1, 2))  # NHWC -> NCHW, (N, 1, 1, 1)


@jax.jit
def _reference_forward(x_nchw, params):
    """Pure-JAX reference (lax.conv) with matched bf16-operand / f32-accumulate
    numerics for the correctness check."""
    x = x_nchw
    for w, (stride, pad, act) in zip(params, _LAYER_CFG):
        x = jax.lax.conv_general_dilated(
            x.astype(jnp.bfloat16), w.astype(jnp.bfloat16),
            (stride, stride), [(pad, pad), (pad, pad)],
            dimension_numbers=("NCHW", "OIHW", "NCHW"),
            preferred_element_type=jnp.float32,
        )
        if act:
            x = jnp.where(x >= 0.0, x, 0.2 * x)
    return x


# ----------------------------------- Main ---------------------------------- #

if __name__ == "__main__":
    key = jax.random.PRNGKey(0)
    kx, kp = jax.random.split(key)

    num_channels = 3
    feature_maps_d = 8
    batch = 2
    # The architecture (5 stride-2 convs + final 4x4 valid conv) requires 128x128.
    x = jax.random.normal(kx, (batch, num_channels, 128, 128), jnp.float32)
    params = init_critic_params(kp, num_channels, feature_maps_d)

    out = jax.block_until_ready(critic_forward(x, params))
    assert out.shape == (batch, 1, 1, 1), out.shape

    ref = jax.block_until_ready(_reference_forward(x, params))
    assert jnp.allclose(out, ref, rtol=2e-2, atol=1e-5), (out, ref)

    print("KERNEL_OK")
</pallas_src>

<mosaic_0001>
module attributes {stable_mosaic.version = 11 : i64} {
  func.func @_matmul_lrelu_kernel(%arg0: i32, %arg1: memref<4096x64xbf16, #tpu.memory_space<vmem>>, %arg2: memref<64x128xbf16, #tpu.memory_space<vmem>>, %arg3: memref<4096x128xf32, #tpu.memory_space<vmem>>) attributes {dimension_semantics = [#tpu.dimension_semantics<parallel>], iteration_bounds = array<i64: 2>, scalar_prefetch = 0 : i64, scratch_operands = 0 : i64, tpu.core_type = #tpu.core_type<tc>, window_params = [{transform_indices = @transform_0, window_bounds = array<i64: 4096, 64>}, {pipeline_mode = #tpu.pipeline_mode<synchronous>, transform_indices = @transform_1, window_bounds = array<i64: 64, 128>}, {transform_indices = @transform_2, window_bounds = array<i64: 4096, 128>}]} {
    %c0 = arith.constant 0 : index
    %c0_0 = arith.constant 0 : index
    %0 = vector.load %arg1[%c0, %c0_0] : memref<4096x64xbf16, #tpu.memory_space<vmem>>, vector<4096x64xbf16>
    %c0_1 = arith.constant 0 : index
    %c0_2 = arith.constant 0 : index
    %1 = vector.load %arg2[%c0_1, %c0_2] : memref<64x128xbf16, #tpu.memory_space<vmem>>, vector<64x128xbf16>
    %cst = arith.constant dense<0.000000e+00> : vector<4096x128xf32>
    %2 = tpu.matmul %0, %1, %cst {dimension_numbers = #tpu.dot_dimension_numbers<[1], [0], [0], [1], [0, 0, 1, 1], [], []>} : vector<4096x64xbf16>, vector<64x128xbf16>, vector<4096x128xf32> -> vector<4096x128xf32>
    %cst_3 = arith.constant 0.000000e+00 : f32
    %3 = vector.broadcast %cst_3 : f32 to vector<4096x128xf32>
    %4 = arith.cmpf oge, %2, %3 : vector<4096x128xf32>
    %cst_4 = arith.constant 2.000000e-01 : f32
    %5 = vector.broadcast %cst_4 : f32 to vector<4096x128xf32>
    %6 = arith.mulf %5, %2 : vector<4096x128xf32>
    %7 = arith.select %4, %2, %6 : vector<4096x128xi1>, vector<4096x128xf32>
    %c0_5 = arith.constant 0 : index
    %c0_6 = arith.constant 0 : index
    %8 = vector.load %arg3[%c0_5, %c0_6] : memref<4096x128xf32, #tpu.memory_space<vmem>>, vector<4096x128xf32>
    tpu.vector_store %arg3[%c0_5, %c0_6], %7 {strides = array<i32>} : memref<4096x128xf32, #tpu.memory_space<vmem>>, vector<4096x128xf32>,
    return
  }
  func.func @transform_0(%arg0: i32) -> (i32, i32) {
    %c0_i32 = arith.constant 0 : i32
    %c0_i32_0 = arith.constant 0 : i32
    return %arg0, %c0_i32 : i32, i32
  }
  func.func @transform_1(%arg0: i32) -> (i32, i32) {
    %c0_i32 = arith.constant 0 : i32
    %c0_i32_0 = arith.constant 0 : i32
    %c0_i32_1 = arith.constant 0 : i32
    return %c0_i32, %c0_i32_0 : i32, i32
  }
  func.func @transform_2(%arg0: i32) -> (i32, i32) {
    %c0_i32 = arith.constant 0 : i32
    %c0_i32_0 = arith.constant 0 : i32
    return %arg0, %c0_i32 : i32, i32
  }
}

module attributes {stable_mosaic.version = 11 : i64} {
  func.func @_matmul_lrelu_kernel(%arg0: i32, %arg1: memref<1024x128xbf16, #tpu.memory_space<vmem>>, %arg2: memref<128x128xbf16, #tpu.memory_space<vmem>>, %arg3: memref<1024x128xf32, #tpu.memory_space<vmem>>) attributes {dimension_semantics = [#tpu.dimension_semantics<parallel>], iteration_bounds = array<i64: 2>, scalar_prefetch = 0 : i64, scratch_operands = 0 : i64, tpu.core_type = #tpu.core_type<tc>, window_params = [{transform_indices = @transform_0, window_bounds = array<i64: 1024, 128>}, {pipeline_mode = #tpu.pipeline_mode<synchronous>, transform_indices = @transform_1, window_bounds = array<i64: 128, 128>}, {transform_indices = @transform_2, window_bounds = array<i64: 1024, 128>}]} {
    %c0 = arith.constant 0 : index
    %c0_0 = arith.constant 0 : index
    %0 = vector.load %arg1[%c0, %c0_0] : memref<1024x128xbf16, #tpu.memory_space<vmem>>, vector<1024x128xbf16>
    %c0_1 = arith.constant 0 : index
    %c0_2 = arith.constant 0 : index
    %1 = vector.load %arg2[%c0_1, %c0_2] : memref<128x128xbf16, #tpu.memory_space<vmem>>, vector<128x128xbf16>
    %cst = arith.constant dense<0.000000e+00> : vector<1024x128xf32>
    %2 = tpu.matmul %0, %1, %cst {dimension_numbers = #tpu.dot_dimension_numbers<[1], [0], [0], [1], [0, 0, 1, 1], [], []>} : vector<1024x128xbf16>, vector<128x128xbf16>, vector<1024x128xf32> -> vector<1024x128xf32>
    %cst_3 = arith.constant 0.000000e+00 : f32
    %3 = vector.broadcast %cst_3 : f32 to vector<1024x128xf32>
    %4 = arith.cmpf oge, %2, %3 : vector<1024x128xf32>
    %cst_4 = arith.constant 2.000000e-01 : f32
    %5 = vector.broadcast %cst_4 : f32 to vector<1024x128xf32>
    %6 = arith.mulf %5, %2 : vector<1024x128xf32>
    %7 = arith.select %4, %2, %6 : vector<1024x128xi1>, vector<1024x128xf32>
    %c0_5 = arith.constant 0 : index
    %c0_6 = arith.constant 0 : index
    %8 = vector.load %arg3[%c0_5, %c0_6] : memref<1024x128xf32, #tpu.memory_space<vmem>>, vector<1024x128xf32>
    tpu.vector_store %arg3[%c0_5, %c0_6], %7 {strides = array<i32>} : memref<1024x128xf32, #tpu.memory_space<vmem>>, vector<1024x128xf32>,
    return
  }
  func.func @transform_0(%arg0: i32) -> (i32, i32) {
    %c0_i32 = arith.constant 0 : i32
    %c0_i32_0 = arith.constant 0 : i32
    return %arg0, %c0_i32 : i32, i32
  }
  func.func @transform_1(%arg0: i32) -> (i32, i32) {
    %c0_i32 = arith.constant 0 : i32
    %c0_i32_0 = arith.constant 0 : i32
    %c0_i32_1 = arith.constant 0 : i32
    return %c0_i32, %c0_i32_0 : i32, i32
  }
  func.func @transform_2(%arg0: i32) -> (i32, i32) {
    %c0_i32 = arith.constant 0 : i32
    %c0_i32_0 = arith.constant 0 : i32
    return %arg0, %c0_i32 : i32, i32
  }
}

module attributes {stable_mosaic.version = 11 : i64} {
  func.func @_matmul_lrelu_kernel(%arg0: i32, %arg1: memref<512x256xbf16, #tpu.memory_space<vmem>>, %arg2: memref<256x128xbf16, #tpu.memory_space<vmem>>, %arg3: memref<512x128xf32, #tpu.memory_space<vmem>>) attributes {dimension_semantics = [#tpu.dimension_semantics<parallel>], iteration_bounds = array<i64: 1>, scalar_prefetch = 0 : i64, scratch_operands = 0 : i64, tpu.core_type = #tpu.core_type<tc>, window_params = [{transform_indices = @transform_0, window_bounds = array<i64: 512, 256>}, {pipeline_mode = #tpu.pipeline_mode<synchronous>, transform_indices = @transform_1, window_bounds = array<i64: 256, 128>}, {transform_indices = @transform_2, window_bounds = array<i64: 512, 128>}]} {
    %c0 = arith.constant 0 : index
    %c0_0 = arith.constant 0 : index
    %0 = vector.load %arg1[%c0, %c0_0] : memref<512x256xbf16, #tpu.memory_space<vmem>>, vector<512x256xbf16>
    %c0_1 = arith.constant 0 : index
    %c0_2 = arith.constant 0 : index
    %1 = vector.load %arg2[%c0_1, %c0_2] : memref<256x128xbf16, #tpu.memory_space<vmem>>, vector<256x128xbf16>
    %cst = arith.constant dense<0.000000e+00> : vector<512x128xf32>
    %2 = tpu.matmul %0, %1, %cst {dimension_numbers = #tpu.dot_dimension_numbers<[1], [0], [0], [1], [0, 0, 1, 1], [], []>} : vector<512x256xbf16>, vector<256x128xbf16>, vector<512x128xf32> -> vector<512x128xf32>
    %cst_3 = arith.constant 0.000000e+00 : f32
    %3 = vector.broadcast %cst_3 : f32 to vector<512x128xf32>
    %4 = arith.cmpf oge, %2, %3 : vector<512x128xf32>
    %cst_4 = arith.constant 2.000000e-01 : f32
    %5 = vector.broadcast %cst_4 : f32 to vector<512x128xf32>
    %6 = arith.mulf %5, %2 : vector<512x128xf32>
    %7 = arith.select %4, %2, %6 : vector<512x128xi1>, vector<512x128xf32>
    %c0_5 = arith.constant 0 : index
    %c0_6 = arith.constant 0 : index
    %8 = vector.load %arg3[%c0_5, %c0_6] : memref<512x128xf32, #tpu.memory_space<vmem>>, vector<512x128xf32>
    tpu.vector_store %arg3[%c0_5, %c0_6], %7 {strides = array<i32>} : memref<512x128xf32, #tpu.memory_space<vmem>>, vector<512x128xf32>,
    return
  }
  func.func @transform_0(%arg0: i32) -> (i32, i32) {
    %c0_i32 = arith.constant 0 : i32
    %c0_i32_0 = arith.constant 0 : i32
    return %arg0, %c0_i32 : i32, i32
  }
  func.func @transform_1(%arg0: i32) -> (i32, i32) {
    %c0_i32 = arith.constant 0 : i32
    %c0_i32_0 = arith.constant 0 : i32
    %c0_i32_1 = arith.constant 0 : i32
    return %c0_i32, %c0_i32_0 : i32, i32
  }
  func.func @transform_2(%arg0: i32) -> (i32, i32) {
    %c0_i32 = arith.constant 0 : i32
    %c0_i32_0 = arith.constant 0 : i32
    return %arg0, %c0_i32 : i32, i32
  }
}

module attributes {stable_mosaic.version = 11 : i64} {
  func.func @_matmul_lrelu_kernel(%arg0: i32, %arg1: memref<128x512xbf16, #tpu.memory_space<vmem>>, %arg2: memref<512x128xbf16, #tpu.memory_space<vmem>>, %arg3: memref<128x128xf32, #tpu.memory_space<vmem>>) attributes {dimension_semantics = [#tpu.dimension_semantics<parallel>], iteration_bounds = array<i64: 1>, scalar_prefetch = 0 : i64, scratch_operands = 0 : i64, tpu.core_type = #tpu.core_type<tc>, window_params = [{transform_indices = @transform_0, window_bounds = array<i64: 128, 512>}, {pipeline_mode = #tpu.pipeline_mode<synchronous>, transform_indices = @transform_1, window_bounds = array<i64: 512, 128>}, {transform_indices = @transform_2, window_bounds = array<i64: 128, 128>}]} {
    %c0 = arith.constant 0 : index
    %c0_0 = arith.constant 0 : index
    %0 = vector.load %arg1[%c0, %c0_0] : memref<128x512xbf16, #tpu.memory_space<vmem>>, vector<128x512xbf16>
    %c0_1 = arith.constant 0 : index
    %c0_2 = arith.constant 0 : index
    %1 = vector.load %arg2[%c0_1, %c0_2] : memref<512x128xbf16, #tpu.memory_space<vmem>>, vector<512x128xbf16>
    %cst = arith.constant dense<0.000000e+00> : vector<128x128xf32>
    %2 = tpu.matmul %0, %1, %cst {dimension_numbers = #tpu.dot_dimension_numbers<[1], [0], [0], [1], [0, 0, 1, 1], [], []>} : vector<128x512xbf16>, vector<512x128xbf16>, vector<128x128xf32> -> vector<128x128xf32>
    %cst_3 = arith.constant 0.000000e+00 : f32
    %3 = vector.broadcast %cst_3 : f32 to vector<128x128xf32>
    %4 = arith.cmpf oge, %2, %3 : vector<128x128xf32>
    %cst_4 = arith.constant 2.000000e-01 : f32
    %5 = vector.broadcast %cst_4 : f32 to vector<128x128xf32>
    %6 = arith.mulf %5, %2 : vector<128x128xf32>
    %7 = arith.select %4, %2, %6 : vector<128x128xi1>, vector<128x128xf32>
    %c0_5 = arith.constant 0 : index
    %c0_6 = arith.constant 0 : index
    %8 = vector.load %arg3[%c0_5, %c0_6] : memref<128x128xf32, #tpu.memory_space<vmem>>, vector<128x128xf32>
    tpu.vector_store %arg3[%c0_5, %c0_6], %7 {strides = array<i32>} : memref<128x128xf32, #tpu.memory_space<vmem>>, vector<128x128xf32>,
    return
  }
  func.func @transform_0(%arg0: i32) -> (i32, i32) {
    %c0_i32 = arith.constant 0 : i32
    %c0_i32_0 = arith.constant 0 : i32
    return %arg0, %c0_i32 : i32, i32
  }
  func.func @transform_1(%arg0: i32) -> (i32, i32) {
    %c0_i32 = arith.constant 0 : i32
    %c0_i32_0 = arith.constant 0 : i32
    %c0_i32_1 = arith.constant 0 : i32
    return %c0_i32, %c0_i32_0 : i32, i32
  }
  func.func @transform_2(%arg0: i32) -> (i32, i32) {
    %c0_i32 = arith.constant 0 : i32
    %c0_i32_0 = arith.constant 0 : i32
    return %arg0, %c0_i32 : i32, i32
  }
}

module attributes {stable_mosaic.version = 11 : i64} {
  func.func @_matmul_lrelu_kernel(%arg0: i32, %arg1: memref<32x1024xbf16, #tpu.memory_space<vmem>>, %arg2: memref<1024x128xbf16, #tpu.memory_space<vmem>>, %arg3: memref<32x128xf32, #tpu.memory_space<vmem>>) attributes {dimension_semantics = [#tpu.dimension_semantics<parallel>], iteration_bounds = array<i64: 1>, scalar_prefetch = 0 : i64, scratch_operands = 0 : i64, tpu.core_type = #tpu.core_type<tc>, window_params = [{transform_indices = @transform_0, window_bounds = array<i64: 32, 1024>}, {pipeline_mode = #tpu.pipeline_mode<synchronous>, transform_indices = @transform_1, window_bounds = array<i64: 1024, 128>}, {transform_indices = @transform_2, window_bounds = array<i64: 32, 128>}]} {
    %c0 = arith.constant 0 : index
    %c0_0 = arith.constant 0 : index
    %0 = vector.load %arg1[%c0, %c0_0] : memref<32x1024xbf16, #tpu.memory_space<vmem>>, vector<32x1024xbf16>
    %c0_1 = arith.constant 0 : index
    %c0_2 = arith.constant 0 : index
    %1 = vector.load %arg2[%c0_1, %c0_2] : memref<1024x128xbf16, #tpu.memory_space<vmem>>, vector<1024x128xbf16>
    %cst = arith.constant dense<0.000000e+00> : vector<32x128xf32>
    %2 = tpu.matmul %0, %1, %cst {dimension_numbers = #tpu.dot_dimension_numbers<[1], [0], [0], [1], [0, 0, 1, 1], [], []>} : vector<32x1024xbf16>, vector<1024x128xbf16>, vector<32x128xf32> -> vector<32x128xf32>
    %cst_3 = arith.constant 0.000000e+00 : f32
    %3 = vector.broadcast %cst_3 : f32 to vector<32x128xf32>
    %4 = arith.cmpf oge, %2, %3 : vector<32x128xf32>
    %cst_4 = arith.constant 2.000000e-01 : f32
    %5 = vector.broadcast %cst_4 : f32 to vector<32x128xf32>
    %6 = arith.mulf %5, %2 : vector<32x128xf32>
    %7 = arith.select %4, %2, %6 : vector<32x128xi1>, vector<32x128xf32>
    %c0_5 = arith.constant 0 : index
    %c0_6 = arith.constant 0 : index
    %8 = vector.load %arg3[%c0_5, %c0_6] : memref<32x128xf32, #tpu.memory_space<vmem>>, vector<32x128xf32>
    tpu.vector_store %arg3[%c0_5, %c0_6], %7 {strides = array<i32>} : memref<32x128xf32, #tpu.memory_space<vmem>>, vector<32x128xf32>,
    return
  }
  func.func @transform_0(%arg0: i32) -> (i32, i32) {
    %c0_i32 = arith.constant 0 : i32
    %c0_i32_0 = arith.constant 0 : i32
    return %arg0, %c0_i32 : i32, i32
  }
  func.func @transform_1(%arg0: i32) -> (i32, i32) {
    %c0_i32 = arith.constant 0 : i32
    %c0_i32_0 = arith.constant 0 : i32
    %c0_i32_1 = arith.constant 0 : i32
    return %c0_i32, %c0_i32_0 : i32, i32
  }
  func.func @transform_2(%arg0: i32) -> (i32, i32) {
    %c0_i32 = arith.constant 0 : i32
    %c0_i32_0 = arith.constant 0 : i32
    return %arg0, %c0_i32 : i32, i32
  }
}

</mosaic_0001>

<llo_original>
// kernel: critic_forward.5
$region0: #{critic_forward.5}
  #allocation0 [shape = 'u32[]', space=smem, size = 0x4, offset = 0x4, fixed_abs, tag = 'smem constant byte address 0x4 - core index']
  #allocation1 [shape = 'u32[144,128]{1,0:T(1,128)}', space=vmem, size = 0x12000, scoped, tag = 'internal scratch']
  %s0 = inlined_call_operand.vmem [shape: bf16[8192,64], index: 0, kind: input, shape index: {}]
  %s1 = inlined_call_operand.vmem [shape: bf16[64,128], index: 1, kind: input, shape index: {}]
  %s2 = inlined_call_operand.vmem [shape: f32[8192,128], index: 2, kind: output, shape index: {}]
  %s3 = sld [smem:[#allocation0]]
  $region41: #{critic_forward.5} parent=0
    _
  %s5 = ssub.s32 1, %s3
  %s6 = scalar_select 0, %s5, %s3
  loop: start=0, step=1, limit=4
  $region2: #{critic_forward.5} parent=0 // loop_pre_header
    _
  $region3: #{critic_forward.5} parent=0 // loop_header
    %s8 = sphi 0, %s12
    %p9 = scmp.ge.s32.totalorder %s8, 4
    %s18 = sphi 0, %s20
    %s21 = sphi 0, %s18
    %s22 = sphi 0, %s21
    %s38 = sphi 0, %s22
    %s42 = sphi 0, %s42
    %s44 = sphi 0, %s42
    %s45 = sphi 0, %s44
    %s59 = sphi 0, %s45
    %s65 = sphi 0, %s67
    %s68 = sphi 0, %s65
    %s69 = sphi 0, %s68
    %s85 = sphi 0, %s69
  $region4: #{critic_forward.5} parent=0 // loop_header_branch
    %11 = sbr.rel (%p9) target = $region8
  $region5: #{critic_forward.5} parent=0 // loop_body
    %s13 = ssub.s32 %s8, 1
    %s14 = ssub.s32 %s8, 2
    %s15 = sadd.s32 %s8, 1
    %s16 = ssub.s32 %s8, %s15
    %p17 = scmp.eq.s32.totalorder %s16, 0
    %s19 = sadd.s32 %s18, 1
    %s20 = scalar_select %p17, %s18, %s19
    %p23 = pneg %p17
    %p24 = scmp.eq.s32.totalorder %s8, 1
    %p25 = por %p23, %p24
    %p26 = scmp.ne.s32.totalorder %s18, %s21
    %p27 = scmp.eq.s32.totalorder %s8, 0
    %p28 = por %p26, %p27
    %p29 = scmp.ne.s32.totalorder %s18, %s21
    %p30 = scmp.eq.s32.totalorder %s13, 1
    %p31 = por %p29, %p30
    %p32 = scmp.ne.s32.totalorder %s21, %s22
    %p33 = scmp.eq.s32.totalorder %s13, 0
    %p34 = por %p32, %p33
    %p35 = scmp.ne.s32.totalorder %s21, %s22
    %p36 = scmp.eq.s32.totalorder %s14, 1
    %p37 = por %p35, %p36
    %p39 = scmp.ne.s32.totalorder %s22, %s38
    %p40 = scmp.eq.s32.totalorder %s14, 0
    %p41 = por %p39, %p40
    %s43 = sadd.s32 %s42, 1
    %p46 = scmp.eq.s32.totalorder %s8, 1
    %p47 = scmp.ne.s32.totalorder %s42, %s44
    %p48 = scmp.eq.s32.totalorder %s8, 0
    %p49 = por %p47, %p48
    %p50 = scmp.ne.s32.totalorder %s42, %s44
    %p51 = scmp.eq.s32.totalorder %s13, 1
    %p52 = por %p50, %p51
    %p53 = scmp.ne.s32.totalorder %s44, %s45
    %p54 = scmp.eq.s32.totalorder %s13, 0
    %p55 = por %p53, %p54
    %p56 = scmp.ne.s32.totalorder %s44, %s45
    %p57 = scmp.eq.s32.totalorder %s14, 1
    %p58 = por %p56, %p57
    %p60 = scmp.ne.s32.totalorder %s45, %s59
    %p61 = scmp.eq.s32.totalorder %s14, 0
    %p62 = por %p60, %p61
    %s63 = ssub.s32 %s8, %s15
    %p64 = scmp.eq.s32.totalorder %s63, 0
    %s66 = sadd.s32 %s65, 1
    %s67 = scalar_select %p64, %s65, %s66
    %p70 = pneg %p64
    %p71 = scmp.eq.s32.totalorder %s8, 1
    %p72 = por %p70, %p71
    %p73 = scmp.ne.s32.totalorder %s65, %s68
    %p74 = scmp.eq.s32.totalorder %s8, 0
    %p75 = por %p73, %p74
    %p76 = scmp.ne.s32.totalorder %s65, %s68
    %p77 = scmp.eq.s32.totalorder %s13, 1
    %p78 = por %p76, %p77
    %p79 = scmp.ne.s32.totalorder %s68, %s69
    %p80 = scmp.eq.s32.totalorder %s13, 0
    %p81 = por %p79, %p80
    %p82 = scmp.ne.s32.totalorder %s68, %s69
    %p83 = scmp.eq.s32.totalorder %s14, 1
    %p84 = por %p82, %p83
    %p86 = scmp.ne.s32.totalorder %s69, %s85
    %p87 = scmp.eq.s32.totalorder %s14, 0
    %p88 = por %p86, %p87
    %p89 = scmp.le.s32.totalorder 1, %s8
    %p90 = scmp.lt.s32.totalorder %s8, 3
    %p91 = pnand %p89, %p90
    %p92 = pneg %p91
    // Predicated region
    $region9: #{critic_forward.5} parent=5 // pred_check
      _
    $region10: #{critic_forward.5} parent=5 // pred_check_branch
      %94 = sbr.rel (%p91) target = $region12
    $region11: #{critic_forward.5} parent=5 // pred_region
      %s95 = ssub.s32 %s8, 1
      // Predicated region
      $region13: #{critic_forward.5} parent=11 // pred_check
        %p96 = pneg %p55
      $region14: #{critic_forward.5} parent=11 // pred_check_branch
        %98 = sbr.rel (%p96) target = $region16
      $region15: #{critic_forward.5} parent=11 // pred_region
        _
      $region16: #{critic_forward.5} parent=11 // pred_fallthru
        _
    $region12: #{critic_forward.5} parent=5 // pred_fallthru
      _
    %p99 = scmp.lt.s32.totalorder %s8, 2
    // Predicated region
    $region17: #{critic_forward.5} parent=5 // pred_check
      %p100 = pneg %p99
    $region18: #{critic_forward.5} parent=5 // pred_check_branch
      %102 = sbr.rel (%p100) target = $region20
    $region19: #{critic_forward.5} parent=5 // pred_region
      // Predicated region
      $region21: #{critic_forward.5} parent=19 // pred_check
        %p103 = pneg %p28
      $region22: #{critic_forward.5} parent=19 // pred_check_branch
        %105 = sbr.rel (%p103) target = $region24
      $region23: #{critic_forward.5} parent=19 // pred_region
        %s106 = smul.u32 512, %s8
        %p107 = scmp.lt.s32.totalorder %s106, 1023
        %s108 = scalar_select %p107, %s106, 1023
        %s109 = smul.addr %s108, 4
        %s110 = scalar_lea.vmem %s0, %s109
        %s111 = smul.u32 512, %s8
      $region24: #{critic_forward.5} parent=19 // pred_fallthru
        _
    $region20: #{critic_forward.5} parent=5 // pred_fallthru
      _
    %p112 = scmp.le.s32.totalorder 1, %s8
    %p113 = scmp.lt.s32.totalorder %s8, 3
    %p114 = pnand %p112, %p113
    %p115 = pneg %p114
    // Predicated region
    $region25: #{critic_forward.5} parent=5 // pred_check
      _
    $region26: #{critic_forward.5} parent=5 // pred_check_branch
      %117 = sbr.rel (%p114) target = $region28
    $region27: #{critic_forward.5} parent=5 // pred_region
      %s118 = ssub.s32 %s8, 1
      %s119 = smul.u32 512, %s13
      %p120 = scmp.lt.s32.totalorder %s119, 1023
      %s121 = scalar_select %p120, %s119, 1023
      %s122 = smul.addr %s121, 4
      %s123 = scalar_lea.vmem %s0, %s122
      %p124 = pneg %p34
      %p125 = pneg %p31
      %p126 = pneg %p55
      %p127 = pneg %p52
      %p128 = pneg %p81
      %p129 = pneg %p78
      %s130 = smul.u32 512, %s13
      %p131 = scmp.lt.s32.totalorder %s130, 1023
      %s132 = scalar_select %p131, %s130, 1023
      %s133 = smul.addr %s132, 8
      %s134 = scalar_lea.vmem %s2, %s133
      %s135 = smul.u32 512, %s13
      %p136 = scmp.lt.s32.totalorder %s135, 1023
      %s137 = scalar_select %p136, %s135, 1023
      %s138 = smul.addr %s137, 4
      %s139 = scalar_lea.vmem %s0, %s138
      %s140 = smul.u32 512, %s13
      %s141 = smul.u32 512, %s13
      %p142 = scmp.lt.s32.totalorder %s141, 1023
      %s143 = scalar_select %p142, %s141, 1023
      %s144 = smul.addr %s143, 8
      %s145 = scalar_lea.vmem %s2, %s144
      %s146 = smul.u32 512, %s13
      %v148 = vld [vmem:[%s139] sm:$0xf]
      %v149 = vld [vmem:[%s139 + $0x4] sm:$0xf]
      %v150 = vld [vmem:[%s139 + $0x8] sm:$0xf]
      %v151 = vld [vmem:[%s139 + $0xc] sm:$0xf]
      %v152 = vld [vmem:[%s139 + $0x10] sm:$0xf]
      %v153 = vld [vmem:[%s139 + $0x14] sm:$0xf]
      %v154 = vld [vmem:[%s139 + $0x18] sm:$0xf]
      %v155 = vld [vmem:[%s139 + $0x1c] sm:$0xf]
      %v156 = vld [vmem:[%s139 + $0x20] sm:$0xf]
      %v157 = vld [vmem:[%s139 + $0x24] sm:$0xf]
      %v158 = vld [vmem:[%s139 + $0x28] sm:$0xf]
      %v159 = vld [vmem:[%s139 + $0x2c] sm:$0xf]
      %v160 = vld [vmem:[%s139 + $0x30] sm:$0xf]
      %v161 = vld [vmem:[%s139 + $0x34] sm:$0xf]
      %v162 = vld [vmem:[%s139 + $0x38] sm:$0xf]
      %v163 = vld [vmem:[%s139 + $0x3c] sm:$0xf]
      %v164 = vld [vmem:[%s139 + $0x40] sm:$0xf]
      %v165 = vld [vmem:[%s139 + $0x44] sm:$0xf]
      %v166 = vld [vmem:[%s139 + $0x48] sm:$0xf]
      %v167 = vld [vmem:[%s139 + $0x4c] sm:$0xf]
      %v168 = vld [vmem:[%s139 + $0x50] sm:$0xf]
      %v169 = vld [vmem:[%s139 + $0x54] sm:$0xf]
      %v170 = vld [vmem:[%s139 + $0x58] sm:$0xf]
      %v171 = vld [vmem:[%s139 + $0x5c] sm:$0xf]
      %v172 = vld [vmem:[%s139 + $0x60] sm:$0xf]
      %v173 = vld [vmem:[%s139 + $0x64] sm:$0xf]
      %v174 = vld [vmem:[%s139 + $0x68] sm:$0xf]
      %v175 = vld [vmem:[%s139 + $0x6c] sm:$0xf]
      %v176 = vld [vmem:[%s139 + $0x70] sm:$0xf]
      %v177 = vld [vmem:[%s139 + $0x74] sm:$0xf]
      %v178 = vld [vmem:[%s139 + $0x78] sm:$0xf]
      %v179 = vld [vmem:[%s139 + $0x7c] sm:$0xf]
      %v180 = vld [vmem:[%s139 + $0x80] sm:$0xf]
      %v181 = vld [vmem:[%s139 + $0x84] sm:$0xf]
      %v182 = vld [vmem:[%s139 + $0x88] sm:$0xf]
      %v183 = vld [vmem:[%s139 + $0x8c] sm:$0xf]
      %v184 = vld [vmem:[%s139 + $0x90] sm:$0xf]
      %v185 = vld [vmem:[%s139 + $0x94] sm:$0xf]
      %v186 = vld [vmem:[%s139 + $0x98] sm:$0xf]
      %v187 = vld [vmem:[%s139 + $0x9c] sm:$0xf]
      %v188 = vld [vmem:[%s139 + $0xa0] sm:$0xf]
      %v189 = vld [vmem:[%s139 + $0xa4] sm:$0xf]
      %v190 = vld [vmem:[%s139 + $0xa8] sm:$0xf]
      %v191 = vld [vmem:[%s139 + $0xac] sm:$0xf]
      %v192 = vld [vmem:[%s139 + $0xb0] sm:$0xf]
      %v193 = vld [vmem:[%s139 + $0xb4] sm:$0xf]
      %v194 = vld [vmem:[%s139 + $0xb8] sm:$0xf]
      %v195 = vld [vmem:[%s139 + $0xbc] sm:$0xf]
      %v196 = vld [vmem:[%s139 + $0xc0] sm:$0xf]
      %v197 = vld [vmem:[%s139 + $0xc4] sm:$0xf]
      %v198 = vld [vmem:[%s139 + $0xc8] sm:$0xf]
      %v199 = vld [vmem:[%s139 + $0xcc] sm:$0xf]
      %v200 = vld [vmem:[%s139 + $0xd0] sm:$0xf]
      %v201 = vld [vmem:[%s139 + $0xd4] sm:$0xf]
      %v202 = vld [vmem:[%s139 + $0xd8] sm:$0xf]
      %v203 = vld [vmem:[%s139 + $0xdc] sm:$0xf]
      %v204 = vld [vmem:[%s139 + $0xe0] sm:$0xf]
      %v205 = vld [vmem:[%s139 + $0xe4] sm:$0xf]
      %v206 = vld [vmem:[%s139 + $0xe8] sm:$0xf]
      %v207 = vld [vmem:[%s139 + $0xec] sm:$0xf]
      %v208 = vld [vmem:[%s139 + $0xf0] sm:$0xf]
      %v209 = vld [vmem:[%s139 + $0xf4] sm:$0xf]
      %v210 = vld [vmem:[%s139 + $0xf8] sm:$0xf]
      %v211 = vld [vmem:[%s139 + $0xfc] sm:$0xf]
      %v212 = vld [vmem:[%s139 + $0x100] sm:$0xf]
      %v213 = vld [vmem:[%s139 + $0x104] sm:$0xf]
      %v214 = vld [vmem:[%s139 + $0x108] sm:$0xf]
      %v215 = vld [vmem:[%s139 + $0x10c] sm:$0xf]
      %v216 = vld [vmem:[%s139 + $0x110] sm:$0xf]
      %v217 = vld [vmem:[%s139 + $0x114] sm:$0xf]
      %v218 = vld [vmem:[%s139 + $0x118] sm:$0xf]
      %v219 = vld [vmem:[%s139 + $0x11c] sm:$0xf]
      %v220 = vld [vmem:[%s139 + $0x120] sm:$0xf]
      %v221 = vld [vmem:[%s139 + $0x124] sm:$0xf]
      %v222 = vld [vmem:[%s139 + $0x128] sm:$0xf]
      %v223 = vld [vmem:[%s139 + $0x12c] sm:$0xf]
      %v224 = vld [vmem:[%s139 + $0x130] sm:$0xf]
      %v225 = vld [vmem:[%s139 + $0x134] sm:$0xf]
      %v226 = vld [vmem:[%s139 + $0x138] sm:$0xf]
      %v227 = vld [vmem:[%s139 + $0x13c] sm:$0xf]
      %v228 = vld [vmem:[%s139 + $0x140] sm:$0xf]
      %v229 = vld [vmem:[%s139 + $0x144] sm:$0xf]
      %v230 = vld [vmem:[%s139 + $0x148] sm:$0xf]
      %v231 = vld [vmem:[%s139 + $0x14c] sm:$0xf]
      %v232 = vld [vmem:[%s139 + $0x150] sm:$0xf]
      %v233 = vld [vmem:[%s139 + $0x154] sm:$0xf]
      %v234 = vld [vmem:[%s139 + $0x158] sm:$0xf]
      %v235 = vld [vmem:[%s139 + $0x15c] sm:$0xf]
      %v236 = vld [vmem:[%s139 + $0x160] sm:$0xf]
      %v237 = vld [vmem:[%s139 + $0x164] sm:$0xf]
      %v238 = vld [vmem:[%s139 + $0x168] sm:$0xf]
      %v239 = vld [vmem:[%s139 + $0x16c] sm:$0xf]
      %v240 = vld [vmem:[%s139 + $0x170] sm:$0xf]
      %v241 = vld [vmem:[%s139 + $0x174] sm:$0xf]
      %v242 = vld [vmem:[%s139 + $0x178] sm:$0xf]
      %v243 = vld [vmem:[%s139 + $0x17c] sm:$0xf]
      %v244 = vld [vmem:[%s139 + $0x180] sm:$0xf]
      %v245 = vld [vmem:[%s139 + $0x184] sm:$0xf]
      %v246 = vld [vmem:[%s139 + $0x188] sm:$0xf]
      %v247 = vld [vmem:[%s139 + $0x18c] sm:$0xf]
      %v248 = vld [vmem:[%s139 + $0x190] sm:$0xf]
      %v249 = vld [vmem:[%s139 + $0x194] sm:$0xf]
      %v250 = vld [vmem:[%s139 + $0x198] sm:$0xf]
      %v251 = vld [vmem:[%s139 + $0x19c] sm:$0xf]
      %v252 = vld [vmem:[%s139 + $0x1a0] sm:$0xf]
      %v253 = vld [vmem:[%s139 + $0x1a4] sm:$0xf]
      %v254 = vld [vmem:[%s139 + $0x1a8] sm:$0xf]
      %v255 = vld [vmem:[%s139 + $0x1ac] sm:$0xf]
      %v256 = vld [vmem:[%s139 + $0x1b0] sm:$0xf]
      %v257 = vld [vmem:[%s139 + $0x1b4] sm:$0xf]
      %v258 = vld [vmem:[%s139 + $0x1b8] sm:$0xf]
      %v259 = vld [vmem:[%s139 + $0x1bc] sm:$0xf]
      %v260 = vld [vmem:[%s139 + $0x1c0] sm:$0xf]
      %v261 = vld [vmem:[%s139 + $0x1c4] sm:$0xf]
      %v262 = vld [vmem:[%s139 + $0x1c8] sm:$0xf]
      %v263 = vld [vmem:[%s139 + $0x1cc] sm:$0xf]
      %v264 = vld [vmem:[%s139 + $0x1d0] sm:$0xf]
      %v265 = vld [vmem:[%s139 + $0x1d4] sm:$0xf]
      %v266 = vld [vmem:[%s139 + $0x1d8] sm:$0xf]
      %v267 = vld [vmem:[%s139 + $0x1dc] sm:$0xf]
      %v268 = vld [vmem:[%s139 + $0x1e0] sm:$0xf]
      %v269 = vld [vmem:[%s139 + $0x1e4] sm:$0xf]
      %v270 = vld [vmem:[%s139 + $0x1e8] sm:$0xf]
      %v271 = vld [vmem:[%s139 + $0x1ec] sm:$0xf]
      %v272 = vld [vmem:[%s139 + $0x1f0] sm:$0xf]
      %v273 = vld [vmem:[%s139 + $0x1f4] sm:$0xf]
      %v274 = vld [vmem:[%s139 + $0x1f8] sm:$0xf]
      %v275 = vld [vmem:[%s139 + $0x1fc] sm:$0xf]
      %v276 = vld [vmem:[%s139 + $0x200] sm:$0xf]
      %v277 = vld [vmem:[%s139 + $0x204] sm:$0xf]
      %v278 = vld [vmem:[%s139 + $0x208] sm:$0xf]
      %v279 = vld [vmem:[%s139 + $0x20c] sm:$0xf]
      %v280 = vld [vmem:[%s139 + $0x210] sm:$0xf]
      %v281 = vld [vmem:[%s139 + $0x214] sm:$0xf]
      %v282 = vld [vmem:[%s139 + $0x218] sm:$0xf]
      %v283 = vld [vmem:[%s139 + $0x21c] sm:$0xf]
      %v284 = vld [vmem:[%s139 + $0x220] sm:$0xf]
      %v285 = vld [vmem:[%s139 + $0x224] sm:$0xf]
      %v286 = vld [vmem:[%s139 + $0x228] sm:$0xf]
      %v287 = vld [vmem:[%s139 + $0x22c] sm:$0xf]
      %v288 = vld [vmem:[%s139 + $0x230] sm:$0xf]
      %v289 = vld [vmem:[%s139 + $0x234] sm:$0xf]
      %v290 = vld [vmem:[%s139 + $0x238] sm:$0xf]
      %v291 = vld [vmem:[%s139 + $0x23c] sm:$0xf]
      %v292 = vld [vmem:[%s139 + $0x240] sm:$0xf]
      %v293 = vld [vmem:[%s139 + $0x244] sm:$0xf]
      %v294 = vld [vmem:[%s139 + $0x248] sm:$0xf]
      %v295 = vld [vmem:[%s139 + $0x24c] sm:$0xf]
      %v296 = vld [vmem:[%s139 + $0x250] sm:$0xf]
      %v297 = vld [vmem:[%s139 + $0x254] sm:$0xf]
      %v298 = vld [vmem:[%s139 + $0x258] sm:$0xf]
      %v299 = vld [vmem:[%s139 + $0x25c] sm:$0xf]
      %v300 = vld [vmem:[%s139 + $0x260] sm:$0xf]
      %v301 = vld [vmem:[%s139 + $0x264] sm:$0xf]
      %v302 = vld [vmem:[%s139 + $0x268] sm:$0xf]
      %v303 = vld [vmem:[%s139 + $0x26c] sm:$0xf]
      %v304 = vld [vmem:[%s139 + $0x270] sm:$0xf]
      %v305 = vld [vmem:[%s139 + $0x274] sm:$0xf]
      %v306 = vld [vmem:[%s139 + $0x278] sm:$0xf]
      %v307 = vld [vmem:[%s139 + $0x27c] sm:$0xf]
      %v308 = vld [vmem:[%s139 + $0x280] sm:$0xf]
      %v309 = vld [vmem:[%s139 + $0x284] sm:$0xf]
      %v310 = vld [vmem:[%s139 + $0x288] sm:$0xf]
      %v311 = vld [vmem:[%s139 + $0x28c] sm:$0xf]
      %v312 = vld [vmem:[%s139 + $0x290] sm:$0xf]
      %v313 = vld [vmem:[%s139 + $0x294] sm:$0xf]
      %v314 = vld [vmem:[%s139 + $0x298] sm:$0xf]
      %v315 = vld [vmem:[%s139 + $0x29c] sm:$0xf]
      %v316 = vld [vmem:[%s139 + $0x2a0] sm:$0xf]
      %v317 = vld [vmem:[%s139 + $0x2a4] sm:$0xf]
      %v318 = vld [vmem:[%s139 + $0x2a8] sm:$0xf]
      %v319 = vld [vmem:[%s139 + $0x2ac] sm:$0xf]
      %v320 = vld [vmem:[%s139 + $0x2b0] sm:$0xf]
      %v321 = vld [vmem:[%s139 + $0x2b4] sm:$0xf]
      %v322 = vld [vmem:[%s139 + $0x2b8] sm:$0xf]
      %v323 = vld [vmem:[%s139 + $0x2bc] sm:$0xf]
      %v324 = vld [vmem:[%s139 + $0x2c0] sm:$0xf]
      %v325 = vld [vmem:[%s139 + $0x2c4] sm:$0xf]
      %v326 = vld [vmem:[%s139 + $0x2c8] sm:$0xf]
      %v327 = vld [vmem:[%s139 + $0x2cc] sm:$0xf]
      %v328 = vld [vmem:[%s139 + $0x2d0] sm:$0xf]
      %v329 = vld [vmem:[%s139 + $0x2d4] sm:$0xf]
      %v330 = vld [vmem:[%s139 + $0x2d8] sm:$0xf]
      %v331 = vld [vmem:[%s139 + $0x2dc] sm:$0xf]
      %v332 = vld [vmem:[%s139 + $0x2e0] sm:$0xf]
      %v333 = vld [vmem:[%s139 + $0x2e4] sm:$0xf]
      %v334 = vld [vmem:[%s139 + $0x2e8] sm:$0xf]
      %v335 = vld [vmem:[%s139 + $0x2ec] sm:$0xf]
      %v336 = vld [vmem:[%s139 + $0x2f0] sm:$0xf]
      %v337 = vld [vmem:[%s139 + $0x2f4] sm:$0xf]
      %v338 = vld [vmem:[%s139 + $0x2f8] sm:$0xf]
      %v339 = vld [vmem:[%s139 + $0x2fc] sm:$0xf]
      %v340 = vld [vmem:[%s139 + $0x300] sm:$0xf]
      %v341 = vld [vmem:[%s139 + $0x304] sm:$0xf]
      %v342 = vld [vmem:[%s139 + $0x308] sm:$0xf]
      %v343 = vld [vmem:[%s139 + $0x30c] sm:$0xf]
      %v344 = vld [vmem:[%s139 + $0x310] sm:$0xf]
      %v345 = vld [vmem:[%s139 + $0x314] sm:$0xf]
      %v346 = vld [vmem:[%s139 + $0x318] sm:$0xf]
      %v347 = vld [vmem:[%s139 + $0x31c] sm:$0xf]
      %v348 = vld [vmem:[%s139 + $0x320] sm:$0xf]
      %v349 = vld [vmem:[%s139 + $0x324] sm:$0xf]
      %v350 = vld [vmem:[%s139 + $0x328] sm:$0xf]
      %v351 = vld [vmem:[%s139 + $0x32c] sm:$0xf]
      %v352 = vld [vmem:[%s139 + $0x330] sm:$0xf]
      %v353 = vld [vmem:[%s139 + $0x334] sm:$0xf]
      %v354 = vld [vmem:[%s139 + $0x338] sm:$0xf]
      %v355 = vld [vmem:[%s139 + $0x33c] sm:$0xf]
      %v356 = vld [vmem:[%s139 + $0x340] sm:$0xf]
      %v357 = vld [vmem:[%s139 + $0x344] sm:$0xf]
      %v358 = vld [vmem:[%s139 + $0x348] sm:$0xf]
      %v359 = vld [vmem:[%s139 + $0x34c] sm:$0xf]
      %v360 = vld [vmem:[%s139 + $0x350] sm:$0xf]
      %v361 = vld [vmem:[%s139 + $0x354] sm:$0xf]
      %v362 = vld [vmem:[%s139 + $0x358] sm:$0xf]
      %v363 = vld [vmem:[%s139 + $0x35c] sm:$0xf]
      %v364 = vld [vmem:[%s139 + $0x360] sm:$0xf]
      %v365 = vld [vmem:[%s139 + $0x364] sm:$0xf]
      %v366 = vld [vmem:[%s139 + $0x368] sm:$0xf]
      %v367 = vld [vmem:[%s139 + $0x36c] sm:$0xf]
      %v368 = vld [vmem:[%s139 + $0x370] sm:$0xf]
      %v369 = vld [vmem:[%s139 + $0x374] sm:$0xf]
      %v370 = vld [vmem:[%s139 + $0x378] sm:$0xf]
      %v371 = vld [vmem:[%s139 + $0x37c] sm:$0xf]
      %v372 = vld [vmem:[%s139 + $0x380] sm:$0xf]
      %v373 = vld [vmem:[%s139 + $0x384] sm:$0xf]
      %v374 = vld [vmem:[%s139 + $0x388] sm:$0xf]
      %v375 = vld [vmem:[%s139 + $0x38c] sm:$0xf]
      %v376 = vld [vmem:[%s139 + $0x390] sm:$0xf]
      %v377 = vld [vmem:[%s139 + $0x394] sm:$0xf]
      %v378 = vld [vmem:[%s139 + $0x398] sm:$0xf]
      %v379 = vld [vmem:[%s139 + $0x39c] sm:$0xf]
      %v380 = vld [vmem:[%s139 + $0x3a0] sm:$0xf]
      %v381 = vld [vmem:[%s139 + $0x3a4] sm:$0xf]
      %v382 = vld [vmem:[%s139 + $0x3a8] sm:$0xf]
      %v383 = vld [vmem:[%s139 + $0x3ac] sm:$0xf]
      %v384 = vld [vmem:[%s139 + $0x3b0] sm:$0xf]
      %v385 = vld [vmem:[%s139 + $0x3b4] sm:$0xf]
      %v386 = vld [vmem:[%s139 + $0x3b8] sm:$0xf]
      %v387 = vld [vmem:[%s139 + $0x3bc] sm:$0xf]
      %v388 = vld [vmem:[%s139 + $0x3c0] sm:$0xf]
      %v389 = vld [vmem:[%s139 + $0x3c4] sm:$0xf]
      %v390 = vld [vmem:[%s139 + $0x3c8] sm:$0xf]
      %v391 = vld [vmem:[%s139 + $0x3cc] sm:$0xf]
      %v392 = vld [vmem:[%s139 + $0x3d0] sm:$0xf]
      %v393 = vld [vmem:[%s139 + $0x3d4] sm:$0xf]
      %v394 = vld [vmem:[%s139 + $0x3d8] sm:$0xf]
      %v395 = vld [vmem:[%s139 + $0x3dc] sm:$0xf]
      %v396 = vld [vmem:[%s139 + $0x3e0] sm:$0xf]
      %v397 = vld [vmem:[%s139 + $0x3e4] sm:$0xf]
      %v398 = vld [vmem:[%s139 + $0x3e8] sm:$0xf]
      %v399 = vld [vmem:[%s139 + $0x3ec] sm:$0xf]
      %v400 = vld [vmem:[%s139 + $0x3f0] sm:$0xf]
      %v401 = vld [vmem:[%s139 + $0x3f4] sm:$0xf]
      %v402 = vld [vmem:[%s139 + $0x3f8] sm:$0xf]
      %v403 = vld [vmem:[%s139 + $0x3fc] sm:$0xf]
      %v404 = vld [vmem:[%s139 + $0x400] sm:$0xf]
      %v405 = vld [vmem:[%s139 + $0x404] sm:$0xf]
      %v406 = vld [vmem:[%s139 + $0x408] sm:$0xf]
      %v407 = vld [vmem:[%s139 + $0x40c] sm:$0xf]
      %v408 = vld [vmem:[%s139 + $0x410] sm:$0xf]
      %v409 = vld [vmem:[%s139 + $0x414] sm:$0xf]
      %v410 = vld [vmem:[%s139 + $0x418] sm:$0xf]
      %v411 = vld [vmem:[%s139 + $0x41c] sm:$0xf]
      %v412 = vld [vmem:[%s139 + $0x420] sm:$0xf]
      %v413 = vld [vmem:[%s139 + $0x424] sm:$0xf]
      %v414 = vld [vmem:[%s139 + $0x428] sm:$0xf]
      %v415 = vld [vmem:[%s139 + $0x42c] sm:$0xf]
      %v416 = vld [vmem:[%s139 + $0x430] sm:$0xf]
      %v417 = vld [vmem:[%s139 + $0x434] sm:$0xf]
      %v418 = vld [vmem:[%s139 + $0x438] sm:$0xf]
      %v419 = vld [vmem:[%s139 + $0x43c] sm:$0xf]
      %v420 = vld [vmem:[%s139 + $0x440] sm:$0xf]
      %v421 = vld [vmem:[%s139 + $0x444] sm:$0xf]
      %v422 = vld [vmem:[%s139 + $0x448] sm:$0xf]
      %v423 = vld [vmem:[%s139 + $0x44c] sm:$0xf]
      %v424 = vld [vmem:[%s139 + $0x450] sm:$0xf]
      %v425 = vld [vmem:[%s139 + $0x454] sm:$0xf]
      %v426 = vld [vmem:[%s139 + $0x458] sm:$0xf]
      %v427 = vld [vmem:[%s139 + $0x45c] sm:$0xf]
      %v428 = vld [vmem:[%s139 + $0x460] sm:$0xf]
      %v429 = vld [vmem:[%s139 + $0x464] sm:$0xf]
      %v430 = vld [vmem:[%s139 + $0x468] sm:$0xf]
      %v431 = vld [vmem:[%s139 + $0x46c] sm:$0xf]
      %v432 = vld [vmem:[%s139 + $0x470] sm:$0xf]
      %v433 = vld [vmem:[%s139 + $0x474] sm:$0xf]
      %v434 = vld [vmem:[%s139 + $0x478] sm:$0xf]
      %v435 = vld [vmem:[%s139 + $0x47c] sm:$0xf]
      %v436 = vld [vmem:[%s139 + $0x480] sm:$0xf]
      %v437 = vld [vmem:[%s139 + $0x484] sm:$0xf]
      %v438 = vld [vmem:[%s139 + $0x488] sm:$0xf]
      %v439 = vld [vmem:[%s139 + $0x48c] sm:$0xf]
      %v440 = vld [vmem:[%s139 + $0x490] sm:$0xf]
      %v441 = vld [vmem:[%s139 + $0x494] sm:$0xf]
      %v442 = vld [vmem:[%s139 + $0x498] sm:$0xf]
      %v443 = vld [vmem:[%s139 + $0x49c] sm:$0xf]
      %v444 = vld [vmem:[%s139 + $0x4a0] sm:$0xf]
      %v445 = vld [vmem:[%s139 + $0x4a4] sm:$0xf]
      %v446 = vld [vmem:[%s139 + $0x4a8] sm:$0xf]
      %v447 = vld [vmem:[%s139 + $0x4ac] sm:$0xf]
      %v448 = vld [vmem:[%s139 + $0x4b0] sm:$0xf]
      %v449 = vld [vmem:[%s139 + $0x4b4] sm:$0xf]
      %v450 = vld [vmem:[%s139 + $0x4b8] sm:$0xf]
      %v451 = vld [vmem:[%s139 + $0x4bc] sm:$0xf]
      %v452 = vld [vmem:[%s139 + $0x4c0] sm:$0xf]
      %v453 = vld [vmem:[%s139 + $0x4c4] sm:$0xf]
      %v454 = vld [vmem:[%s139 + $0x4c8] sm:$0xf]
      %v455 = vld [vmem:[%s139 + $0x4cc] sm:$0xf]
      %v456 = vld [vmem:[%s139 + $0x4d0] sm:$0xf]
      %v457 = vld [vmem:[%s139 + $0x4d4] sm:$0xf]
      %v458 = vld [vmem:[%s139 + $0x4d8] sm:$0xf]
      %v459 = vld [vmem:[%s139 + $0x4dc] sm:$0xf]
      %v460 = vld [vmem:[%s139 + $0x4e0] sm:$0xf]
      %v461 = vld [vmem:[%s139 + $0x4e4] sm:$0xf]
      %v462 = vld [vmem:[%s139 + $0x4e8] sm:$0xf]
      %v463 = vld [vmem:[%s139 + $0x4ec] sm:$0xf]
      %v464 = vld [vmem:[%s139 + $0x4f0] sm:$0xf]
      %v465 = vld [vmem:[%s139 + $0x4f4] sm:$0xf]
      %v466 = vld [vmem:[%s139 + $0x4f8] sm:$0xf]
      %v467 = vld [vmem:[%s139 + $0x4fc] sm:$0xf]
      %v468 = vld [vmem:[%s139 + $0x500] sm:$0xf]
      %v469 = vld [vmem:[%s139 + $0x504] sm:$0xf]
      %v470 = vld [vmem:[%s139 + $0x508] sm:$0xf]
      %v471 = vld [vmem:[%s139 + $0x50c] sm:$0xf]
      %v472 = vld [vmem:[%s139 + $0x510] sm:$0xf]
      %v473 = vld [vmem:[%s139 + $0x514] sm:$0xf]
      %v474 = vld [vmem:[%s139 + $0x518] sm:$0xf]
      %v475 = vld [vmem:[%s139 + $0x51c] sm:$0xf]
      %v476 = vld [vmem:[%s139 + $0x520] sm:$0xf]
      %v477 = vld [vmem:[%s139 + $0x524] sm:$0xf]
      %v478 = vld [vmem:[%s139 + $0x528] sm:$0xf]
      %v479 = vld [vmem:[%s139 + $0x52c] sm:$0xf]
      %v480 = vld [vmem:[%s139 + $0x530] sm:$0xf]
      %v481 = vld [vmem:[%s139 + $0x534] sm:$0xf]
      %v482 = vld [vmem:[%s139 + $0x538] sm:$0xf]
      %v483 = vld [vmem:[%s139 + $0x53c] sm:$0xf]
      %v484 = vld [vmem:[%s139 + $0x540] sm:$0xf]
      %v485 = vld [vmem:[%s139 + $0x544] sm:$0xf]
      %v486 = vld [vmem:[%s139 + $0x548] sm:$0xf]
      %v487 = vld [vmem:[%s139 + $0x54c] sm:$0xf]
      %v488 = vld [vmem:[%s139 + $0x550] sm:$0xf]
      %v489 = vld [vmem:[%s139 + $0x554] sm:$0xf]
      %v490 = vld [vmem:[%s139 + $0x558] sm:$0xf]
      %v491 = vld [vmem:[%s139 + $0x55c] sm:$0xf]
      %v492 = vld [vmem:[%s139 + $0x560] sm:$0xf]
      %v493 = vld [vmem:[%s139 + $0x564] sm:$0xf]
      %v494 = vld [vmem:[%s139 + $0x568] sm:$0xf]
      %v495 = vld [vmem:[%s139 + $0x56c] sm:$0xf]
      %v496 = vld [vmem:[%s139 + $0x570] sm:$0xf]
      %v497 = vld [vmem:[%s139 + $0x574] sm:$0xf]
      %v498 = vld [vmem:[%s139 + $0x578] sm:$0xf]
      %v499 = vld [vmem:[%s139 + $0x57c] sm:$0xf]
      %v500 = vld [vmem:[%s139 + $0x580] sm:$0xf]
      %v501 = vld [vmem:[%s139 + $0x584] sm:$0xf]
      %v502 = vld [vmem:[%s139 + $0x588] sm:$0xf]
      %v503 = vld [vmem:[%s139 + $0x58c] sm:$0xf]
      %v504 = vld [vmem:[%s139 + $0x590] sm:$0xf]
      %v505 = vld [vmem:[%s139 + $0x594] sm:$0xf]
      %v506 = vld [vmem:[%s139 + $0x598] sm:$0xf]
      %v507 = vld [vmem:[%s139 + $0x59c] sm:$0xf]
      %v508 = vld [vmem:[%s139 + $0x5a0] sm:$0xf]
      %v509 = vld [vmem:[%s139 + $0x5a4] sm:$0xf]
      %v510 = vld [vmem:[%s139 + $0x5a8] sm:$0xf]
      %v511 = vld [vmem:[%s139 + $0x5ac] sm:$0xf]
      %v512 = vld [vmem:[%s139 + $0x5b0] sm:$0xf]
      %v513 = vld [vmem:[%s139 + $0x5b4] sm:$0xf]
      %v514 = vld [vmem:[%s139 + $0x5b8] sm:$0xf]
      %v515 = vld [vmem:[%s139 + $0x5bc] sm:$0xf]
      %v516 = vld [vmem:[%s139 + $0x5c0] sm:$0xf]
      %v517 = vld [vmem:[%s139 + $0x5c4] sm:$0xf]
      %v518 = vld [vmem:[%s139 + $0x5c8] sm:$0xf]
      %v519 = vld [vmem:[%s139 + $0x5cc] sm:$0xf]
      %v520 = vld [vmem:[%s139 + $0x5d0] sm:$0xf]
      %v521 = vld [vmem:[%s139 + $0x5d4] sm:$0xf]
      %v522 = vld [vmem:[%s139 + $0x5d8] sm:$0xf]
      %v523 = vld [vmem:[%s139 + $0x5dc] sm:$0xf]
      %v524 = vld [vmem:[%s139 + $0x5e0] sm:$0xf]
      %v525 = vld [vmem:[%s139 + $0x5e4] sm:$0xf]
      %v526 = vld [vmem:[%s139 + $0x5e8] sm:$0xf]
      %v527 = vld [vmem:[%s139 + $0x5ec] sm:$0xf]
      %v528 = vld [vmem:[%s139 + $0x5f0] sm:$0xf]
      %v529 = vld [vmem:[%s139 + $0x5f4] sm:$0xf]
      %v530 = vld [vmem:[%s139 + $0x5f8] sm:$0xf]
      %v531 = vld [vmem:[%s139 + $0x5fc] sm:$0xf]
      %v532 = vld [vmem:[%s139 + $0x600] sm:$0xf]
      %v533 = vld [vmem:[%s139 + $0x604] sm:$0xf]
      %v534 = vld [vmem:[%s139 + $0x608] sm:$0xf]
      %v535 = vld [vmem:[%s139 + $0x60c] sm:$0xf]
      %v536 = vld [vmem:[%s139 + $0x610] sm:$0xf]
      %v537 = vld [vmem:[%s139 + $0x614] sm:$0xf]
      %v538 = vld [vmem:[%s139 + $0x618] sm:$0xf]
      %v539 = vld [vmem:[%s139 + $0x61c] sm:$0xf]
      %v540 = vld [vmem:[%s139 + $0x620] sm:$0xf]
      %v541 = vld [vmem:[%s139 + $0x624] sm:$0xf]
      %v542 = vld [vmem:[%s139 + $0x628] sm:$0xf]
      %v543 = vld [vmem:[%s139 + $0x62c] sm:$0xf]
      %v544 = vld [vmem:[%s139 + $0x630] sm:$0xf]
      %v545 = vld [vmem:[%s139 + $0x634] sm:$0xf]
      %v546 = vld [vmem:[%s139 + $0x638] sm:$0xf]
      %v547 = vld [vmem:[%s139 + $0x63c] sm:$0xf]
      %v548 = vld [vmem:[%s139 + $0x640] sm:$0xf]
      %v549 = vld [vmem:[%s139 + $0x644] sm:$0xf]
      %v550 = vld [vmem:[%s139 + $0x648] sm:$0xf]
      %v551 = vld [vmem:[%s139 + $0x64c] sm:$0xf]
      %v552 = vld [vmem:[%s139 + $0x650] sm:$0xf]
      %v553 = vld [vmem:[%s139 + $0x654] sm:$0xf]
      %v554 = vld [vmem:[%s139 + $0x658] sm:$0xf]
      %v555 = vld [vmem:[%s139 + $0x65c] sm:$0xf]
      %v556 = vld [vmem:[%s139 + $0x660] sm:$0xf]
      %v557 = vld [vmem:[%s139 + $0x664] sm:$0xf]
      %v558 = vld [vmem:[%s139 + $0x668] sm:$0xf]
      %v559 = vld [vmem:[%s139 + $0x66c] sm:$0xf]
      %v560 = vld [vmem:[%s139 + $0x670] sm:$0xf]
      %v561 = vld [vmem:[%s139 + $0x674] sm:$0xf]
      %v562 = vld [vmem:[%s139 + $0x678] sm:$0xf]
      %v563 = vld [vmem:[%s139 + $0x67c] sm:$0xf]
      %v564 = vld [vmem:[%s139 + $0x680] sm:$0xf]
      %v565 = vld [vmem:[%s139 + $0x684] sm:$0xf]
      %v566 = vld [vmem:[%s139 + $0x688] sm:$0xf]
      %v567 = vld [vmem:[%s139 + $0x68c] sm:$0xf]
      %v568 = vld [vmem:[%s139 + $0x690] sm:$0xf]
      %v569 = vld [vmem:[%s139 + $0x694] sm:$0xf]
      %v570 = vld [vmem:[%s139 + $0x698] sm:$0xf]
      %v571 = vld [vmem:[%s139 + $0x69c] sm:$0xf]
      %v572 = vld [vmem:[%s139 + $0x6a0] sm:$0xf]
      %v573 = vld [vmem:[%s139 + $0x6a4] sm:$0xf]
      %v574 = vld [vmem:[%s139 + $0x6a8] sm:$0xf]
      %v575 = vld [vmem:[%s139 + $0x6ac] sm:$0xf]
      %v576 = vld [vmem:[%s139 + $0x6b0] sm:$0xf]
      %v577 = vld [vmem:[%s139 + $0x6b4] sm:$0xf]
      %v578 = vld [vmem:[%s139 + $0x6b8] sm:$0xf]
      %v579 = vld [vmem:[%s139 + $0x6bc] sm:$0xf]
      %v580 = vld [vmem:[%s139 + $0x6c0] sm:$0xf]
      %v581 = vld [vmem:[%s139 + $0x6c4] sm:$0xf]
      %v582 = vld [vmem:[%s139 + $0x6c8] sm:$0xf]
      %v583 = vld [vmem:[%s139 + $0x6cc] sm:$0xf]
      %v584 = vld [vmem:[%s139 + $0x6d0] sm:$0xf]
      %v585 = vld [vmem:[%s139 + $0x6d4] sm:$0xf]
      %v586 = vld [vmem:[%s139 + $0x6d8] sm:$0xf]
      %v587 = vld [vmem:[%s139 + $0x6dc] sm:$0xf]
      %v588 = vld [vmem:[%s139 + $0x6e0] sm:$0xf]
      %v589 = vld [vmem:[%s139 + $0x6e4] sm:$0xf]
      %v590 = vld [vmem:[%s139 + $0x6e8] sm:$0xf]
      %v591 = vld [vmem:[%s139 + $0x6ec] sm:$0xf]
      %v592 = vld [vmem:[%s139 + $0x6f0] sm:$0xf]
      %v593 = vld [vmem:[%s139 + $0x6f4] sm:$0xf]
      %v594 = vld [vmem:[%s139 + $0x6f8] sm:$0xf]
      %v595 = vld [vmem:[%s139 + $0x6fc] sm:$0xf]
      %v596 = vld [vmem:[%s139 + $0x700] sm:$0xf]
      %v597 = vld [vmem:[%s139 + $0x704] sm:$0xf]
      %v598 = vld [vmem:[%s139 + $0x708] sm:$0xf]
      %v599 = vld [vmem:[%s139 + $0x70c] sm:$0xf]
      %v600 = vld [vmem:[%s139 + $0x710] sm:$0xf]
      %v601 = vld [vmem:[%s139 + $0x714] sm:$0xf]
      %v602 = vld [vmem:[%s139 + $0x718] sm:$0xf]
      %v603 = vld [vmem:[%s139 + $0x71c] sm:$0xf]
      %v604 = vld [vmem:[%s139 + $0x720] sm:$0xf]
      %v605 = vld [vmem:[%s139 + $0x724] sm:$0xf]
      %v606 = vld [vmem:[%s139 + $0x728] sm:$0xf]
      %v607 = vld [vmem:[%s139 + $0x72c] sm:$0xf]
      %v608 = vld [vmem:[%s139 + $0x730] sm:$0xf]
      %v609 = vld [vmem:[%s139 + $0x734] sm:$0xf]
      %v610 = vld [vmem:[%s139 + $0x738] sm:$0xf]
      %v611 = vld [vmem:[%s139 + $0x73c] sm:$0xf]
      %v612 = vld [vmem:[%s139 + $0x740] sm:$0xf]
      %v613 = vld [vmem:[%s139 + $0x744] sm:$0xf]
      %v614 = vld [vmem:[%s139 + $0x748] sm:$0xf]
      %v615 = vld [vmem:[%s139 + $0x74c] sm:$0xf]
      %v616 = vld [vmem:[%s139 + $0x750] sm:$0xf]
      %v617 = vld [vmem:[%s139 + $0x754] sm:$0xf]
      %v618 = vld [vmem:[%s139 + $0x758] sm:$0xf]
      %v619 = vld [vmem:[%s139 + $0x75c] sm:$0xf]
      %v620 = vld [vmem:[%s139 + $0x760] sm:$0xf]
      %v621 = vld [vmem:[%s139 + $0x764] sm:$0xf]
      %v622 = vld [vmem:[%s139 + $0x768] sm:$0xf]
      %v623 = vld [vmem:[%s139 + $0x76c] sm:$0xf]
      %v624 = vld [vmem:[%s139 + $0x770] sm:$0xf]
      %v625 = vld [vmem:[%s139 + $0x774] sm:$0xf]
      %v626 = vld [vmem:[%s139 + $0x778] sm:$0xf]
      %v627 = vld [vmem:[%s139 + $0x77c] sm:$0xf]
      %v628 = vld [vmem:[%s139 + $0x780] sm:$0xf]
      %v629 = vld [vmem:[%s139 + $0x784] sm:$0xf]
      %v630 = vld [vmem:[%s139 + $0x788] sm:$0xf]
      %v631 = vld [vmem:[%s139 + $0x78c] sm:$0xf]
      %v632 = vld [vmem:[%s139 + $0x790] sm:$0xf]
      %v633 = vld [vmem:[%s139 + $0x794] sm:$0xf]
      %v634 = vld [vmem:[%s139 + $0x798] sm:$0xf]
      %v635 = vld [vmem:[%s139 + $0x79c] sm:$0xf]
      %v636 = vld [vmem:[%s139 + $0x7a0] sm:$0xf]
      %v637 = vld [vmem:[%s139 + $0x7a4] sm:$0xf]
      %v638 = vld [vmem:[%s139 + $0x7a8] sm:$0xf]
      %v639 = vld [vmem:[%s139 + $0x7ac] sm:$0xf]
      %v640 = vld [vmem:[%s139 + $0x7b0] sm:$0xf]
      %v641 = vld [vmem:[%s139 + $0x7b4] sm:$0xf]
      %v642 = vld [vmem:[%s139 + $0x7b8] sm:$0xf]
      %v643 = vld [vmem:[%s139 + $0x7bc] sm:$0xf]
      %v644 = vld [vmem:[%s139 + $0x7c0] sm:$0xf]
      %v645 = vld [vmem:[%s139 + $0x7c4] sm:$0xf]
      %v646 = vld [vmem:[%s139 + $0x7c8] sm:$0xf]
      %v647 = vld [vmem:[%s139 + $0x7cc] sm:$0xf]
      %v648 = vld [vmem:[%s139 + $0x7d0] sm:$0xf]
      %v649 = vld [vmem:[%s139 + $0x7d4] sm:$0xf]
      %v650 = vld [vmem:[%s139 + $0x7d8] sm:$0xf]
      %v651 = vld [vmem:[%s139 + $0x7dc] sm:$0xf]
      %v652 = vld [vmem:[%s139 + $0x7e0] sm:$0xf]
      %v653 = vld [vmem:[%s139 + $0x7e4] sm:$0xf]
      %v654 = vld [vmem:[%s139 + $0x7e8] sm:$0xf]
      %v655 = vld [vmem:[%s139 + $0x7ec] sm:$0xf]
      %v656 = vld [vmem:[%s139 + $0x7f0] sm:$0xf]
      %v657 = vld [vmem:[%s139 + $0x7f4] sm:$0xf]
      %v658 = vld [vmem:[%s139 + $0x7f8] sm:$0xf]
      %v659 = vld [vmem:[%s139 + $0x7fc] sm:$0xf]
      %v660 = vld [vmem:[%s1] sm:$0xf]
      %v661 = vld [vmem:[%s1 + $0x4] sm:$0xf]
      %v662 = vld [vmem:[%s1 + $0x8] sm:$0xf]
      %v663 = vld [vmem:[%s1 + $0xc] sm:$0xf]
      %v664 = vld [vmem:[%s1 + $0x10] sm:$0xf]
      %v665 = vld [vmem:[%s1 + $0x14] sm:$0xf]
      %v666 = vld [vmem:[%s1 + $0x18] sm:$0xf]
      %v667 = vld [vmem:[%s1 + $0x1c] sm:$0xf]
      %v1180 = vunpack.c.l.b16 %v148
      %v1181 = vunpack.c.l.b16 %v149
      %v1182 = vunpack.c.l.b16 %v150
      %v1183 = vunpack.c.l.b16 %v151
      %v1184 = vunpack.c.l.b16 %v152
      %v1185 = vunpack.c.l.b16 %v153
      %v1186 = vunpack.c.l.b16 %v154
      %v1187 = vunpack.c.l.b16 %v155
      %v1188 = vunpack.c.l.b16 %v156
      %v1189 = vunpack.c.l.b16 %v157
      %v1190 = vunpack.c.l.b16 %v158
      %v1191 = vunpack.c.l.b16 %v159
      %v1192 = vunpack.c.l.b16 %v160
      %v1193 = vunpack.c.l.b16 %v161
      %v1194 = vunpack.c.l.b16 %v162
      %v1195 = vunpack.c.l.b16 %v163
      %v1196 = vunpack.c.l.b16 %v164
      %v1197 = vunpack.c.l.b16 %v165
      %v1198 = vunpack.c.l.b16 %v166
      %v1199 = vunpack.c.l.b16 %v167
      %v1200 = vunpack.c.l.b16 %v168
      %v1201 = vunpack.c.l.b16 %v169
      %v1202 = vunpack.c.l.b16 %v170
      %v1203 = vunpack.c.l.b16 %v171
      %v1204 = vunpack.c.l.b16 %v172
      %v1205 = vunpack.c.l.b16 %v173
      %v1206 = vunpack.c.l.b16 %v174
      %v1207 = vunpack.c.l.b16 %v175
      %v1208 = vunpack.c.l.b16 %v176
      %v1209 = vunpack.c.l.b16 %v177
      %v1210 = vunpack.c.l.b16 %v178
      %v1211 = vunpack.c.l.b16 %v179
      %v1212 = vunpack.c.l.b16 %v180
      %v1213 = vunpack.c.l.b16 %v181
      %v1214 = vunpack.c.l.b16 %v182
      %v1215 = vunpack.c.l.b16 %v183
      %v1216 = vunpack.c.l.b16 %v184
      %v1217 = vunpack.c.l.b16 %v185
      %v1218 = vunpack.c.l.b16 %v186
      %v1219 = vunpack.c.l.b16 %v187
      %v1220 = vunpack.c.l.b16 %v188
      %v1221 = vunpack.c.l.b16 %v189
      %v1222 = vunpack.c.l.b16 %v190
      %v1223 = vunpack.c.l.b16 %v191
      %v1224 = vunpack.c.l.b16 %v192
      %v1225 = vunpack.c.l.b16 %v193
      %v1226 = vunpack.c.l.b16 %v194
      %v1227 = vunpack.c.l.b16 %v195
      %v1228 = vunpack.c.l.b16 %v196
      %v1229 = vunpack.c.l.b16 %v197
      %v1230 = vunpack.c.l.b16 %v198
      %v1231 = vunpack.c.l.b16 %v199
      %v1232 = vunpack.c.l.b16 %v200
      %v1233 = vunpack.c.l.b16 %v201
      %v1234 = vunpack.c.l.b16 %v202
      %v1235 = vunpack.c.l.b16 %v203
      %v1236 = vunpack.c.l.b16 %v204
      %v1237 = vunpack.c.l.b16 %v205
      %v1238 = vunpack.c.l.b16 %v206
      %v1239 = vunpack.c.l.b16 %v207
      %v1240 = vunpack.c.l.b16 %v208
      %v1241 = vunpack.c.l.b16 %v209
      %v1242 = vunpack.c.l.b16 %v210
      %v1243 = vunpack.c.l.b16 %v211
      %v1244 = vunpack.c.l.b16 %v212
      %v1245 = vunpack.c.l.b16 %v213
      %v1246 = vunpack.c.l.b16 %v214
      %v1247 = vunpack.c.l.b16 %v215
      %v1248 = vunpack.c.l.b16 %v216
      %v1249 = vunpack.c.l.b16 %v217
      %v1250 = vunpack.c.l.b16 %v218
      %v1251 = vunpack.c.l.b16 %v219
      %v1252 = vunpack.c.l.b16 %v220
      %v1253 = vunpack.c.l.b16 %v221
      %v1254 = vunpack.c.l.b16 %v222
      %v1255 = vunpack.c.l.b16 %v223
      %v1256 = vunpack.c.l.b16 %v224
      %v1257 = vunpack.c.l.b16 %v225
      %v1258 = vunpack.c.l.b16 %v226
      %v1259 = vunpack.c.l.b16 %v227
      %v1260 = vunpack.c.l.b16 %v228
      %v1261 = vunpack.c.l.b16 %v229
      %v1262 = vunpack.c.l.b16 %v230
      %v1263 = vunpack.c.l.b16 %v231
      %v1264 = vunpack.c.l.b16 %v232
      %v1265 = vunpack.c.l.b16 %v233
      %v1266 = vunpack.c.l.b16 %v234
      %v1267 = vunpack.c.l.b16 %v235
      %v1268 = vunpack.c.l.b16 %v236
      %v1269 = vunpack.c.l.b16 %v237
      %v1270 = vunpack.c.l.b16 %v238
      %v1271 = vunpack.c.l.b16 %v239
      %v1272 = vunpack.c.l.b16 %v240
      %v1273 = vunpack.c.l.b16 %v241
      %v1274 = vunpack.c.l.b16 %v242
      %v1275 = vunpack.c.l.b16 %v243
      %v1276 = vunpack.c.l.b16 %v244
      %v1277 = vunpack.c.l.b16 %v245
      %v1278 = vunpack.c.l.b16 %v246
      %v1279 = vunpack.c.l.b16 %v247
      %v1280 = vunpack.c.l.b16 %v248
      %v1281 = vunpack.c.l.b16 %v249
      %v1282 = vunpack.c.l.b16 %v250
      %v1283 = vunpack.c.l.b16 %v251
      %v1284 = vunpack.c.l.b16 %v252
      %v1285 = vunpack.c.l.b16 %v253
      %v1286 = vunpack.c.l.b16 %v254
      %v1287 = vunpack.c.l.b16 %v255
      %v1288 = vunpack.c.l.b16 %v256
      %v1289 = vunpack.c.l.b16 %v257
      %v1290 = vunpack.c.l.b16 %v258
      %v1291 = vunpack.c.l.b16 %v259
      %v1292 = vunpack.c.l.b16 %v260
      %v1293 = vunpack.c.l.b16 %v261
      %v1294 = vunpack.c.l.b16 %v262
      %v1295 = vunpack.c.l.b16 %v263
      %v1296 = vunpack.c.l.b16 %v264
      %v1297 = vunpack.c.l.b16 %v265
      %v1298 = vunpack.c.l.b16 %v266
      %v1299 = vunpack.c.l.b16 %v267
      %v1300 = vunpack.c.l.b16 %v268
      %v1301 = vunpack.c.l.b16 %v269
      %v1302 = vunpack.c.l.b16 %v270
      %v1303 = vunpack.c.l.b16 %v271
      %v1304 = vunpack.c.l.b16 %v272
      %v1305 = vunpack.c.l.b16 %v273
      %v1306 = vunpack.c.l.b16 %v274
      %v1307 = vunpack.c.l.b16 %v275
      %v1308 = vunpack.c.l.b16 %v276
      %v1309 = vunpack.c.l.b16 %v277
      %v1310 = vunpack.c.l.b16 %v278
      %v1311 = vunpack.c.l.b16 %v279
      %v1312 = vunpack.c.l.b16 %v280
      %v1313 = vunpack.c.l.b16 %v281
      %v1314 = vunpack.c.l.b16 %v282
      %v1315 = vunpack.c.l.b16 %v283
      %v1316 = vunpack.c.l.b16 %v284
      %v1317 = vunpack.c.l.b16 %v285
      %v1318 = vunpack.c.l.b16 %v286
      %v1319 = vunpack.c.l.b16 %v287
      %v1320 = vunpack.c.l.b16 %v288
      %v1321 = vunpack.c.l.b16 %v289
      %v1322 = vunpack.c.l.b16 %v290
      %v1323 = vunpack.c.l.b16 %v291
      %v1324 = vunpack.c.l.b16 %v292
      %v1325 = vunpack.c.l.b16 %v293
      %v1326 = vunpack.c.l.b16 %v294
      %v1327 = vunpack.c.l.b16 %v295
      %v1328 = vunpack.c.l.b16 %v296
      %v1329 = vunpack.c.l.b16 %v297
      %v1330 = vunpack.c.l.b16 %v298
      %v1331 = vunpack.c.l.b16 %v299
      %v1332 = vunpack.c.l.b16 %v300
      %v1333 = vunpack.c.l.b16 %v301
      %v1334 = vunpack.c.l.b16 %v302
      %v1335 = vunpack.c.l.b16 %v303
      %v1336 = vunpack.c.l.b16 %v304
      %v1337 = vunpack.c.l.b16 %v305
      %v1338 = vunpack.c.l.b16 %v306
      %v1339 = vunpack.c.l.b16 %v307
      %v1340 = vunpack.c.l.b16 %v308
      %v1341 = vunpack.c.l.b16 %v309
      %v1342 = vunpack.c.l.b16 %v310
      %v1343 = vunpack.c.l.b16 %v311
      %v1344 = vunpack.c.l.b16 %v312
      %v1345 = vunpack.c.l.b16 %v313
      %v1346 = vunpack.c.l.b16 %v314
      %v1347 = vunpack.c.l.b16 %v315
      %v1348 = vunpack.c.l.b16 %v316
      %v1349 = vunpack.c.l.b16 %v317
      %v1350 = vunpack.c.l.b16 %v318
      %v1351 = vunpack.c.l.b16 %v319
      %v1352 = vunpack.c.l.b16 %v320
      %v1353 = vunpack.c.l.b16 %v321
      %v1354 = vunpack.c.l.b16 %v322
      %v1355 = vunpack.c.l.b16 %v323
      %v1356 = vunpack.c.l.b16 %v324
      %v1357 = vunpack.c.l.b16 %v325
      %v1358 = vunpack.c.l.b16 %v326
      %v1359 = vunpack.c.l.b16 %v327
      %v1360 = vunpack.c.l.b16 %v328
      %v1361 = vunpack.c.l.b16 %v329
      %v1362 = vunpack.c.l.b16 %v330
      %v1363 = vunpack.c.l.b16 %v331
      %v1364 = vunpack.c.l.b16 %v332
      %v1365 = vunpack.c.l.b16 %v333
      %v1366 = vunpack.c.l.b16 %v334
      %v1367 = vunpack.c.l.b16 %v335
      %v1368 = vunpack.c.l.b16 %v336
      %v1369 = vunpack.c.l.b16 %v337
      %v1370 = vunpack.c.l.b16 %v338
      %v1371 = vunpack.c.l.b16 %v339
      %v1372 = vunpack.c.l.b16 %v340
      %v1373 = vunpack.c.l.b16 %v341
      %v1374 = vunpack.c.l.b16 %v342
      %v1375 = vunpack.c.l.b16 %v343
      %v1376 = vunpack.c.l.b16 %v344
      %v1377 = vunpack.c.l.b16 %v345
      %v1378 = vunpack.c.l.b16 %v346
      %v1379 = vunpack.c.l.b16 %v347
      %v1380 = vunpack.c.l.b16 %v348
      %v1381 = vunpack.c.l.b16 %v349
      %v1382 = vunpack.c.l.b16 %v350
      %v1383 = vunpack.c.l.b16 %v351
      %v1384 = vunpack.c.l.b16 %v352
      %v1385 = vunpack.c.l.b16 %v353
      %v1386 = vunpack.c.l.b16 %v354
      %v1387 = vunpack.c.l.b16 %v355
      %v1388 = vunpack.c.l.b16 %v356
      %v1389 = vunpack.c.l.b16 %v357
      %v1390 = vunpack.c.l.b16 %v358
      %v1391 = vunpack.c.l.b16 %v359
      %v1392 = vunpack.c.l.b16 %v360
      %v1393 = vunpack.c.l.b16 %v361
      %v1394 = vunpack.c.l.b16 %v362
      %v1395 = vunpack.c.l.b16 %v363
      %v1396 = vunpack.c.l.b16 %v364
      %v1397 = vunpack.c.l.b16 %v365
      %v1398 = vunpack.c.l.b16 %v366
      %v1399 = vunpack.c.l.b16 %v367
      %v1400 = vunpack.c.l.b16 %v368
      %v1401 = vunpack.c.l.b16 %v369
      %v1402 = vunpack.c.l.b16 %v370
      %v1403 = vunpack.c.l.b16 %v371
      %v1404 = vunpack.c.l.b16 %v372
      %v1405 = vunpack.c.l.b16 %v373
      %v1406 = vunpack.c.l.b16 %v374
      %v1407 = vunpack.c.l.b16 %v375
      %v1408 = vunpack.c.l.b16 %v376
      %v1409 = vunpack.c.l.b16 %v377
      %v1410 = vunpack.c.l.b16 %v378
      %v1411 = vunpack.c.l.b16 %v379
      %v1412 = vunpack.c.l.b16 %v380
      %v1413 = vunpack.c.l.b16 %v381
      %v1414 = vunpack.c.l.b16 %v382
      %v1415 = vunpack.c.l.b16 %v383
      %v1416 = vunpack.c.l.b16 %v384
      %v1417 = vunpack.c.l.b16 %v385
      %v1418 = vunpack.c.l.b16 %v386
      %v1419 = vunpack.c.l.b16 %v387
      %v1420 = vunpack.c.l.b16 %v388
      %v1421 = vunpack.c.l.b16 %v389
      %v1422 = vunpack.c.l.b16 %v390
      %v1423 = vunpack.c.l.b16 %v391
      %v1424 = vunpack.c.l.b16 %v392
      %v1425 = vunpack.c.l.b16 %v393
      %v1426 = vunpack.c.l.b16 %v394
      %v1427 = vunpack.c.l.b16 %v395
      %v1428 = vunpack.c.l.b16 %v396
      %v1429 = vunpack.c.l.b16 %v397
      %v1430 = vunpack.c.l.b16 %v398
      %v1431 = vunpack.c.l.b16 %v399
      %v1432 = vunpack.c.l.b16 %v400
      %v1433 = vunpack.c.l.b16 %v401
      %v1434 = vunpack.c.l.b16 %v402
      %v1435 = vunpack.c.l.b16 %v403
      %v1436 = vunpack.c.l.b16 %v404
      %v1437 = vunpack.c.l.b16 %v405
      %v1438 = vunpack.c.l.b16 %v406
      %v1439 = vunpack.c.l.b16 %v407
      %v1440 = vunpack.c.l.b16 %v408
      %v1441 = vunpack.c.l.b16 %v409
      %v1442 = vunpack.c.l.b16 %v410
      %v1443 = vunpack.c.l.b16 %v411
      %v1444 = vunpack.c.l.b16 %v412
      %v1445 = vunpack.c.l.b16 %v413
      %v1446 = vunpack.c.l.b16 %v414
      %v1447 = vunpack.c.l.b16 %v415
      %v1448 = vunpack.c.l.b16 %v416
      %v1449 = vunpack.c.l.b16 %v417
      %v1450 = vunpack.c.l.b16 %v418
      %v1451 = vunpack.c.l.b16 %v419
      %v1452 = vunpack.c.l.b16 %v420
      %v1453 = vunpack.c.l.b16 %v421
      %v1454 = vunpack.c.l.b16 %v422
      %v1455 = vunpack.c.l.b16 %v423
      %v1456 = vunpack.c.l.b16 %v424
      %v1457 = vunpack.c.l.b16 %v425
      %v1458 = vunpack.c.l.b16 %v426
      %v1459 = vunpack.c.l.b16 %v427
      %v1460 = vunpack.c.l.b16 %v428
      %v1461 = vunpack.c.l.b16 %v429
      %v1462 = vunpack.c.l.b16 %v430
      %v1463 = vunpack.c.l.b16 %v431
      %v1464 = vunpack.c.l.b16 %v432
      %v1465 = vunpack.c.l.b16 %v433
      %v1466 = vunpack.c.l.b16 %v434
      %v1467 = vunpack.c.l.b16 %v435
      %v1468 = vunpack.c.l.b16 %v436
      %v1469 = vunpack.c.l.b16 %v437
      %v1470 = vunpack.c.l.b16 %v438
      %v1471 = vunpack.c.l.b16 %v439
      %v1472 = vunpack.c.l.b16 %v440
      %v1473 = vunpack.c.l.b16 %v441
      %v1474 = vunpack.c.l.b16 %v442
      %v1475 = vunpack.c.l.b16 %v443
      %v1476 = vunpack.c.l.b16 %v444
      %v1477 = vunpack.c.l.b16 %v445
      %v1478 = vunpack.c.l.b16 %v446
      %v1479 = vunpack.c.l.b16 %v447
      %v1480 = vunpack.c.l.b16 %v448
      %v1481 = vunpack.c.l.b16 %v449
      %v1482 = vunpack.c.l.b16 %v450
      %v1483 = vunpack.c.l.b16 %v451
      %v1484 = vunpack.c.l.b16 %v452
      %v1485 = vunpack.c.l.b16 %v453
      %v1486 = vunpack.c.l.b16 %v454
      %v1487 = vunpack.c.l.b16 %v455
      %v1488 = vunpack.c.l.b16 %v456
      %v1489 = vunpack.c.l.b16 %v457
      %v1490 = vunpack.c.l.b16 %v458
      %v1491 = vunpack.c.l.b16 %v459
      %v1492 = vunpack.c.l.b16 %v460
      %v1493 = vunpack.c.l.b16 %v461
      %v1494 = vunpack.c.l.b16 %v462
      %v1495 = vunpack.c.l.b16 %v463
      %v1496 = vunpack.c.l.b16 %v464
      %v1497 = vunpack.c.l.b16 %v465
      %v1498 = vunpack.c.l.b16 %v466
      %v1499 = vunpack.c.l.b16 %v467
      %v1500 = vunpack.c.l.b16 %v468
      %v1501 = vunpack.c.l.b16 %v469
      %v1502 = vunpack.c.l.b16 %v470
      %v1503 = vunpack.c.l.b16 %v471
      %v1504 = vunpack.c.l.b16 %v472
      %v1505 = vunpack.c.l.b16 %v473
      %v1506 = vunpack.c.l.b16 %v474
      %v1507 = vunpack.c.l.b16 %v475
      %v1508 = vunpack.c.l.b16 %v476
      %v1509 = vunpack.c.l.b16 %v477
      %v1510 = vunpack.c.l.b16 %v478
      %v1511 = vunpack.c.l.b16 %v479
      %v1512 = vunpack.c.l.b16 %v480
      %v1513 = vunpack.c.l.b16 %v481
      %v1514 = vunpack.c.l.b16 %v482
      %v1515 = vunpack.c.l.b16 %v483
      %v1516 = vunpack.c.l.b16 %v484
      %v1517 = vunpack.c.l.b16 %v485
      %v1518 = vunpack.c.l.b16 %v486
      %v1519 = vunpack.c.l.b16 %v487
      %v1520 = vunpack.c.l.b16 %v488
      %v1521 = vunpack.c.l.b16 %v489
      %v1522 = vunpack.c.l.b16 %v490
      %v1523 = vunpack.c.l.b16 %v491
      %v1524 = vunpack.c.l.b16 %v492
      %v1525 = vunpack.c.l.b16 %v493
      %v1526 = vunpack.c.l.b16 %v494
      %v1527 = vunpack.c.l.b16 %v495
      %v1528 = vunpack.c.l.b16 %v496
      %v1529 = vunpack.c.l.b16 %v497
      %v1530 = vunpack.c.l.b16 %v498
      %v1531 = vunpack.c.l.b16 %v499
      %v1532 = vunpack.c.l.b16 %v500
      %v1533 = vunpack.c.l.b16 %v501
      %v1534 = vunpack.c.l.b16 %v502
      %v1535 = vunpack.c.l.b16 %v503
      %v1536 = vunpack.c.l.b16 %v504
      %v1537 = vunpack.c.l.b16 %v505
      %v1538 = vunpack.c.l.b16 %v506
      %v1539 = vunpack.c.l.b16 %v507
      %v1540 = vunpack.c.l.b16 %v508
      %v1541 = vunpack.c.l.b16 %v509
      %v1542 = vunpack.c.l.b16 %v510
      %v1543 = vunpack.c.l.b16 %v511
      %v1544 = vunpack.c.l.b16 %v512
      %v1545 = vunpack.c.l.b16 %v513
      %v1546 = vunpack.c.l.b16 %v514
      %v1547 = vunpack.c.l.b16 %v515
      %v1548 = vunpack.c.l.b16 %v516
      %v1549 = vunpack.c.l.b16 %v517
      %v1550 = vunpack.c.l.b16 %v518
      %v1551 = vunpack.c.l.b16 %v519
      %v1552 = vunpack.c.l.b16 %v520
      %v1553 = vunpack.c.l.b16 %v521
      %v1554 = vunpack.c.l.b16 %v522
      %v1555 = vunpack.c.l.b16 %v523
      %v1556 = vunpack.c.l.b16 %v524
      %v1557 = vunpack.c.l.b16 %v525
      %v1558 = vunpack.c.l.b16 %v526
      %v1559 = vunpack.c.l.b16 %v527
      %v1560 = vunpack.c.l.b16 %v528
      %v1561 = vunpack.c.l.b16 %v529
      %v1562 = vunpack.c.l.b16 %v530
      %v1563 = vunpack.c.l.b16 %v531
      %v1564 = vunpack.c.l.b16 %v532
      %v1565 = vunpack.c.l.b16 %v533
      %v1566 = vunpack.c.l.b16 %v534
      %v1567 = vunpack.c.l.b16 %v535
      %v1568 = vunpack.c.l.b16 %v536
      %v1569 = vunpack.c.l.b16 %v537
      %v1570 = vunpack.c.l.b16 %v538
      %v1571 = vunpack.c.l.b16 %v539
      %v1572 = vunpack.c.l.b16 %v540
      %v1573 = vunpack.c.l.b16 %v541
      %v1574 = vunpack.c.l.b16 %v542
      %v1575 = vunpack.c.l.b16 %v543
      %v1576 = vunpack.c.l.b16 %v544
      %v1577 = vunpack.c.l.b16 %v545
      %v1578 = vunpack.c.l.b16 %v546
      %v1579 = vunpack.c.l.b16 %v547
      %v1580 = vunpack.c.l.b16 %v548
      %v1581 = vunpack.c.l.b16 %v549
      %v1582 = vunpack.c.l.b16 %v550
      %v1583 = vunpack.c.l.b16 %v551
      %v1584 = vunpack.c.l.b16 %v552
      %v1585 = vunpack.c.l.b16 %v553
      %v1586 = vunpack.c.l.b16 %v554
      %v1587 = vunpack.c.l.b16 %v555
      %v1588 = vunpack.c.l.b16 %v556
      %v1589 = vunpack.c.l.b16 %v557
      %v1590 = vunpack.c.l.b16 %v558
      %v1591 = vunpack.c.l.b16 %v559
      %v1592 = vunpack.c.l.b16 %v560
      %v1593 = vunpack.c.l.b16 %v561
      %v1594 = vunpack.c.l.b16 %v562
      %v1595 = vunpack.c.l.b16 %v563
      %v1596 = vunpack.c.l.b16 %v564
      %v1597 = vunpack.c.l.b16 %v565
      %v1598 = vunpack.c.l.b16 %v566
      %v1599 = vunpack.c.l.b16 %v567
      %v1600 = vunpack.c.l.b16 %v568
      %v1601 = vunpack.c.l.b16 %v569
      %v1602 = vunpack.c.l.b16 %v570
      %v1603 = vunpack.c.l.b16 %v571
      %v1604 = vunpack.c.l.b16 %v572
      %v1605 = vunpack.c.l.b16 %v573
      %v1606 = vunpack.c.l.b16 %v574
      %v1607 = vunpack.c.l.b16 %v575
      %v1608 = vunpack.c.l.b16 %v576
      %v1609 = vunpack.c.l.b16 %v577
      %v1610 = vunpack.c.l.b16 %v578
      %v1611 = vunpack.c.l.b16 %v579
      %v1612 = vunpack.c.l.b16 %v580
      %v1613 = vunpack.c.l.b16 %v581
      %v1614 = vunpack.c.l.b16 %v582
      %v1615 = vunpack.c.l.b16 %v583
      %v1616 = vunpack.c.l.b16 %v584
      %v1617 = vunpack.c.l.b16 %v585
      %v1618 = vunpack.c.l.b16 %v586
      %v1619 = vunpack.c.l.b16 %v587
      %v1620 = vunpack.c.l.b16 %v588
      %v1621 = vunpack.c.l.b16 %v589
      %v1622 = vunpack.c.l.b16 %v590
      %v1623 = vunpack.c.l.b16 %v591
      %v1624 = vunpack.c.l.b16 %v592
      %v1625 = vunpack.c.l.b16 %v593
      %v1626 = vunpack.c.l.b16 %v594
      %v1627 = vunpack.c.l.b16 %v595
      %v1628 = vunpack.c.l.b16 %v596
      %v1629 = vunpack.c.l.b16 %v597
      %v1630 = vunpack.c.l.b16 %v598
      %v1631 = vunpack.c.l.b16 %v599
      %v1632 = vunpack.c.l.b16 %v600
      %v1633 = vunpack.c.l.b16 %v601
      %v1634 = vunpack.c.l.b16 %v602
      %v1635 = vunpack.c.l.b16 %v603
      %v1636 = vunpack.c.l.b16 %v604
      %v1637 = vunpack.c.l.b16 %v605
      %v1638 = vunpack.c.l.b16 %v606
      %v1639 = vunpack.c.l.b16 %v607
      %v1640 = vunpack.c.l.b16 %v608
      %v1641 = vunpack.c.l.b16 %v609
      %v1642 = vunpack.c.l.b16 %v610
      %v1643 = vunpack.c.l.b16 %v611
      %v1644 = vunpack.c.l.b16 %v612
      %v1645 = vunpack.c.l.b16 %v613
      %v1646 = vunpack.c.l.b16 %v614
      %v1647 = vunpack.c.l.b16 %v615
      %v1648 = vunpack.c.l.b16 %v616
      %v1649 = vunpack.c.l.b16 %v617
      %v1650 = vunpack.c.l.b16 %v618
      %v1651 = vunpack.c.l.b16 %v619
      %v1652 = vunpack.c.l.b16 %v620
      %v1653 = vunpack.c.l.b16 %v621
      %v1654 = vunpack.c.l.b16 %v622
      %v1655 = vunpack.c.l.b16 %v623
      %v1656 = vunpack.c.l.b16 %v624
      %v1657 = vunpack.c.l.b16 %v625
      %v1658 = vunpack.c.l.b16 %v626
      %v1659 = vunpack.c.l.b16 %v627
      %v1660 = vunpack.c.l.b16 %v628
      %v1661 = vunpack.c.l.b16 %v629
      %v1662 = vunpack.c.l.b16 %v630
      %v1663 = vunpack.c.l.b16 %v631
      %v1664 = vunpack.c.l.b16 %v632
      %v1665 = vunpack.c.l.b16 %v633
      %v1666 = vunpack.c.l.b16 %v634
      %v1667 = vunpack.c.l.b16 %v635
      %v1668 = vunpack.c.l.b16 %v636
      %v1669 = vunpack.c.l.b16 %v637
      %v1670 = vunpack.c.l.b16 %v638
      %v1671 = vunpack.c.l.b16 %v639
      %v1672 = vunpack.c.l.b16 %v640
      %v1673 = vunpack.c.l.b16 %v641
      %v1674 = vunpack.c.l.b16 %v642
      %v1675 = vunpack.c.l.b16 %v643
      %v1676 = vunpack.c.l.b16 %v644
      %v1677 = vunpack.c.l.b16 %v645
      %v1678 = vunpack.c.l.b16 %v646
      %v1679 = vunpack.c.l.b16 %v647
      %v1680 = vunpack.c.l.b16 %v648
      %v1681 = vunpack.c.l.b16 %v649
      %v1682 = vunpack.c.l.b16 %v650
      %v1683 = vunpack.c.l.b16 %v651
      %v1684 = vunpack.c.l.b16 %v652
      %v1685 = vunpack.c.l.b16 %v653
      %v1686 = vunpack.c.l.b16 %v654
      %v1687 = vunpack.c.l.b16 %v655
      %v1688 = vunpack.c.l.b16 %v656
      %v1689 = vunpack.c.l.b16 %v657
      %v1690 = vunpack.c.l.b16 %v658
      %v1691 = vunpack.c.l.b16 %v659
      %v1692 = vpack.c.b16 %v1181, %v1180
      %v1693 = vpack.c.b16 %v1183, %v1182
      %v1694 = vpack.c.b16 %v1185, %v1184
      %v1695 = vpack.c.b16 %v1187, %v1186
      %v1696 = vpack.c.b16 %v1189, %v1188
      %v1697 = vpack.c.b16 %v1191, %v1190
      %v1698 = vpack.c.b16 %v1193, %v1192
      %v1699 = vpack.c.b16 %v1195, %v1194
      %v1700 = vpack.c.b16 %v1197, %v1196
      %v1701 = vpack.c.b16 %v1199, %v1198
      %v1702 = vpack.c.b16 %v1201, %v1200
      %v1703 = vpack.c.b16 %v1203, %v1202
      %v1704 = vpack.c.b16 %v1205, %v1204
      %v1705 = vpack.c.b16 %v1207, %v1206
      %v1706 = vpack.c.b16 %v1209, %v1208
      %v1707 = vpack.c.b16 %v1211, %v1210
      %v1708 = vpack.c.b16 %v1213, %v1212
      %v1709 = vpack.c.b16 %v1215, %v1214
      %v1710 = vpack.c.b16 %v1217, %v1216
      %v1711 = vpack.c.b16 %v1219, %v1218
      %v1712 = vpack.c.b16 %v1221, %v1220
      %v1713 = vpack.c.b16 %v1223, %v1222
      %v1714 = vpack.c.b16 %v1225, %v1224
      %v1715 = vpack.c.b16 %v1227, %v1226
      %v1716 = vpack.c.b16 %v1229, %v1228
      %v1717 = vpack.c.b16 %v1231, %v1230
      %v1718 = vpack.c.b16 %v1233, %v1232
      %v1719 = vpack.c.b16 %v1235, %v1234
      %v1720 = vpack.c.b16 %v1237, %v1236
      %v1721 = vpack.c.b16 %v1239, %v1238
      %v1722 = vpack.c.b16 %v1241, %v1240
      %v1723 = vpack.c.b16 %v1243, %v1242
      %v1724 = vpack.c.b16 %v1245, %v1244
      %v1725 = vpack.c.b16 %v1247, %v1246
      %v1726 = vpack.c.b16 %v1249, %v1248
      %v1727 = vpack.c.b16 %v1251, %v1250
      %v1728 = vpack.c.b16 %v1253, %v1252
      %v1729 = vpack.c.b16 %v1255, %v1254
      %v1730 = vpack.c.b16 %v1257, %v1256
      %v1731 = vpack.c.b16 %v1259, %v1258
      %v1732 = vpack.c.b16 %v1261, %v1260
      %v1733 = vpack.c.b16 %v1263, %v1262
      %v1734 = vpack.c.b16 %v1265, %v1264
      %v1735 = vpack.c.b16 %v1267, %v1266
      %v1736 = vpack.c.b16 %v1269, %v1268
      %v1737 = vpack.c.b16 %v1271, %v1270
      %v1738 = vpack.c.b16 %v1273, %v1272
      %v1739 = vpack.c.b16 %v1275, %v1274
      %v1740 = vpack.c.b16 %v1277, %v1276
      %v1741 = vpack.c.b16 %v1279, %v1278
      %v1742 = vpack.c.b16 %v1281, %v1280
      %v1743 = vpack.c.b16 %v1283, %v1282
      %v1744 = vpack.c.b16 %v1285, %v1284
      %v1745 = vpack.c.b16 %v1287, %v1286
      %v1746 = vpack.c.b16 %v1289, %v1288
      %v1747 = vpack.c.b16 %v1291, %v1290
      %v1748 = vpack.c.b16 %v1293, %v1292
      %v1749 = vpack.c.b16 %v1295, %v1294
      %v1750 = vpack.c.b16 %v1297, %v1296
      %v1751 = vpack.c.b16 %v1299, %v1298
      %v1752 = vpack.c.b16 %v1301, %v1300
      %v1753 = vpack.c.b16 %v1303, %v1302
      %v1754 = vpack.c.b16 %v1305, %v1304
      %v1755 = vpack.c.b16 %v1307, %v1306
      %v1756 = vpack.c.b16 %v1309, %v1308
      %v1757 = vpack.c.b16 %v1311, %v1310
      %v1758 = vpack.c.b16 %v1313, %v1312
      %v1759 = vpack.c.b16 %v1315, %v1314
      %v1760 = vpack.c.b16 %v1317, %v1316
      %v1761 = vpack.c.b16 %v1319, %v1318
      %v1762 = vpack.c.b16 %v1321, %v1320
      %v1763 = vpack.c.b16 %v1323, %v1322
      %v1764 = vpack.c.b16 %v1325, %v1324
      %v1765 = vpack.c.b16 %v1327, %v1326
      %v1766 = vpack.c.b16 %v1329, %v1328
      %v1767 = vpack.c.b16 %v1331, %v1330
      %v1768 = vpack.c.b16 %v1333, %v1332
      %v1769 = vpack.c.b16 %v1335, %v1334
      %v1770 = vpack.c.b16 %v1337, %v1336
      %v1771 = vpack.c.b16 %v1339, %v1338
      %v1772 = vpack.c.b16 %v1341, %v1340
      %v1773 = vpack.c.b16 %v1343, %v1342
      %v1774 = vpack.c.b16 %v1345, %v1344
      %v1775 = vpack.c.b16 %v1347, %v1346
      %v1776 = vpack.c.b16 %v1349, %v1348
      %v1777 = vpack.c.b16 %v1351, %v1350
      %v1778 = vpack.c.b16 %v1353, %v1352
      %v1779 = vpack.c.b16 %v1355, %v1354
      %v1780 = vpack.c.b16 %v1357, %v1356
      %v1781 = vpack.c.b16 %v1359, %v1358
      %v1782 = vpack.c.b16 %v1361, %v1360
      %v1783 = vpack.c.b16 %v1363, %v1362
      %v1784 = vpack.c.b16 %v1365, %v1364
      %v1785 = vpack.c.b16 %v1367, %v1366
      %v1786 = vpack.c.b16 %v1369, %v1368
      %v1787 = vpack.c.b16 %v1371, %v1370
      %v1788 = vpack.c.b16 %v1373, %v1372
      %v1789 = vpack.c.b16 %v1375, %v1374
      %v1790 = vpack.c.b16 %v1377, %v1376
      %v1791 = vpack.c.b16 %v1379, %v1378
      %v1792 = vpack.c.b16 %v1381, %v1380
      %v1793 = vpack.c.b16 %v1383, %v1382
      %v1794 = vpack.c.b16 %v1385, %v1384
      %v1795 = vpack.c.b16 %v1387, %v1386
      %v1796 = vpack.c.b16 %v1389, %v1388
      %v1797 = vpack.c.b16 %v1391, %v1390
      %v1798 = vpack.c.b16 %v1393, %v1392
      %v1799 = vpack.c.b16 %v1395, %v1394
      %v1800 = vpack.c.b16 %v1397, %v1396
      %v1801 = vpack.c.b16 %v1399, %v1398
      %v1802 = vpack.c.b16 %v1401, %v1400
      %v1803 = vpack.c.b16 %v1403, %v1402
      %v1804 = vpack.c.b16 %v1405, %v1404
      %v1805 = vpack.c.b16 %v1407, %v1406
      %v1806 = vpack.c.b16 %v1409, %v1408
      %v1807 = vpack.c.b16 %v1411, %v1410
      %v1808 = vpack.c.b16 %v1413, %v1412
      %v1809 = vpack.c.b16 %v1415, %v1414
      %v1810 = vpack.c.b16 %v1417, %v1416
      %v1811 = vpack.c.b16 %v1419, %v1418
      %v1812 = vpack.c.b16 %v1421, %v1420
      %v1813 = vpack.c.b16 %v1423, %v1422
      %v1814 = vpack.c.b16 %v1425, %v1424
      %v1815 = vpack.c.b16 %v1427, %v1426
      %v1816 = vpack.c.b16 %v1429, %v1428
      %v1817 = vpack.c.b16 %v1431, %v1430
      %v1818 = vpack.c.b16 %v1433, %v1432
      %v1819 = vpack.c.b16 %v1435, %v1434
      %v1820 = vpack.c.b16 %v1437, %v1436
      %v1821 = vpack.c.b16 %v1439, %v1438
      %v1822 = vpack.c.b16 %v1441, %v1440
      %v1823 = vpack.c.b16 %v1443, %v1442
      %v1824 = vpack.c.b16 %v1445, %v1444
      %v1825 = vpack.c.b16 %v1447, %v1446
      %v1826 = vpack.c.b16 %v1449, %v1448
      %v1827 = vpack.c.b16 %v1451, %v1450
      %v1828 = vpack.c.b16 %v1453, %v1452
      %v1829 = vpack.c.b16 %v1455, %v1454
      %v1830 = vpack.c.b16 %v1457, %v1456
      %v1831 = vpack.c.b16 %v1459, %v1458
      %v1832 = vpack.c.b16 %v1461, %v1460
      %v1833 = vpack.c.b16 %v1463, %v1462
      %v1834 = vpack.c.b16 %v1465, %v1464
      %v1835 = vpack.c.b16 %v1467, %v1466
      %v1836 = vpack.c.b16 %v1469, %v1468
      %v1837 = vpack.c.b16 %v1471, %v1470
      %v1838 = vpack.c.b16 %v1473, %v1472
      %v1839 = vpack.c.b16 %v1475, %v1474
      %v1840 = vpack.c.b16 %v1477, %v1476
      %v1841 = vpack.c.b16 %v1479, %v1478
      %v1842 = vpack.c.b16 %v1481, %v1480
      %v1843 = vpack.c.b16 %v1483, %v1482
      %v1844 = vpack.c.b16 %v1485, %v1484
      %v1845 = vpack.c.b16 %v1487, %v1486
      %v1846 = vpack.c.b16 %v1489, %v1488
      %v1847 = vpack.c.b16 %v1491, %v1490
      %v1848 = vpack.c.b16 %v1493, %v1492
      %v1849 = vpack.c.b16 %v1495, %v1494
      %v1850 = vpack.c.b16 %v1497, %v1496
      %v1851 = vpack.c.b16 %v1499, %v1498
      %v1852 = vpack.c.b16 %v1501, %v1500
      %v1853 = vpack.c.b16 %v1503, %v1502
      %v1854 = vpack.c.b16 %v1505, %v1504
      %v1855 = vpack.c.b16 %v1507, %v1506
      %v1856 = vpack.c.b16 %v1509, %v1508
      %v1857 = vpack.c.b16 %v1511, %v1510
      %v1858 = vpack.c.b16 %v1513, %v1512
      %v1859 = vpack.c.b16 %v1515, %v1514
      %v1860 = vpack.c.b16 %v1517, %v1516
      %v1861 = vpack.c.b16 %v1519, %v1518
      %v1862 = vpack.c.b16 %v1521, %v1520
      %v1863 = vpack.c.b16 %v1523, %v1522
      %v1864 = vpack.c.b16 %v1525, %v1524
      %v1865 = vpack.c.b16 %v1527, %v1526
      %v1866 = vpack.c.b16 %v1529, %v1528
      %v1867 = vpack.c.b16 %v1531, %v1530
      %v1868 = vpack.c.b16 %v1533, %v1532
      %v1869 = vpack.c.b16 %v1535, %v1534
      %v1870 = vpack.c.b16 %v1537, %v1536
      %v1871 = vpack.c.b16 %v1539, %v1538
      %v1872 = vpack.c.b16 %v1541, %v1540
      %v1873 = vpack.c.b16 %v1543, %v1542
      %v1874 = vpack.c.b16 %v1545, %v1544
      %v1875 = vpack.c.b16 %v1547, %v1546
      %v1876 = vpack.c.b16 %v1549, %v1548
      %v1877 = vpack.c.b16 %v1551, %v1550
      %v1878 = vpack.c.b16 %v1553, %v1552
      %v1879 = vpack.c.b16 %v1555, %v1554
      %v1880 = vpack.c.b16 %v1557, %v1556
      %v1881 = vpack.c.b16 %v1559, %v1558
      %v1882 = vpack.c.b16 %v1561, %v1560
      %v1883 = vpack.c.b16 %v1563, %v1562
      %v1884 = vpack.c.b16 %v1565, %v1564
      %v1885 = vpack.c.b16 %v1567, %v1566
      %v1886 = vpack.c.b16 %v1569, %v1568
      %v1887 = vpack.c.b16 %v1571, %v1570
      %v1888 = vpack.c.b16 %v1573, %v1572
      %v1889 = vpack.c.b16 %v1575, %v1574
      %v1890 = vpack.c.b16 %v1577, %v1576
      %v1891 = vpack.c.b16 %v1579, %v1578
      %v1892 = vpack.c.b16 %v1581, %v1580
      %v1893 = vpack.c.b16 %v1583, %v1582
      %v1894 = vpack.c.b16 %v1585, %v1584
      %v1895 = vpack.c.b16 %v1587, %v1586
      %v1896 = vpack.c.b16 %v1589, %v1588
      %v1897 = vpack.c.b16 %v1591, %v1590
      %v1898 = vpack.c.b16 %v1593, %v1592
      %v1899 = vpack.c.b16 %v1595, %v1594
      %v1900 = vpack.c.b16 %v1597, %v1596
      %v1901 = vpack.c.b16 %v1599, %v1598
      %v1902 = vpack.c.b16 %v1601, %v1600
      %v1903 = vpack.c.b16 %v1603, %v1602
      %v1904 = vpack.c.b16 %v1605, %v1604
      %v1905 = vpack.c.b16 %v1607, %v1606
      %v1906 = vpack.c.b16 %v1609, %v1608
      %v1907 = vpack.c.b16 %v1611, %v1610
      %v1908 = vpack.c.b16 %v1613, %v1612
      %v1909 = vpack.c.b16 %v1615, %v1614
      %v1910 = vpack.c.b16 %v1617, %v1616
      %v1911 = vpack.c.b16 %v1619, %v1618
      %v1912 = vpack.c.b16 %v1621, %v1620
      %v1913 = vpack.c.b16 %v1623, %v1622
      %v1914 = vpack.c.b16 %v1625, %v1624
      %v1915 = vpack.c.b16 %v1627, %v1626
      %v1916 = vpack.c.b16 %v1629, %v1628
      %v1917 = vpack.c.b16 %v1631, %v1630
      %v1918 = vpack.c.b16 %v1633, %v1632
      %v1919 = vpack.c.b16 %v1635, %v1634
      %v1920 = vpack.c.b16 %v1637, %v1636
      %v1921 = vpack.c.b16 %v1639, %v1638
      %v1922 = vpack.c.b16 %v1641, %v1640
      %v1923 = vpack.c.b16 %v1643, %v1642
      %v1924 = vpack.c.b16 %v1645, %v1644
      %v1925 = vpack.c.b16 %v1647, %v1646
      %v1926 = vpack.c.b16 %v1649, %v1648
      %v1927 = vpack.c.b16 %v1651, %v1650
      %v1928 = vpack.c.b16 %v1653, %v1652
      %v1929 = vpack.c.b16 %v1655, %v1654
      %v1930 = vpack.c.b16 %v1657, %v1656
      %v1931 = vpack.c.b16 %v1659, %v1658
      %v1932 = vpack.c.b16 %v1661, %v1660
      %v1933 = vpack.c.b16 %v1663, %v1662
      %v1934 = vpack.c.b16 %v1665, %v1664
      %v1935 = vpack.c.b16 %v1667, %v1666
      %v1936 = vpack.c.b16 %v1669, %v1668
      %v1937 = vpack.c.b16 %v1671, %v1670
      %v1938 = vpack.c.b16 %v1673, %v1672
      %v1939 = vpack.c.b16 %v1675, %v1674
      %v1940 = vpack.c.b16 %v1677, %v1676
      %v1941 = vpack.c.b16 %v1679, %v1678
      %v1942 = vpack.c.b16 %v1681, %v1680
      %v1943 = vpack.c.b16 %v1683, %v1682
      %v1944 = vpack.c.b16 %v1685, %v1684
      %v1945 = vpack.c.b16 %v1687, %v1686
      %v1946 = vpack.c.b16 %v1689, %v1688
      %v1947 = vpack.c.b16 %v1691, %v1690
      %v1956 = vunpack.c.l.b16 %v660
      %v1957 = vunpack.c.l.b16 %v661
      %v1958 = vunpack.c.l.b16 %v662
      %v1959 = vunpack.c.l.b16 %v663
      %v1960 = vunpack.c.l.b16 %v664
      %v1961 = vunpack.c.l.b16 %v665
      %v1962 = vunpack.c.l.b16 %v666
      %v1963 = vunpack.c.l.b16 %v667
      %v1964 = vpack.c.b16 %v1957, %v1956
      %v1965 = vpack.c.b16 %v1959, %v1958
      %v1966 = vpack.c.b16 %v1961, %v1960
      %v1967 = vpack.c.b16 %v1963, %v1962
      %vm1972 = vcmask 523264
      %v1974 = vsel %vm1972, %v1692, 0
      %v1977 = vsel %vm1972, %v1693, 0
      %v1980 = vsel %vm1972, %v1694, 0
      %v1983 = vsel %vm1972, %v1695, 0
      %v1986 = vsel %vm1972, %v1696, 0
      %v1989 = vsel %vm1972, %v1697, 0
      %v1992 = vsel %vm1972, %v1698, 0
      %v1995 = vsel %vm1972, %v1699, 0
      %v1998 = vsel %vm1972, %v1700, 0
      %v2001 = vsel %vm1972, %v1701, 0
      %v2004 = vsel %vm1972, %v1702, 0
      %v2007 = vsel %vm1972, %v1703, 0
      %v2010 = vsel %vm1972, %v1704, 0
      %v2013 = vsel %vm1972, %v1705, 0
      %v2016 = vsel %vm1972, %v1706, 0
      %v2019 = vsel %vm1972, %v1707, 0
      %v2022 = vsel %vm1972, %v1708, 0
      %v2025 = vsel %vm1972, %v1709, 0
      %v2028 = vsel %vm1972, %v1710, 0
      %v2031 = vsel %vm1972, %v1711, 0
      %v2034 = vsel %vm1972, %v1712, 0
      %v2037 = vsel %vm1972, %v1713, 0
      %v2040 = vsel %vm1972, %v1714, 0
      %v2043 = vsel %vm1972, %v1715, 0
      %v2046 = vsel %vm1972, %v1716, 0
      %v2049 = vsel %vm1972, %v1717, 0
      %v2052 = vsel %vm1972, %v1718, 0
      %v2055 = vsel %vm1972, %v1719, 0
      %v2058 = vsel %vm1972, %v1720, 0
      %v2061 = vsel %vm1972, %v1721, 0
      %v2064 = vsel %vm1972, %v1722, 0
      %v2067 = vsel %vm1972, %v1723, 0
      %v2070 = vsel %vm1972, %v1724, 0
      %v2073 = vsel %vm1972, %v1725, 0
      %v2076 = vsel %vm1972, %v1726, 0
      %v2079 = vsel %vm1972, %v1727, 0
      %v2082 = vsel %vm1972, %v1728, 0
      %v2085 = vsel %vm1972, %v1729, 0
      %v2088 = vsel %vm1972, %v1730, 0
      %v2091 = vsel %vm1972, %v1731, 0
      %v2094 = vsel %vm1972, %v1732, 0
      %v2097 = vsel %vm1972, %v1733, 0
      %v2100 = vsel %vm1972, %v1734, 0
      %v2103 = vsel %vm1972, %v1735, 0
      %v2106 = vsel %vm1972, %v1736, 0
      %v2109 = vsel %vm1972, %v1737, 0
      %v2112 = vsel %vm1972, %v1738, 0
      %v2115 = vsel %vm1972, %v1739, 0
      %v2118 = vsel %vm1972, %v1740, 0
      %v2121 = vsel %vm1972, %v1741, 0
      %v2124 = vsel %vm1972, %v1742, 0
      %v2127 = vsel %vm1972, %v1743, 0
      %v2130 = vsel %vm1972, %v1744, 0
      %v2133 = vsel %vm1972, %v1745, 0
      %v2136 = vsel %vm1972, %v1746, 0
      %v2139 = vsel %vm1972, %v1747, 0
      %v2142 = vsel %vm1972, %v1748, 0
      %v2145 = vsel %vm1972, %v1749, 0
      %v2148 = vsel %vm1972, %v1750, 0
      %v2151 = vsel %vm1972, %v1751, 0
      %v2154 = vsel %vm1972, %v1752, 0
      %v2157 = vsel %vm1972, %v1753, 0
      %v2160 = vsel %vm1972, %v1754, 0
      %v2163 = vsel %vm1972, %v1755, 0
      %v2166 = vsel %vm1972, %v1756, 0
      %v2169 = vsel %vm1972, %v1757, 0
      %v2172 = vsel %vm1972, %v1758, 0
      %v2175 = vsel %vm1972, %v1759, 0
      %v2178 = vsel %vm1972, %v1760, 0
      %v2181 = vsel %vm1972, %v1761, 0
      %v2184 = vsel %vm1972, %v1762, 0
      %v2187 = vsel %vm1972, %v1763, 0
      %v2190 = vsel %vm1972, %v1764, 0
      %v2193 = vsel %vm1972, %v1765, 0
      %v2196 = vsel %vm1972, %v1766, 0
      %v2199 = vsel %vm1972, %v1767, 0
      %v2202 = vsel %vm1972, %v1768, 0
      %v2205 = vsel %vm1972, %v1769, 0
      %v2208 = vsel %vm1972, %v1770, 0
      %v2211 = vsel %vm1972, %v1771, 0
      %v2214 = vsel %vm1972, %v1772, 0
      %v2217 = vsel %vm1972, %v1773, 0
      %v2220 = vsel %vm1972, %v1774, 0
      %v2223 = vsel %vm1972, %v1775, 0
      %v2226 = vsel %vm1972, %v1776, 0
      %v2229 = vsel %vm1972, %v1777, 0
      %v2232 = vsel %vm1972, %v1778, 0
      %v2235 = vsel %vm1972, %v1779, 0
      %v2238 = vsel %vm1972, %v1780, 0
      %v2241 = vsel %vm1972, %v1781, 0
      %v2244 = vsel %vm1972, %v1782, 0
      %v2247 = vsel %vm1972, %v1783, 0
      %v2250 = vsel %vm1972, %v1784, 0
      %v2253 = vsel %vm1972, %v1785, 0
      %v2256 = vsel %vm1972, %v1786, 0
      %v2259 = vsel %vm1972, %v1787, 0
      %v2262 = vsel %vm1972, %v1788, 0
      %v2265 = vsel %vm1972, %v1789, 0
      %v2268 = vsel %vm1972, %v1790, 0
      %v2271 = vsel %vm1972, %v1791, 0
      %v2274 = vsel %vm1972, %v1792, 0
      %v2277 = vsel %vm1972, %v1793, 0
      %v2280 = vsel %vm1972, %v1794, 0
      %v2283 = vsel %vm1972, %v1795, 0
      %v2286 = vsel %vm1972, %v1796, 0
      %v2289 = vsel %vm1972, %v1797, 0
      %v2292 = vsel %vm1972, %v1798, 0
      %v2295 = vsel %vm1972, %v1799, 0
      %v2298 = vsel %vm1972, %v1800, 0
      %v2301 = vsel %vm1972, %v1801, 0
      %v2304 = vsel %vm1972, %v1802, 0
      %v2307 = vsel %vm1972, %v1803, 0
      %v2310 = vsel %vm1972, %v1804, 0
      %v2313 = vsel %vm1972, %v1805, 0
      %v2316 = vsel %vm1972, %v1806, 0
      %v2319 = vsel %vm1972, %v1807, 0
      %v2322 = vsel %vm1972, %v1808, 0
      %v2325 = vsel %vm1972, %v1809, 0
      %v2328 = vsel %vm1972, %v1810, 0
      %v2331 = vsel %vm1972, %v1811, 0
      %v2334 = vsel %vm1972, %v1812, 0
      %v2337 = vsel %vm1972, %v1813, 0
      %v2340 = vsel %vm1972, %v1814, 0
      %v2343 = vsel %vm1972, %v1815, 0
      %v2346 = vsel %vm1972, %v1816, 0
      %v2349 = vsel %vm1972, %v1817, 0
      %v2352 = vsel %vm1972, %v1818, 0
      %v2355 = vsel %vm1972, %v1819, 0
      %v2358 = vsel %vm1972, %v1820, 0
      %v2361 = vsel %vm1972, %v1821, 0
      %v2364 = vsel %vm1972, %v1822, 0
      %v2367 = vsel %vm1972, %v1823, 0
      %v2370 = vsel %vm1972, %v1824, 0
      %v2373 = vsel %vm1972, %v1825, 0
      %v2376 = vsel %vm1972, %v1826, 0
      %v2379 = vsel %vm1972, %v1827, 0
      %v2382 = vsel %vm1972, %v1828, 0
      %v2385 = vsel %vm1972, %v1829, 0
      %v2388 = vsel %vm1972, %v1830, 0
      %v2391 = vsel %vm1972, %v1831, 0
      %v2394 = vsel %vm1972, %v1832, 0
      %v2397 = vsel %vm1972, %v1833, 0
      %v2400 = vsel %vm1972, %v1834, 0
      %v2403 = vsel %vm1972, %v1835, 0
      %v2406 = vsel %vm1972, %v1836, 0
      %v2409 = vsel %vm1972, %v1837, 0
      %v2412 = vsel %vm1972, %v1838, 0
      %v2415 = vsel %vm1972, %v1839, 0
      %v2418 = vsel %vm1972, %v1840, 0
      %v2421 = vsel %vm1972, %v1841, 0
      %v2424 = vsel %vm1972, %v1842, 0
      %v2427 = vsel %vm1972, %v1843, 0
      %v2430 = vsel %vm1972, %v1844, 0
      %v2433 = vsel %vm1972, %v1845, 0
      %v2436 = vsel %vm1972, %v1846, 0
      %v2439 = vsel %vm1972, %v1847, 0
      %v2442 = vsel %vm1972, %v1848, 0
      %v2445 = vsel %vm1972, %v1849, 0
      %v2448 = vsel %vm1972, %v1850, 0
      %v2451 = vsel %vm1972, %v1851, 0
      %v2454 = vsel %vm1972, %v1852, 0
      %v2457 = vsel %vm1972, %v1853, 0
      %v2460 = vsel %vm1972, %v1854, 0
      %v2463 = vsel %vm1972, %v1855, 0
      %v2466 = vsel %vm1972, %v1856, 0
      %v2469 = vsel %vm1972, %v1857, 0
      %v2472 = vsel %vm1972, %v1858, 0
      %v2475 = vsel %vm1972, %v1859, 0
      %v2478 = vsel %vm1972, %v1860, 0
      %v2481 = vsel %vm1972, %v1861, 0
      %v2484 = vsel %vm1972, %v1862, 0
      %v2487 = vsel %vm1972, %v1863, 0
      %v2490 = vsel %vm1972, %v1864, 0
      %v2493 = vsel %vm1972, %v1865, 0
      %v2496 = vsel %vm1972, %v1866, 0
      %v2499 = vsel %vm1972, %v1867, 0
      %v2502 = vsel %vm1972, %v1868, 0
      %v2505 = vsel %vm1972, %v1869, 0
      %v2508 = vsel %vm1972, %v1870, 0
      %v2511 = vsel %vm1972, %v1871, 0
      %v2514 = vsel %vm1972, %v1872, 0
      %v2517 = vsel %vm1972, %v1873, 0
      %v2520 = vsel %vm1972, %v1874, 0
      %v2523 = vsel %vm1972, %v1875, 0
      %v2526 = vsel %vm1972, %v1876, 0
      %v2529 = vsel %vm1972, %v1877, 0
      %v2532 = vsel %vm1972, %v1878, 0
      %v2535 = vsel %vm1972, %v1879, 0
      %v2538 = vsel %vm1972, %v1880, 0
      %v2541 = vsel %vm1972, %v1881, 0
      %v2544 = vsel %vm1972, %v1882, 0
      %v2547 = vsel %vm1972, %v1883, 0
      %v2550 = vsel %vm1972, %v1884, 0
      %v2553 = vsel %vm1972, %v1885, 0
      %v2556 = vsel %vm1972, %v1886, 0
      %v2559 = vsel %vm1972, %v1887, 0
      %v2562 = vsel %vm1972, %v1888, 0
      %v2565 = vsel %vm1972, %v1889, 0
      %v2568 = vsel %vm1972, %v1890, 0
      %v2571 = vsel %vm1972, %v1891, 0
      %v2574 = vsel %vm1972, %v1892, 0
      %v2577 = vsel %vm1972, %v1893, 0
      %v2580 = vsel %vm1972, %v1894, 0
      %v2583 = vsel %vm1972, %v1895, 0
      %v2586 = vsel %vm1972, %v1896, 0
      %v2589 = vsel %vm1972, %v1897, 0
      %v2592 = vsel %vm1972, %v1898, 0
      %v2595 = vsel %vm1972, %v1899, 0
      %v2598 = vsel %vm1972, %v1900, 0
      %v2601 = vsel %vm1972, %v1901, 0
      %v2604 = vsel %vm1972, %v1902, 0
      %v2607 = vsel %vm1972, %v1903, 0
      %v2610 = vsel %vm1972, %v1904, 0
      %v2613 = vsel %vm1972, %v1905, 0
      %v2616 = vsel %vm1972, %v1906, 0
      %v2619 = vsel %vm1972, %v1907, 0
      %v2622 = vsel %vm1972, %v1908, 0
      %v2625 = vsel %vm1972, %v1909, 0
      %v2628 = vsel %vm1972, %v1910, 0
      %v2631 = vsel %vm1972, %v1911, 0
      %v2634 = vsel %vm1972, %v1912, 0
      %v2637 = vsel %vm1972, %v1913, 0
      %v2640 = vsel %vm1972, %v1914, 0
      %v2643 = vsel %vm1972, %v1915, 0
      %v2646 = vsel %vm1972, %v1916, 0
      %v2649 = vsel %vm1972, %v1917, 0
      %v2652 = vsel %vm1972, %v1918, 0
      %v2655 = vsel %vm1972, %v1919, 0
      %v2658 = vsel %vm1972, %v1920, 0
      %v2661 = vsel %vm1972, %v1921, 0
      %v2664 = vsel %vm1972, %v1922, 0
      %v2667 = vsel %vm1972, %v1923, 0
      %v2670 = vsel %vm1972, %v1924, 0
      %v2673 = vsel %vm1972, %v1925, 0
      %v2676 = vsel %vm1972, %v1926, 0
      %v2679 = vsel %vm1972, %v1927, 0
      %v2682 = vsel %vm1972, %v1928, 0
      %v2685 = vsel %vm1972, %v1929, 0
      %v2688 = vsel %vm1972, %v1930, 0
      %v2691 = vsel %vm1972, %v1931, 0
      %v2694 = vsel %vm1972, %v1932, 0
      %v2697 = vsel %vm1972, %v1933, 0
      %v2700 = vsel %vm1972, %v1934, 0
      %v2703 = vsel %vm1972, %v1935, 0
      %v2706 = vsel %vm1972, %v1936, 0
      %v2709 = vsel %vm1972, %v1937, 0
      %v2712 = vsel %vm1972, %v1938, 0
      %v2715 = vsel %vm1972, %v1939, 0
      %v2718 = vsel %vm1972, %v1940, 0
      %v2721 = vsel %vm1972, %v1941, 0
      %v2724 = vsel %vm1972, %v1942, 0
      %v2727 = vsel %vm1972, %v1943, 0
      %v2730 = vsel %vm1972, %v1944, 0
      %v2733 = vsel %vm1972, %v1945, 0
      %v2736 = vsel %vm1972, %v1946, 0
      %v2739 = vsel %vm1972, %v1947, 0
      %2741 = vmatprep.subr.bf16.mxu0 0
      %2742 = vmatpush1.bf16.msra.mxu0 %v1964
      %2743 = vmatprep.subr.bf16.mxu0 0
      %2744 = vmatpush1.bf16.msra.mxu0 %v1965
      %2745 = vmatprep.subr.bf16.mxu0 0
      %2746 = vmatpush1.bf16.msra.mxu0 %v1966
      %2747 = vmatprep.subr.bf16.mxu0 0
      %2748 = vmatpush1.bf16.msra.mxu0 %v1967
      %2749 = vmatprep.subr.bf16.mxu0 0
      %2750 = vmatpush1.bf16.msra.mxu0 0
      %2751 = vmatprep.subr.bf16.mxu0 0
      %2752 = vmatpush1.bf16.msra.mxu0 0
      %2753 = vmatprep.subr.bf16.mxu0 0
      %2754 = vmatpush1.bf16.msra.mxu0 0
      %2755 = vmatprep.subr.bf16.mxu0 0
      %2756 = vmatpush1.bf16.msra.mxu0 0
      %2757 = vmatprep.subr.bf16.mxu0 0
      %2758 = vmatpush1.bf16.msra.mxu0 0
      %2759 = vmatprep.subr.bf16.mxu0 0
      %2760 = vmatpush1.bf16.msra.mxu0 0
      %2761 = vmatprep.subr.bf16.mxu0 0
      %2762 = vmatpush1.bf16.msra.mxu0 0
      %2763 = vmatprep.subr.bf16.mxu0 0
      %2764 = vmatpush1.bf16.msra.mxu0 0
      %2765 = vmatprep.subr.bf16.mxu0 0
      %2766 = vmatpush1.bf16.msra.mxu0 0
      %2767 = vmatprep.subr.bf16.mxu0 0
      %2768 = vmatpush1.bf16.msra.mxu0 0
      %2769 = vmatprep.subr.bf16.mxu0 0
      %2770 = vmatpush1.bf16.msra.mxu0 0
      %2771 = vmatprep.subr.bf16.mxu0 0
      %2772 = vmatpush1.bf16.msra.mxu0 0
      %2773 = vmatprep.mubr.bf16.mxu0 0
      %2774 = vmatmul.mubr.bf16.gmra.mrb[0].mxu0 %v1974
      %v2775 = vpop.f32.mrb[0].mxu0
      %v2776 = vadd.f32 0.0, %v2775
      %v2777 = vpop.f32.mrb[0].mxu0
      %v2778 = vpop.f32.mrb[0].mxu0
      %v2779 = vadd.f32 0.0, %v2778
      %v2780 = vpop.f32.mrb[0].mxu0
      %2781 = vmatprep.mubr.bf16.mxu0 0
      %2782 = vmatmul.mubr.bf16.gmra.mrb[0].mxu0 %v1977
      %v2783 = vpop.f32.mrb[0].mxu0
      %v2784 = vadd.f32 0.0, %v2783
      %v2785 = vpop.f32.mrb[0].mxu0
      %v2786 = vpop.f32.mrb[0].mxu0
      %v2787 = vadd.f32 0.0, %v2786
      %v2788 = vpop.f32.mrb[0].mxu0
      %2789 = vmatprep.mubr.bf16.mxu0 0
      %2790 = vmatmul.mubr.bf16.gmra.mrb[0].mxu0 %v1980
      %v2791 = vpop.f32.mrb[0].mxu0
      %v2792 = vadd.f32 0.0, %v2791
      %v2793 = vpop.f32.mrb[0].mxu0
      %v2794 = vpop.f32.mrb[0].mxu0
      %v2795 = vadd.f32 0.0, %v2794
      %v2796 = vpop.f32.mrb[0].mxu0
      %2797 = vmatprep.mubr.bf16.mxu0 0
      %2798 = vmatmul.mubr.bf16.gmra.mrb[0].mxu0 %v1983
      %v2799 = vpop.f32.mrb[0].mxu0
      %v2800 = vadd.f32 0.0, %v2799
      %v2801 = vpop.f32.mrb[0].mxu0
      %v2802 = vpop.f32.mrb[0].mxu0
      %v2803 = vadd.f32 0.0, %v2802
      %v2804 = vpop.f32.mrb[0].mxu0
      %2805 = vmatprep.mubr.bf16.mxu0 0
      %2806 = vmatmul.mubr.bf16.gmra.mrb[0].mxu0 %v1986
      %v2807 = vpop.f32.mrb[0].mxu0
      %v2808 = vadd.f32 0.0, %v2807
      %v2809 = vpop.f32.mrb[0].mxu0
      %v2810 = vpop.f32.mrb[0].mxu0
      %v2811 = vadd.f32 0.0, %v2810
      %v2812 = vpop.f32.mrb[0].mxu0
      %2813 = vmatprep.mubr.bf16.mxu0 0
      %2814 = vmatmul.mubr.bf16.gmra.mrb[0].mxu0 %v1989
      %v2815 = vpop.f32.mrb[0].mxu0
      %v2816 = vadd.f32 0.0, %v2815
      %v2817 = vpop.f32.mrb[0].mxu0
      %v2818 = vpop.f32.mrb[0].mxu0
      %v2819 = vadd.f32 0.0, %v2818
      %v2820 = vpop.f32.mrb[0].mxu0
      %2821 = vmatprep.mubr.bf16.mxu0 0
      %2822 = vmatmul.mubr.bf16.gmra.mrb[0].mxu0 %v1992
      %v2823 = vpop.f32.mrb[0].mxu0
      %v2824 = vadd.f32 0.0, %v2823
      %v2825 = vpop.f32.mrb[0].mxu0
      %v2826 = vpop.f32.mrb[0].mxu0
      %v2827 = vadd.f32 0.0, %v2826
      %v2828 = vpop.f32.mrb[0].mxu0
      %2829 = vmatprep.mubr.bf16.mxu0 0
      %2830 = vmatmul.mubr.bf16.gmra.mrb[0].mxu0 %v1995
      %v2831 = vpop.f32.mrb[0].mxu0
      %v2832 = vadd.f32 0.0, %v2831
      %v2833 = vpop.f32.mrb[0].mxu0
      %v2834 = vpop.f32.mrb[0].mxu0
      %v2835 = vadd.f32 0.0, %v2834
      %v2836 = vpop.f32.mrb[0].mxu0
      %2837 = vmatprep.mubr.bf16.mxu0 0
      %2838 = vmatmul.mubr.bf16.gmra.mrb[0].mxu0 %v1998
      %v2839 = vpop.f32.mrb[0].mxu0
      %v2840 = vadd.f32 0.0, %v2839
      %v2841 = vpop.f32.mrb[0].mxu0
      %v2842 = vpop.f32.mrb[0].mxu0
      %v2843 = vadd.f32 0.0, %v2842
      %v2844 = vpop.f32.mrb[0].mxu0
      %2845 = vmatprep.mubr.bf16.mxu0 0
      %2846 = vmatmul.mubr.bf16.gmra.mrb[0].mxu0 %v2001
      %v2847 = vpop.f32.mrb[0].mxu0
      %v2848 = vadd.f32 0.0, %v2847
      %v2849 = vpop.f32.mrb[0].mxu0
      %v2850 = vpop.f32.mrb[0].mxu0
      %v2851 = vadd.f32 0.0, %v2850
      %v2852 = vpop.f32.mrb[0].mxu0
      %2853 = vmatprep.mubr.bf16.mxu0 0
      %2854 = vmatmul.mubr.bf16.gmra.mrb[0].mxu0 %v2004
      %v2855 = vpop.f32.mrb[0].mxu0
      %v2856 = vadd.f32 0.0, %v2855
      %v2857 = vpop.f32.mrb[0].mxu0
      %v2858 = vpop.f32.mrb[0].mxu0
      %v2859 = vadd.f32 0.0, %v2858
      %v2860 = vpop.f32.mrb[0].mxu0
      %2861 = vmatprep.mubr.bf16.mxu0 0
      %2862 = vmatmul.mubr.bf16.gmra.mrb[0].mxu0 %v2007
      %v2863 = vpop.f32.mrb[0].mxu0
      %v2864 = vadd.f32 0.0, %v2863
      %v2865 = vpop.f32.mrb[0].mxu0
      %v2866 = vpop.f32.mrb[0].mxu0
      %v2867 = vadd.f32 0.0, %v2866
      %v2868 = vpop.f32.mrb[0].mxu0
      %2869 = vmatprep.mubr.bf16.mxu0 0
      %2870 = vmatmul.mubr.bf16.gmra.mrb[0].mxu0 %v2010
      %v2871 = vpop.f32.mrb[0].mxu0
      %v2872 = vadd.f32 0.0, %v2871
      %v2873 = vpop.f32.mrb[0].mxu0
      %v2874 = vpop.f32.mrb[0].mxu0
      %v2875 = vadd.f32 0.0, %v2874
      %v2876 = vpop.f32.mrb[0].mxu0
      %2877 = vmatprep.mubr.bf16.mxu0 0
      %2878 = vmatmul.mubr.bf16.gmra.mrb[0].mxu0 %v2013
      %v2879 = vpop.f32.mrb[0].mxu0
      %v2880 = vadd.f32 0.0, %v2879
      %v2881 = vpop.f32.mrb[0].mxu0
      %v2882 = vpop.f32.mrb[0].mxu0
      %v2883 = vadd.f32 0.0, %v2882
      %v2884 = vpop.f32.mrb[0].mxu0
      %2885 = vmatprep.mubr.bf16.mxu0 0
      %2886 = vmatmul.mubr.bf16.gmra.mrb[0].mxu0 %v2016
      %v2887 = vpop.f32.mrb[0].mxu0
      %v2888 = vadd.f32 0.0, %v2887
      %v2889 = vpop.f32.mrb[0].mxu0
      %v2890 = vpop.f32.mrb[0].mxu0
      %v2891 = vadd.f32 0.0, %v2890
      %v2892 = vpop.f32.mrb[0].mxu0
      %2893 = vmatprep.mubr.bf16.mxu0 0
      %2894 = vmatmul.mubr.bf16.gmra.mrb[0].mxu0 %v2019
      %v2895 = vpop.f32.mrb[0].mxu0
      %v2896 = vadd.f32 0.0, %v2895
      %v2897 = vpop.f32.mrb[0].mxu0
      %v2898 = vpop.f32.mrb[0].mxu0
      %v2899 = vadd.f32 0.0, %v2898
      %v2900 = vpop.f32.mrb[0].mxu0
      %2901 = vmatprep.mubr.bf16.mxu0 0
      %2902 = vmatmul.mubr.bf16.gmra.mrb[0].mxu0 %v2022
      %v2903 = vpop.f32.mrb[0].mxu0
      %v2904 = vadd.f32 0.0, %v2903
      %v2905 = vpop.f32.mrb[0].mxu0
      %v2906 = vpop.f32.mrb[0].mxu0
      %v2907 = vadd.f32 0.0, %v2906
      %v2908 = vpop.f32.mrb[0].mxu0
      %2909 = vmatprep.mubr.bf16.mxu0 0
      %2910 = vmatmul.mubr.bf16.gmra.mrb[0].mxu0 %v2025
      %v2911 = vpop.f32.mrb[0].mxu0
      %v2912 = vadd.f32 0.0, %v2911
      %v2913 = vpop.f32.mrb[0].mxu0
      %v2914 = vpop.f32.mrb[0].mxu0
      %v2915 = vadd.f32 0.0, %v2914
      %v2916 = vpop.f32.mrb[0].mxu0
      %2917 = vmatprep.mubr.bf16.mxu0 0
      %2918 = vmatmul.mubr.bf16.gmra.mrb[0].mxu0 %v2028
      %v2919 = vpop.f32.mrb[0].mxu0
      %v2920 = vadd.f32 0.0, %v2919
      %v2921 = vpop.f32.mrb[0].mxu0
      %v2922 = vpop.f32.mrb[0].mxu0
      %v2923 = vadd.f32 0.0, %v2922
      %v2924 = vpop.f32.mrb[0].mxu0
      %2925 = vmatprep.mubr.bf16.mxu0 0
      %2926 = vmatmul.mubr.bf16.gmra.mrb[0].mxu0 %v2031
      %v2927 = vpop.f32.mrb[0].mxu0
      %v2928 = vadd.f32 0.0, %v2927
      %v2929 = vpop.f32.mrb[0].mxu0
      %v2930 = vpop.f32.mrb[0].mxu0
      %v2931 = vadd.f32 0.0, %v2930
      %v2932 = vpop.f32.mrb[0].mxu0
      %2933 = vmatprep.mubr.bf16.mxu0 0
      %2934 = vmatmul.mubr.bf16.gmra.mrb[0].mxu0 %v2034
      %v2935 = vpop.f32.mrb[0].mxu0
      %v2936 = vadd.f32 0.0, %v2935
      %v2937 = vpop.f32.mrb[0].mxu0
      %v2938 = vpop.f32.mrb[0].mxu0
      %v2939 = vadd.f32 0.0, %v2938
      %v2940 = vpop.f32.mrb[0].mxu0
      %2941 = vmatprep.mubr.bf16.mxu0 0
      %2942 = vmatmul.mubr.bf16.gmra.mrb[0].mxu0 %v2037
      %v2943 = vpop.f32.mrb[0].mxu0
      %v2944 = vadd.f32 0.0, %v2943
      %v2945 = vpop.f32.mrb[0].mxu0
      %v2946 = vpop.f32.mrb[0].mxu0
      %v2947 = vadd.f32 0.0, %v2946
      %v2948 = vpop.f32.mrb[0].mxu0
      %2949 = vmatprep.mubr.bf16.mxu0 0
      %2950 = vmatmul.mubr.bf16.gmra.mrb[0].mxu0 %v2040
      %v2951 = vpop.f32.mrb[0].mxu0
      %v2952 = vadd.f32 0.0, %v2951
      %v2953 = vpop.f32.mrb[0].mxu0
      %v2954 = vpop.f32.mrb[0].mxu0
      %v2955 = vadd.f32 0.0, %v2954
      %v2956 = vpop.f32.mrb[0].mxu0
      %2957 = vmatprep.mubr.bf16.mxu0 0
      %2958 = vmatmul.mubr.bf16.gmra.mrb[0].mxu0 %v2043
      %v2959 = vpop.f32.mrb[0].mxu0
      %v2960 = vadd.f32 0.0, %v2959
      %v2961 = vpop.f32.mrb[0].mxu0
      %v2962 = vpop.f32.mrb[0].mxu0
      %v2963 = vadd.f32 0.0, %v2962
      %v2964 = vpop.f32.mrb[0].mxu0
      %2965 = vmatprep.mubr.bf16.mxu0 0
      %2966 = vmatmul.mubr.bf16.gmra.mrb[0].mxu0 %v2046
      %v2967 = vpop.f32.mrb[0].mxu0
      %v2968 = vadd.f32 0.0, %v2967
      %v2969 = vpop.f32.mrb[0].mxu0
      %v2970 = vpop.f32.mrb[0].mxu0
      %v2971 = vadd.f32 0.0, %v2970
      %v2972 = vpop.f32.mrb[0].mxu0
      %2973 = vmatprep.mubr.bf16.mxu0 0
      %2974 = vmatmul.mubr.bf16.gmra.mrb[0].mxu0 %v2049
      %v2975 = vpop.f32.mrb[0].mxu0
      %v2976 = vadd.f32 0.0, %v2975
      %v2977 = vpop.f32.mrb[0].mxu0
      %v2978 = vpop.f32.mrb[0].mxu0
      %v2979 = vadd.f32 0.0, %v2978
      %v2980 = vpop.f32.mrb[0].mxu0
      %2981 = vmatprep.mubr.bf16.mxu0 0
      %2982 = vmatmul.mubr.bf16.gmra.mrb[0].mxu0 %v2052
      %v2983 = vpop.f32.mrb[0].mxu0
      %v2984 = vadd.f32 0.0, %v2983
      %v2985 = vpop.f32.mrb[0].mxu0
      %v2986 = vpop.f32.mrb[0].mxu0
      %v2987 = vadd.f32 0.0, %v2986
      %v2988 = vpop.f32.mrb[0].mxu0
      %2989 = vmatprep.mubr.bf16.mxu0 0
      %2990 = vmatmul.mubr.bf16.gmra.mrb[0].mxu0 %v2055
      %v2991 = vpop.f32.mrb[0].mxu0
      %v2992 = vadd.f32 0.0, %v2991
      %v2993 = vpop.f32.mrb[0].mxu0
      %v2994 = vpop.f32.mrb[0].mxu0
      %v2995 = vadd.f32 0.0, %v2994
      %v2996 = vpop.f32.mrb[0].mxu0
      %2997 = vmatprep.mubr.bf16.mxu0 0
      %2998 = vmatmul.mubr.bf16.gmra.mrb[0].mxu0 %v2058
      %v2999 = vpop.f32.mrb[0].mxu0
      %v3000 = vadd.f32 0.0, %v2999
      %v3001 = vpop.f32.mrb[0].mxu0
      %v3002 = vpop.f32.mrb[0].mxu0
      %v3003 = vadd.f32 0.0, %v3002
      %v3004 = vpop.f32.mrb[0].mxu0
      %3005 = vmatprep.mubr.bf16.mxu0 0
      %3006 = vmatmul.mubr.bf16.gmra.mrb[0].mxu0 %v2061
      %v3007 = vpop.f32.mrb[0].mxu0
      %v3008 = vadd.f32 0.0, %v3007
      %v3009 = vpop.f32.mrb[0].mxu0
      %v3010 = vpop.f32.mrb[0].mxu0
      %v3011 = vadd.f32 0.0, %v3010
      %v3012 = vpop.f32.mrb[0].mxu0
      %3013 = vmatprep.mubr.bf16.mxu0 0
      %3014 = vmatmul.mubr.bf16.gmra.mrb[0].mxu0 %v2064
      %v3015 = vpop.f32.mrb[0].mxu0
      %v3016 = vadd.f32 0.0, %v3015
      %v3017 = vpop.f32.mrb[0].mxu0
      %v3018 = vpop.f32.mrb[0].mxu0
      %v3019 = vadd.f32 0.0, %v3018
      %v3020 = vpop.f32.mrb[0].mxu0
      %3021 = vmatprep.mubr.bf16.mxu0 0
      %3022 = vmatmul.mubr.bf16.gmra.mrb[0].mxu0 %v2067
      %v3023 = vpop.f32.mrb[0].mxu0
      %v3024 = vadd.f32 0.0, %v3023
      %v3025 = vpop.f32.mrb[0].mxu0
      %v3026 = vpop.f32.mrb[0].mxu0
      %v3027 = vadd.f32 0.0, %v3026
      %v3028 = vpop.f32.mrb[0].mxu0
      %3029 = vmatprep.mubr.bf16.mxu0 0
      %3030 = vmatmul.mubr.bf16.gmra.mrb[0].mxu0 %v2070
      %v3031 = vpop.f32.mrb[0].mxu0
      %v3032 = vadd.f32 0.0, %v3031
      %v3033 = vpop.f32.mrb[0].mxu0
      %v3034 = vpop.f32.mrb[0].mxu0
      %v3035 = vadd.f32 0.0, %v3034
      %v3036 = vpop.f32.mrb[0].mxu0
      %3037 = vmatprep.mubr.bf16.mxu0 0
      %3038 = vmatmul.mubr.bf16.gmra.mrb[0].mxu0 %v2073
      %v3039 = vpop.f32.mrb[0].mxu0
      %v3040 = vadd.f32 0.0, %v3039
      %v3041 = vpop.f32.mrb[0].mxu0
      %v3042 = vpop.f32.mrb[0].mxu0
      %v3043 = vadd.f32 0.0, %v3042
      %v3044 = vpop.f32.mrb[0].mxu0
      %3045 = vmatprep.mubr.bf16.mxu0 0
      %3046 = vmatmul.mubr.bf16.gmra.mrb[0].mxu0 %v2076
      %v3047 = vpop.f32.mrb[0].mxu0
      %v3048 = vadd.f32 0.0, %v3047
      %v3049 = vpop.f32.mrb[0].mxu0
      %v3050 = vpop.f32.mrb[0].mxu0
      %v3051 = vadd.f32 0.0, %v3050
      %v3052 = vpop.f32.mrb[0].mxu0
      %3053 = vmatprep.mubr.bf16.mxu0 0
      %3054 = vmatmul.mubr.bf16.gmra.mrb[0].mxu0 %v2079
      %v3055 = vpop.f32.mrb[0].mxu0
      %v3056 = vadd.f32 0.0, %v3055
      %v3057 = vpop.f32.mrb[0].mxu0
      %v3058 = vpop.f32.mrb[0].mxu0
      %v3059 = vadd.f32 0.0, %v3058
      %v3060 = vpop.f32.mrb[0].mxu0
      %3061 = vmatprep.mubr.bf16.mxu0 0
      %3062 = vmatmul.mubr.bf16.gmra.mrb[0].mxu0 %v2082
      %v3063 = vpop.f32.mrb[0].mxu0
      %v3064 = vadd.f32 0.0, %v3063
      %v3065 = vpop.f32.mrb[0].mxu0
      %v3066 = vpop.f32.mrb[0].mxu0
      %v3067 = vadd.f32 0.0, %v3066
      %v3068 = vpop.f32.mrb[0].mxu0
      %3069 = vmatprep.mubr.bf16.mxu0 0
      %3070 = vmatmul.mubr.bf16.gmra.mrb[0].mxu0 %v2085
      %v3071 = vpop.f32.mrb[0].mxu0
      %v3072 = vadd.f32 0.0, %v3071
      %v3073 = vpop.f32.mrb[0].mxu0
      %v3074 = vpop.f32.mrb[0].mxu0
      %v3075 = vadd.f32 0.0, %v3074
      %v3076 = vpop.f32.mrb[0].mxu0
      %3077 = vmatprep.mubr.bf16.mxu0 0
      %3078 = vmatmul.mubr.bf16.gmra.mrb[0].mxu0 %v2088
      %v3079 = vpop.f32.mrb[0].mxu0
      %v3080 = vadd.f32 0.0, %v3079
      %v3081 = vpop.f32.mrb[0].mxu0
      %v3082 = vpop.f32.mrb[0].mxu0
      %v3083 = vadd.f32 0.0, %v3082
      %v3084 = vpop.f32.mrb[0].mxu0
      %3085 = vmatprep.mubr.bf16.mxu0 0
      %3086 = vmatmul.mubr.bf16.gmra.mrb[0].mxu0 %v2091
      %v3087 = vpop.f32.mrb[0].mxu0
      %v3088 = vadd.f32 0.0, %v3087
      %v3089 = vpop.f32.mrb[0].mxu0
      %v3090 = vpop.f32.mrb[0].mxu0
      %v3091 = vadd.f32 0.0, %v3090
      %v3092 = vpop.f32.mrb[0].mxu0
      %3093 = vmatprep.mubr.bf16.mxu0 0
      %3094 = vmatmul.mubr.bf16.gmra.mrb[0].mxu0 %v2094
      %v3095 = vpop.f32.mrb[0].mxu0
      %v3096 = vadd.f32 0.0, %v3095
      %v3097 = vpop.f32.mrb[0].mxu0
      %v3098 = vpop.f32.mrb[0].mxu0
      %v3099 = vadd.f32 0.0, %v3098
      %v3100 = vpop.f32.mrb[0].mxu0
      %3101 = vmatprep.mubr.bf16.mxu0 0
      %3102 = vmatmul.mubr.bf16.gmra.mrb[0].mxu0 %v2097
      %v3103 = vpop.f32.mrb[0].mxu0
      %v3104 = vadd.f32 0.0, %v3103
      %v3105 = vpop.f32.mrb[0].mxu0
      %v3106 = vpop.f32.mrb[0].mxu0
      %v3107 = vadd.f32 0.0, %v3106
      %v3108 = vpop.f32.mrb[0].mxu0
      %3109 = vmatprep.mubr.bf16.mxu0 0
      %3110 = vmatmul.mubr.bf16.gmra.mrb[0].mxu0 %v2100
      %v3111 = vpop.f32.mrb[0].mxu0
      %v3112 = vadd.f32 0.0, %v3111
      %v3113 = vpop.f32.mrb[0].mxu0
      %v3114 = vpop.f32.mrb[0].mxu0
      %v3115 = vadd.f32 0.0, %v3114
      %v3116 = vpop.f32.mrb[0].mxu0
      %3117 = vmatprep.mubr.bf16.mxu0 0
      %3118 = vmatmul.mubr.bf16.gmra.mrb[0].mxu0 %v2103
      %v3119 = vpop.f32.mrb[0].mxu0
      %v3120 = vadd.f32 0.0, %v3119
      %v3121 = vpop.f32.mrb[0].mxu0
      %v3122 = vpop.f32.mrb[0].mxu0
      %v3123 = vadd.f32 0.0, %v3122
      %v3124 = vpop.f32.mrb[0].mxu0
      %3125 = vmatprep.mubr.bf16.mxu0 0
      %3126 = vmatmul.mubr.bf16.gmra.mrb[0].mxu0 %v2106
      %v3127 = vpop.f32.mrb[0].mxu0
      %v3128 = vadd.f32 0.0, %v3127
      %v3129 = vpop.f32.mrb[0].mxu0
      %v3130 = vpop.f32.mrb[0].mxu0
      %v3131 = vadd.f32 0.0, %v3130
      %v3132 = vpop.f32.mrb[0].mxu0
      %3133 = vmatprep.mubr.bf16.mxu0 0
      %3134 = vmatmul.mubr.bf16.gmra.mrb[0].mxu0 %v2109
      %v3135 = vpop.f32.mrb[0].mxu0
      %v3136 = vadd.f32 0.0, %v3135
      %v3137 = vpop.f32.mrb[0].mxu0
      %v3138 = vpop.f32.mrb[0].mxu0
      %v3139 = vadd.f32 0.0, %v3138
      %v3140 = vpop.f32.mrb[0].mxu0
      %3141 = vmatprep.mubr.bf16.mxu0 0
      %3142 = vmatmul.mubr.bf16.gmra.mrb[0].mxu0 %v2112
      %v3143 = vpop.f32.mrb[0].mxu0
      %v3144 = vadd.f32 0.0, %v3143
      %v3145 = vpop.f32.mrb[0].mxu0
      %v3146 = vpop.f32.mrb[0].mxu0
      %v3147 = vadd.f32 0.0, %v3146
      %v3148 = vpop.f32.mrb[0].mxu0
      %3149 = vmatprep.mubr.bf16.mxu0 0
      %3150 = vmatmul.mubr.bf16.gmra.mrb[0].mxu0 %v2115
      %v3151 = vpop.f32.mrb[0].mxu0
      %v3152 = vadd.f32 0.0, %v3151
      %v3153 = vpop.f32.mrb[0].mxu0
      %v3154 = vpop.f32.mrb[0].mxu0
      %v3155 = vadd.f32 0.0, %v3154
      %v3156 = vpop.f32.mrb[0].mxu0
      %3157 = vmatprep.mubr.bf16.mxu0 0
      %3158 = vmatmul.mubr.bf16.gmra.mrb[0].mxu0 %v2118
      %v3159 = vpop.f32.mrb[0].mxu0
      %v3160 = vadd.f32 0.0, %v3159
      %v3161 = vpop.f32.mrb[0].mxu0
      %v3162 = vpop.f32.mrb[0].mxu0
      %v3163 = vadd.f32 0.0, %v3162
      %v3164 = vpop.f32.mrb[0].mxu0
      %3165 = vmatprep.mubr.bf16.mxu0 0
      %3166 = vmatmul.mubr.bf16.gmra.mrb[0].mxu0 %v2121
      %v3167 = vpop.f32.mrb[0].mxu0
      %v3168 = vadd.f32 0.0, %v3167
      %v3169 = vpop.f32.mrb[0].mxu0
      %v3170 = vpop.f32.mrb[0].mxu0
      %v3171 = vadd.f32 0.0, %v3170
      %v3172 = vpop.f32.mrb[0].mxu0
      %3173 = vmatprep.mubr.bf16.mxu0 0
      %3174 = vmatmul.mubr.bf16.gmra.mrb[0].mxu0 %v2124
      %v3175 = vpop.f32.mrb[0].mxu0
      %v3176 = vadd.f32 0.0, %v3175
      %v3177 = vpop.f32.mrb[0].mxu0
      %v3178 = vpop.f32.mrb[0].mxu0
      %v3179 = vadd.f32 0.0, %v3178
      %v3180 = vpop.f32.mrb[0].mxu0
      %3181 = vmatprep.mubr.bf16.mxu0 0
      %3182 = vmatmul.mubr.bf16.gmra.mrb[0].mxu0 %v2127
      %v3183 = vpop.f32.mrb[0].mxu0
      %v3184 = vadd.f32 0.0, %v3183
      %v3185 = vpop.f32.mrb[0].mxu0
      %v3186 = vpop.f32.mrb[0].mxu0
      %v3187 = vadd.f32 0.0, %v3186
      %v3188 = vpop.f32.mrb[0].mxu0
      %3189 = vmatprep.mubr.bf16.mxu0 0
      %3190 = vmatmul.mubr.bf16.gmra.mrb[0].mxu0 %v2130
      %v3191 = vpop.f32.mrb[0].mxu0
      %v3192 = vadd.f32 0.0, %v3191
      %v3193 = vpop.f32.mrb[0].mxu0
      %v3194 = vpop.f32.mrb[0].mxu0
      %v3195 = vadd.f32 0.0, %v3194
      %v3196 = vpop.f32.mrb[0].mxu0
      %3197 = vmatprep.mubr.bf16.mxu0 0
      %3198 = vmatmul.mubr.bf16.gmra.mrb[0].mxu0 %v2133
      %v3199 = vpop.f32.mrb[0].mxu0
      %v3200 = vadd.f32 0.0, %v3199
      %v3201 = vpop.f32.mrb[0].mxu0
      %v3202 = vpop.f32.mrb[0].mxu0
      %v3203 = vadd.f32 0.0, %v3202
      %v3204 = vpop.f32.mrb[0].mxu0
      %3205 = vmatprep.mubr.bf16.mxu0 0
      %3206 = vmatmul.mubr.bf16.gmra.mrb[0].mxu0 %v2136
      %v3207 = vpop.f32.mrb[0].mxu0
      %v3208 = vadd.f32 0.0, %v3207
      %v3209 = vpop.f32.mrb[0].mxu0
      %v3210 = vpop.f32.mrb[0].mxu0
      %v3211 = vadd.f32 0.0, %v3210
      %v3212 = vpop.f32.mrb[0].mxu0
      %3213 = vmatprep.mubr.bf16.mxu0 0
      %3214 = vmatmul.mubr.bf16.gmra.mrb[0].mxu0 %v2139
      %v3215 = vpop.f32.mrb[0].mxu0
      %v3216 = vadd.f32 0.0, %v3215
      %v3217 = vpop.f32.mrb[0].mxu0
      %v3218 = vpop.f32.mrb[0].mxu0
      %v3219 = vadd.f32 0.0, %v3218
      %v3220 = vpop.f32.mrb[0].mxu0
      %3221 = vmatprep.mubr.bf16.mxu0 0
      %3222 = vmatmul.mubr.bf16.gmra.mrb[0].mxu0 %v2142
      %v3223 = vpop.f32.mrb[0].mxu0
      %v3224 = vadd.f32 0.0, %v3223
      %v3225 = vpop.f32.mrb[0].mxu0
      %v3226 = vpop.f32.mrb[0].mxu0
      %v3227 = vadd.f32 0.0, %v3226
      %v3228 = vpop.f32.mrb[0].mxu0
      %3229 = vmatprep.mubr.bf16.mxu0 0
      %3230 = vmatmul.mubr.bf16.gmra.mrb[0].mxu0 %v2145
      %v3231 = vpop.f32.mrb[0].mxu0
      %v3232 = vadd.f32 0.0, %v3231
      %v3233 = vpop.f32.mrb[0].mxu0
      %v3234 = vpop.f32.mrb[0].mxu0
      %v3235 = vadd.f32 0.0, %v3234
      %v3236 = vpop.f32.mrb[0].mxu0
      %3237 = vmatprep.mubr.bf16.mxu0 0
      %3238 = vmatmul.mubr.bf16.gmra.mrb[0].mxu0 %v2148
      %v3239 = vpop.f32.mrb[0].mxu0
      %v3240 = vadd.f32 0.0, %v3239
      %v3241 = vpop.f32.mrb[0].mxu0
      %v3242 = vpop.f32.mrb[0].mxu0
      %v3243 = vadd.f32 0.0, %v3242
      %v3244 = vpop.f32.mrb[0].mxu0
      %3245 = vmatprep.mubr.bf16.mxu0 0
      %3246 = vmatmul.mubr.bf16.gmra.mrb[0].mxu0 %v2151
      %v3247 = vpop.f32.mrb[0].mxu0
      %v3248 = vadd.f32 0.0, %v3247
      %v3249 = vpop.f32.mrb[0].mxu0
      %v3250 = vpop.f32.mrb[0].mxu0
      %v3251 = vadd.f32 0.0, %v3250
      %v3252 = vpop.f32.mrb[0].mxu0
      %3253 = vmatprep.mubr.bf16.mxu0 0
      %3254 = vmatmul.mubr.bf16.gmra.mrb[0].mxu0 %v2154
      %v3255 = vpop.f32.mrb[0].mxu0
      %v3256 = vadd.f32 0.0, %v3255
      %v3257 = vpop.f32.mrb[0].mxu0
      %v3258 = vpop.f32.mrb[0].mxu0
      %v3259 = vadd.f32 0.0, %v3258
      %v3260 = vpop.f32.mrb[0].mxu0
      %3261 = vmatprep.mubr.bf16.mxu0 0
      %3262 = vmatmul.mubr.bf16.gmra.mrb[0].mxu0 %v2157
      %v3263 = vpop.f32.mrb[0].mxu0
      %v3264 = vadd.f32 0.0, %v3263
      %v3265 = vpop.f32.mrb[0].mxu0
      %v3266 = vpop.f32.mrb[0].mxu0
      %v3267 = vadd.f32 0.0, %v3266
      %v3268 = vpop.f32.mrb[0].mxu0
      %3269 = vmatprep.mubr.bf16.mxu0 0
      %3270 = vmatmul.mubr.bf16.gmra.mrb[0].mxu0 %v2160
      %v3271 = vpop.f32.mrb[0].mxu0
      %v3272 = vadd.f32 0.0, %v3271
      %v3273 = vpop.f32.mrb[0].mxu0
      %v3274 = vpop.f32.mrb[0].mxu0
      %v3275 = vadd.f32 0.0, %v3274
      %v3276 = vpop.f32.mrb[0].mxu0
      %3277 = vmatprep.mubr.bf16.mxu0 0
      %3278 = vmatmul.mubr.bf16.gmra.mrb[0].mxu0 %v2163
      %v3279 = vpop.f32.mrb[0].mxu0
      %v3280 = vadd.f32 0.0, %v3279
      %v3281 = vpop.f32.mrb[0].mxu0
      %v3282 = vpop.f32.mrb[0].mxu0
      %v3283 = vadd.f32 0.0, %v3282
      %v3284 = vpop.f32.mrb[0].mxu0
      %3285 = vmatprep.mubr.bf16.mxu0 0
      %3286 = vmatmul.mubr.bf16.gmra.mrb[0].mxu0 %v2166
      %v3287 = vpop.f32.mrb[0].mxu0
      %v3288 = vadd.f32 0.0, %v3287
      %v3289 = vpop.f32.mrb[0].mxu0
      %v3290 = vpop.f32.mrb[0].mxu0
      %v3291 = vadd.f32 0.0, %v3290
      %v3292 = vpop.f32.mrb[0].mxu0
      %3293 = vmatprep.mubr.bf16.mxu0 0
      %3294 = vmatmul.mubr.bf16.gmra.mrb[0].mxu0 %v2169
      %v3295 = vpop.f32.mrb[0].mxu0
      %v3296 = vadd.f32 0.0, %v3295
      %v3297 = vpop.f32.mrb[0].mxu0
      %v3298 = vpop.f32.mrb[0].mxu0
      %v3299 = vadd.f32 0.0, %v3298
      %v3300 = vpop.f32.mrb[0].mxu0
      %3301 = vmatprep.mubr.bf16.mxu0 0
      %3302 = vmatmul.mubr.bf16.gmra.mrb[0].mxu0 %v2172
      %v3303 = vpop.f32.mrb[0].mxu0
      %v3304 = vadd.f32 0.0, %v3303
      %v3305 = vpop.f32.mrb[0].mxu0
      %v3306 = vpop.f32.mrb[0].mxu0
      %v3307 = vadd.f32 0.0, %v3306
      %v3308 = vpop.f32.mrb[0].mxu0
      %3309 = vmatprep.mubr.bf16.mxu0 0
      %3310 = vmatmul.mubr.bf16.gmra.mrb[0].mxu0 %v2175
      %v3311 = vpop.f32.mrb[0].mxu0
      %v3312 = vadd.f32 0.0, %v3311
      %v3313 = vpop.f32.mrb[0].mxu0
      %v3314 = vpop.f32.mrb[0].mxu0
      %v3315 = vadd.f32 0.0, %v3314
      %v3316 = vpop.f32.mrb[0].mxu0
      %3317 = vmatprep.mubr.bf16.mxu0 0
      %3318 = vmatmul.mubr.bf16.gmra.mrb[0].mxu0 %v2178
      %v3319 = vpop.f32.mrb[0].mxu0
      %v3320 = vadd.f32 0.0, %v3319
      %v3321 = vpop.f32.mrb[0].mxu0
      %v3322 = vpop.f32.mrb[0].mxu0
      %v3323 = vadd.f32 0.0, %v3322
      %v3324 = vpop.f32.mrb[0].mxu0
      %3325 = vmatprep.mubr.bf16.mxu0 0
      %3326 = vmatmul.mubr.bf16.gmra.mrb[0].mxu0 %v2181
      %v3327 = vpop.f32.mrb[0].mxu0
      %v3328 = vadd.f32 0.0, %v3327
      %v3329 = vpop.f32.mrb[0].mxu0
      %v3330 = vpop.f32.mrb[0].mxu0
      %v3331 = vadd.f32 0.0, %v3330
      %v3332 = vpop.f32.mrb[0].mxu0
      %3333 = vmatprep.mubr.bf16.mxu0 0
      %3334 = vmatmul.mubr.bf16.gmra.mrb[0].mxu0 %v2184
      %v3335 = vpop.f32.mrb[0].mxu0
      %v3336 = vadd.f32 0.0, %v3335
      %v3337 = vpop.f32.mrb[0].mxu0
      %v3338 = vpop.f32.mrb[0].mxu0
      %v3339 = vadd.f32 0.0, %v3338
      %v3340 = vpop.f32.mrb[0].mxu0
      %3341 = vmatprep.mubr.bf16.mxu0 0
      %3342 = vmatmul.mubr.bf16.gmra.mrb[0].mxu0 %v2187
      %v3343 = vpop.f32.mrb[0].mxu0
      %v3344 = vadd.f32 0.0, %v3343
      %v3345 = vpop.f32.mrb[0].mxu0
      %v3346 = vpop.f32.mrb[0].mxu0
      %v3347 = vadd.f32 0.0, %v3346
      %v3348 = vpop.f32.mrb[0].mxu0
      %3349 = vmatprep.mubr.bf16.mxu0 0
      %3350 = vmatmul.mubr.bf16.gmra.mrb[0].mxu0 %v2190
      %v3351 = vpop.f32.mrb[0].mxu0
      %v3352 = vadd.f32 0.0, %v3351
      %v3353 = vpop.f32.mrb[0].mxu0
      %v3354 = vpop.f32.mrb[0].mxu0
      %v3355 = vadd.f32 0.0, %v3354
      %v3356 = vpop.f32.mrb[0].mxu0
      %3357 = vmatprep.mubr.bf16.mxu0 0
      %3358 = vmatmul.mubr.bf16.gmra.mrb[0].mxu0 %v2193
      %v3359 = vpop.f32.mrb[0].mxu0
      %v3360 = vadd.f32 0.0, %v3359
      %v3361 = vpop.f32.mrb[0].mxu0
      %v3362 = vpop.f32.mrb[0].mxu0
      %v3363 = vadd.f32 0.0, %v3362
      %v3364 = vpop.f32.mrb[0].mxu0
      %3365 = vmatprep.mubr.bf16.mxu0 0
      %3366 = vmatmul.mubr.bf16.gmra.mrb[0].mxu0 %v2196
      %v3367 = vpop.f32.mrb[0].mxu0
      %v3368 = vadd.f32 0.0, %v3367
      %v3369 = vpop.f32.mrb[0].mxu0
      %v3370 = vpop.f32.mrb[0].mxu0
      %v3371 = vadd.f32 0.0, %v3370
      %v3372 = vpop.f32.mrb[0].mxu0
      %3373 = vmatprep.mubr.bf16.mxu0 0
      %3374 = vmatmul.mubr.bf16.gmra.mrb[0].mxu0 %v2199
      %v3375 = vpop.f32.mrb[0].mxu0
      %v3376 = vadd.f32 0.0, %v3375
      %v3377 = vpop.f32.mrb[0].mxu0
      %v3378 = vpop.f32.mrb[0].mxu0
      %v3379 = vadd.f32 0.0, %v3378
      %v3380 = vpop.f32.mrb[0].mxu0
      %3381 = vmatprep.mubr.bf16.mxu0 0
      %3382 = vmatmul.mubr.bf16.gmra.mrb[0].mxu0 %v2202
      %v3383 = vpop.f32.mrb[0].mxu0
      %v3384 = vadd.f32 0.0, %v3383
      %v3385 = vpop.f32.mrb[0].mxu0
      %v3386 = vpop.f32.mrb[0].mxu0
      %v3387 = vadd.f32 0.0, %v3386
      %v3388 = vpop.f32.mrb[0].mxu0
      %3389 = vmatprep.mubr.bf16.mxu0 0
      %3390 = vmatmul.mubr.bf16.gmra.mrb[0].mxu0 %v2205
      %v3391 = vpop.f32.mrb[0].mxu0
      %v3392 = vadd.f32 0.0, %v3391
      %v3393 = vpop.f32.mrb[0].mxu0
      %v3394 = vpop.f32.mrb[0].mxu0
      %v3395 = vadd.f32 0.0, %v3394
      %v3396 = vpop.f32.mrb[0].mxu0
      %3397 = vmatprep.mubr.bf16.mxu0 0
      %3398 = vmatmul.mubr.bf16.gmra.mrb[0].mxu0 %v2208
      %v3399 = vpop.f32.mrb[0].mxu0
      %v3400 = vadd.f32 0.0, %v3399
      %v3401 = vpop.f32.mrb[0].mxu0
      %v3402 = vpop.f32.mrb[0].mxu0
      %v3403 = vadd.f32 0.0, %v3402
      %v3404 = vpop.f32.mrb[0].mxu0
      %3405 = vmatprep.mubr.bf16.mxu0 0
      %3406 = vmatmul.mubr.bf16.gmra.mrb[0].mxu0 %v2211
      %v3407 = vpop.f32.mrb[0].mxu0
      %v3408 = vadd.f32 0.0, %v3407
      %v3409 = vpop.f32.mrb[0].mxu0
      %v3410 = vpop.f32.mrb[0].mxu0
      %v3411 = vadd.f32 0.0, %v3410
      %v3412 = vpop.f32.mrb[0].mxu0
      %3413 = vmatprep.mubr.bf16.mxu0 0
      %3414 = vmatmul.mubr.bf16.gmra.mrb[0].mxu0 %v2214
      %v3415 = vpop.f32.mrb[0].mxu0
      %v3416 = vadd.f32 0.0, %v3415
      %v3417 = vpop.f32.mrb[0].mxu0
      %v3418 = vpop.f32.mrb[0].mxu0
      %v3419 = vadd.f32 0.0, %v3418
      %v3420 = vpop.f32.mrb[0].mxu0
      %3421 = vmatprep.mubr.bf16.mxu0 0
      %3422 = vmatmul.mubr.bf16.gmra.mrb[0].mxu0 %v2217
      %v3423 = vpop.f32.mrb[0].mxu0
      %v3424 = vadd.f32 0.0, %v3423
      %v3425 = vpop.f32.mrb[0].mxu0
      %v3426 = vpop.f32.mrb[0].mxu0
      %v3427 = vadd.f32 0.0, %v3426
      %v3428 = vpop.f32.mrb[0].mxu0
      %3429 = vmatprep.mubr.bf16.mxu0 0
      %3430 = vmatmul.mubr.bf16.gmra.mrb[0].mxu0 %v2220
      %v3431 = vpop.f32.mrb[0].mxu0
      %v3432 = vadd.f32 0.0, %v3431
      %v3433 = vpop.f32.mrb[0].mxu0
      %v3434 = vpop.f32.mrb[0].mxu0
      %v3435 = vadd.f32 0.0, %v3434
      %v3436 = vpop.f32.mrb[0].mxu0
      %3437 = vmatprep.mubr.bf16.mxu0 0
      %3438 = vmatmul.mubr.bf16.gmra.mrb[0].mxu0 %v2223
      %v3439 = vpop.f32.mrb[0].mxu0
      %v3440 = vadd.f32 0.0, %v3439
      %v3441 = vpop.f32.mrb[0].mxu0
      %v3442 = vpop.f32.mrb[0].mxu0
      %v3443 = vadd.f32 0.0, %v3442
      %v3444 = vpop.f32.mrb[0].mxu0
      %3445 = vmatprep.mubr.bf16.mxu0 0
      %3446 = vmatmul.mubr.bf16.gmra.mrb[0].mxu0 %v2226
      %v3447 = vpop.f32.mrb[0].mxu0
      %v3448 = vadd.f32 0.0, %v3447
      %v3449 = vpop.f32.mrb[0].mxu0
      %v3450 = vpop.f32.mrb[0].mxu0
      %v3451 = vadd.f32 0.0, %v3450
      %v3452 = vpop.f32.mrb[0].mxu0
      %3453 = vmatprep.mubr.bf16.mxu0 0
      %3454 = vmatmul.mubr.bf16.gmra.mrb[0].mxu0 %v2229
      %v3455 = vpop.f32.mrb[0].mxu0
      %v3456 = vadd.f32 0.0, %v3455
      %v3457 = vpop.f32.mrb[0].mxu0
      %v3458 = vpop.f32.mrb[0].mxu0
      %v3459 = vadd.f32 0.0, %v3458
      %v3460 = vpop.f32.mrb[0].mxu0
      %3461 = vmatprep.mubr.bf16.mxu0 0
      %3462 = vmatmul.mubr.bf16.gmra.mrb[0].mxu0 %v2232
      %v3463 = vpop.f32.mrb[0].mxu0
      %v3464 = vadd.f32 0.0, %v3463
      %v3465 = vpop.f32.mrb[0].mxu0
      %v3466 = vpop.f32.mrb[0].mxu0
      %v3467 = vadd.f32 0.0, %v3466
      %v3468 = vpop.f32.mrb[0].mxu0
      %3469 = vmatprep.mubr.bf16.mxu0 0
      %3470 = vmatmul.mubr.bf16.gmra.mrb[0].mxu0 %v2235
      %v3471 = vpop.f32.mrb[0].mxu0
      %v3472 = vadd.f32 0.0, %v3471
      %v3473 = vpop.f32.mrb[0].mxu0
      %v3474 = vpop.f32.mrb[0].mxu0
      %v3475 = vadd.f32 0.0, %v3474
      %v3476 = vpop.f32.mrb[0].mxu0
      %3477 = vmatprep.mubr.bf16.mxu0 0
      %3478 = vmatmul.mubr.bf16.gmra.mrb[0].mxu0 %v2238
      %v3479 = vpop.f32.mrb[0].mxu0
      %v3480 = vadd.f32 0.0, %v3479
      %v3481 = vpop.f32.mrb[0].mxu0
      %v3482 = vpop.f32.mrb[0].mxu0
      %v3483 = vadd.f32 0.0, %v3482
      %v3484 = vpop.f32.mrb[0].mxu0
      %3485 = vmatprep.mubr.bf16.mxu0 0
      %3486 = vmatmul.mubr.bf16.gmra.mrb[0].mxu0 %v2241
      %v3487 = vpop.f32.mrb[0].mxu0
      %v3488 = vadd.f32 0.0, %v3487
      %v3489 = vpop.f32.mrb[0].mxu0
      %v3490 = vpop.f32.mrb[0].mxu0
      %v3491 = vadd.f32 0.0, %v3490
      %v3492 = vpop.f32.mrb[0].mxu0
      %3493 = vmatprep.mubr.bf16.mxu0 0
      %3494 = vmatmul.mubr.bf16.gmra.mrb[0].mxu0 %v2244
      %v3495 = vpop.f32.mrb[0].mxu0
      %v3496 = vadd.f32 0.0, %v3495
      %v3497 = vpop.f32.mrb[0].mxu0
      %v3498 = vpop.f32.mrb[0].mxu0
      %v3499 = vadd.f32 0.0, %v3498
      %v3500 = vpop.f32.mrb[0].mxu0
      %3501 = vmatprep.mubr.bf16.mxu0 0
      %3502 = vmatmul.mubr.bf16.gmra.mrb[0].mxu0 %v2247
      %v3503 = vpop.f32.mrb[0].mxu0
      %v3504 = vadd.f32 0.0, %v3503
      %v3505 = vpop.f32.mrb[0].mxu0
      %v3506 = vpop.f32.mrb[0].mxu0
      %v3507 = vadd.f32 0.0, %v3506
      %v3508 = vpop.f32.mrb[0].mxu0
      %3509 = vmatprep.mubr.bf16.mxu0 0
      %3510 = vmatmul.mubr.bf16.gmra.mrb[0].mxu0 %v2250
      %v3511 = vpop.f32.mrb[0].mxu0
      %v3512 = vadd.f32 0.0, %v3511
      %v3513 = vpop.f32.mrb[0].mxu0
      %v3514 = vpop.f32.mrb[0].mxu0
      %v3515 = vadd.f32 0.0, %v3514
      %v3516 = vpop.f32.mrb[0].mxu0
      %3517 = vmatprep.mubr.bf16.mxu0 0
      %3518 = vmatmul.mubr.bf16.gmra.mrb[0].mxu0 %v2253
      %v3519 = vpop.f32.mrb[0].mxu0
      %v3520 = vadd.f32 0.0, %v3519
      %v3521 = vpop.f32.mrb[0].mxu0
      %v3522 = vpop.f32.mrb[0].mxu0
      %v3523 = vadd.f32 0.0, %v3522
      %v3524 = vpop.f32.mrb[0].mxu0
      %3525 = vmatprep.mubr.bf16.mxu0 0
      %3526 = vmatmul.mubr.bf16.gmra.mrb[0].mxu0 %v2256
      %v3527 = vpop.f32.mrb[0].mxu0
      %v3528 = vadd.f32 0.0, %v3527
      %v3529 = vpop.f32.mrb[0].mxu0
      %v3530 = vpop.f32.mrb[0].mxu0
      %v3531 = vadd.f32 0.0, %v3530
      %v3532 = vpop.f32.mrb[0].mxu0
      %3533 = vmatprep.mubr.bf16.mxu0 0
      %3534 = vmatmul.mubr.bf16.gmra.mrb[0].mxu0 %v2259
      %v3535 = vpop.f32.mrb[0].mxu0
      %v3536 = vadd.f32 0.0, %v3535
      %v3537 = vpop.f32.mrb[0].mxu0
      %v3538 = vpop.f32.mrb[0].mxu0
      %v3539 = vadd.f32 0.0, %v3538
      %v3540 = vpop.f32.mrb[0].mxu0
      %3541 = vmatprep.mubr.bf16.mxu0 0
      %3542 = vmatmul.mubr.bf16.gmra.mrb[0].mxu0 %v2262
      %v3543 = vpop.f32.mrb[0].mxu0
      %v3544 = vadd.f32 0.0, %v3543
      %v3545 = vpop.f32.mrb[0].mxu0
      %v3546 = vpop.f32.mrb[0].mxu0
      %v3547 = vadd.f32 0.0, %v3546
      %v3548 = vpop.f32.mrb[0].mxu0
      %3549 = vmatprep.mubr.bf16.mxu0 0
      %3550 = vmatmul.mubr.bf16.gmra.mrb[0].mxu0 %v2265
      %v3551 = vpop.f32.mrb[0].mxu0
      %v3552 = vadd.f32 0.0, %v3551
      %v3553 = vpop.f32.mrb[0].mxu0
      %v3554 = vpop.f32.mrb[0].mxu0
      %v3555 = vadd.f32 0.0, %v3554
      %v3556 = vpop.f32.mrb[0].mxu0
      %3557 = vmatprep.mubr.bf16.mxu0 0
      %3558 = vmatmul.mubr.bf16.gmra.mrb[0].mxu0 %v2268
      %v3559 = vpop.f32.mrb[0].mxu0
      %v3560 = vadd.f32 0.0, %v3559
      %v3561 = vpop.f32.mrb[0].mxu0
      %v3562 = vpop.f32.mrb[0].mxu0
      %v3563 = vadd.f32 0.0, %v3562
      %v3564 = vpop.f32.mrb[0].mxu0
      %3565 = vmatprep.mubr.bf16.mxu0 0
      %3566 = vmatmul.mubr.bf16.gmra.mrb[0].mxu0 %v2271
      %v3567 = vpop.f32.mrb[0].mxu0
      %v3568 = vadd.f32 0.0, %v3567
      %v3569 = vpop.f32.mrb[0].mxu0
      %v3570 = vpop.f32.mrb[0].mxu0
      %v3571 = vadd.f32 0.0, %v3570
      %v3572 = vpop.f32.mrb[0].mxu0
      %3573 = vmatprep.mubr.bf16.mxu0 0
      %3574 = vmatmul.mubr.bf16.gmra.mrb[0].mxu0 %v2274
      %v3575 = vpop.f32.mrb[0].mxu0
      %v3576 = vadd.f32 0.0, %v3575
      %v3577 = vpop.f32.mrb[0].mxu0
      %v3578 = vpop.f32.mrb[0].mxu0
      %v3579 = vadd.f32 0.0, %v3578
      %v3580 = vpop.f32.mrb[0].mxu0
      %3581 = vmatprep.mubr.bf16.mxu0 0
      %3582 = vmatmul.mubr.bf16.gmra.mrb[0].mxu0 %v2277
      %v3583 = vpop.f32.mrb[0].mxu0
      %v3584 = vadd.f32 0.0, %v3583
      %v3585 = vpop.f32.mrb[0].mxu0
      %v3586 = vpop.f32.mrb[0].mxu0
      %v3587 = vadd.f32 0.0, %v3586
      %v3588 = vpop.f32.mrb[0].mxu0
      %3589 = vmatprep.mubr.bf16.mxu0 0
      %3590 = vmatmul.mubr.bf16.gmra.mrb[0].mxu0 %v2280
      %v3591 = vpop.f32.mrb[0].mxu0
      %v3592 = vadd.f32 0.0, %v3591
      %v3593 = vpop.f32.mrb[0].mxu0
      %v3594 = vpop.f32.mrb[0].mxu0
      %v3595 = vadd.f32 0.0, %v3594
      %v3596 = vpop.f32.mrb[0].mxu0
      %3597 = vmatprep.mubr.bf16.mxu0 0
      %3598 = vmatmul.mubr.bf16.gmra.mrb[0].mxu0 %v2283
      %v3599 = vpop.f32.mrb[0].mxu0
      %v3600 = vadd.f32 0.0, %v3599
      %v3601 = vpop.f32.mrb[0].mxu0
      %v3602 = vpop.f32.mrb[0].mxu0
      %v3603 = vadd.f32 0.0, %v3602
      %v3604 = vpop.f32.mrb[0].mxu0
      %3605 = vmatprep.mubr.bf16.mxu0 0
      %3606 = vmatmul.mubr.bf16.gmra.mrb[0].mxu0 %v2286
      %v3607 = vpop.f32.mrb[0].mxu0
      %v3608 = vadd.f32 0.0, %v3607
      %v3609 = vpop.f32.mrb[0].mxu0
      %v3610 = vpop.f32.mrb[0].mxu0
      %v3611 = vadd.f32 0.0, %v3610
      %v3612 = vpop.f32.mrb[0].mxu0
      %3613 = vmatprep.mubr.bf16.mxu0 0
      %3614 = vmatmul.mubr.bf16.gmra.mrb[0].mxu0 %v2289
      %v3615 = vpop.f32.mrb[0].mxu0
      %v3616 = vadd.f32 0.0, %v3615
      %v3617 = vpop.f32.mrb[0].mxu0
      %v3618 = vpop.f32.mrb[0].mxu0
      %v3619 = vadd.f32 0.0, %v3618
      %v3620 = vpop.f32.mrb[0].mxu0
      %3621 = vmatprep.mubr.bf16.mxu0 0
      %3622 = vmatmul.mubr.bf16.gmra.mrb[0].mxu0 %v2292
      %v3623 = vpop.f32.mrb[0].mxu0
      %v3624 = vadd.f32 0.0, %v3623
      %v3625 = vpop.f32.mrb[0].mxu0
      %v3626 = vpop.f32.mrb[0].mxu0
      %v3627 = vadd.f32 0.0, %v3626
      %v3628 = vpop.f32.mrb[0].mxu0
      %3629 = vmatprep.mubr.bf16.mxu0 0
      %3630 = vmatmul.mubr.bf16.gmra.mrb[0].mxu0 %v2295
      %v3631 = vpop.f32.mrb[0].mxu0
      %v3632 = vadd.f32 0.0, %v3631
      %v3633 = vpop.f32.mrb[0].mxu0
      %v3634 = vpop.f32.mrb[0].mxu0
      %v3635 = vadd.f32 0.0, %v3634
      %v3636 = vpop.f32.mrb[0].mxu0
      %3637 = vmatprep.mubr.bf16.mxu0 0
      %3638 = vmatmul.mubr.bf16.gmra.mrb[0].mxu0 %v2298
      %v3639 = vpop.f32.mrb[0].mxu0
      %v3640 = vadd.f32 0.0, %v3639
      %v3641 = vpop.f32.mrb[0].mxu0
      %v3642 = vpop.f32.mrb[0].mxu0
      %v3643 = vadd.f32 0.0, %v3642
      %v3644 = vpop.f32.mrb[0].mxu0
      %3645 = vmatprep.mubr.bf16.mxu0 0
      %3646 = vmatmul.mubr.bf16.gmra.mrb[0].mxu0 %v2301
      %v3647 = vpop.f32.mrb[0].mxu0
      %v3648 = vadd.f32 0.0, %v3647
      %v3649 = vpop.f32.mrb[0].mxu0
      %v3650 = vpop.f32.mrb[0].mxu0
      %v3651 = vadd.f32 0.0, %v3650
      %v3652 = vpop.f32.mrb[0].mxu0
      %3653 = vmatprep.mubr.bf16.mxu0 0
      %3654 = vmatmul.mubr.bf16.gmra.mrb[0].mxu0 %v2304
      %v3655 = vpop.f32.mrb[0].mxu0
      %v3656 = vadd.f32 0.0, %v3655
      %v3657 = vpop.f32.mrb[0].mxu0
      %v3658 = vpop.f32.mrb[0].mxu0
      %v3659 = vadd.f32 0.0, %v3658
      %v3660 = vpop.f32.mrb[0].mxu0
      %3661 = vmatprep.mubr.bf16.mxu0 0
      %3662 = vmatmul.mubr.bf16.gmra.mrb[0].mxu0 %v2307
      %v3663 = vpop.f32.mrb[0].mxu0
      %v3664 = vadd.f32 0.0, %v3663
      %v3665 = vpop.f32.mrb[0].mxu0
      %v3666 = vpop.f32.mrb[0].mxu0
      %v3667 = vadd.f32 0.0, %v3666
      %v3668 = vpop.f32.mrb[0].mxu0
      %3669 = vmatprep.mubr.bf16.mxu0 0
      %3670 = vmatmul.mubr.bf16.gmra.mrb[0].mxu0 %v2310
      %v3671 = vpop.f32.mrb[0].mxu0
      %v3672 = vadd.f32 0.0, %v3671
      %v3673 = vpop.f32.mrb[0].mxu0
      %v3674 = vpop.f32.mrb[0].mxu0
      %v3675 = vadd.f32 0.0, %v3674
      %v3676 = vpop.f32.mrb[0].mxu0
      %3677 = vmatprep.mubr.bf16.mxu0 0
      %3678 = vmatmul.mubr.bf16.gmra.mrb[0].mxu0 %v2313
      %v3679 = vpop.f32.mrb[0].mxu0
      %v3680 = vadd.f32 0.0, %v3679
      %v3681 = vpop.f32.mrb[0].mxu0
      %v3682 = vpop.f32.mrb[0].mxu0
      %v3683 = vadd.f32 0.0, %v3682
      %v3684 = vpop.f32.mrb[0].mxu0
      %3685 = vmatprep.mubr.bf16.mxu0 0
      %3686 = vmatmul.mubr.bf16.gmra.mrb[0].mxu0 %v2316
      %v3687 = vpop.f32.mrb[0].mxu0
      %v3688 = vadd.f32 0.0, %v3687
      %v3689 = vpop.f32.mrb[0].mxu0
      %v3690 = vpop.f32.mrb[0].mxu0
      %v3691 = vadd.f32 0.0, %v3690
      %v3692 = vpop.f32.mrb[0].mxu0
      %3693 = vmatprep.mubr.bf16.mxu0 0
      %3694 = vmatmul.mubr.bf16.gmra.mrb[0].mxu0 %v2319
      %v3695 = vpop.f32.mrb[0].mxu0
      %v3696 = vadd.f32 0.0, %v3695
      %v3697 = vpop.f32.mrb[0].mxu0
      %v3698 = vpop.f32.mrb[0].mxu0
      %v3699 = vadd.f32 0.0, %v3698
      %v3700 = vpop.f32.mrb[0].mxu0
      %3701 = vmatprep.mubr.bf16.mxu0 0
      %3702 = vmatmul.mubr.bf16.gmra.mrb[0].mxu0 %v2322
      %v3703 = vpop.f32.mrb[0].mxu0
      %v3704 = vadd.f32 0.0, %v3703
      %v3705 = vpop.f32.mrb[0].mxu0
      %v3706 = vpop.f32.mrb[0].mxu0
      %v3707 = vadd.f32 0.0, %v3706
      %v3708 = vpop.f32.mrb[0].mxu0
      %3709 = vmatprep.mubr.bf16.mxu0 0
      %3710 = vmatmul.mubr.bf16.gmra.mrb[0].mxu0 %v2325
      %v3711 = vpop.f32.mrb[0].mxu0
      %v3712 = vadd.f32 0.0, %v3711
      %v3713 = vpop.f32.mrb[0].mxu0
      %v3714 = vpop.f32.mrb[0].mxu0
      %v3715 = vadd.f32 0.0, %v3714
      %v3716 = vpop.f32.mrb[0].mxu0
      %3717 = vmatprep.mubr.bf16.mxu0 0
      %3718 = vmatmul.mubr.bf16.gmra.mrb[0].mxu0 %v2328
      %v3719 = vpop.f32.mrb[0].mxu0
      %v3720 = vadd.f32 0.0, %v3719
      %v3721 = vpop.f32.mrb[0].mxu0
      %v3722 = vpop.f32.mrb[0].mxu0
      %v3723 = vadd.f32 0.0, %v3722
      %v3724 = vpop.f32.mrb[0].mxu0
      %3725 = vmatprep.mubr.bf16.mxu0 0
      %3726 = vmatmul.mubr.bf16.gmra.mrb[0].mxu0 %v2331
      %v3727 = vpop.f32.mrb[0].mxu0
      %v3728 = vadd.f32 0.0, %v3727
      %v3729 = vpop.f32.mrb[0].mxu0
      %v3730 = vpop.f32.mrb[0].mxu0
      %v3731 = vadd.f32 0.0, %v3730
      %v3732 = vpop.f32.mrb[0].mxu0
      %3733 = vmatprep.mubr.bf16.mxu0 0
      %3734 = vmatmul.mubr.bf16.gmra.mrb[0].mxu0 %v2334
      %v3735 = vpop.f32.mrb[0].mxu0
      %v3736 = vadd.f32 0.0, %v3735
      %v3737 = vpop.f32.mrb[0].mxu0
      %v3738 = vpop.f32.mrb[0].mxu0
      %v3739 = vadd.f32 0.0, %v3738
      %v3740 = vpop.f32.mrb[0].mxu0
      %3741 = vmatprep.mubr.bf16.mxu0 0
      %3742 = vmatmul.mubr.bf16.gmra.mrb[0].mxu0 %v2337
      %v3743 = vpop.f32.mrb[0].mxu0
      %v3744 = vadd.f32 0.0, %v3743
      %v3745 = vpop.f32.mrb[0].mxu0
      %v3746 = vpop.f32.mrb[0].mxu0
      %v3747 = vadd.f32 0.0, %v3746
      %v3748 = vpop.f32.mrb[0].mxu0
      %3749 = vmatprep.mubr.bf16.mxu0 0
      %3750 = vmatmul.mubr.bf16.gmra.mrb[0].mxu0 %v2340
      %v3751 = vpop.f32.mrb[0].mxu0
      %v3752 = vadd.f32 0.0, %v3751
      %v3753 = vpop.f32.mrb[0].mxu0
      %v3754 = vpop.f32.mrb[0].mxu0
      %v3755 = vadd.f32 0.0, %v3754
      %v3756 = vpop.f32.mrb[0].mxu0
      %3757 = vmatprep.mubr.bf16.mxu0 0
      %3758 = vmatmul.mubr.bf16.gmra.mrb[0].mxu0 %v2343
      %v3759 = vpop.f32.mrb[0].mxu0
      %v3760 = vadd.f32 0.0, %v3759
      %v3761 = vpop.f32.mrb[0].mxu0
      %v3762 = vpop.f32.mrb[0].mxu0
      %v3763 = vadd.f32 0.0, %v3762
      %v3764 = vpop.f32.mrb[0].mxu0
      %3765 = vmatprep.mubr.bf16.mxu0 0
      %3766 = vmatmul.mubr.bf16.gmra.mrb[0].mxu0 %v2346
      %v3767 = vpop.f32.mrb[0].mxu0
      %v3768 = vadd.f32 0.0, %v3767
      %v3769 = vpop.f32.mrb[0].mxu0
      %v3770 = vpop.f32.mrb[0].mxu0
      %v3771 = vadd.f32 0.0, %v3770
      %v3772 = vpop.f32.mrb[0].mxu0
      %3773 = vmatprep.mubr.bf16.mxu0 0
      %3774 = vmatmul.mubr.bf16.gmra.mrb[0].mxu0 %v2349
      %v3775 = vpop.f32.mrb[0].mxu0
      %v3776 = vadd.f32 0.0, %v3775
      %v3777 = vpop.f32.mrb[0].mxu0
      %v3778 = vpop.f32.mrb[0].mxu0
      %v3779 = vadd.f32 0.0, %v3778
      %v3780 = vpop.f32.mrb[0].mxu0
      %3781 = vmatprep.mubr.bf16.mxu0 0
      %3782 = vmatmul.mubr.bf16.gmra.mrb[0].mxu0 %v2352
      %v3783 = vpop.f32.mrb[0].mxu0
      %v3784 = vadd.f32 0.0, %v3783
      %v3785 = vpop.f32.mrb[0].mxu0
      %v3786 = vpop.f32.mrb[0].mxu0
      %v3787 = vadd.f32 0.0, %v3786
      %v3788 = vpop.f32.mrb[0].mxu0
      %3789 = vmatprep.mubr.bf16.mxu0 0
      %3790 = vmatmul.mubr.bf16.gmra.mrb[0].mxu0 %v2355
      %v3791 = vpop.f32.mrb[0].mxu0
      %v3792 = vadd.f32 0.0, %v3791
      %v3793 = vpop.f32.mrb[0].mxu0
      %v3794 = vpop.f32.mrb[0].mxu0
      %v3795 = vadd.f32 0.0, %v3794
      %v3796 = vpop.f32.mrb[0].mxu0
      %3797 = vmatprep.mubr.bf16.mxu0 0
      %3798 = vmatmul.mubr.bf16.gmra.mrb[0].mxu0 %v2358
      %v3799 = vpop.f32.mrb[0].mxu0
      %v3800 = vadd.f32 0.0, %v3799
      %v3801 = vpop.f32.mrb[0].mxu0
      %v3802 = vpop.f32.mrb[0].mxu0
      %v3803 = vadd.f32 0.0, %v3802
      %v3804 = vpop.f32.mrb[0].mxu0
      %3805 = vmatprep.mubr.bf16.mxu0 0
      %3806 = vmatmul.mubr.bf16.gmra.mrb[0].mxu0 %v2361
      %v3807 = vpop.f32.mrb[0].mxu0
      %v3808 = vadd.f32 0.0, %v3807
      %v3809 = vpop.f32.mrb[0].mxu0
      %v3810 = vpop.f32.mrb[0].mxu0
      %v3811 = vadd.f32 0.0, %v3810
      %v3812 = vpop.f32.mrb[0].mxu0
      %3813 = vmatprep.mubr.bf16.mxu0 0
      %3814 = vmatmul.mubr.bf16.gmra.mrb[0].mxu0 %v2364
      %v3815 = vpop.f32.mrb[0].mxu0
      %v3816 = vadd.f32 0.0, %v3815
      %v3817 = vpop.f32.mrb[0].mxu0
      %v3818 = vpop.f32.mrb[0].mxu0
      %v3819 = vadd.f32 0.0, %v3818
      %v3820 = vpop.f32.mrb[0].mxu0
      %3821 = vmatprep.mubr.bf16.mxu0 0
      %3822 = vmatmul.mubr.bf16.gmra.mrb[0].mxu0 %v2367
      %v3823 = vpop.f32.mrb[0].mxu0
      %v3824 = vadd.f32 0.0, %v3823
      %v3825 = vpop.f32.mrb[0].mxu0
      %v3826 = vpop.f32.mrb[0].mxu0
      %v3827 = vadd.f32 0.0, %v3826
      %v3828 = vpop.f32.mrb[0].mxu0
      %3829 = vmatprep.mubr.bf16.mxu0 0
      %3830 = vmatmul.mubr.bf16.gmra.mrb[0].mxu0 %v2370
      %v3831 = vpop.f32.mrb[0].mxu0
      %v3832 = vadd.f32 0.0, %v3831
      %v3833 = vpop.f32.mrb[0].mxu0
      %v3834 = vpop.f32.mrb[0].mxu0
      %v3835 = vadd.f32 0.0, %v3834
      %v3836 = vpop.f32.mrb[0].mxu0
      %3837 = vmatprep.mubr.bf16.mxu0 0
      %3838 = vmatmul.mubr.bf16.gmra.mrb[0].mxu0 %v2373
      %v3839 = vpop.f32.mrb[0].mxu0
      %v3840 = vadd.f32 0.0, %v3839
      %v3841 = vpop.f32.mrb[0].mxu0
      %v3842 = vpop.f32.mrb[0].mxu0
      %v3843 = vadd.f32 0.0, %v3842
      %v3844 = vpop.f32.mrb[0].mxu0
      %3845 = vmatprep.mubr.bf16.mxu0 0
      %3846 = vmatmul.mubr.bf16.gmra.mrb[0].mxu0 %v2376
      %v3847 = vpop.f32.mrb[0].mxu0
      %v3848 = vadd.f32 0.0, %v3847
      %v3849 = vpop.f32.mrb[0].mxu0
      %v3850 = vpop.f32.mrb[0].mxu0
      %v3851 = vadd.f32 0.0, %v3850
      %v3852 = vpop.f32.mrb[0].mxu0
      %3853 = vmatprep.mubr.bf16.mxu0 0
      %3854 = vmatmul.mubr.bf16.gmra.mrb[0].mxu0 %v2379
      %v3855 = vpop.f32.mrb[0].mxu0
      %v3856 = vadd.f32 0.0, %v3855
      %v3857 = vpop.f32.mrb[0].mxu0
      %v3858 = vpop.f32.mrb[0].mxu0
      %v3859 = vadd.f32 0.0, %v3858
      %v3860 = vpop.f32.mrb[0].mxu0
      %3861 = vmatprep.mubr.bf16.mxu0 0
      %3862 = vmatmul.mubr.bf16.gmra.mrb[0].mxu0 %v2382
      %v3863 = vpop.f32.mrb[0].mxu0
      %v3864 = vadd.f32 0.0, %v3863
      %v3865 = vpop.f32.mrb[0].mxu0
      %v3866 = vpop.f32.mrb[0].mxu0
      %v3867 = vadd.f32 0.0, %v3866
      %v3868 = vpop.f32.mrb[0].mxu0
      %3869 = vmatprep.mubr.bf16.mxu0 0
      %3870 = vmatmul.mubr.bf16.gmra.mrb[0].mxu0 %v2385
      %v3871 = vpop.f32.mrb[0].mxu0
      %v3872 = vadd.f32 0.0, %v3871
      %v3873 = vpop.f32.mrb[0].mxu0
      %v3874 = vpop.f32.mrb[0].mxu0
      %v3875 = vadd.f32 0.0, %v3874
      %v3876 = vpop.f32.mrb[0].mxu0
      %3877 = vmatprep.mubr.bf16.mxu0 0
      %3878 = vmatmul.mubr.bf16.gmra.mrb[0].mxu0 %v2388
      %v3879 = vpop.f32.mrb[0].mxu0
      %v3880 = vadd.f32 0.0, %v3879
      %v3881 = vpop.f32.mrb[0].mxu0
      %v3882 = vpop.f32.mrb[0].mxu0
      %v3883 = vadd.f32 0.0, %v3882
      %v3884 = vpop.f32.mrb[0].mxu0
      %3885 = vmatprep.mubr.bf16.mxu0 0
      %3886 = vmatmul.mubr.bf16.gmra.mrb[0].mxu0 %v2391
      %v3887 = vpop.f32.mrb[0].mxu0
      %v3888 = vadd.f32 0.0, %v3887
      %v3889 = vpop.f32.mrb[0].mxu0
      %v3890 = vpop.f32.mrb[0].mxu0
      %v3891 = vadd.f32 0.0, %v3890
      %v3892 = vpop.f32.mrb[0].mxu0
      %3893 = vmatprep.mubr.bf16.mxu0 0
      %3894 = vmatmul.mubr.bf16.gmra.mrb[0].mxu0 %v2394
      %v3895 = vpop.f32.mrb[0].mxu0
      %v3896 = vadd.f32 0.0, %v3895
      %v3897 = vpop.f32.mrb[0].mxu0
      %v3898 = vpop.f32.mrb[0].mxu0
      %v3899 = vadd.f32 0.0, %v3898
      %v3900 = vpop.f32.mrb[0].mxu0
      %3901 = vmatprep.mubr.bf16.mxu0 0
      %3902 = vmatmul.mubr.bf16.gmra.mrb[0].mxu0 %v2397
      %v3903 = vpop.f32.mrb[0].mxu0
      %v3904 = vadd.f32 0.0, %v3903
      %v3905 = vpop.f32.mrb[0].mxu0
      %v3906 = vpop.f32.mrb[0].mxu0
      %v3907 = vadd.f32 0.0, %v3906
      %v3908 = vpop.f32.mrb[0].mxu0
      %3909 = vmatprep.mubr.bf16.mxu0 0
      %3910 = vmatmul.mubr.bf16.gmra.mrb[0].mxu0 %v2400
      %v3911 = vpop.f32.mrb[0].mxu0
      %v3912 = vadd.f32 0.0, %v3911
      %v3913 = vpop.f32.mrb[0].mxu0
      %v3914 = vpop.f32.mrb[0].mxu0
      %v3915 = vadd.f32 0.0, %v3914
      %v3916 = vpop.f32.mrb[0].mxu0
      %3917 = vmatprep.mubr.bf16.mxu0 0
      %3918 = vmatmul.mubr.bf16.gmra.mrb[0].mxu0 %v2403
      %v3919 = vpop.f32.mrb[0].mxu0
      %v3920 = vadd.f32 0.0, %v3919
      %v3921 = vpop.f32.mrb[0].mxu0
      %v3922 = vpop.f32.mrb[0].mxu0
      %v3923 = vadd.f32 0.0, %v3922
      %v3924 = vpop.f32.mrb[0].mxu0
      %3925 = vmatprep.mubr.bf16.mxu0 0
      %3926 = vmatmul.mubr.bf16.gmra.mrb[0].mxu0 %v2406
      %v3927 = vpop.f32.mrb[0].mxu0
      %v3928 = vadd.f32 0.0, %v3927
      %v3929 = vpop.f32.mrb[0].mxu0
      %v3930 = vpop.f32.mrb[0].mxu0
      %v3931 = vadd.f32 0.0, %v3930
      %v3932 = vpop.f32.mrb[0].mxu0
      %3933 = vmatprep.mubr.bf16.mxu0 0
      %3934 = vmatmul.mubr.bf16.gmra.mrb[0].mxu0 %v2409
      %v3935 = vpop.f32.mrb[0].mxu0
      %v3936 = vadd.f32 0.0, %v3935
      %v3937 = vpop.f32.mrb[0].mxu0
      %v3938 = vpop.f32.mrb[0].mxu0
      %v3939 = vadd.f32 0.0, %v3938
      %v3940 = vpop.f32.mrb[0].mxu0
      %3941 = vmatprep.mubr.bf16.mxu0 0
      %3942 = vmatmul.mubr.bf16.gmra.mrb[0].mxu0 %v2412
      %v3943 = vpop.f32.mrb[0].mxu0
      %v3944 = vadd.f32 0.0, %v3943
      %v3945 = vpop.f32.mrb[0].mxu0
      %v3946 = vpop.f32.mrb[0].mxu0
      %v3947 = vadd.f32 0.0, %v3946
      %v3948 = vpop.f32.mrb[0].mxu0
      %3949 = vmatprep.mubr.bf16.mxu0 0
      %3950 = vmatmul.mubr.bf16.gmra.mrb[0].mxu0 %v2415
      %v3951 = vpop.f32.mrb[0].mxu0
      %v3952 = vadd.f32 0.0, %v3951
      %v3953 = vpop.f32.mrb[0].mxu0
      %v3954 = vpop.f32.mrb[0].mxu0
      %v3955 = vadd.f32 0.0, %v3954
      %v3956 = vpop.f32.mrb[0].mxu0
      %3957 = vmatprep.mubr.bf16.mxu0 0
      %3958 = vmatmul.mubr.bf16.gmra.mrb[0].mxu0 %v2418
      %v3959 = vpop.f32.mrb[0].mxu0
      %v3960 = vadd.f32 0.0, %v3959
      %v3961 = vpop.f32.mrb[0].mxu0
      %v3962 = vpop.f32.mrb[0].mxu0
      %v3963 = vadd.f32 0.0, %v3962
      %v3964 = vpop.f32.mrb[0].mxu0
      %3965 = vmatprep.mubr.bf16.mxu0 0
      %3966 = vmatmul.mubr.bf16.gmra.mrb[0].mxu0 %v2421
      %v3967 = vpop.f32.mrb[0].mxu0
      %v3968 = vadd.f32 0.0, %v3967
      %v3969 = vpop.f32.mrb[0].mxu0
      %v3970 = vpop.f32.mrb[0].mxu0
      %v3971 = vadd.f32 0.0, %v3970
      %v3972 = vpop.f32.mrb[0].mxu0
      %3973 = vmatprep.mubr.bf16.mxu0 0
      %3974 = vmatmul.mubr.bf16.gmra.mrb[0].mxu0 %v2424
      %v3975 = vpop.f32.mrb[0].mxu0
      %v3976 = vadd.f32 0.0, %v3975
      %v3977 = vpop.f32.mrb[0].mxu0
      %v3978 = vpop.f32.mrb[0].mxu0
      %v3979 = vadd.f32 0.0, %v3978
      %v3980 = vpop.f32.mrb[0].mxu0
      %3981 = vmatprep.mubr.bf16.mxu0 0
      %3982 = vmatmul.mubr.bf16.gmra.mrb[0].mxu0 %v2427
      %v3983 = vpop.f32.mrb[0].mxu0
      %v3984 = vadd.f32 0.0, %v3983
      %v3985 = vpop.f32.mrb[0].mxu0
      %v3986 = vpop.f32.mrb[0].mxu0
      %v3987 = vadd.f32 0.0, %v3986
      %v3988 = vpop.f32.mrb[0].mxu0
      %3989 = vmatprep.mubr.bf16.mxu0 0
      %3990 = vmatmul.mubr.bf16.gmra.mrb[0].mxu0 %v2430
      %v3991 = vpop.f32.mrb[0].mxu0
      %v3992 = vadd.f32 0.0, %v3991
      %v3993 = vpop.f32.mrb[0].mxu0
      %v3994 = vpop.f32.mrb[0].mxu0
      %v3995 = vadd.f32 0.0, %v3994
      %v3996 = vpop.f32.mrb[0].mxu0
      %3997 = vmatprep.mubr.bf16.mxu0 0
      %3998 = vmatmul.mubr.bf16.gmra.mrb[0].mxu0 %v2433
      %v3999 = vpop.f32.mrb[0].mxu0
      %v4000 = vadd.f32 0.0, %v3999
      %v4001 = vpop.f32.mrb[0].mxu0
      %v4002 = vpop.f32.mrb[0].mxu0
      %v4003 = vadd.f32 0.0, %v4002
      %v4004 = vpop.f32.mrb[0].mxu0
      %4005 = vmatprep.mubr.bf16.mxu0 0
      %4006 = vmatmul.mubr.bf16.gmra.mrb[0].mxu0 %v2436
      %v4007 = vpop.f32.mrb[0].mxu0
      %v4008 = vadd.f32 0.0, %v4007
      %v4009 = vpop.f32.mrb[0].mxu0
      %v4010 = vpop.f32.mrb[0].mxu0
      %v4011 = vadd.f32 0.0, %v4010
      %v4012 = vpop.f32.mrb[0].mxu0
      %4013 = vmatprep.mubr.bf16.mxu0 0
      %4014 = vmatmul.mubr.bf16.gmra.mrb[0].mxu0 %v2439
      %v4015 = vpop.f32.mrb[0].mxu0
      %v4016 = vadd.f32 0.0, %v4015
      %v4017 = vpop.f32.mrb[0].mxu0
      %v4018 = vpop.f32.mrb[0].mxu0
      %v4019 = vadd.f32 0.0, %v4018
      %v4020 = vpop.f32.mrb[0].mxu0
      %4021 = vmatprep.mubr.bf16.mxu0 0
      %4022 = vmatmul.mubr.bf16.gmra.mrb[0].mxu0 %v2442
      %v4023 = vpop.f32.mrb[0].mxu0
      %v4024 = vadd.f32 0.0, %v4023
      %v4025 = vpop.f32.mrb[0].mxu0
      %v4026 = vpop.f32.mrb[0].mxu0
      %v4027 = vadd.f32 0.0, %v4026
      %v4028 = vpop.f32.mrb[0].mxu0
      %4029 = vmatprep.mubr.bf16.mxu0 0
      %4030 = vmatmul.mubr.bf16.gmra.mrb[0].mxu0 %v2445
      %v4031 = vpop.f32.mrb[0].mxu0
      %v4032 = vadd.f32 0.0, %v4031
      %v4033 = vpop.f32.mrb[0].mxu0
      %v4034 = vpop.f32.mrb[0].mxu0
      %v4035 = vadd.f32 0.0, %v4034
      %v4036 = vpop.f32.mrb[0].mxu0
      %4037 = vmatprep.mubr.bf16.mxu0 0
      %4038 = vmatmul.mubr.bf16.gmra.mrb[0].mxu0 %v2448
      %v4039 = vpop.f32.mrb[0].mxu0
      %v4040 = vadd.f32 0.0, %v4039
      %v4041 = vpop.f32.mrb[0].mxu0
      %v4042 = vpop.f32.mrb[0].mxu0
      %v4043 = vadd.f32 0.0, %v4042
      %v4044 = vpop.f32.mrb[0].mxu0
      %4045 = vmatprep.mubr.bf16.mxu0 0
      %4046 = vmatmul.mubr.bf16.gmra.mrb[0].mxu0 %v2451
      %v4047 = vpop.f32.mrb[0].mxu0
      %v4048 = vadd.f32 0.0, %v4047
      %v4049 = vpop.f32.mrb[0].mxu0
      %v4050 = vpop.f32.mrb[0].mxu0
      %v4051 = vadd.f32 0.0, %v4050
      %v4052 = vpop.f32.mrb[0].mxu0
      %4053 = vmatprep.mubr.bf16.mxu0 0
      %4054 = vmatmul.mubr.bf16.gmra.mrb[0].mxu0 %v2454
      %v4055 = vpop.f32.mrb[0].mxu0
      %v4056 = vadd.f32 0.0, %v4055
      %v4057 = vpop.f32.mrb[0].mxu0
      %v4058 = vpop.f32.mrb[0].mxu0
      %v4059 = vadd.f32 0.0, %v4058
      %v4060 = vpop.f32.mrb[0].mxu0
      %4061 = vmatprep.mubr.bf16.mxu0 0
      %4062 = vmatmul.mubr.bf16.gmra.mrb[0].mxu0 %v2457
      %v4063 = vpop.f32.mrb[0].mxu0
      %v4064 = vadd.f32 0.0, %v4063
      %v4065 = vpop.f32.mrb[0].mxu0
      %v4066 = vpop.f32.mrb[0].mxu0
      %v4067 = vadd.f32 0.0, %v4066
      %v4068 = vpop.f32.mrb[0].mxu0
      %4069 = vmatprep.mubr.bf16.mxu0 0
      %4070 = vmatmul.mubr.bf16.gmra.mrb[0].mxu0 %v2460
      %v4071 = vpop.f32.mrb[0].mxu0
      %v4072 = vadd.f32 0.0, %v4071
      %v4073 = vpop.f32.mrb[0].mxu0
      %v4074 = vpop.f32.mrb[0].mxu0
      %v4075 = vadd.f32 0.0, %v4074
      %v4076 = vpop.f32.mrb[0].mxu0
      %4077 = vmatprep.mubr.bf16.mxu0 0
      %4078 = vmatmul.mubr.bf16.gmra.mrb[0].mxu0 %v2463
      %v4079 = vpop.f32.mrb[0].mxu0
      %v4080 = vadd.f32 0.0, %v4079
      %v4081 = vpop.f32.mrb[0].mxu0
      %v4082 = vpop.f32.mrb[0].mxu0
      %v4083 = vadd.f32 0.0, %v4082
      %v4084 = vpop.f32.mrb[0].mxu0
      %4085 = vmatprep.mubr.bf16.mxu0 0
      %4086 = vmatmul.mubr.bf16.gmra.mrb[0].mxu0 %v2466
      %v4087 = vpop.f32.mrb[0].mxu0
      %v4088 = vadd.f32 0.0, %v4087
      %v4089 = vpop.f32.mrb[0].mxu0
      %v4090 = vpop.f32.mrb[0].mxu0
      %v4091 = vadd.f32 0.0, %v4090
      %v4092 = vpop.f32.mrb[0].mxu0
      %4093 = vmatprep.mubr.bf16.mxu0 0
      %4094 = vmatmul.mubr.bf16.gmra.mrb[0].mxu0 %v2469
      %v4095 = vpop.f32.mrb[0].mxu0
      %v4096 = vadd.f32 0.0, %v4095
      %v4097 = vpop.f32.mrb[0].mxu0
      %v4098 = vpop.f32.mrb[0].mxu0
      %v4099 = vadd.f32 0.0, %v4098
      %v4100 = vpop.f32.mrb[0].mxu0
      %4101 = vmatprep.mubr.bf16.mxu0 0
      %4102 = vmatmul.mubr.bf16.gmra.mrb[0].mxu0 %v2472
      %v4103 = vpop.f32.mrb[0].mxu0
      %v4104 = vadd.f32 0.0, %v4103
      %v4105 = vpop.f32.mrb[0].mxu0
      %v4106 = vpop.f32.mrb[0].mxu0
      %v4107 = vadd.f32 0.0, %v4106
      %v4108 = vpop.f32.mrb[0].mxu0
      %4109 = vmatprep.mubr.bf16.mxu0 0
      %4110 = vmatmul.mubr.bf16.gmra.mrb[0].mxu0 %v2475
      %v4111 = vpop.f32.mrb[0].mxu0
      %v4112 = vadd.f32 0.0, %v4111
      %v4113 = vpop.f32.mrb[0].mxu0
      %v4114 = vpop.f32.mrb[0].mxu0
      %v4115 = vadd.f32 0.0, %v4114
      %v4116 = vpop.f32.mrb[0].mxu0
      %4117 = vmatprep.mubr.bf16.mxu0 0
      %4118 = vmatmul.mubr.bf16.gmra.mrb[0].mxu0 %v2478
      %v4119 = vpop.f32.mrb[0].mxu0
      %v4120 = vadd.f32 0.0, %v4119
      %v4121 = vpop.f32.mrb[0].mxu0
      %v4122 = vpop.f32.mrb[0].mxu0
      %v4123 = vadd.f32 0.0, %v4122
      %v4124 = vpop.f32.mrb[0].mxu0
      %4125 = vmatprep.mubr.bf16.mxu0 0
      %4126 = vmatmul.mubr.bf16.gmra.mrb[0].mxu0 %v2481
      %v4127 = vpop.f32.mrb[0].mxu0
      %v4128 = vadd.f32 0.0, %v4127
      %v4129 = vpop.f32.mrb[0].mxu0
      %v4130 = vpop.f32.mrb[0].mxu0
      %v4131 = vadd.f32 0.0, %v4130
      %v4132 = vpop.f32.mrb[0].mxu0
      %4133 = vmatprep.mubr.bf16.mxu0 0
      %4134 = vmatmul.mubr.bf16.gmra.mrb[0].mxu0 %v2484
      %v4135 = vpop.f32.mrb[0].mxu0
      %v4136 = vadd.f32 0.0, %v4135
      %v4137 = vpop.f32.mrb[0].mxu0
      %v4138 = vpop.f32.mrb[0].mxu0
      %v4139 = vadd.f32 0.0, %v4138
      %v4140 = vpop.f32.mrb[0].mxu0
      %4141 = vmatprep.mubr.bf16.mxu0 0
      %4142 = vmatmul.mubr.bf16.gmra.mrb[0].mxu0 %v2487
      %v4143 = vpop.f32.mrb[0].mxu0
      %v4144 = vadd.f32 0.0, %v4143
      %v4145 = vpop.f32.mrb[0].mxu0
      %v4146 = vpop.f32.mrb[0].mxu0
      %v4147 = vadd.f32 0.0, %v4146
      %v4148 = vpop.f32.mrb[0].mxu0
      %4149 = vmatprep.mubr.bf16.mxu0 0
      %4150 = vmatmul.mubr.bf16.gmra.mrb[0].mxu0 %v2490
      %v4151 = vpop.f32.mrb[0].mxu0
      %v4152 = vadd.f32 0.0, %v4151
      %v4153 = vpop.f32.mrb[0].mxu0
      %v4154 = vpop.f32.mrb[0].mxu0
      %v4155 = vadd.f32 0.0, %v4154
      %v4156 = vpop.f32.mrb[0].mxu0
      %4157 = vmatprep.mubr.bf16.mxu0 0
      %4158 = vmatmul.mubr.bf16.gmra.mrb[0].mxu0 %v2493
      %v4159 = vpop.f32.mrb[0].mxu0
      %v4160 = vadd.f32 0.0, %v4159
      %v4161 = vpop.f32.mrb[0].mxu0
      %v4162 = vpop.f32.mrb[0].mxu0
      %v4163 = vadd.f32 0.0, %v4162
      %v4164 = vpop.f32.mrb[0].mxu0
      %4165 = vmatprep.mubr.bf16.mxu0 0
      %4166 = vmatmul.mubr.bf16.gmra.mrb[0].mxu0 %v2496
      %v4167 = vpop.f32.mrb[0].mxu0
      %v4168 = vadd.f32 0.0, %v4167
      %v4169 = vpop.f32.mrb[0].mxu0
      %v4170 = vpop.f32.mrb[0].mxu0
      %v4171 = vadd.f32 0.0, %v4170
      %v4172 = vpop.f32.mrb[0].mxu0
      %4173 = vmatprep.mubr.bf16.mxu0 0
      %4174 = vmatmul.mubr.bf16.gmra.mrb[0].mxu0 %v2499
      %v4175 = vpop.f32.mrb[0].mxu0
      %v4176 = vadd.f32 0.0, %v4175
      %v4177 = vpop.f32.mrb[0].mxu0
      %v4178 = vpop.f32.mrb[0].mxu0
      %v4179 = vadd.f32 0.0, %v4178
      %v4180 = vpop.f32.mrb[0].mxu0
      %4181 = vmatprep.mubr.bf16.mxu0 0
      %4182 = vmatmul.mubr.bf16.gmra.mrb[0].mxu0 %v2502
      %v4183 = vpop.f32.mrb[0].mxu0
      %v4184 = vadd.f32 0.0, %v4183
      %v4185 = vpop.f32.mrb[0].mxu0
      %v4186 = vpop.f32.mrb[0].mxu0
      %v4187 = vadd.f32 0.0, %v4186
      %v4188 = vpop.f32.mrb[0].mxu0
      %4189 = vmatprep.mubr.bf16.mxu0 0
      %4190 = vmatmul.mubr.bf16.gmra.mrb[0].mxu0 %v2505
      %v4191 = vpop.f32.mrb[0].mxu0
      %v4192 = vadd.f32 0.0, %v4191
      %v4193 = vpop.f32.mrb[0].mxu0
      %v4194 = vpop.f32.mrb[0].mxu0
      %v4195 = vadd.f32 0.0, %v4194
      %v4196 = vpop.f32.mrb[0].mxu0
      %4197 = vmatprep.mubr.bf16.mxu0 0
      %4198 = vmatmul.mubr.bf16.gmra.mrb[0].mxu0 %v2508
      %v4199 = vpop.f32.mrb[0].mxu0
      %v4200 = vadd.f32 0.0, %v4199
      %v4201 = vpop.f32.mrb[0].mxu0
      %v4202 = vpop.f32.mrb[0].mxu0
      %v4203 = vadd.f32 0.0, %v4202
      %v4204 = vpop.f32.mrb[0].mxu0
      %4205 = vmatprep.mubr.bf16.mxu0 0
      %4206 = vmatmul.mubr.bf16.gmra.mrb[0].mxu0 %v2511
      %v4207 = vpop.f32.mrb[0].mxu0
      %v4208 = vadd.f32 0.0, %v4207
      %v4209 = vpop.f32.mrb[0].mxu0
      %v4210 = vpop.f32.mrb[0].mxu0
      %v4211 = vadd.f32 0.0, %v4210
      %v4212 = vpop.f32.mrb[0].mxu0
      %4213 = vmatprep.mubr.bf16.mxu0 0
      %4214 = vmatmul.mubr.bf16.gmra.mrb[0].mxu0 %v2514
      %v4215 = vpop.f32.mrb[0].mxu0
      %v4216 = vadd.f32 0.0, %v4215
      %v4217 = vpop.f32.mrb[0].mxu0
      %v4218 = vpop.f32.mrb[0].mxu0
      %v4219 = vadd.f32 0.0, %v4218
      %v4220 = vpop.f32.mrb[0].mxu0
      %4221 = vmatprep.mubr.bf16.mxu0 0
      %4222 = vmatmul.mubr.bf16.gmra.mrb[0].mxu0 %v2517
      %v4223 = vpop.f32.mrb[0].mxu0
      %v4224 = vadd.f32 0.0, %v4223
      %v4225 = vpop.f32.mrb[0].mxu0
      %v4226 = vpop.f32.mrb[0].mxu0
      %v4227 = vadd.f32 0.0, %v4226
      %v4228 = vpop.f32.mrb[0].mxu0
      %4229 = vmatprep.mubr.bf16.mxu0 0
      %4230 = vmatmul.mubr.bf16.gmra.mrb[0].mxu0 %v2520
      %v4231 = vpop.f32.mrb[0].mxu0
      %v4232 = vadd.f32 0.0, %v4231
      %v4233 = vpop.f32.mrb[0].mxu0
      %v4234 = vpop.f32.mrb[0].mxu0
      %v4235 = vadd.f32 0.0, %v4234
      %v4236 = vpop.f32.mrb[0].mxu0
      %4237 = vmatprep.mubr.bf16.mxu0 0
      %4238 = vmatmul.mubr.bf16.gmra.mrb[0].mxu0 %v2523
      %v4239 = vpop.f32.mrb[0].mxu0
      %v4240 = vadd.f32 0.0, %v4239
      %v4241 = vpop.f32.mrb[0].mxu0
      %v4242 = vpop.f32.mrb[0].mxu0
      %v4243 = vadd.f32 0.0, %v4242
      %v4244 = vpop.f32.mrb[0].mxu0
      %4245 = vmatprep.mubr.bf16.mxu0 0
      %4246 = vmatmul.mubr.bf16.gmra.mrb[0].mxu0 %v2526
      %v4247 = vpop.f32.mrb[0].mxu0
      %v4248 = vadd.f32 0.0, %v4247
      %v4249 = vpop.f32.mrb[0].mxu0
      %v4250 = vpop.f32.mrb[0].mxu0
      %v4251 = vadd.f32 0.0, %v4250
      %v4252 = vpop.f32.mrb[0].mxu0
      %4253 = vmatprep.mubr.bf16.mxu0 0
      %4254 = vmatmul.mubr.bf16.gmra.mrb[0].mxu0 %v2529
      %v4255 = vpop.f32.mrb[0].mxu0
      %v4256 = vadd.f32 0.0, %v4255
      %v4257 = vpop.f32.mrb[0].mxu0
      %v4258 = vpop.f32.mrb[0].mxu0
      %v4259 = vadd.f32 0.0, %v4258
      %v4260 = vpop.f32.mrb[0].mxu0
      %4261 = vmatprep.mubr.bf16.mxu0 0
      %4262 = vmatmul.mubr.bf16.gmra.mrb[0].mxu0 %v2532
      %v4263 = vpop.f32.mrb[0].mxu0
      %v4264 = vadd.f32 0.0, %v4263
      %v4265 = vpop.f32.mrb[0].mxu0
      %v4266 = vpop.f32.mrb[0].mxu0
      %v4267 = vadd.f32 0.0, %v4266
      %v4268 = vpop.f32.mrb[0].mxu0
      %4269 = vmatprep.mubr.bf16.mxu0 0
      %4270 = vmatmul.mubr.bf16.gmra.mrb[0].mxu0 %v2535
      %v4271 = vpop.f32.mrb[0].mxu0
      %v4272 = vadd.f32 0.0, %v4271
      %v4273 = vpop.f32.mrb[0].mxu0
      %v4274 = vpop.f32.mrb[0].mxu0
      %v4275 = vadd.f32 0.0, %v4274
      %v4276 = vpop.f32.mrb[0].mxu0
      %4277 = vmatprep.mubr.bf16.mxu0 0
      %4278 = vmatmul.mubr.bf16.gmra.mrb[0].mxu0 %v2538
      %v4279 = vpop.f32.mrb[0].mxu0
      %v4280 = vadd.f32 0.0, %v4279
      %v4281 = vpop.f32.mrb[0].mxu0
      %v4282 = vpop.f32.mrb[0].mxu0
      %v4283 = vadd.f32 0.0, %v4282
      %v4284 = vpop.f32.mrb[0].mxu0
      %4285 = vmatprep.mubr.bf16.mxu0 0
      %4286 = vmatmul.mubr.bf16.gmra.mrb[0].mxu0 %v2541
      %v4287 = vpop.f32.mrb[0].mxu0
      %v4288 = vadd.f32 0.0, %v4287
      %v4289 = vpop.f32.mrb[0].mxu0
      %v4290 = vpop.f32.mrb[0].mxu0
      %v4291 = vadd.f32 0.0, %v4290
      %v4292 = vpop.f32.mrb[0].mxu0
      %4293 = vmatprep.mubr.bf16.mxu0 0
      %4294 = vmatmul.mubr.bf16.gmra.mrb[0].mxu0 %v2544
      %v4295 = vpop.f32.mrb[0].mxu0
      %v4296 = vadd.f32 0.0, %v4295
      %v4297 = vpop.f32.mrb[0].mxu0
      %v4298 = vpop.f32.mrb[0].mxu0
      %v4299 = vadd.f32 0.0, %v4298
      %v4300 = vpop.f32.mrb[0].mxu0
      %4301 = vmatprep.mubr.bf16.mxu0 0
      %4302 = vmatmul.mubr.bf16.gmra.mrb[0].mxu0 %v2547
      %v4303 = vpop.f32.mrb[0].mxu0
      %v4304 = vadd.f32 0.0, %v4303
      %v4305 = vpop.f32.mrb[0].mxu0
      %v4306 = vpop.f32.mrb[0].mxu0
      %v4307 = vadd.f32 0.0, %v4306
      %v4308 = vpop.f32.mrb[0].mxu0
      %4309 = vmatprep.mubr.bf16.mxu0 0
      %4310 = vmatmul.mubr.bf16.gmra.mrb[0].mxu0 %v2550
      %v4311 = vpop.f32.mrb[0].mxu0
      %v4312 = vadd.f32 0.0, %v4311
      %v4313 = vpop.f32.mrb[0].mxu0
      %v4314 = vpop.f32.mrb[0].mxu0
      %v4315 = vadd.f32 0.0, %v4314
      %v4316 = vpop.f32.mrb[0].mxu0
      %4317 = vmatprep.mubr.bf16.mxu0 0
      %4318 = vmatmul.mubr.bf16.gmra.mrb[0].mxu0 %v2553
      %v4319 = vpop.f32.mrb[0].mxu0
      %v4320 = vadd.f32 0.0, %v4319
      %v4321 = vpop.f32.mrb[0].mxu0
      %v4322 = vpop.f32.mrb[0].mxu0
      %v4323 = vadd.f32 0.0, %v4322
      %v4324 = vpop.f32.mrb[0].mxu0
      %4325 = vmatprep.mubr.bf16.mxu0 0
      %4326 = vmatmul.mubr.bf16.gmra.mrb[0].mxu0 %v2556
      %v4327 = vpop.f32.mrb[0].mxu0
      %v4328 = vadd.f32 0.0, %v4327
      %v4329 = vpop.f32.mrb[0].mxu0
      %v4330 = vpop.f32.mrb[0].mxu0
      %v4331 = vadd.f32 0.0, %v4330
      %v4332 = vpop.f32.mrb[0].mxu0
      %4333 = vmatprep.mubr.bf16.mxu0 0
      %4334 = vmatmul.mubr.bf16.gmra.mrb[0].mxu0 %v2559
      %v4335 = vpop.f32.mrb[0].mxu0
      %v4336 = vadd.f32 0.0, %v4335
      %v4337 = vpop.f32.mrb[0].mxu0
      %v4338 = vpop.f32.mrb[0].mxu0
      %v4339 = vadd.f32 0.0, %v4338
      %v4340 = vpop.f32.mrb[0].mxu0
      %4341 = vmatprep.mubr.bf16.mxu0 0
      %4342 = vmatmul.mubr.bf16.gmra.mrb[0].mxu0 %v2562
      %v4343 = vpop.f32.mrb[0].mxu0
      %v4344 = vadd.f32 0.0, %v4343
      %v4345 = vpop.f32.mrb[0].mxu0
      %v4346 = vpop.f32.mrb[0].mxu0
      %v4347 = vadd.f32 0.0, %v4346
      %v4348 = vpop.f32.mrb[0].mxu0
      %4349 = vmatprep.mubr.bf16.mxu0 0
      %4350 = vmatmul.mubr.bf16.gmra.mrb[0].mxu0 %v2565
      %v4351 = vpop.f32.mrb[0].mxu0
      %v4352 = vadd.f32 0.0, %v4351
      %v4353 = vpop.f32.mrb[0].mxu0
      %v4354 = vpop.f32.mrb[0].mxu0
      %v4355 = vadd.f32 0.0, %v4354
      %v4356 = vpop.f32.mrb[0].mxu0
      %4357 = vmatprep.mubr.bf16.mxu0 0
      %4358 = vmatmul.mubr.bf16.gmra.mrb[0].mxu0 %v2568
      %v4359 = vpop.f32.mrb[0].mxu0
      %v4360 = vadd.f32 0.0, %v4359
      %v4361 = vpop.f32.mrb[0].mxu0
      %v4362 = vpop.f32.mrb[0].mxu0
      %v4363 = vadd.f32 0.0, %v4362
      %v4364 = vpop.f32.mrb[0].mxu0
      %4365 = vmatprep.mubr.bf16.mxu0 0
      %4366 = vmatmul.mubr.bf16.gmra.mrb[0].mxu0 %v2571
      %v4367 = vpop.f32.mrb[0].mxu0
      %v4368 = vadd.f32 0.0, %v4367
      %v4369 = vpop.f32.mrb[0].mxu0
      %v4370 = vpop.f32.mrb[0].mxu0
      %v4371 = vadd.f32 0.0, %v4370
      %v4372 = vpop.f32.mrb[0].mxu0
      %4373 = vmatprep.mubr.bf16.mxu0 0
      %4374 = vmatmul.mubr.bf16.gmra.mrb[0].mxu0 %v2574
      %v4375 = vpop.f32.mrb[0].mxu0
      %v4376 = vadd.f32 0.0, %v4375
      %v4377 = vpop.f32.mrb[0].mxu0
      %v4378 = vpop.f32.mrb[0].mxu0
      %v4379 = vadd.f32 0.0, %v4378
      %v4380 = vpop.f32.mrb[0].mxu0
      %4381 = vmatprep.mubr.bf16.mxu0 0
      %4382 = vmatmul.mubr.bf16.gmra.mrb[0].mxu0 %v2577
      %v4383 = vpop.f32.mrb[0].mxu0
      %v4384 = vadd.f32 0.0, %v4383
      %v4385 = vpop.f32.mrb[0].mxu0
      %v4386 = vpop.f32.mrb[0].mxu0
      %v4387 = vadd.f32 0.0, %v4386
      %v4388 = vpop.f32.mrb[0].mxu0
      %4389 = vmatprep.mubr.bf16.mxu0 0
      %4390 = vmatmul.mubr.bf16.gmra.mrb[0].mxu0 %v2580
      %v4391 = vpop.f32.mrb[0].mxu0
      %v4392 = vadd.f32 0.0, %v4391
      %v4393 = vpop.f32.mrb[0].mxu0
      %v4394 = vpop.f32.mrb[0].mxu0
      %v4395 = vadd.f32 0.0, %v4394
      %v4396 = vpop.f32.mrb[0].mxu0
      %4397 = vmatprep.mubr.bf16.mxu0 0
      %4398 = vmatmul.mubr.bf16.gmra.mrb[0].mxu0 %v2583
      %v4399 = vpop.f32.mrb[0].mxu0
      %v4400 = vadd.f32 0.0, %v4399
      %v4401 = vpop.f32.mrb[0].mxu0
      %v4402 = vpop.f32.mrb[0].mxu0
      %v4403 = vadd.f32 0.0, %v4402
      %v4404 = vpop.f32.mrb[0].mxu0
      %4405 = vmatprep.mubr.bf16.mxu0 0
      %4406 = vmatmul.mubr.bf16.gmra.mrb[0].mxu0 %v2586
      %v4407 = vpop.f32.mrb[0].mxu0
      %v4408 = vadd.f32 0.0, %v4407
      %v4409 = vpop.f32.mrb[0].mxu0
      %v4410 = vpop.f32.mrb[0].mxu0
      %v4411 = vadd.f32 0.0, %v4410
      %v4412 = vpop.f32.mrb[0].mxu0
      %4413 = vmatprep.mubr.bf16.mxu0 0
      %4414 = vmatmul.mubr.bf16.gmra.mrb[0].mxu0 %v2589
      %v4415 = vpop.f32.mrb[0].mxu0
      %v4416 = vadd.f32 0.0, %v4415
      %v4417 = vpop.f32.mrb[0].mxu0
      %v4418 = vpop.f32.mrb[0].mxu0
      %v4419 = vadd.f32 0.0, %v4418
      %v4420 = vpop.f32.mrb[0].mxu0
      %4421 = vmatprep.mubr.bf16.mxu0 0
      %4422 = vmatmul.mubr.bf16.gmra.mrb[0].mxu0 %v2592
      %v4423 = vpop.f32.mrb[0].mxu0
      %v4424 = vadd.f32 0.0, %v4423
      %v4425 = vpop.f32.mrb[0].mxu0
      %v4426 = vpop.f32.mrb[0].mxu0
      %v4427 = vadd.f32 0.0, %v4426
      %v4428 = vpop.f32.mrb[0].mxu0
      %4429 = vmatprep.mubr.bf16.mxu0 0
      %4430 = vmatmul.mubr.bf16.gmra.mrb[0].mxu0 %v2595
      %v4431 = vpop.f32.mrb[0].mxu0
      %v4432 = vadd.f32 0.0, %v4431
      %v4433 = vpop.f32.mrb[0].mxu0
      %v4434 = vpop.f32.mrb[0].mxu0
      %v4435 = vadd.f32 0.0, %v4434
      %v4436 = vpop.f32.mrb[0].mxu0
      %4437 = vmatprep.mubr.bf16.mxu0 0
      %4438 = vmatmul.mubr.bf16.gmra.mrb[0].mxu0 %v2598
      %v4439 = vpop.f32.mrb[0].mxu0
      %v4440 = vadd.f32 0.0, %v4439
      %v4441 = vpop.f32.mrb[0].mxu0
      %v4442 = vpop.f32.mrb[0].mxu0
      %v4443 = vadd.f32 0.0, %v4442
      %v4444 = vpop.f32.mrb[0].mxu0
      %4445 = vmatprep.mubr.bf16.mxu0 0
      %4446 = vmatmul.mubr.bf16.gmra.mrb[0].mxu0 %v2601
      %v4447 = vpop.f32.mrb[0].mxu0
      %v4448 = vadd.f32 0.0, %v4447
      %v4449 = vpop.f32.mrb[0].mxu0
      %v4450 = vpop.f32.mrb[0].mxu0
      %v4451 = vadd.f32 0.0, %v4450
      %v4452 = vpop.f32.mrb[0].mxu0
      %4453 = vmatprep.mubr.bf16.mxu0 0
      %4454 = vmatmul.mubr.bf16.gmra.mrb[0].mxu0 %v2604
      %v4455 = vpop.f32.mrb[0].mxu0
      %v4456 = vadd.f32 0.0, %v4455
      %v4457 = vpop.f32.mrb[0].mxu0
      %v4458 = vpop.f32.mrb[0].mxu0
      %v4459 = vadd.f32 0.0, %v4458
      %v4460 = vpop.f32.mrb[0].mxu0
      %4461 = vmatprep.mubr.bf16.mxu0 0
      %4462 = vmatmul.mubr.bf16.gmra.mrb[0].mxu0 %v2607
      %v4463 = vpop.f32.mrb[0].mxu0
      %v4464 = vadd.f32 0.0, %v4463
      %v4465 = vpop.f32.mrb[0].mxu0
      %v4466 = vpop.f32.mrb[0].mxu0
      %v4467 = vadd.f32 0.0, %v4466
      %v4468 = vpop.f32.mrb[0].mxu0
      %4469 = vmatprep.mubr.bf16.mxu0 0
      %4470 = vmatmul.mubr.bf16.gmra.mrb[0].mxu0 %v2610
      %v4471 = vpop.f32.mrb[0].mxu0
      %v4472 = vadd.f32 0.0, %v4471
      %v4473 = vpop.f32.mrb[0].mxu0
      %v4474 = vpop.f32.mrb[0].mxu0
      %v4475 = vadd.f32 0.0, %v4474
      %v4476 = vpop.f32.mrb[0].mxu0
      %4477 = vmatprep.mubr.bf16.mxu0 0
      %4478 = vmatmul.mubr.bf16.gmra.mrb[0].mxu0 %v2613
      %v4479 = vpop.f32.mrb[0].mxu0
      %v4480 = vadd.f32 0.0, %v4479
      %v4481 = vpop.f32.mrb[0].mxu0
      %v4482 = vpop.f32.mrb[0].mxu0
      %v4483 = vadd.f32 0.0, %v4482
      %v4484 = vpop.f32.mrb[0].mxu0
      %4485 = vmatprep.mubr.bf16.mxu0 0
      %4486 = vmatmul.mubr.bf16.gmra.mrb[0].mxu0 %v2616
      %v4487 = vpop.f32.mrb[0].mxu0
      %v4488 = vadd.f32 0.0, %v4487
      %v4489 = vpop.f32.mrb[0].mxu0
      %v4490 = vpop.f32.mrb[0].mxu0
      %v4491 = vadd.f32 0.0, %v4490
      %v4492 = vpop.f32.mrb[0].mxu0
      %4493 = vmatprep.mubr.bf16.mxu0 0
      %4494 = vmatmul.mubr.bf16.gmra.mrb[0].mxu0 %v2619
      %v4495 = vpop.f32.mrb[0].mxu0
      %v4496 = vadd.f32 0.0, %v4495
      %v4497 = vpop.f32.mrb[0].mxu0
      %v4498 = vpop.f32.mrb[0].mxu0
      %v4499 = vadd.f32 0.0, %v4498
      %v4500 = vpop.f32.mrb[0].mxu0
      %4501 = vmatprep.mubr.bf16.mxu0 0
      %4502 = vmatmul.mubr.bf16.gmra.mrb[0].mxu0 %v2622
      %v4503 = vpop.f32.mrb[0].mxu0
      %v4504 = vadd.f32 0.0, %v4503
      %v4505 = vpop.f32.mrb[0].mxu0
      %v4506 = vpop.f32.mrb[0].mxu0
      %v4507 = vadd.f32 0.0, %v4506
      %v4508 = vpop.f32.mrb[0].mxu0
      %4509 = vmatprep.mubr.bf16.mxu0 0
      %4510 = vmatmul.mubr.bf16.gmra.mrb[0].mxu0 %v2625
      %v4511 = vpop.f32.mrb[0].mxu0
      %v4512 = vadd.f32 0.0, %v4511
      %v4513 = vpop.f32.mrb[0].mxu0
      %v4514 = vpop.f32.mrb[0].mxu0
      %v4515 = vadd.f32 0.0, %v4514
      %v4516 = vpop.f32.mrb[0].mxu0
      %4517 = vmatprep.mubr.bf16.mxu0 0
      %4518 = vmatmul.mubr.bf16.gmra.mrb[0].mxu0 %v2628
      %v4519 = vpop.f32.mrb[0].mxu0
      %v4520 = vadd.f32 0.0, %v4519
      %v4521 = vpop.f32.mrb[0].mxu0
      %v4522 = vpop.f32.mrb[0].mxu0
      %v4523 = vadd.f32 0.0, %v4522
      %v4524 = vpop.f32.mrb[0].mxu0
      %4525 = vmatprep.mubr.bf16.mxu0 0
      %4526 = vmatmul.mubr.bf16.gmra.mrb[0].mxu0 %v2631
      %v4527 = vpop.f32.mrb[0].mxu0
      %v4528 = vadd.f32 0.0, %v4527
      %v4529 = vpop.f32.mrb[0].mxu0
      %v4530 = vpop.f32.mrb[0].mxu0
      %v4531 = vadd.f32 0.0, %v4530
      %v4532 = vpop.f32.mrb[0].mxu0
      %4533 = vmatprep.mubr.bf16.mxu0 0
      %4534 = vmatmul.mubr.bf16.gmra.mrb[0].mxu0 %v2634
      %v4535 = vpop.f32.mrb[0].mxu0
      %v4536 = vadd.f32 0.0, %v4535
      %v4537 = vpop.f32.mrb[0].mxu0
      %v4538 = vpop.f32.mrb[0].mxu0
      %v4539 = vadd.f32 0.0, %v4538
      %v4540 = vpop.f32.mrb[0].mxu0
      %4541 = vmatprep.mubr.bf16.mxu0 0
      %4542 = vmatmul.mubr.bf16.gmra.mrb[0].mxu0 %v2637
      %v4543 = vpop.f32.mrb[0].mxu0
      %v4544 = vadd.f32 0.0, %v4543
      %v4545 = vpop.f32.mrb[0].mxu0
      %v4546 = vpop.f32.mrb[0].mxu0
      %v4547 = vadd.f32 0.0, %v4546
      %v4548 = vpop.f32.mrb[0].mxu0
      %4549 = vmatprep.mubr.bf16.mxu0 0
      %4550 = vmatmul.mubr.bf16.gmra.mrb[0].mxu0 %v2640
      %v4551 = vpop.f32.mrb[0].mxu0
      %v4552 = vadd.f32 0.0, %v4551
      %v4553 = vpop.f32.mrb[0].mxu0
      %v4554 = vpop.f32.mrb[0].mxu0
      %v4555 = vadd.f32 0.0, %v4554
      %v4556 = vpop.f32.mrb[0].mxu0
      %4557 = vmatprep.mubr.bf16.mxu0 0
      %4558 = vmatmul.mubr.bf16.gmra.mrb[0].mxu0 %v2643
      %v4559 = vpop.f32.mrb[0].mxu0
      %v4560 = vadd.f32 0.0, %v4559
      %v4561 = vpop.f32.mrb[0].mxu0
      %v4562 = vpop.f32.mrb[0].mxu0
      %v4563 = vadd.f32 0.0, %v4562
      %v4564 = vpop.f32.mrb[0].mxu0
      %4565 = vmatprep.mubr.bf16.mxu0 0
      %4566 = vmatmul.mubr.bf16.gmra.mrb[0].mxu0 %v2646
      %v4567 = vpop.f32.mrb[0].mxu0
      %v4568 = vadd.f32 0.0, %v4567
      %v4569 = vpop.f32.mrb[0].mxu0
      %v4570 = vpop.f32.mrb[0].mxu0
      %v4571 = vadd.f32 0.0, %v4570
      %v4572 = vpop.f32.mrb[0].mxu0
      %4573 = vmatprep.mubr.bf16.mxu0 0
      %4574 = vmatmul.mubr.bf16.gmra.mrb[0].mxu0 %v2649
      %v4575 = vpop.f32.mrb[0].mxu0
      %v4576 = vadd.f32 0.0, %v4575
      %v4577 = vpop.f32.mrb[0].mxu0
      %v4578 = vpop.f32.mrb[0].mxu0
      %v4579 = vadd.f32 0.0, %v4578
      %v4580 = vpop.f32.mrb[0].mxu0
      %4581 = vmatprep.mubr.bf16.mxu0 0
      %4582 = vmatmul.mubr.bf16.gmra.mrb[0].mxu0 %v2652
      %v4583 = vpop.f32.mrb[0].mxu0
      %v4584 = vadd.f32 0.0, %v4583
      %v4585 = vpop.f32.mrb[0].mxu0
      %v4586 = vpop.f32.mrb[0].mxu0
      %v4587 = vadd.f32 0.0, %v4586
      %v4588 = vpop.f32.mrb[0].mxu0
      %4589 = vmatprep.mubr.bf16.mxu0 0
      %4590 = vmatmul.mubr.bf16.gmra.mrb[0].mxu0 %v2655
      %v4591 = vpop.f32.mrb[0].mxu0
      %v4592 = vadd.f32 0.0, %v4591
      %v4593 = vpop.f32.mrb[0].mxu0
      %v4594 = vpop.f32.mrb[0].mxu0
      %v4595 = vadd.f32 0.0, %v4594
      %v4596 = vpop.f32.mrb[0].mxu0
      %4597 = vmatprep.mubr.bf16.mxu0 0
      %4598 = vmatmul.mubr.bf16.gmra.mrb[0].mxu0 %v2658
      %v4599 = vpop.f32.mrb[0].mxu0
      %v4600 = vadd.f32 0.0, %v4599
      %v4601 = vpop.f32.mrb[0].mxu0
      %v4602 = vpop.f32.mrb[0].mxu0
      %v4603 = vadd.f32 0.0, %v4602
      %v4604 = vpop.f32.mrb[0].mxu0
      %4605 = vmatprep.mubr.bf16.mxu0 0
      %4606 = vmatmul.mubr.bf16.gmra.mrb[0].mxu0 %v2661
      %v4607 = vpop.f32.mrb[0].mxu0
      %v4608 = vadd.f32 0.0, %v4607
      %v4609 = vpop.f32.mrb[0].mxu0
      %v4610 = vpop.f32.mrb[0].mxu0
      %v4611 = vadd.f32 0.0, %v4610
      %v4612 = vpop.f32.mrb[0].mxu0
      %4613 = vmatprep.mubr.bf16.mxu0 0
      %4614 = vmatmul.mubr.bf16.gmra.mrb[0].mxu0 %v2664
      %v4615 = vpop.f32.mrb[0].mxu0
      %v4616 = vadd.f32 0.0, %v4615
      %v4617 = vpop.f32.mrb[0].mxu0
      %v4618 = vpop.f32.mrb[0].mxu0
      %v4619 = vadd.f32 0.0, %v4618
      %v4620 = vpop.f32.mrb[0].mxu0
      %4621 = vmatprep.mubr.bf16.mxu0 0
      %4622 = vmatmul.mubr.bf16.gmra.mrb[0].mxu0 %v2667
      %v4623 = vpop.f32.mrb[0].mxu0
      %v4624 = vadd.f32 0.0, %v4623
      %v4625 = vpop.f32.mrb[0].mxu0
      %v4626 = vpop.f32.mrb[0].mxu0
      %v4627 = vadd.f32 0.0, %v4626
      %v4628 = vpop.f32.mrb[0].mxu0
      %4629 = vmatprep.mubr.bf16.mxu0 0
      %4630 = vmatmul.mubr.bf16.gmra.mrb[0].mxu0 %v2670
      %v4631 = vpop.f32.mrb[0].mxu0
      %v4632 = vadd.f32 0.0, %v4631
      %v4633 = vpop.f32.mrb[0].mxu0
      %v4634 = vpop.f32.mrb[0].mxu0
      %v4635 = vadd.f32 0.0, %v4634
      %v4636 = vpop.f32.mrb[0].mxu0
      %4637 = vmatprep.mubr.bf16.mxu0 0
      %4638 = vmatmul.mubr.bf16.gmra.mrb[0].mxu0 %v2673
      %v4639 = vpop.f32.mrb[0].mxu0
      %v4640 = vadd.f32 0.0, %v4639
      %v4641 = vpop.f32.mrb[0].mxu0
      %v4642 = vpop.f32.mrb[0].mxu0
      %v4643 = vadd.f32 0.0, %v4642
      %v4644 = vpop.f32.mrb[0].mxu0
      %4645 = vmatprep.mubr.bf16.mxu0 0
      %4646 = vmatmul.mubr.bf16.gmra.mrb[0].mxu0 %v2676
      %v4647 = vpop.f32.mrb[0].mxu0
      %v4648 = vadd.f32 0.0, %v4647
      %v4649 = vpop.f32.mrb[0].mxu0
      %v4650 = vpop.f32.mrb[0].mxu0
      %v4651 = vadd.f32 0.0, %v4650
      %v4652 = vpop.f32.mrb[0].mxu0
      %4653 = vmatprep.mubr.bf16.mxu0 0
      %4654 = vmatmul.mubr.bf16.gmra.mrb[0].mxu0 %v2679
      %v4655 = vpop.f32.mrb[0].mxu0
      %v4656 = vadd.f32 0.0, %v4655
      %v4657 = vpop.f32.mrb[0].mxu0
      %v4658 = vpop.f32.mrb[0].mxu0
      %v4659 = vadd.f32 0.0, %v4658
      %v4660 = vpop.f32.mrb[0].mxu0
      %4661 = vmatprep.mubr.bf16.mxu0 0
      %4662 = vmatmul.mubr.bf16.gmra.mrb[0].mxu0 %v2682
      %v4663 = vpop.f32.mrb[0].mxu0
      %v4664 = vadd.f32 0.0, %v4663
      %v4665 = vpop.f32.mrb[0].mxu0
      %v4666 = vpop.f32.mrb[0].mxu0
      %v4667 = vadd.f32 0.0, %v4666
      %v4668 = vpop.f32.mrb[0].mxu0
      %4669 = vmatprep.mubr.bf16.mxu0 0
      %4670 = vmatmul.mubr.bf16.gmra.mrb[0].mxu0 %v2685
      %v4671 = vpop.f32.mrb[0].mxu0
      %v4672 = vadd.f32 0.0, %v4671
      %v4673 = vpop.f32.mrb[0].mxu0
      %v4674 = vpop.f32.mrb[0].mxu0
      %v4675 = vadd.f32 0.0, %v4674
      %v4676 = vpop.f32.mrb[0].mxu0
      %4677 = vmatprep.mubr.bf16.mxu0 0
      %4678 = vmatmul.mubr.bf16.gmra.mrb[0].mxu0 %v2688
      %v4679 = vpop.f32.mrb[0].mxu0
      %v4680 = vadd.f32 0.0, %v4679
      %v4681 = vpop.f32.mrb[0].mxu0
      %v4682 = vpop.f32.mrb[0].mxu0
      %v4683 = vadd.f32 0.0, %v4682
      %v4684 = vpop.f32.mrb[0].mxu0
      %4685 = vmatprep.mubr.bf16.mxu0 0
      %4686 = vmatmul.mubr.bf16.gmra.mrb[0].mxu0 %v2691
      %v4687 = vpop.f32.mrb[0].mxu0
      %v4688 = vadd.f32 0.0, %v4687
      %v4689 = vpop.f32.mrb[0].mxu0
      %v4690 = vpop.f32.mrb[0].mxu0
      %v4691 = vadd.f32 0.0, %v4690
      %v4692 = vpop.f32.mrb[0].mxu0
      %4693 = vmatprep.mubr.bf16.mxu0 0
      %4694 = vmatmul.mubr.bf16.gmra.mrb[0].mxu0 %v2694
      %v4695 = vpop.f32.mrb[0].mxu0
      %v4696 = vadd.f32 0.0, %v4695
      %v4697 = vpop.f32.mrb[0].mxu0
      %v4698 = vpop.f32.mrb[0].mxu0
      %v4699 = vadd.f32 0.0, %v4698
      %v4700 = vpop.f32.mrb[0].mxu0
      %4701 = vmatprep.mubr.bf16.mxu0 0
      %4702 = vmatmul.mubr.bf16.gmra.mrb[0].mxu0 %v2697
      %v4703 = vpop.f32.mrb[0].mxu0
      %v4704 = vadd.f32 0.0, %v4703
      %v4705 = vpop.f32.mrb[0].mxu0
      %v4706 = vpop.f32.mrb[0].mxu0
      %v4707 = vadd.f32 0.0, %v4706
      %v4708 = vpop.f32.mrb[0].mxu0
      %4709 = vmatprep.mubr.bf16.mxu0 0
      %4710 = vmatmul.mubr.bf16.gmra.mrb[0].mxu0 %v2700
      %v4711 = vpop.f32.mrb[0].mxu0
      %v4712 = vadd.f32 0.0, %v4711
      %v4713 = vpop.f32.mrb[0].mxu0
      %v4714 = vpop.f32.mrb[0].mxu0
      %v4715 = vadd.f32 0.0, %v4714
      %v4716 = vpop.f32.mrb[0].mxu0
      %4717 = vmatprep.mubr.bf16.mxu0 0
      %4718 = vmatmul.mubr.bf16.gmra.mrb[0].mxu0 %v2703
      %v4719 = vpop.f32.mrb[0].mxu0
      %v4720 = vadd.f32 0.0, %v4719
      %v4721 = vpop.f32.mrb[0].mxu0
      %v4722 = vpop.f32.mrb[0].mxu0
      %v4723 = vadd.f32 0.0, %v4722
      %v4724 = vpop.f32.mrb[0].mxu0
      %4725 = vmatprep.mubr.bf16.mxu0 0
      %4726 = vmatmul.mubr.bf16.gmra.mrb[0].mxu0 %v2706
      %v4727 = vpop.f32.mrb[0].mxu0
      %v4728 = vadd.f32 0.0, %v4727
      %v4729 = vpop.f32.mrb[0].mxu0
      %v4730 = vpop.f32.mrb[0].mxu0
      %v4731 = vadd.f32 0.0, %v4730
      %v4732 = vpop.f32.mrb[0].mxu0
      %4733 = vmatprep.mubr.bf16.mxu0 0
      %4734 = vmatmul.mubr.bf16.gmra.mrb[0].mxu0 %v2709
      %v4735 = vpop.f32.mrb[0].mxu0
      %v4736 = vadd.f32 0.0, %v4735
      %v4737 = vpop.f32.mrb[0].mxu0
      %v4738 = vpop.f32.mrb[0].mxu0
      %v4739 = vadd.f32 0.0, %v4738
      %v4740 = vpop.f32.mrb[0].mxu0
      %4741 = vmatprep.mubr.bf16.mxu0 0
      %4742 = vmatmul.mubr.bf16.gmra.mrb[0].mxu0 %v2712
      %v4743 = vpop.f32.mrb[0].mxu0
      %v4744 = vadd.f32 0.0, %v4743
      %v4745 = vpop.f32.mrb[0].mxu0
      %v4746 = vpop.f32.mrb[0].mxu0
      %v4747 = vadd.f32 0.0, %v4746
      %v4748 = vpop.f32.mrb[0].mxu0
      %4749 = vmatprep.mubr.bf16.mxu0 0
      %4750 = vmatmul.mubr.bf16.gmra.mrb[0].mxu0 %v2715
      %v4751 = vpop.f32.mrb[0].mxu0
      %v4752 = vadd.f32 0.0, %v4751
      %v4753 = vpop.f32.mrb[0].mxu0
      %v4754 = vpop.f32.mrb[0].mxu0
      %v4755 = vadd.f32 0.0, %v4754
      %v4756 = vpop.f32.mrb[0].mxu0
      %4757 = vmatprep.mubr.bf16.mxu0 0
      %4758 = vmatmul.mubr.bf16.gmra.mrb[0].mxu0 %v2718
      %v4759 = vpop.f32.mrb[0].mxu0
      %v4760 = vadd.f32 0.0, %v4759
      %v4761 = vpop.f32.mrb[0].mxu0
      %v4762 = vpop.f32.mrb[0].mxu0
      %v4763 = vadd.f32 0.0, %v4762
      %v4764 = vpop.f32.mrb[0].mxu0
      %4765 = vmatprep.mubr.bf16.mxu0 0
      %4766 = vmatmul.mubr.bf16.gmra.mrb[0].mxu0 %v2721
      %v4767 = vpop.f32.mrb[0].mxu0
      %v4768 = vadd.f32 0.0, %v4767
      %v4769 = vpop.f32.mrb[0].mxu0
      %v4770 = vpop.f32.mrb[0].mxu0
      %v4771 = vadd.f32 0.0, %v4770
      %v4772 = vpop.f32.mrb[0].mxu0
      %4773 = vmatprep.mubr.bf16.mxu0 0
      %4774 = vmatmul.mubr.bf16.gmra.mrb[0].mxu0 %v2724
      %v4775 = vpop.f32.mrb[0].mxu0
      %v4776 = vadd.f32 0.0, %v4775
      %v4777 = vpop.f32.mrb[0].mxu0
      %v4778 = vpop.f32.mrb[0].mxu0
      %v4779 = vadd.f32 0.0, %v4778
      %v4780 = vpop.f32.mrb[0].mxu0
      %4781 = vmatprep.mubr.bf16.mxu0 0
      %4782 = vmatmul.mubr.bf16.gmra.mrb[0].mxu0 %v2727
      %v4783 = vpop.f32.mrb[0].mxu0
      %v4784 = vadd.f32 0.0, %v4783
      %v4785 = vpop.f32.mrb[0].mxu0
      %v4786 = vpop.f32.mrb[0].mxu0
      %v4787 = vadd.f32 0.0, %v4786
      %v4788 = vpop.f32.mrb[0].mxu0
      %4789 = vmatprep.mubr.bf16.mxu0 0
      %4790 = vmatmul.mubr.bf16.gmra.mrb[0].mxu0 %v2730
      %v4791 = vpop.f32.mrb[0].mxu0
      %v4792 = vadd.f32 0.0, %v4791
      %v4793 = vpop.f32.mrb[0].mxu0
      %v4794 = vpop.f32.mrb[0].mxu0
      %v4795 = vadd.f32 0.0, %v4794
      %v4796 = vpop.f32.mrb[0].mxu0
      %4797 = vmatprep.mubr.bf16.mxu0 0
      %4798 = vmatmul.mubr.bf16.gmra.mrb[0].mxu0 %v2733
      %v4799 = vpop.f32.mrb[0].mxu0
      %v4800 = vadd.f32 0.0, %v4799
      %v4801 = vpop.f32.mrb[0].mxu0
      %v4802 = vpop.f32.mrb[0].mxu0
      %v4803 = vadd.f32 0.0, %v4802
      %v4804 = vpop.f32.mrb[0].mxu0
      %4805 = vmatprep.mubr.bf16.mxu0 0
      %4806 = vmatmul.mubr.bf16.gmra.mrb[0].mxu0 %v2736
      %v4807 = vpop.f32.mrb[0].mxu0
      %v4808 = vadd.f32 0.0, %v4807
      %v4809 = vpop.f32.mrb[0].mxu0
      %v4810 = vpop.f32.mrb[0].mxu0
      %v4811 = vadd.f32 0.0, %v4810
      %v4812 = vpop.f32.mrb[0].mxu0
      %4813 = vmatprep.mubr.bf16.mxu0 0
      %4814 = vmatmul.mubr.bf16.gmra.mrb[0].mxu0 %v2739
      %v4815 = vpop.f32.mrb[0].mxu0
      %v4816 = vadd.f32 0.0, %v4815
      %v4817 = vpop.f32.mrb[0].mxu0
      %v4818 = vpop.f32.mrb[0].mxu0
      %v4819 = vadd.f32 0.0, %v4818
      %v4820 = vpop.f32.mrb[0].mxu0
      %4821 = vdwg.mxu0
      %vm4822 = vcmp.ge.f32.partialorder %v2776, 0.0
      %vm4823 = vcmp.ge.f32.partialorder %v2779, 0.0
      %vm4824 = vcmp.ge.f32.partialorder %v2784, 0.0
      %vm4825 = vcmp.ge.f32.partialorder %v2787, 0.0
      %vm4826 = vcmp.ge.f32.partialorder %v2792, 0.0
      %vm4827 = vcmp.ge.f32.partialorder %v2795, 0.0
      %vm4828 = vcmp.ge.f32.partialorder %v2800, 0.0
      %vm4829 = vcmp.ge.f32.partialorder %v2803, 0.0
      %vm4830 = vcmp.ge.f32.partialorder %v2808, 0.0
      %vm4831 = vcmp.ge.f32.partialorder %v2811, 0.0
      %vm4832 = vcmp.ge.f32.partialorder %v2816, 0.0
      %vm4833 = vcmp.ge.f32.partialorder %v2819, 0.0
      %vm4834 = vcmp.ge.f32.partialorder %v2824, 0.0
      %vm4835 = vcmp.ge.f32.partialorder %v2827, 0.0
      %vm4836 = vcmp.ge.f32.partialorder %v2832, 0.0
      %vm4837 = vcmp.ge.f32.partialorder %v2835, 0.0
      %vm4838 = vcmp.ge.f32.partialorder %v2840, 0.0
      %vm4839 = vcmp.ge.f32.partialorder %v2843, 0.0
      %vm4840 = vcmp.ge.f32.partialorder %v2848, 0.0
      %vm4841 = vcmp.ge.f32.partialorder %v2851, 0.0
      %vm4842 = vcmp.ge.f32.partialorder %v2856, 0.0
      %vm4843 = vcmp.ge.f32.partialorder %v2859, 0.0
      %vm4844 = vcmp.ge.f32.partialorder %v2864, 0.0
      %vm4845 = vcmp.ge.f32.partialorder %v2867, 0.0
      %vm4846 = vcmp.ge.f32.partialorder %v2872, 0.0
      %vm4847 = vcmp.ge.f32.partialorder %v2875, 0.0
      %vm4848 = vcmp.ge.f32.partialorder %v2880, 0.0
      %vm4849 = vcmp.ge.f32.partialorder %v2883, 0.0
      %vm4850 = vcmp.ge.f32.partialorder %v2888, 0.0
      %vm4851 = vcmp.ge.f32.partialorder %v2891, 0.0
      %vm4852 = vcmp.ge.f32.partialorder %v2896, 0.0
      %vm4853 = vcmp.ge.f32.partialorder %v2899, 0.0
      %vm4854 = vcmp.ge.f32.partialorder %v2904, 0.0
      %vm4855 = vcmp.ge.f32.partialorder %v2907, 0.0
      %vm4856 = vcmp.ge.f32.partialorder %v2912, 0.0
      %vm4857 = vcmp.ge.f32.partialorder %v2915, 0.0
      %vm4858 = vcmp.ge.f32.partialorder %v2920, 0.0
      %vm4859 = vcmp.ge.f32.partialorder %v2923, 0.0
      %vm4860 = vcmp.ge.f32.partialorder %v2928, 0.0
      %vm4861 = vcmp.ge.f32.partialorder %v2931, 0.0
      %vm4862 = vcmp.ge.f32.partialorder %v2936, 0.0
      %vm4863 = vcmp.ge.f32.partialorder %v2939, 0.0
      %vm4864 = vcmp.ge.f32.partialorder %v2944, 0.0
      %vm4865 = vcmp.ge.f32.partialorder %v2947, 0.0
      %vm4866 = vcmp.ge.f32.partialorder %v2952, 0.0
      %vm4867 = vcmp.ge.f32.partialorder %v2955, 0.0
      %vm4868 = vcmp.ge.f32.partialorder %v2960, 0.0
      %vm4869 = vcmp.ge.f32.partialorder %v2963, 0.0
      %vm4870 = vcmp.ge.f32.partialorder %v2968, 0.0
      %vm4871 = vcmp.ge.f32.partialorder %v2971, 0.0
      %vm4872 = vcmp.ge.f32.partialorder %v2976, 0.0
      %vm4873 = vcmp.ge.f32.partialorder %v2979, 0.0
      %vm4874 = vcmp.ge.f32.partialorder %v2984, 0.0
      %vm4875 = vcmp.ge.f32.partialorder %v2987, 0.0
      %vm4876 = vcmp.ge.f32.partialorder %v2992, 0.0
      %vm4877 = vcmp.ge.f32.partialorder %v2995, 0.0
      %vm4878 = vcmp.ge.f32.partialorder %v3000, 0.0
      %vm4879 = vcmp.ge.f32.partialorder %v3003, 0.0
      %vm4880 = vcmp.ge.f32.partialorder %v3008, 0.0
      %vm4881 = vcmp.ge.f32.partialorder %v3011, 0.0
      %vm4882 = vcmp.ge.f32.partialorder %v3016, 0.0
      %vm4883 = vcmp.ge.f32.partialorder %v3019, 0.0
      %vm4884 = vcmp.ge.f32.partialorder %v3024, 0.0
      %vm4885 = vcmp.ge.f32.partialorder %v3027, 0.0
      %vm4886 = vcmp.ge.f32.partialorder %v3032, 0.0
      %vm4887 = vcmp.ge.f32.partialorder %v3035, 0.0
      %vm4888 = vcmp.ge.f32.partialorder %v3040, 0.0
      %vm4889 = vcmp.ge.f32.partialorder %v3043, 0.0
      %vm4890 = vcmp.ge.f32.partialorder %v3048, 0.0
      %vm4891 = vcmp.ge.f32.partialorder %v3051, 0.0
      %vm4892 = vcmp.ge.f32.partialorder %v3056, 0.0
      %vm4893 = vcmp.ge.f32.partialorder %v3059, 0.0
      %vm4894 = vcmp.ge.f32.partialorder %v3064, 0.0
      %vm4895 = vcmp.ge.f32.partialorder %v3067, 0.0
      %vm4896 = vcmp.ge.f32.partialorder %v3072, 0.0
      %vm4897 = vcmp.ge.f32.partialorder %v3075, 0.0
      %vm4898 = vcmp.ge.f32.partialorder %v3080, 0.0
      %vm4899 = vcmp.ge.f32.partialorder %v3083, 0.0
      %vm4900 = vcmp.ge.f32.partialorder %v3088, 0.0
      %vm4901 = vcmp.ge.f32.partialorder %v3091, 0.0
      %vm4902 = vcmp.ge.f32.partialorder %v3096, 0.0
      %vm4903 = vcmp.ge.f32.partialorder %v3099, 0.0
      %vm4904 = vcmp.ge.f32.partialorder %v3104, 0.0
      %vm4905 = vcmp.ge.f32.partialorder %v3107, 0.0
      %vm4906 = vcmp.ge.f32.partialorder %v3112, 0.0
      %vm4907 = vcmp.ge.f32.partialorder %v3115, 0.0
      %vm4908 = vcmp.ge.f32.partialorder %v3120, 0.0
      %vm4909 = vcmp.ge.f32.partialorder %v3123, 0.0
      %vm4910 = vcmp.ge.f32.partialorder %v3128, 0.0
      %vm4911 = vcmp.ge.f32.partialorder %v3131, 0.0
      %vm4912 = vcmp.ge.f32.partialorder %v3136, 0.0
      %vm4913 = vcmp.ge.f32.partialorder %v3139, 0.0
      %vm4914 = vcmp.ge.f32.partialorder %v3144, 0.0
      %vm4915 = vcmp.ge.f32.partialorder %v3147, 0.0
      %vm4916 = vcmp.ge.f32.partialorder %v3152, 0.0
      %vm4917 = vcmp.ge.f32.partialorder %v3155, 0.0
      %vm4918 = vcmp.ge.f32.partialorder %v3160, 0.0
      %vm4919 = vcmp.ge.f32.partialorder %v3163, 0.0
      %vm4920 = vcmp.ge.f32.partialorder %v3168, 0.0
      %vm4921 = vcmp.ge.f32.partialorder %v3171, 0.0
      %vm4922 = vcmp.ge.f32.partialorder %v3176, 0.0
      %vm4923 = vcmp.ge.f32.partialorder %v3179, 0.0
      %vm4924 = vcmp.ge.f32.partialorder %v3184, 0.0
      %vm4925 = vcmp.ge.f32.partialorder %v3187, 0.0
      %vm4926 = vcmp.ge.f32.partialorder %v3192, 0.0
      %vm4927 = vcmp.ge.f32.partialorder %v3195, 0.0
      %vm4928 = vcmp.ge.f32.partialorder %v3200, 0.0
      %vm4929 = vcmp.ge.f32.partialorder %v3203, 0.0
      %vm4930 = vcmp.ge.f32.partialorder %v3208, 0.0
      %vm4931 = vcmp.ge.f32.partialorder %v3211, 0.0
      %vm4932 = vcmp.ge.f32.partialorder %v3216, 0.0
      %vm4933 = vcmp.ge.f32.partialorder %v3219, 0.0
      %vm4934 = vcmp.ge.f32.partialorder %v3224, 0.0
      %vm4935 = vcmp.ge.f32.partialorder %v3227, 0.0
      %vm4936 = vcmp.ge.f32.partialorder %v3232, 0.0
      %vm4937 = vcmp.ge.f32.partialorder %v3235, 0.0
      %vm4938 = vcmp.ge.f32.partialorder %v3240, 0.0
      %vm4939 = vcmp.ge.f32.partialorder %v3243, 0.0
      %vm4940 = vcmp.ge.f32.partialorder %v3248, 0.0
      %vm4941 = vcmp.ge.f32.partialorder %v3251, 0.0
      %vm4942 = vcmp.ge.f32.partialorder %v3256, 0.0
      %vm4943 = vcmp.ge.f32.partialorder %v3259, 0.0
      %vm4944 = vcmp.ge.f32.partialorder %v3264, 0.0
      %vm4945 = vcmp.ge.f32.partialorder %v3267, 0.0
      %vm4946 = vcmp.ge.f32.partialorder %v3272, 0.0
      %vm4947 = vcmp.ge.f32.partialorder %v3275, 0.0
      %vm4948 = vcmp.ge.f32.partialorder %v3280, 0.0
      %vm4949 = vcmp.ge.f32.partialorder %v3283, 0.0
      %vm4950 = vcmp.ge.f32.partialorder %v3288, 0.0
      %vm4951 = vcmp.ge.f32.partialorder %v3291, 0.0
      %vm4952 = vcmp.ge.f32.partialorder %v3296, 0.0
      %vm4953 = vcmp.ge.f32.partialorder %v3299, 0.0
      %vm4954 = vcmp.ge.f32.partialorder %v3304, 0.0
      %vm4955 = vcmp.ge.f32.partialorder %v3307, 0.0
      %vm4956 = vcmp.ge.f32.partialorder %v3312, 0.0
      %vm4957 = vcmp.ge.f32.partialorder %v3315, 0.0
      %vm4958 = vcmp.ge.f32.partialorder %v3320, 0.0
      %vm4959 = vcmp.ge.f32.partialorder %v3323, 0.0
      %vm4960 = vcmp.ge.f32.partialorder %v3328, 0.0
      %vm4961 = vcmp.ge.f32.partialorder %v3331, 0.0
      %vm4962 = vcmp.ge.f32.partialorder %v3336, 0.0
      %vm4963 = vcmp.ge.f32.partialorder %v3339, 0.0
      %vm4964 = vcmp.ge.f32.partialorder %v3344, 0.0
      %vm4965 = vcmp.ge.f32.partialorder %v3347, 0.0
      %vm4966 = vcmp.ge.f32.partialorder %v3352, 0.0
      %vm4967 = vcmp.ge.f32.partialorder %v3355, 0.0
      %vm4968 = vcmp.ge.f32.partialorder %v3360, 0.0
      %vm4969 = vcmp.ge.f32.partialorder %v3363, 0.0
      %vm4970 = vcmp.ge.f32.partialorder %v3368, 0.0
      %vm4971 = vcmp.ge.f32.partialorder %v3371, 0.0
      %vm4972 = vcmp.ge.f32.partialorder %v3376, 0.0
      %vm4973 = vcmp.ge.f32.partialorder %v3379, 0.0
      %vm4974 = vcmp.ge.f32.partialorder %v3384, 0.0
      %vm4975 = vcmp.ge.f32.partialorder %v3387, 0.0
      %vm4976 = vcmp.ge.f32.partialorder %v3392, 0.0
      %vm4977 = vcmp.ge.f32.partialorder %v3395, 0.0
      %vm4978 = vcmp.ge.f32.partialorder %v3400, 0.0
      %vm4979 = vcmp.ge.f32.partialorder %v3403, 0.0
      %vm4980 = vcmp.ge.f32.partialorder %v3408, 0.0
      %vm4981 = vcmp.ge.f32.partialorder %v3411, 0.0
      %vm4982 = vcmp.ge.f32.partialorder %v3416, 0.0
      %vm4983 = vcmp.ge.f32.partialorder %v3419, 0.0
      %vm4984 = vcmp.ge.f32.partialorder %v3424, 0.0
      %vm4985 = vcmp.ge.f32.partialorder %v3427, 0.0
      %vm4986 = vcmp.ge.f32.partialorder %v3432, 0.0
      %vm4987 = vcmp.ge.f32.partialorder %v3435, 0.0
      %vm4988 = vcmp.ge.f32.partialorder %v3440, 0.0
      %vm4989 = vcmp.ge.f32.partialorder %v3443, 0.0
      %vm4990 = vcmp.ge.f32.partialorder %v3448, 0.0
      %vm4991 = vcmp.ge.f32.partialorder %v3451, 0.0
      %vm4992 = vcmp.ge.f32.partialorder %v3456, 0.0
      %vm4993 = vcmp.ge.f32.partialorder %v3459, 0.0
      %vm4994 = vcmp.ge.f32.partialorder %v3464, 0.0
      %vm4995 = vcmp.ge.f32.partialorder %v3467, 0.0
      %vm4996 = vcmp.ge.f32.partialorder %v3472, 0.0
      %vm4997 = vcmp.ge.f32.partialorder %v3475, 0.0
      %vm4998 = vcmp.ge.f32.partialorder %v3480, 0.0
      %vm4999 = vcmp.ge.f32.partialorder %v3483, 0.0
      %vm5000 = vcmp.ge.f32.partialorder %v3488, 0.0
      %vm5001 = vcmp.ge.f32.partialorder %v3491, 0.0
      %vm5002 = vcmp.ge.f32.partialorder %v3496, 0.0
      %vm5003 = vcmp.ge.f32.partialorder %v3499, 0.0
      %vm5004 = vcmp.ge.f32.partialorder %v3504, 0.0
      %vm5005 = vcmp.ge.f32.partialorder %v3507, 0.0
      %vm5006 = vcmp.ge.f32.partialorder %v3512, 0.0
      %vm5007 = vcmp.ge.f32.partialorder %v3515, 0.0
      %vm5008 = vcmp.ge.f32.partialorder %v3520, 0.0
      %vm5009 = vcmp.ge.f32.partialorder %v3523, 0.0
      %vm5010 = vcmp.ge.f32.partialorder %v3528, 0.0
      %vm5011 = vcmp.ge.f32.partialorder %v3531, 0.0
      %vm5012 = vcmp.ge.f32.partialorder %v3536, 0.0
      %vm5013 = vcmp.ge.f32.partialorder %v3539, 0.0
      %vm5014 = vcmp.ge.f32.partialorder %v3544, 0.0
      %vm5015 = vcmp.ge.f32.partialorder %v3547, 0.0
      %vm5016 = vcmp.ge.f32.partialorder %v3552, 0.0
      %vm5017 = vcmp.ge.f32.partialorder %v3555, 0.0
      %vm5018 = vcmp.ge.f32.partialorder %v3560, 0.0
      %vm5019 = vcmp.ge.f32.partialorder %v3563, 0.0
      %vm5020 = vcmp.ge.f32.partialorder %v3568, 0.0
      %vm5021 = vcmp.ge.f32.partialorder %v3571, 0.0
      %vm5022 = vcmp.ge.f32.partialorder %v3576, 0.0
      %vm5023 = vcmp.ge.f32.partialorder %v3579, 0.0
      %vm5024 = vcmp.ge.f32.partialorder %v3584, 0.0
      %vm5025 = vcmp.ge.f32.partialorder %v3587, 0.0
      %vm5026 = vcmp.ge.f32.partialorder %v3592, 0.0
      %vm5027 = vcmp.ge.f32.partialorder %v3595, 0.0
      %vm5028 = vcmp.ge.f32.partialorder %v3600, 0.0
      %vm5029 = vcmp.ge.f32.partialorder %v3603, 0.0
      %vm5030 = vcmp.ge.f32.partialorder %v3608, 0.0
      %vm5031 = vcmp.ge.f32.partialorder %v3611, 0.0
      %vm5032 = vcmp.ge.f32.partialorder %v3616, 0.0
      %vm5033 = vcmp.ge.f32.partialorder %v3619, 0.0
      %vm5034 = vcmp.ge.f32.partialorder %v3624, 0.0
      %vm5035 = vcmp.ge.f32.partialorder %v3627, 0.0
      %vm5036 = vcmp.ge.f32.partialorder %v3632, 0.0
      %vm5037 = vcmp.ge.f32.partialorder %v3635, 0.0
      %vm5038 = vcmp.ge.f32.partialorder %v3640, 0.0
      %vm5039 = vcmp.ge.f32.partialorder %v3643, 0.0
      %vm5040 = vcmp.ge.f32.partialorder %v3648, 0.0
      %vm5041 = vcmp.ge.f32.partialorder %v3651, 0.0
      %vm5042 = vcmp.ge.f32.partialorder %v3656, 0.0
      %vm5043 = vcmp.ge.f32.partialorder %v3659, 0.0
      %vm5044 = vcmp.ge.f32.partialorder %v3664, 0.0
      %vm5045 = vcmp.ge.f32.partialorder %v3667, 0.0
      %vm5046 = vcmp.ge.f32.partialorder %v3672, 0.0
      %vm5047 = vcmp.ge.f32.partialorder %v3675, 0.0
      %vm5048 = vcmp.ge.f32.partialorder %v3680, 0.0
      %vm5049 = vcmp.ge.f32.partialorder %v3683, 0.0
      %vm5050 = vcmp.ge.f32.partialorder %v3688, 0.0
      %vm5051 = vcmp.ge.f32.partialorder %v3691, 0.0
      %vm5052 = vcmp.ge.f32.partialorder %v3696, 0.0
      %vm5053 = vcmp.ge.f32.partialorder %v3699, 0.0
      %vm5054 = vcmp.ge.f32.partialorder %v3704, 0.0
      %vm5055 = vcmp.ge.f32.partialorder %v3707, 0.0
      %vm5056 = vcmp.ge.f32.partialorder %v3712, 0.0
      %vm5057 = vcmp.ge.f32.partialorder %v3715, 0.0
      %vm5058 = vcmp.ge.f32.partialorder %v3720, 0.0
      %vm5059 = vcmp.ge.f32.partialorder %v3723, 0.0
      %vm5060 = vcmp.ge.f32.partialorder %v3728, 0.0
      %vm5061 = vcmp.ge.f32.partialorder %v3731, 0.0
      %vm5062 = vcmp.ge.f32.partialorder %v3736, 0.0
      %vm5063 = vcmp.ge.f32.partialorder %v3739, 0.0
      %vm5064 = vcmp.ge.f32.partialorder %v3744, 0.0
      %vm5065 = vcmp.ge.f32.partialorder %v3747, 0.0
      %vm5066 = vcmp.ge.f32.partialorder %v3752, 0.0
      %vm5067 = vcmp.ge.f32.partialorder %v3755, 0.0
      %vm5068 = vcmp.ge.f32.partialorder %v3760, 0.0
      %vm5069 = vcmp.ge.f32.partialorder %v3763, 0.0
      %vm5070 = vcmp.ge.f32.partialorder %v3768, 0.0
      %vm5071 = vcmp.ge.f32.partialorder %v3771, 0.0
      %vm5072 = vcmp.ge.f32.partialorder %v3776, 0.0
      %vm5073 = vcmp.ge.f32.partialorder %v3779, 0.0
      %vm5074 = vcmp.ge.f32.partialorder %v3784, 0.0
      %vm5075 = vcmp.ge.f32.partialorder %v3787, 0.0
      %vm5076 = vcmp.ge.f32.partialorder %v3792, 0.0
      %vm5077 = vcmp.ge.f32.partialorder %v3795, 0.0
      %vm5078 = vcmp.ge.f32.partialorder %v3800, 0.0
      %vm5079 = vcmp.ge.f32.partialorder %v3803, 0.0
      %vm5080 = vcmp.ge.f32.partialorder %v3808, 0.0
      %vm5081 = vcmp.ge.f32.partialorder %v3811, 0.0
      %vm5082 = vcmp.ge.f32.partialorder %v3816, 0.0
      %vm5083 = vcmp.ge.f32.partialorder %v3819, 0.0
      %vm5084 = vcmp.ge.f32.partialorder %v3824, 0.0
      %vm5085 = vcmp.ge.f32.partialorder %v3827, 0.0
      %vm5086 = vcmp.ge.f32.partialorder %v3832, 0.0
      %vm5087 = vcmp.ge.f32.partialorder %v3835, 0.0
      %vm5088 = vcmp.ge.f32.partialorder %v3840, 0.0
      %vm5089 = vcmp.ge.f32.partialorder %v3843, 0.0
      %vm5090 = vcmp.ge.f32.partialorder %v3848, 0.0
      %vm5091 = vcmp.ge.f32.partialorder %v3851, 0.0
      %vm5092 = vcmp.ge.f32.partialorder %v3856, 0.0
      %vm5093 = vcmp.ge.f32.partialorder %v3859, 0.0
      %vm5094 = vcmp.ge.f32.partialorder %v3864, 0.0
      %vm5095 = vcmp.ge.f32.partialorder %v3867, 0.0
      %vm5096 = vcmp.ge.f32.partialorder %v3872, 0.0
      %vm5097 = vcmp.ge.f32.partialorder %v3875, 0.0
      %vm5098 = vcmp.ge.f32.partialorder %v3880, 0.0
      %vm5099 = vcmp.ge.f32.partialorder %v3883, 0.0
      %vm5100 = vcmp.ge.f32.partialorder %v3888, 0.0
      %vm5101 = vcmp.ge.f32.partialorder %v3891, 0.0
      %vm5102 = vcmp.ge.f32.partialorder %v3896, 0.0
      %vm5103 = vcmp.ge.f32.partialorder %v3899, 0.0
      %vm5104 = vcmp.ge.f32.partialorder %v3904, 0.0
      %vm5105 = vcmp.ge.f32.partialorder %v3907, 0.0
      %vm5106 = vcmp.ge.f32.partialorder %v3912, 0.0
      %vm5107 = vcmp.ge.f32.partialorder %v3915, 0.0
      %vm5108 = vcmp.ge.f32.partialorder %v3920, 0.0
      %vm5109 = vcmp.ge.f32.partialorder %v3923, 0.0
      %vm5110 = vcmp.ge.f32.partialorder %v3928, 0.0
      %vm5111 = vcmp.ge.f32.partialorder %v3931, 0.0
      %vm5112 = vcmp.ge.f32.partialorder %v3936, 0.0
      %vm5113 = vcmp.ge.f32.partialorder %v3939, 0.0
      %vm5114 = vcmp.ge.f32.partialorder %v3944, 0.0
      %vm5115 = vcmp.ge.f32.partialorder %v3947, 0.0
      %vm5116 = vcmp.ge.f32.partialorder %v3952, 0.0
      %vm5117 = vcmp.ge.f32.partialorder %v3955, 0.0
      %vm5118 = vcmp.ge.f32.partialorder %v3960, 0.0
      %vm5119 = vcmp.ge.f32.partialorder %v3963, 0.0
      %vm5120 = vcmp.ge.f32.partialorder %v3968, 0.0
      %vm5121 = vcmp.ge.f32.partialorder %v3971, 0.0
      %vm5122 = vcmp.ge.f32.partialorder %v3976, 0.0
      %vm5123 = vcmp.ge.f32.partialorder %v3979, 0.0
      %vm5124 = vcmp.ge.f32.partialorder %v3984, 0.0
      %vm5125 = vcmp.ge.f32.partialorder %v3987, 0.0
      %vm5126 = vcmp.ge.f32.partialorder %v3992, 0.0
      %vm5127 = vcmp.ge.f32.partialorder %v3995, 0.0
      %vm5128 = vcmp.ge.f32.partialorder %v4000, 0.0
      %vm5129 = vcmp.ge.f32.partialorder %v4003, 0.0
      %vm5130 = vcmp.ge.f32.partialorder %v4008, 0.0
      %vm5131 = vcmp.ge.f32.partialorder %v4011, 0.0
      %vm5132 = vcmp.ge.f32.partialorder %v4016, 0.0
      %vm5133 = vcmp.ge.f32.partialorder %v4019, 0.0
      %vm5134 = vcmp.ge.f32.partialorder %v4024, 0.0
      %vm5135 = vcmp.ge.f32.partialorder %v4027, 0.0
      %vm5136 = vcmp.ge.f32.partialorder %v4032, 0.0
      %vm5137 = vcmp.ge.f32.partialorder %v4035, 0.0
      %vm5138 = vcmp.ge.f32.partialorder %v4040, 0.0
      %vm5139 = vcmp.ge.f32.partialorder %v4043, 0.0
      %vm5140 = vcmp.ge.f32.partialorder %v4048, 0.0
      %vm5141 = vcmp.ge.f32.partialorder %v4051, 0.0
      %vm5142 = vcmp.ge.f32.partialorder %v4056, 0.0
      %vm5143 = vcmp.ge.f32.partialorder %v4059, 0.0
      %vm5144 = vcmp.ge.f32.partialorder %v4064, 0.0
      %vm5145 = vcmp.ge.f32.partialorder %v4067, 0.0
      %vm5146 = vcmp.ge.f32.partialorder %v4072, 0.0
      %vm5147 = vcmp.ge.f32.partialorder %v4075, 0.0
      %vm5148 = vcmp.ge.f32.partialorder %v4080, 0.0
      %vm5149 = vcmp.ge.f32.partialorder %v4083, 0.0
      %vm5150 = vcmp.ge.f32.partialorder %v4088, 0.0
      %vm5151 = vcmp.ge.f32.partialorder %v4091, 0.0
      %vm5152 = vcmp.ge.f32.partialorder %v4096, 0.0
      %vm5153 = vcmp.ge.f32.partialorder %v4099, 0.0
      %vm5154 = vcmp.ge.f32.partialorder %v4104, 0.0
      %vm5155 = vcmp.ge.f32.partialorder %v4107, 0.0
      %vm5156 = vcmp.ge.f32.partialorder %v4112, 0.0
      %vm5157 = vcmp.ge.f32.partialorder %v4115, 0.0
      %vm5158 = vcmp.ge.f32.partialorder %v4120, 0.0
      %vm5159 = vcmp.ge.f32.partialorder %v4123, 0.0
      %vm5160 = vcmp.ge.f32.partialorder %v4128, 0.0
      %vm5161 = vcmp.ge.f32.partialorder %v4131, 0.0
      %vm5162 = vcmp.ge.f32.partialorder %v4136, 0.0
      %vm5163 = vcmp.ge.f32.partialorder %v4139, 0.0
      %vm5164 = vcmp.ge.f32.partialorder %v4144, 0.0
      %vm5165 = vcmp.ge.f32.partialorder %v4147, 0.0
      %vm5166 = vcmp.ge.f32.partialorder %v4152, 0.0
      %vm5167 = vcmp.ge.f32.partialorder %v4155, 0.0
      %vm5168 = vcmp.ge.f32.partialorder %v4160, 0.0
      %vm5169 = vcmp.ge.f32.partialorder %v4163, 0.0
      %vm5170 = vcmp.ge.f32.partialorder %v4168, 0.0
      %vm5171 = vcmp.ge.f32.partialorder %v4171, 0.0
      %vm5172 = vcmp.ge.f32.partialorder %v4176, 0.0
      %vm5173 = vcmp.ge.f32.partialorder %v4179, 0.0
      %vm5174 = vcmp.ge.f32.partialorder %v4184, 0.0
      %vm5175 = vcmp.ge.f32.partialorder %v4187, 0.0
      %vm5176 = vcmp.ge.f32.partialorder %v4192, 0.0
      %vm5177 = vcmp.ge.f32.partialorder %v4195, 0.0
      %vm5178 = vcmp.ge.f32.partialorder %v4200, 0.0
      %vm5179 = vcmp.ge.f32.partialorder %v4203, 0.0
      %vm5180 = vcmp.ge.f32.partialorder %v4208, 0.0
      %vm5181 = vcmp.ge.f32.partialorder %v4211, 0.0
      %vm5182 = vcmp.ge.f32.partialorder %v4216, 0.0
      %vm5183 = vcmp.ge.f32.partialorder %v4219, 0.0
      %vm5184 = vcmp.ge.f32.partialorder %v4224, 0.0
      %vm5185 = vcmp.ge.f32.partialorder %v4227, 0.0
      %vm5186 = vcmp.ge.f32.partialorder %v4232, 0.0
      %vm5187 = vcmp.ge.f32.partialorder %v4235, 0.0
      %vm5188 = vcmp.ge.f32.partialorder %v4240, 0.0
      %vm5189 = vcmp.ge.f32.partialorder %v4243, 0.0
      %vm5190 = vcmp.ge.f32.partialorder %v4248, 0.0
      %vm5191 = vcmp.ge.f32.partialorder %v4251, 0.0
      %vm5192 = vcmp.ge.f32.partialorder %v4256, 0.0
      %vm5193 = vcmp.ge.f32.partialorder %v4259, 0.0
      %vm5194 = vcmp.ge.f32.partialorder %v4264, 0.0
      %vm5195 = vcmp.ge.f32.partialorder %v4267, 0.0
      %vm5196 = vcmp.ge.f32.partialorder %v4272, 0.0
      %vm5197 = vcmp.ge.f32.partialorder %v4275, 0.0
      %vm5198 = vcmp.ge.f32.partialorder %v4280, 0.0
      %vm5199 = vcmp.ge.f32.partialorder %v4283, 0.0
      %vm5200 = vcmp.ge.f32.partialorder %v4288, 0.0
      %vm5201 = vcmp.ge.f32.partialorder %v4291, 0.0
      %vm5202 = vcmp.ge.f32.partialorder %v4296, 0.0
      %vm5203 = vcmp.ge.f32.partialorder %v4299, 0.0
      %vm5204 = vcmp.ge.f32.partialorder %v4304, 0.0
      %vm5205 = vcmp.ge.f32.partialorder %v4307, 0.0
      %vm5206 = vcmp.ge.f32.partialorder %v4312, 0.0
      %vm5207 = vcmp.ge.f32.partialorder %v4315, 0.0
      %vm5208 = vcmp.ge.f32.partialorder %v4320, 0.0
      %vm5209 = vcmp.ge.f32.partialorder %v4323, 0.0
      %vm5210 = vcmp.ge.f32.partialorder %v4328, 0.0
      %vm5211 = vcmp.ge.f32.partialorder %v4331, 0.0
      %vm5212 = vcmp.ge.f32.partialorder %v4336, 0.0
      %vm5213 = vcmp.ge.f32.partialorder %v4339, 0.0
      %vm5214 = vcmp.ge.f32.partialorder %v4344, 0.0
      %vm5215 = vcmp.ge.f32.partialorder %v4347, 0.0
      %vm5216 = vcmp.ge.f32.partialorder %v4352, 0.0
      %vm5217 = vcmp.ge.f32.partialorder %v4355, 0.0
      %vm5218 = vcmp.ge.f32.partialorder %v4360, 0.0
      %vm5219 = vcmp.ge.f32.partialorder %v4363, 0.0
      %vm5220 = vcmp.ge.f32.partialorder %v4368, 0.0
      %vm5221 = vcmp.ge.f32.partialorder %v4371, 0.0
      %vm5222 = vcmp.ge.f32.partialorder %v4376, 0.0
      %vm5223 = vcmp.ge.f32.partialorder %v4379, 0.0
      %vm5224 = vcmp.ge.f32.partialorder %v4384, 0.0
      %vm5225 = vcmp.ge.f32.partialorder %v4387, 0.0
      %vm5226 = vcmp.ge.f32.partialorder %v4392, 0.0
      %vm5227 = vcmp.ge.f32.partialorder %v4395, 0.0
      %vm5228 = vcmp.ge.f32.partialorder %v4400, 0.0
      %vm5229 = vcmp.ge.f32.partialorder %v4403, 0.0
      %vm5230 = vcmp.ge.f32.partialorder %v4408, 0.0
      %vm5231 = vcmp.ge.f32.partialorder %v4411, 0.0
      %vm5232 = vcmp.ge.f32.partialorder %v4416, 0.0
      %vm5233 = vcmp.ge.f32.partialorder %v4419, 0.0
      %vm5234 = vcmp.ge.f32.partialorder %v4424, 0.0
      %vm5235 = vcmp.ge.f32.partialorder %v4427, 0.0
      %vm5236 = vcmp.ge.f32.partialorder %v4432, 0.0
      %vm5237 = vcmp.ge.f32.partialorder %v4435, 0.0
      %vm5238 = vcmp.ge.f32.partialorder %v4440, 0.0
      %vm5239 = vcmp.ge.f32.partialorder %v4443, 0.0
      %vm5240 = vcmp.ge.f32.partialorder %v4448, 0.0
      %vm5241 = vcmp.ge.f32.partialorder %v4451, 0.0
      %vm5242 = vcmp.ge.f32.partialorder %v4456, 0.0
      %vm5243 = vcmp.ge.f32.partialorder %v4459, 0.0
      %vm5244 = vcmp.ge.f32.partialorder %v4464, 0.0
      %vm5245 = vcmp.ge.f32.partialorder %v4467, 0.0
      %vm5246 = vcmp.ge.f32.partialorder %v4472, 0.0
      %vm5247 = vcmp.ge.f32.partialorder %v4475, 0.0
      %vm5248 = vcmp.ge.f32.partialorder %v4480, 0.0
      %vm5249 = vcmp.ge.f32.partialorder %v4483, 0.0
      %vm5250 = vcmp.ge.f32.partialorder %v4488, 0.0
      %vm5251 = vcmp.ge.f32.partialorder %v4491, 0.0
      %vm5252 = vcmp.ge.f32.partialorder %v4496, 0.0
      %vm5253 = vcmp.ge.f32.partialorder %v4499, 0.0
      %vm5254 = vcmp.ge.f32.partialorder %v4504, 0.0
      %vm5255 = vcmp.ge.f32.partialorder %v4507, 0.0
      %vm5256 = vcmp.ge.f32.partialorder %v4512, 0.0
      %vm5257 = vcmp.ge.f32.partialorder %v4515, 0.0
      %vm5258 = vcmp.ge.f32.partialorder %v4520, 0.0
      %vm5259 = vcmp.ge.f32.partialorder %v4523, 0.0
      %vm5260 = vcmp.ge.f32.partialorder %v4528, 0.0
      %vm5261 = vcmp.ge.f32.partialorder %v4531, 0.0
      %vm5262 = vcmp.ge.f32.partialorder %v4536, 0.0
      %vm5263 = vcmp.ge.f32.partialorder %v4539, 0.0
      %vm5264 = vcmp.ge.f32.partialorder %v4544, 0.0
      %vm5265 = vcmp.ge.f32.partialorder %v4547, 0.0
      %vm5266 = vcmp.ge.f32.partialorder %v4552, 0.0
      %vm5267 = vcmp.ge.f32.partialorder %v4555, 0.0
      %vm5268 = vcmp.ge.f32.partialorder %v4560, 0.0
      %vm5269 = vcmp.ge.f32.partialorder %v4563, 0.0
      %vm5270 = vcmp.ge.f32.partialorder %v4568, 0.0
      %vm5271 = vcmp.ge.f32.partialorder %v4571, 0.0
      %vm5272 = vcmp.ge.f32.partialorder %v4576, 0.0
      %vm5273 = vcmp.ge.f32.partialorder %v4579, 0.0
      %vm5274 = vcmp.ge.f32.partialorder %v4584, 0.0
      %vm5275 = vcmp.ge.f32.partialorder %v4587, 0.0
      %vm5276 = vcmp.ge.f32.partialorder %v4592, 0.0
      %vm5277 = vcmp.ge.f32.partialorder %v4595, 0.0
      %vm5278 = vcmp.ge.f32.partialorder %v4600, 0.0
      %vm5279 = vcmp.ge.f32.partialorder %v4603, 0.0
      %vm5280 = vcmp.ge.f32.partialorder %v4608, 0.0
      %vm5281 = vcmp.ge.f32.partialorder %v4611, 0.0
      %vm5282 = vcmp.ge.f32.partialorder %v4616, 0.0
      %vm5283 = vcmp.ge.f32.partialorder %v4619, 0.0
      %vm5284 = vcmp.ge.f32.partialorder %v4624, 0.0
      %vm5285 = vcmp.ge.f32.partialorder %v4627, 0.0
      %vm5286 = vcmp.ge.f32.partialorder %v4632, 0.0
      %vm5287 = vcmp.ge.f32.partialorder %v4635, 0.0
      %vm5288 = vcmp.ge.f32.partialorder %v4640, 0.0
      %vm5289 = vcmp.ge.f32.partialorder %v4643, 0.0
      %vm5290 = vcmp.ge.f32.partialorder %v4648, 0.0
      %vm5291 = vcmp.ge.f32.partialorder %v4651, 0.0
      %vm5292 = vcmp.ge.f32.partialorder %v4656, 0.0
      %vm5293 = vcmp.ge.f32.partialorder %v4659, 0.0
      %vm5294 = vcmp.ge.f32.partialorder %v4664, 0.0
      %vm5295 = vcmp.ge.f32.partialorder %v4667, 0.0
      %vm5296 = vcmp.ge.f32.partialorder %v4672, 0.0
      %vm5297 = vcmp.ge.f32.partialorder %v4675, 0.0
      %vm5298 = vcmp.ge.f32.partialorder %v4680, 0.0
      %vm5299 = vcmp.ge.f32.partialorder %v4683, 0.0
      %vm5300 = vcmp.ge.f32.partialorder %v4688, 0.0
      %vm5301 = vcmp.ge.f32.partialorder %v4691, 0.0
      %vm5302 = vcmp.ge.f32.partialorder %v4696, 0.0
      %vm5303 = vcmp.ge.f32.partialorder %v4699, 0.0
      %vm5304 = vcmp.ge.f32.partialorder %v4704, 0.0
      %vm5305 = vcmp.ge.f32.partialorder %v4707, 0.0
      %vm5306 = vcmp.ge.f32.partialorder %v4712, 0.0
      %vm5307 = vcmp.ge.f32.partialorder %v4715, 0.0
      %vm5308 = vcmp.ge.f32.partialorder %v4720, 0.0
      %vm5309 = vcmp.ge.f32.partialorder %v4723, 0.0
      %vm5310 = vcmp.ge.f32.partialorder %v4728, 0.0
      %vm5311 = vcmp.ge.f32.partialorder %v4731, 0.0
      %vm5312 = vcmp.ge.f32.partialorder %v4736, 0.0
      %vm5313 = vcmp.ge.f32.partialorder %v4739, 0.0
      %vm5314 = vcmp.ge.f32.partialorder %v4744, 0.0
      %vm5315 = vcmp.ge.f32.partialorder %v4747, 0.0
      %vm5316 = vcmp.ge.f32.partialorder %v4752, 0.0
      %vm5317 = vcmp.ge.f32.partialorder %v4755, 0.0
      %vm5318 = vcmp.ge.f32.partialorder %v4760, 0.0
      %vm5319 = vcmp.ge.f32.partialorder %v4763, 0.0
      %vm5320 = vcmp.ge.f32.partialorder %v4768, 0.0
      %vm5321 = vcmp.ge.f32.partialorder %v4771, 0.0
      %vm5322 = vcmp.ge.f32.partialorder %v4776, 0.0
      %vm5323 = vcmp.ge.f32.partialorder %v4779, 0.0
      %vm5324 = vcmp.ge.f32.partialorder %v4784, 0.0
      %vm5325 = vcmp.ge.f32.partialorder %v4787, 0.0
      %vm5326 = vcmp.ge.f32.partialorder %v4792, 0.0
      %vm5327 = vcmp.ge.f32.partialorder %v4795, 0.0
      %vm5328 = vcmp.ge.f32.partialorder %v4800, 0.0
      %vm5329 = vcmp.ge.f32.partialorder %v4803, 0.0
      %vm5330 = vcmp.ge.f32.partialorder %v4808, 0.0
      %vm5331 = vcmp.ge.f32.partialorder %v4811, 0.0
      %vm5332 = vcmp.ge.f32.partialorder %v4816, 0.0
      %vm5333 = vcmp.ge.f32.partialorder %v4819, 0.0
      %v5334 = vmul.f32 %v2776, 0.2
      %v5335 = vmul.f32 %v2779, 0.2
      %v5336 = vmul.f32 %v2784, 0.2
      %v5337 = vmul.f32 %v2787, 0.2
      %v5338 = vmul.f32 %v2792, 0.2
      %v5339 = vmul.f32 %v2795, 0.2
      %v5340 = vmul.f32 %v2800, 0.2
      %v5341 = vmul.f32 %v2803, 0.2
      %v5342 = vmul.f32 %v2808, 0.2
      %v5343 = vmul.f32 %v2811, 0.2
      %v5344 = vmul.f32 %v2816, 0.2
      %v5345 = vmul.f32 %v2819, 0.2
      %v5346 = vmul.f32 %v2824, 0.2
      %v5347 = vmul.f32 %v2827, 0.2
      %v5348 = vmul.f32 %v2832, 0.2
      %v5349 = vmul.f32 %v2835, 0.2
      %v5350 = vmul.f32 %v2840, 0.2
      %v5351 = vmul.f32 %v2843, 0.2
      %v5352 = vmul.f32 %v2848, 0.2
      %v5353 = vmul.f32 %v2851, 0.2
      %v5354 = vmul.f32 %v2856, 0.2
      %v5355 = vmul.f32 %v2859, 0.2
      %v5356 = vmul.f32 %v2864, 0.2
      %v5357 = vmul.f32 %v2867, 0.2
      %v5358 = vmul.f32 %v2872, 0.2
      %v5359 = vmul.f32 %v2875, 0.2
      %v5360 = vmul.f32 %v2880, 0.2
      %v5361 = vmul.f32 %v2883, 0.2
      %v5362 = vmul.f32 %v2888, 0.2
      %v5363 = vmul.f32 %v2891, 0.2
      %v5364 = vmul.f32 %v2896, 0.2
      %v5365 = vmul.f32 %v2899, 0.2
      %v5366 = vmul.f32 %v2904, 0.2
      %v5367 = vmul.f32 %v2907, 0.2
      %v5368 = vmul.f32 %v2912, 0.2
      %v5369 = vmul.f32 %v2915, 0.2
      %v5370 = vmul.f32 %v2920, 0.2
      %v5371 = vmul.f32 %v2923, 0.2
      %v5372 = vmul.f32 %v2928, 0.2
      %v5373 = vmul.f32 %v2931, 0.2
      %v5374 = vmul.f32 %v2936, 0.2
      %v5375 = vmul.f32 %v2939, 0.2
      %v5376 = vmul.f32 %v2944, 0.2
      %v5377 = vmul.f32 %v2947, 0.2
      %v5378 = vmul.f32 %v2952, 0.2
      %v5379 = vmul.f32 %v2955, 0.2
      %v5380 = vmul.f32 %v2960, 0.2
      %v5381 = vmul.f32 %v2963, 0.2
      %v5382 = vmul.f32 %v2968, 0.2
      %v5383 = vmul.f32 %v2971, 0.2
      %v5384 = vmul.f32 %v2976, 0.2
      %v5385 = vmul.f32 %v2979, 0.2
      %v5386 = vmul.f32 %v2984, 0.2
      %v5387 = vmul.f32 %v2987, 0.2
      %v5388 = vmul.f32 %v2992, 0.2
      %v5389 = vmul.f32 %v2995, 0.2
      %v5390 = vmul.f32 %v3000, 0.2
      %v5391 = vmul.f32 %v3003, 0.2
      %v5392 = vmul.f32 %v3008, 0.2
      %v5393 = vmul.f32 %v3011, 0.2
      %v5394 = vmul.f32 %v3016, 0.2
      %v5395 = vmul.f32 %v3019, 0.2
      %v5396 = vmul.f32 %v3024, 0.2
      %v5397 = vmul.f32 %v3027, 0.2
      %v5398 = vmul.f32 %v3032, 0.2
      %v5399 = vmul.f32 %v3035, 0.2
      %v5400 = vmul.f32 %v3040, 0.2
      %v5401 = vmul.f32 %v3043, 0.2
      %v5402 = vmul.f32 %v3048, 0.2
      %v5403 = vmul.f32 %v3051, 0.2
      %v5404 = vmul.f32 %v3056, 0.2
      %v5405 = vmul.f32 %v3059, 0.2
      %v5406 = vmul.f32 %v3064, 0.2
      %v5407 = vmul.f32 %v3067, 0.2
      %v5408 = vmul.f32 %v3072, 0.2
      %v5409 = vmul.f32 %v3075, 0.2
      %v5410 = vmul.f32 %v3080, 0.2
      %v5411 = vmul.f32 %v3083, 0.2
      %v5412 = vmul.f32 %v3088, 0.2
      %v5413 = vmul.f32 %v3091, 0.2
      %v5414 = vmul.f32 %v3096, 0.2
      %v5415 = vmul.f32 %v3099, 0.2
      %v5416 = vmul.f32 %v3104, 0.2
      %v5417 = vmul.f32 %v3107, 0.2
      %v5418 = vmul.f32 %v3112, 0.2
      %v5419 = vmul.f32 %v3115, 0.2
      %v5420 = vmul.f32 %v3120, 0.2
      %v5421 = vmul.f32 %v3123, 0.2
      %v5422 = vmul.f32 %v3128, 0.2
      %v5423 = vmul.f32 %v3131, 0.2
      %v5424 = vmul.f32 %v3136, 0.2
      %v5425 = vmul.f32 %v3139, 0.2
      %v5426 = vmul.f32 %v3144, 0.2
      %v5427 = vmul.f32 %v3147, 0.2
      %v5428 = vmul.f32 %v3152, 0.2
      %v5429 = vmul.f32 %v3155, 0.2
      %v5430 = vmul.f32 %v3160, 0.2
      %v5431 = vmul.f32 %v3163, 0.2
      %v5432 = vmul.f32 %v3168, 0.2
      %v5433 = vmul.f32 %v3171, 0.2
      %v5434 = vmul.f32 %v3176, 0.2
      %v5435 = vmul.f32 %v3179, 0.2
      %v5436 = vmul.f32 %v3184, 0.2
      %v5437 = vmul.f32 %v3187, 0.2
      %v5438 = vmul.f32 %v3192, 0.2
      %v5439 = vmul.f32 %v3195, 0.2
      %v5440 = vmul.f32 %v3200, 0.2
      %v5441 = vmul.f32 %v3203, 0.2
      %v5442 = vmul.f32 %v3208, 0.2
      %v5443 = vmul.f32 %v3211, 0.2
      %v5444 = vmul.f32 %v3216, 0.2
      %v5445 = vmul.f32 %v3219, 0.2
      %v5446 = vmul.f32 %v3224, 0.2
      %v5447 = vmul.f32 %v3227, 0.2
      %v5448 = vmul.f32 %v3232, 0.2
      %v5449 = vmul.f32 %v3235, 0.2
      %v5450 = vmul.f32 %v3240, 0.2
      %v5451 = vmul.f32 %v3243, 0.2
      %v5452 = vmul.f32 %v3248, 0.2
      %v5453 = vmul.f32 %v3251, 0.2
      %v5454 = vmul.f32 %v3256, 0.2
      %v5455 = vmul.f32 %v3259, 0.2
      %v5456 = vmul.f32 %v3264, 0.2
      %v5457 = vmul.f32 %v3267, 0.2
      %v5458 = vmul.f32 %v3272, 0.2
      %v5459 = vmul.f32 %v3275, 0.2
      %v5460 = vmul.f32 %v3280, 0.2
      %v5461 = vmul.f32 %v3283, 0.2
      %v5462 = vmul.f32 %v3288, 0.2
      %v5463 = vmul.f32 %v3291, 0.2
      %v5464 = vmul.f32 %v3296, 0.2
      %v5465 = vmul.f32 %v3299, 0.2
      %v5466 = vmul.f32 %v3304, 0.2
      %v5467 = vmul.f32 %v3307, 0.2
      %v5468 = vmul.f32 %v3312, 0.2
      %v5469 = vmul.f32 %v3315, 0.2
      %v5470 = vmul.f32 %v3320, 0.2
      %v5471 = vmul.f32 %v3323, 0.2
      %v5472 = vmul.f32 %v3328, 0.2
      %v5473 = vmul.f32 %v3331, 0.2
      %v5474 = vmul.f32 %v3336, 0.2
      %v5475 = vmul.f32 %v3339, 0.2
      %v5476 = vmul.f32 %v3344, 0.2
      %v5477 = vmul.f32 %v3347, 0.2
      %v5478 = vmul.f32 %v3352, 0.2
      %v5479 = vmul.f32 %v3355, 0.2
      %v5480 = vmul.f32 %v3360, 0.2
      %v5481 = vmul.f32 %v3363, 0.2
      %v5482 = vmul.f32 %v3368, 0.2
      %v5483 = vmul.f32 %v3371, 0.2
      %v5484 = vmul.f32 %v3376, 0.2
      %v5485 = vmul.f32 %v3379, 0.2
      %v5486 = vmul.f32 %v3384, 0.2
      %v5487 = vmul.f32 %v3387, 0.2
      %v5488 = vmul.f32 %v3392, 0.2
      %v5489 = vmul.f32 %v3395, 0.2
      %v5490 = vmul.f32 %v3400, 0.2
      %v5491 = vmul.f32 %v3403, 0.2
      %v5492 = vmul.f32 %v3408, 0.2
      %v5493 = vmul.f32 %v3411, 0.2
      %v5494 = vmul.f32 %v3416, 0.2
      %v5495 = vmul.f32 %v3419, 0.2
      %v5496 = vmul.f32 %v3424, 0.2
      %v5497 = vmul.f32 %v3427, 0.2
      %v5498 = vmul.f32 %v3432, 0.2
      %v5499 = vmul.f32 %v3435, 0.2
      %v5500 = vmul.f32 %v3440, 0.2
      %v5501 = vmul.f32 %v3443, 0.2
      %v5502 = vmul.f32 %v3448, 0.2
      %v5503 = vmul.f32 %v3451, 0.2
      %v5504 = vmul.f32 %v3456, 0.2
      %v5505 = vmul.f32 %v3459, 0.2
      %v5506 = vmul.f32 %v3464, 0.2
      %v5507 = vmul.f32 %v3467, 0.2
      %v5508 = vmul.f32 %v3472, 0.2
      %v5509 = vmul.f32 %v3475, 0.2
      %v5510 = vmul.f32 %v3480, 0.2
      %v5511 = vmul.f32 %v3483, 0.2
      %v5512 = vmul.f32 %v3488, 0.2
      %v5513 = vmul.f32 %v3491, 0.2
      %v5514 = vmul.f32 %v3496, 0.2
      %v5515 = vmul.f32 %v3499, 0.2
      %v5516 = vmul.f32 %v3504, 0.2
      %v5517 = vmul.f32 %v3507, 0.2
      %v5518 = vmul.f32 %v3512, 0.2
      %v5519 = vmul.f32 %v3515, 0.2
      %v5520 = vmul.f32 %v3520, 0.2
      %v5521 = vmul.f32 %v3523, 0.2
      %v5522 = vmul.f32 %v3528, 0.2
      %v5523 = vmul.f32 %v3531, 0.2
      %v5524 = vmul.f32 %v3536, 0.2
      %v5525 = vmul.f32 %v3539, 0.2
      %v5526 = vmul.f32 %v3544, 0.2
      %v5527 = vmul.f32 %v3547, 0.2
      %v5528 = vmul.f32 %v3552, 0.2
      %v5529 = vmul.f32 %v3555, 0.2
      %v5530 = vmul.f32 %v3560, 0.2
      %v5531 = vmul.f32 %v3563, 0.2
      %v5532 = vmul.f32 %v3568, 0.2
      %v5533 = vmul.f32 %v3571, 0.2
      %v5534 = vmul.f32 %v3576, 0.2
      %v5535 = vmul.f32 %v3579, 0.2
      %v5536 = vmul.f32 %v3584, 0.2
      %v5537 = vmul.f32 %v3587, 0.2
      %v5538 = vmul.f32 %v3592, 0.2
      %v5539 = vmul.f32 %v3595, 0.2
      %v5540 = vmul.f32 %v3600, 0.2
      %v5541 = vmul.f32 %v3603, 0.2
      %v5542 = vmul.f32 %v3608, 0.2
      %v5543 = vmul.f32 %v3611, 0.2
      %v5544 = vmul.f32 %v3616, 0.2
      %v5545 = vmul.f32 %v3619, 0.2
      %v5546 = vmul.f32 %v3624, 0.2
      %v5547 = vmul.f32 %v3627, 0.2
      %v5548 = vmul.f32 %v3632, 0.2
      %v5549 = vmul.f32 %v3635, 0.2
      %v5550 = vmul.f32 %v3640, 0.2
      %v5551 = vmul.f32 %v3643, 0.2
      %v5552 = vmul.f32 %v3648, 0.2
      %v5553 = vmul.f32 %v3651, 0.2
      %v5554 = vmul.f32 %v3656, 0.2
      %v5555 = vmul.f32 %v3659, 0.2
      %v5556 = vmul.f32 %v3664, 0.2
      %v5557 = vmul.f32 %v3667, 0.2
      %v5558 = vmul.f32 %v3672, 0.2
      %v5559 = vmul.f32 %v3675, 0.2
      %v5560 = vmul.f32 %v3680, 0.2
      %v5561 = vmul.f32 %v3683, 0.2
      %v5562 = vmul.f32 %v3688, 0.2
      %v5563 = vmul.f32 %v3691, 0.2
      %v5564 = vmul.f32 %v3696, 0.2
      %v5565 = vmul.f32 %v3699, 0.2
      %v5566 = vmul.f32 %v3704, 0.2
      %v5567 = vmul.f32 %v3707, 0.2
      %v5568 = vmul.f32 %v3712, 0.2
      %v5569 = vmul.f32 %v3715, 0.2
      %v5570 = vmul.f32 %v3720, 0.2
      %v5571 = vmul.f32 %v3723, 0.2
      %v5572 = vmul.f32 %v3728, 0.2
      %v5573 = vmul.f32 %v3731, 0.2
      %v5574 = vmul.f32 %v3736, 0.2
      %v5575 = vmul.f32 %v3739, 0.2
      %v5576 = vmul.f32 %v3744, 0.2
      %v5577 = vmul.f32 %v3747, 0.2
      %v5578 = vmul.f32 %v3752, 0.2
      %v5579 = vmul.f32 %v3755, 0.2
      %v5580 = vmul.f32 %v3760, 0.2
      %v5581 = vmul.f32 %v3763, 0.2
      %v5582 = vmul.f32 %v3768, 0.2
      %v5583 = vmul.f32 %v3771, 0.2
      %v5584 = vmul.f32 %v3776, 0.2
      %v5585 = vmul.f32 %v3779, 0.2
      %v5586 = vmul.f32 %v3784, 0.2
      %v5587 = vmul.f32 %v3787, 0.2
      %v5588 = vmul.f32 %v3792, 0.2
      %v5589 = vmul.f32 %v3795, 0.2
      %v5590 = vmul.f32 %v3800, 0.2
      %v5591 = vmul.f32 %v3803, 0.2
      %v5592 = vmul.f32 %v3808, 0.2
      %v5593 = vmul.f32 %v3811, 0.2
      %v5594 = vmul.f32 %v3816, 0.2
      %v5595 = vmul.f32 %v3819, 0.2
      %v5596 = vmul.f32 %v3824, 0.2
      %v5597 = vmul.f32 %v3827, 0.2
      %v5598 = vmul.f32 %v3832, 0.2
      %v5599 = vmul.f32 %v3835, 0.2
      %v5600 = vmul.f32 %v3840, 0.2
      %v5601 = vmul.f32 %v3843, 0.2
      %v5602 = vmul.f32 %v3848, 0.2
      %v5603 = vmul.f32 %v3851, 0.2
      %v5604 = vmul.f32 %v3856, 0.2
      %v5605 = vmul.f32 %v3859, 0.2
      %v5606 = vmul.f32 %v3864, 0.2
      %v5607 = vmul.f32 %v3867, 0.2
      %v5608 = vmul.f32 %v3872, 0.2
      %v5609 = vmul.f32 %v3875, 0.2
      %v5610 = vmul.f32 %v3880, 0.2
      %v5611 = vmul.f32 %v3883, 0.2
      %v5612 = vmul.f32 %v3888, 0.2
      %v5613 = vmul.f32 %v3891, 0.2
      %v5614 = vmul.f32 %v3896, 0.2
      %v5615 = vmul.f32 %v3899, 0.2
      %v5616 = vmul.f32 %v3904, 0.2
      %v5617 = vmul.f32 %v3907, 0.2
      %v5618 = vmul.f32 %v3912, 0.2
      %v5619 = vmul.f32 %v3915, 0.2
      %v5620 = vmul.f32 %v3920, 0.2
      %v5621 = vmul.f32 %v3923, 0.2
      %v5622 = vmul.f32 %v3928, 0.2
      %v5623 = vmul.f32 %v3931, 0.2
      %v5624 = vmul.f32 %v3936, 0.2
      %v5625 = vmul.f32 %v3939, 0.2
      %v5626 = vmul.f32 %v3944, 0.2
      %v5627 = vmul.f32 %v3947, 0.2
      %v5628 = vmul.f32 %v3952, 0.2
      %v5629 = vmul.f32 %v3955, 0.2
      %v5630 = vmul.f32 %v3960, 0.2
      %v5631 = vmul.f32 %v3963, 0.2
      %v5632 = vmul.f32 %v3968, 0.2
      %v5633 = vmul.f32 %v3971, 0.2
      %v5634 = vmul.f32 %v3976, 0.2
      %v5635 = vmul.f32 %v3979, 0.2
      %v5636 = vmul.f32 %v3984, 0.2
      %v5637 = vmul.f32 %v3987, 0.2
      %v5638 = vmul.f32 %v3992, 0.2
      %v5639 = vmul.f32 %v3995, 0.2
      %v5640 = vmul.f32 %v4000, 0.2
      %v5641 = vmul.f32 %v4003, 0.2
      %v5642 = vmul.f32 %v4008, 0.2
      %v5643 = vmul.f32 %v4011, 0.2
      %v5644 = vmul.f32 %v4016, 0.2
      %v5645 = vmul.f32 %v4019, 0.2
      %v5646 = vmul.f32 %v4024, 0.2
      %v5647 = vmul.f32 %v4027, 0.2
      %v5648 = vmul.f32 %v4032, 0.2
      %v5649 = vmul.f32 %v4035, 0.2
      %v5650 = vmul.f32 %v4040, 0.2
      %v5651 = vmul.f32 %v4043, 0.2
      %v5652 = vmul.f32 %v4048, 0.2
      %v5653 = vmul.f32 %v4051, 0.2
      %v5654 = vmul.f32 %v4056, 0.2
      %v5655 = vmul.f32 %v4059, 0.2
      %v5656 = vmul.f32 %v4064, 0.2
      %v5657 = vmul.f32 %v4067, 0.2
      %v5658 = vmul.f32 %v4072, 0.2
      %v5659 = vmul.f32 %v4075, 0.2
      %v5660 = vmul.f32 %v4080, 0.2
      %v5661 = vmul.f32 %v4083, 0.2
      %v5662 = vmul.f32 %v4088, 0.2
      %v5663 = vmul.f32 %v4091, 0.2
      %v5664 = vmul.f32 %v4096, 0.2
      %v5665 = vmul.f32 %v4099, 0.2
      %v5666 = vmul.f32 %v4104, 0.2
      %v5667 = vmul.f32 %v4107, 0.2
      %v5668 = vmul.f32 %v4112, 0.2
      %v5669 = vmul.f32 %v4115, 0.2
      %v5670 = vmul.f32 %v4120, 0.2
      %v5671 = vmul.f32 %v4123, 0.2
      %v5672 = vmul.f32 %v4128, 0.2
      %v5673 = vmul.f32 %v4131, 0.2
      %v5674 = vmul.f32 %v4136, 0.2
      %v5675 = vmul.f32 %v4139, 0.2
      %v5676 = vmul.f32 %v4144, 0.2
      %v5677 = vmul.f32 %v4147, 0.2
      %v5678 = vmul.f32 %v4152, 0.2
      %v5679 = vmul.f32 %v4155, 0.2
      %v5680 = vmul.f32 %v4160, 0.2
      %v5681 = vmul.f32 %v4163, 0.2
      %v5682 = vmul.f32 %v4168, 0.2
      %v5683 = vmul.f32 %v4171, 0.2
      %v5684 = vmul.f32 %v4176, 0.2
      %v5685 = vmul.f32 %v4179, 0.2
      %v5686 = vmul.f32 %v4184, 0.2
      %v5687 = vmul.f32 %v4187, 0.2
      %v5688 = vmul.f32 %v4192, 0.2
      %v5689 = vmul.f32 %v4195, 0.2
      %v5690 = vmul.f32 %v4200, 0.2
      %v5691 = vmul.f32 %v4203, 0.2
      %v5692 = vmul.f32 %v4208, 0.2
      %v5693 = vmul.f32 %v4211, 0.2
      %v5694 = vmul.f32 %v4216, 0.2
      %v5695 = vmul.f32 %v4219, 0.2
      %v5696 = vmul.f32 %v4224, 0.2
      %v5697 = vmul.f32 %v4227, 0.2
      %v5698 = vmul.f32 %v4232, 0.2
      %v5699 = vmul.f32 %v4235, 0.2
      %v5700 = vmul.f32 %v4240, 0.2
      %v5701 = vmul.f32 %v4243, 0.2
      %v5702 = vmul.f32 %v4248, 0.2
      %v5703 = vmul.f32 %v4251, 0.2
      %v5704 = vmul.f32 %v4256, 0.2
      %v5705 = vmul.f32 %v4259, 0.2
      %v5706 = vmul.f32 %v4264, 0.2
      %v5707 = vmul.f32 %v4267, 0.2
      %v5708 = vmul.f32 %v4272, 0.2
      %v5709 = vmul.f32 %v4275, 0.2
      %v5710 = vmul.f32 %v4280, 0.2
      %v5711 = vmul.f32 %v4283, 0.2
      %v5712 = vmul.f32 %v4288, 0.2
      %v5713 = vmul.f32 %v4291, 0.2
      %v5714 = vmul.f32 %v4296, 0.2
      %v5715 = vmul.f32 %v4299, 0.2
      %v5716 = vmul.f32 %v4304, 0.2
      %v5717 = vmul.f32 %v4307, 0.2
      %v5718 = vmul.f32 %v4312, 0.2
      %v5719 = vmul.f32 %v4315, 0.2
      %v5720 = vmul.f32 %v4320, 0.2
      %v5721 = vmul.f32 %v4323, 0.2
      %v5722 = vmul.f32 %v4328, 0.2
      %v5723 = vmul.f32 %v4331, 0.2
      %v5724 = vmul.f32 %v4336, 0.2
      %v5725 = vmul.f32 %v4339, 0.2
      %v5726 = vmul.f32 %v4344, 0.2
      %v5727 = vmul.f32 %v4347, 0.2
      %v5728 = vmul.f32 %v4352, 0.2
      %v5729 = vmul.f32 %v4355, 0.2
      %v5730 = vmul.f32 %v4360, 0.2
      %v5731 = vmul.f32 %v4363, 0.2
      %v5732 = vmul.f32 %v4368, 0.2
      %v5733 = vmul.f32 %v4371, 0.2
      %v5734 = vmul.f32 %v4376, 0.2
      %v5735 = vmul.f32 %v4379, 0.2
      %v5736 = vmul.f32 %v4384, 0.2
      %v5737 = vmul.f32 %v4387, 0.2
      %v5738 = vmul.f32 %v4392, 0.2
      %v5739 = vmul.f32 %v4395, 0.2
      %v5740 = vmul.f32 %v4400, 0.2
      %v5741 = vmul.f32 %v4403, 0.2
      %v5742 = vmul.f32 %v4408, 0.2
      %v5743 = vmul.f32 %v4411, 0.2
      %v5744 = vmul.f32 %v4416, 0.2
      %v5745 = vmul.f32 %v4419, 0.2
      %v5746 = vmul.f32 %v4424, 0.2
      %v5747 = vmul.f32 %v4427, 0.2
      %v5748 = vmul.f32 %v4432, 0.2
      %v5749 = vmul.f32 %v4435, 0.2
      %v5750 = vmul.f32 %v4440, 0.2
      %v5751 = vmul.f32 %v4443, 0.2
      %v5752 = vmul.f32 %v4448, 0.2
      %v5753 = vmul.f32 %v4451, 0.2
      %v5754 = vmul.f32 %v4456, 0.2
      %v5755 = vmul.f32 %v4459, 0.2
      %v5756 = vmul.f32 %v4464, 0.2
      %v5757 = vmul.f32 %v4467, 0.2
      %v5758 = vmul.f32 %v4472, 0.2
      %v5759 = vmul.f32 %v4475, 0.2
      %v5760 = vmul.f32 %v4480, 0.2
      %v5761 = vmul.f32 %v4483, 0.2
      %v5762 = vmul.f32 %v4488, 0.2
      %v5763 = vmul.f32 %v4491, 0.2
      %v5764 = vmul.f32 %v4496, 0.2
      %v5765 = vmul.f32 %v4499, 0.2
      %v5766 = vmul.f32 %v4504, 0.2
      %v5767 = vmul.f32 %v4507, 0.2
      %v5768 = vmul.f32 %v4512, 0.2
      %v5769 = vmul.f32 %v4515, 0.2
      %v5770 = vmul.f32 %v4520, 0.2
      %v5771 = vmul.f32 %v4523, 0.2
      %v5772 = vmul.f32 %v4528, 0.2
      %v5773 = vmul.f32 %v4531, 0.2
      %v5774 = vmul.f32 %v4536, 0.2
      %v5775 = vmul.f32 %v4539, 0.2
      %v5776 = vmul.f32 %v4544, 0.2
      %v5777 = vmul.f32 %v4547, 0.2
      %v5778 = vmul.f32 %v4552, 0.2
      %v5779 = vmul.f32 %v4555, 0.2
      %v5780 = vmul.f32 %v4560, 0.2
      %v5781 = vmul.f32 %v4563, 0.2
      %v5782 = vmul.f32 %v4568, 0.2
      %v5783 = vmul.f32 %v4571, 0.2
      %v5784 = vmul.f32 %v4576, 0.2
      %v5785 = vmul.f32 %v4579, 0.2
      %v5786 = vmul.f32 %v4584, 0.2
      %v5787 = vmul.f32 %v4587, 0.2
      %v5788 = vmul.f32 %v4592, 0.2
      %v5789 = vmul.f32 %v4595, 0.2
      %v5790 = vmul.f32 %v4600, 0.2
      %v5791 = vmul.f32 %v4603, 0.2
      %v5792 = vmul.f32 %v4608, 0.2
      %v5793 = vmul.f32 %v4611, 0.2
      %v5794 = vmul.f32 %v4616, 0.2
      %v5795 = vmul.f32 %v4619, 0.2
      %v5796 = vmul.f32 %v4624, 0.2
      %v5797 = vmul.f32 %v4627, 0.2
      %v5798 = vmul.f32 %v4632, 0.2
      %v5799 = vmul.f32 %v4635, 0.2
      %v5800 = vmul.f32 %v4640, 0.2
      %v5801 = vmul.f32 %v4643, 0.2
      %v5802 = vmul.f32 %v4648, 0.2
      %v5803 = vmul.f32 %v4651, 0.2
      %v5804 = vmul.f32 %v4656, 0.2
      %v5805 = vmul.f32 %v4659, 0.2
      %v5806 = vmul.f32 %v4664, 0.2
      %v5807 = vmul.f32 %v4667, 0.2
      %v5808 = vmul.f32 %v4672, 0.2
      %v5809 = vmul.f32 %v4675, 0.2
      %v5810 = vmul.f32 %v4680, 0.2
      %v5811 = vmul.f32 %v4683, 0.2
      %v5812 = vmul.f32 %v4688, 0.2
      %v5813 = vmul.f32 %v4691, 0.2
      %v5814 = vmul.f32 %v4696, 0.2
      %v5815 = vmul.f32 %v4699, 0.2
      %v5816 = vmul.f32 %v4704, 0.2
      %v5817 = vmul.f32 %v4707, 0.2
      %v5818 = vmul.f32 %v4712, 0.2
      %v5819 = vmul.f32 %v4715, 0.2
      %v5820 = vmul.f32 %v4720, 0.2
      %v5821 = vmul.f32 %v4723, 0.2
      %v5822 = vmul.f32 %v4728, 0.2
      %v5823 = vmul.f32 %v4731, 0.2
      %v5824 = vmul.f32 %v4736, 0.2
      %v5825 = vmul.f32 %v4739, 0.2
      %v5826 = vmul.f32 %v4744, 0.2
      %v5827 = vmul.f32 %v4747, 0.2
      %v5828 = vmul.f32 %v4752, 0.2
      %v5829 = vmul.f32 %v4755, 0.2
      %v5830 = vmul.f32 %v4760, 0.2
      %v5831 = vmul.f32 %v4763, 0.2
      %v5832 = vmul.f32 %v4768, 0.2
      %v5833 = vmul.f32 %v4771, 0.2
      %v5834 = vmul.f32 %v4776, 0.2
      %v5835 = vmul.f32 %v4779, 0.2
      %v5836 = vmul.f32 %v4784, 0.2
      %v5837 = vmul.f32 %v4787, 0.2
      %v5838 = vmul.f32 %v4792, 0.2
      %v5839 = vmul.f32 %v4795, 0.2
      %v5840 = vmul.f32 %v4800, 0.2
      %v5841 = vmul.f32 %v4803, 0.2
      %v5842 = vmul.f32 %v4808, 0.2
      %v5843 = vmul.f32 %v4811, 0.2
      %v5844 = vmul.f32 %v4816, 0.2
      %v5845 = vmul.f32 %v4819, 0.2
      %v5846 = vsel %vm4822, %v2776, %v5334
      %v5847 = vsel %vm4823, %v2779, %v5335
      %v5848 = vsel %vm4824, %v2784, %v5336
      %v5849 = vsel %vm4825, %v2787, %v5337
      %v5850 = vsel %vm4826, %v2792, %v5338
      %v5851 = vsel %vm4827, %v2795, %v5339
      %v5852 = vsel %vm4828, %v2800, %v5340
      %v5853 = vsel %vm4829, %v2803, %v5341
      %v5854 = vsel %vm4830, %v2808, %v5342
      %v5855 = vsel %vm4831, %v2811, %v5343
      %v5856 = vsel %vm4832, %v2816, %v5344
      %v5857 = vsel %vm4833, %v2819, %v5345
      %v5858 = vsel %vm4834, %v2824, %v5346
      %v5859 = vsel %vm4835, %v2827, %v5347
      %v5860 = vsel %vm4836, %v2832, %v5348
      %v5861 = vsel %vm4837, %v2835, %v5349
      %v5862 = vsel %vm4838, %v2840, %v5350
      %v5863 = vsel %vm4839, %v2843, %v5351
      %v5864 = vsel %vm4840, %v2848, %v5352
      %v5865 = vsel %vm4841, %v2851, %v5353
      %v5866 = vsel %vm4842, %v2856, %v5354
      %v5867 = vsel %vm4843, %v2859, %v5355
      %v5868 = vsel %vm4844, %v2864, %v5356
      %v5869 = vsel %vm4845, %v2867, %v5357
      %v5870 = vsel %vm4846, %v2872, %v5358
      %v5871 = vsel %vm4847, %v2875, %v5359
      %v5872 = vsel %vm4848, %v2880, %v5360
      %v5873 = vsel %vm4849, %v2883, %v5361
      %v5874 = vsel %vm4850, %v2888, %v5362
      %v5875 = vsel %vm4851, %v2891, %v5363
      %v5876 = vsel %vm4852, %v2896, %v5364
      %v5877 = vsel %vm4853, %v2899, %v5365
      %v5878 = vsel %vm4854, %v2904, %v5366
      %v5879 = vsel %vm4855, %v2907, %v5367
      %v5880 = vsel %vm4856, %v2912, %v5368
      %v5881 = vsel %vm4857, %v2915, %v5369
      %v5882 = vsel %vm4858, %v2920, %v5370
      %v5883 = vsel %vm4859, %v2923, %v5371
      %v5884 = vsel %vm4860, %v2928, %v5372
      %v5885 = vsel %vm4861, %v2931, %v5373
      %v5886 = vsel %vm4862, %v2936, %v5374
      %v5887 = vsel %vm4863, %v2939, %v5375
      %v5888 = vsel %vm4864, %v2944, %v5376
      %v5889 = vsel %vm4865, %v2947, %v5377
      %v5890 = vsel %vm4866, %v2952, %v5378
      %v5891 = vsel %vm4867, %v2955, %v5379
      %v5892 = vsel %vm4868, %v2960, %v5380
      %v5893 = vsel %vm4869, %v2963, %v5381
      %v5894 = vsel %vm4870, %v2968, %v5382
      %v5895 = vsel %vm4871, %v2971, %v5383
      %v5896 = vsel %vm4872, %v2976, %v5384
      %v5897 = vsel %vm4873, %v2979, %v5385
      %v5898 = vsel %vm4874, %v2984, %v5386
      %v5899 = vsel %vm4875, %v2987, %v5387
      %v5900 = vsel %vm4876, %v2992, %v5388
      %v5901 = vsel %vm4877, %v2995, %v5389
      %v5902 = vsel %vm4878, %v3000, %v5390
      %v5903 = vsel %vm4879, %v3003, %v5391
      %v5904 = vsel %vm4880, %v3008, %v5392
      %v5905 = vsel %vm4881, %v3011, %v5393
      %v5906 = vsel %vm4882, %v3016, %v5394
      %v5907 = vsel %vm4883, %v3019, %v5395
      %v5908 = vsel %vm4884, %v3024, %v5396
      %v5909 = vsel %vm4885, %v3027, %v5397
      %v5910 = vsel %vm4886, %v3032, %v5398
      %v5911 = vsel %vm4887, %v3035, %v5399
      %v5912 = vsel %vm4888, %v3040, %v5400
      %v5913 = vsel %vm4889, %v3043, %v5401
      %v5914 = vsel %vm4890, %v3048, %v5402
      %v5915 = vsel %vm4891, %v3051, %v5403
      %v5916 = vsel %vm4892, %v3056, %v5404
      %v5917 = vsel %vm4893, %v3059, %v5405
      %v5918 = vsel %vm4894, %v3064, %v5406
      %v5919 = vsel %vm4895, %v3067, %v5407
      %v5920 = vsel %vm4896, %v3072, %v5408
      %v5921 = vsel %vm4897, %v3075, %v5409
      %v5922 = vsel %vm4898, %v3080, %v5410
      %v5923 = vsel %vm4899, %v3083, %v5411
      %v5924 = vsel %vm4900, %v3088, %v5412
      %v5925 = vsel %vm4901, %v3091, %v5413
      %v5926 = vsel %vm4902, %v3096, %v5414
      %v5927 = vsel %vm4903, %v3099, %v5415
      %v5928 = vsel %vm4904, %v3104, %v5416
      %v5929 = vsel %vm4905, %v3107, %v5417
      %v5930 = vsel %vm4906, %v3112, %v5418
      %v5931 = vsel %vm4907, %v3115, %v5419
      %v5932 = vsel %vm4908, %v3120, %v5420
      %v5933 = vsel %vm4909, %v3123, %v5421
      %v5934 = vsel %vm4910, %v3128, %v5422
      %v5935 = vsel %vm4911, %v3131, %v5423
      %v5936 = vsel %vm4912, %v3136, %v5424
      %v5937 = vsel %vm4913, %v3139, %v5425
      %v5938 = vsel %vm4914, %v3144, %v5426
      %v5939 = vsel %vm4915, %v3147, %v5427
      %v5940 = vsel %vm4916, %v3152, %v5428
      %v5941 = vsel %vm4917, %v3155, %v5429
      %v5942 = vsel %vm4918, %v3160, %v5430
      %v5943 = vsel %vm4919, %v3163, %v5431
      %v5944 = vsel %vm4920, %v3168, %v5432
      %v5945 = vsel %vm4921, %v3171, %v5433
      %v5946 = vsel %vm4922, %v3176, %v5434
      %v5947 = vsel %vm4923, %v3179, %v5435
      %v5948 = vsel %vm4924, %v3184, %v5436
      %v5949 = vsel %vm4925, %v3187, %v5437
      %v5950 = vsel %vm4926, %v3192, %v5438
      %v5951 = vsel %vm4927, %v3195, %v5439
      %v5952 = vsel %vm4928, %v3200, %v5440
      %v5953 = vsel %vm4929, %v3203, %v5441
      %v5954 = vsel %vm4930, %v3208, %v5442
      %v5955 = vsel %vm4931, %v3211, %v5443
      %v5956 = vsel %vm4932, %v3216, %v5444
      %v5957 = vsel %vm4933, %v3219, %v5445
      %v5958 = vsel %vm4934, %v3224, %v5446
      %v5959 = vsel %vm4935, %v3227, %v5447
      %v5960 = vsel %vm4936, %v3232, %v5448
      %v5961 = vsel %vm4937, %v3235, %v5449
      %v5962 = vsel %vm4938, %v3240, %v5450
      %v5963 = vsel %vm4939, %v3243, %v5451
      %v5964 = vsel %vm4940, %v3248, %v5452
      %v5965 = vsel %vm4941, %v3251, %v5453
      %v5966 = vsel %vm4942, %v3256, %v5454
      %v5967 = vsel %vm4943, %v3259, %v5455
      %v5968 = vsel %vm4944, %v3264, %v5456
      %v5969 = vsel %vm4945, %v3267, %v5457
      %v5970 = vsel %vm4946, %v3272, %v5458
      %v5971 = vsel %vm4947, %v3275, %v5459
      %v5972 = vsel %vm4948, %v3280, %v5460
      %v5973 = vsel %vm4949, %v3283, %v5461
      %v5974 = vsel %vm4950, %v3288, %v5462
      %v5975 = vsel %vm4951, %v3291, %v5463
      %v5976 = vsel %vm4952, %v3296, %v5464
      %v5977 = vsel %vm4953, %v3299, %v5465
      %v5978 = vsel %vm4954, %v3304, %v5466
      %v5979 = vsel %vm4955, %v3307, %v5467
      %v5980 = vsel %vm4956, %v3312, %v5468
      %v5981 = vsel %vm4957, %v3315, %v5469
      %v5982 = vsel %vm4958, %v3320, %v5470
      %v5983 = vsel %vm4959, %v3323, %v5471
      %v5984 = vsel %vm4960, %v3328, %v5472
      %v5985 = vsel %vm4961, %v3331, %v5473
      %v5986 = vsel %vm4962, %v3336, %v5474
      %v5987 = vsel %vm4963, %v3339, %v5475
      %v5988 = vsel %vm4964, %v3344, %v5476
      %v5989 = vsel %vm4965, %v3347, %v5477
      %v5990 = vsel %vm4966, %v3352, %v5478
      %v5991 = vsel %vm4967, %v3355, %v5479
      %v5992 = vsel %vm4968, %v3360, %v5480
      %v5993 = vsel %vm4969, %v3363, %v5481
      %v5994 = vsel %vm4970, %v3368, %v5482
      %v5995 = vsel %vm4971, %v3371, %v5483
      %v5996 = vsel %vm4972, %v3376, %v5484
      %v5997 = vsel %vm4973, %v3379, %v5485
      %v5998 = vsel %vm4974, %v3384, %v5486
      %v5999 = vsel %vm4975, %v3387, %v5487
      %v6000 = vsel %vm4976, %v3392, %v5488
      %v6001 = vsel %vm4977, %v3395, %v5489
      %v6002 = vsel %vm4978, %v3400, %v5490
      %v6003 = vsel %vm4979, %v3403, %v5491
      %v6004 = vsel %vm4980, %v3408, %v5492
      %v6005 = vsel %vm4981, %v3411, %v5493
      %v6006 = vsel %vm4982, %v3416, %v5494
      %v6007 = vsel %vm4983, %v3419, %v5495
      %v6008 = vsel %vm4984, %v3424, %v5496
      %v6009 = vsel %vm4985, %v3427, %v5497
      %v6010 = vsel %vm4986, %v3432, %v5498
      %v6011 = vsel %vm4987, %v3435, %v5499
      %v6012 = vsel %vm4988, %v3440, %v5500
      %v6013 = vsel %vm4989, %v3443, %v5501
      %v6014 = vsel %vm4990, %v3448, %v5502
      %v6015 = vsel %vm4991, %v3451, %v5503
      %v6016 = vsel %vm4992, %v3456, %v5504
      %v6017 = vsel %vm4993, %v3459, %v5505
      %v6018 = vsel %vm4994, %v3464, %v5506
      %v6019 = vsel %vm4995, %v3467, %v5507
      %v6020 = vsel %vm4996, %v3472, %v5508
      %v6021 = vsel %vm4997, %v3475, %v5509
      %v6022 = vsel %vm4998, %v3480, %v5510
      %v6023 = vsel %vm4999, %v3483, %v5511
      %v6024 = vsel %vm5000, %v3488, %v5512
      %v6025 = vsel %vm5001, %v3491, %v5513
      %v6026 = vsel %vm5002, %v3496, %v5514
      %v6027 = vsel %vm5003, %v3499, %v5515
      %v6028 = vsel %vm5004, %v3504, %v5516
      %v6029 = vsel %vm5005, %v3507, %v5517
      %v6030 = vsel %vm5006, %v3512, %v5518
      %v6031 = vsel %vm5007, %v3515, %v5519
      %v6032 = vsel %vm5008, %v3520, %v5520
      %v6033 = vsel %vm5009, %v3523, %v5521
      %v6034 = vsel %vm5010, %v3528, %v5522
      %v6035 = vsel %vm5011, %v3531, %v5523
      %v6036 = vsel %vm5012, %v3536, %v5524
      %v6037 = vsel %vm5013, %v3539, %v5525
      %v6038 = vsel %vm5014, %v3544, %v5526
      %v6039 = vsel %vm5015, %v3547, %v5527
      %v6040 = vsel %vm5016, %v3552, %v5528
      %v6041 = vsel %vm5017, %v3555, %v5529
      %v6042 = vsel %vm5018, %v3560, %v5530
      %v6043 = vsel %vm5019, %v3563, %v5531
      %v6044 = vsel %vm5020, %v3568, %v5532
      %v6045 = vsel %vm5021, %v3571, %v5533
      %v6046 = vsel %vm5022, %v3576, %v5534
      %v6047 = vsel %vm5023, %v3579, %v5535
      %v6048 = vsel %vm5024, %v3584, %v5536
      %v6049 = vsel %vm5025, %v3587, %v5537
      %v6050 = vsel %vm5026, %v3592, %v5538
      %v6051 = vsel %vm5027, %v3595, %v5539
      %v6052 = vsel %vm5028, %v3600, %v5540
      %v6053 = vsel %vm5029, %v3603, %v5541
      %v6054 = vsel %vm5030, %v3608, %v5542
      %v6055 = vsel %vm5031, %v3611, %v5543
      %v6056 = vsel %vm5032, %v3616, %v5544
      %v6057 = vsel %vm5033, %v3619, %v5545
      %v6058 = vsel %vm5034, %v3624, %v5546
      %v6059 = vsel %vm5035, %v3627, %v5547
      %v6060 = vsel %vm5036, %v3632, %v5548
      %v6061 = vsel %vm5037, %v3635, %v5549
      %v6062 = vsel %vm5038, %v3640, %v5550
      %v6063 = vsel %vm5039, %v3643, %v5551
      %v6064 = vsel %vm5040, %v3648, %v5552
      %v6065 = vsel %vm5041, %v3651, %v5553
      %v6066 = vsel %vm5042, %v3656, %v5554
      %v6067 = vsel %vm5043, %v3659, %v5555
      %v6068 = vsel %vm5044, %v3664, %v5556
      %v6069 = vsel %vm5045, %v3667, %v5557
      %v6070 = vsel %vm5046, %v3672, %v5558
      %v6071 = vsel %vm5047, %v3675, %v5559
      %v6072 = vsel %vm5048, %v3680, %v5560
      %v6073 = vsel %vm5049, %v3683, %v5561
      %v6074 = vsel %vm5050, %v3688, %v5562
      %v6075 = vsel %vm5051, %v3691, %v5563
      %v6076 = vsel %vm5052, %v3696, %v5564
      %v6077 = vsel %vm5053, %v3699, %v5565
      %v6078 = vsel %vm5054, %v3704, %v5566
      %v6079 = vsel %vm5055, %v3707, %v5567
      %v6080 = vsel %vm5056, %v3712, %v5568
      %v6081 = vsel %vm5057, %v3715, %v5569
      %v6082 = vsel %vm5058, %v3720, %v5570
      %v6083 = vsel %vm5059, %v3723, %v5571
      %v6084 = vsel %vm5060, %v3728, %v5572
      %v6085 = vsel %vm5061, %v3731, %v5573
      %v6086 = vsel %vm5062, %v3736, %v5574
      %v6087 = vsel %vm5063, %v3739, %v5575
      %v6088 = vsel %vm5064, %v3744, %v5576
      %v6089 = vsel %vm5065, %v3747, %v5577
      %v6090 = vsel %vm5066, %v3752, %v5578
      %v6091 = vsel %vm5067, %v3755, %v5579
      %v6092 = vsel %vm5068, %v3760, %v5580
      %v6093 = vsel %vm5069, %v3763, %v5581
      %v6094 = vsel %vm5070, %v3768, %v5582
      %v6095 = vsel %vm5071, %v3771, %v5583
      %v6096 = vsel %vm5072, %v3776, %v5584
      %v6097 = vsel %vm5073, %v3779, %v5585
      %v6098 = vsel %vm5074, %v3784, %v5586
      %v6099 = vsel %vm5075, %v3787, %v5587
      %v6100 = vsel %vm5076, %v3792, %v5588
      %v6101 = vsel %vm5077, %v3795, %v5589
      %v6102 = vsel %vm5078, %v3800, %v5590
      %v6103 = vsel %vm5079, %v3803, %v5591
      %v6104 = vsel %vm5080, %v3808, %v5592
      %v6105 = vsel %vm5081, %v3811, %v5593
      %v6106 = vsel %vm5082, %v3816, %v5594
      %v6107 = vsel %vm5083, %v3819, %v5595
      %v6108 = vsel %vm5084, %v3824, %v5596
      %v6109 = vsel %vm5085, %v3827, %v5597
      %v6110 = vsel %vm5086, %v3832, %v5598
      %v6111 = vsel %vm5087, %v3835, %v5599
      %v6112 = vsel %vm5088, %v3840, %v5600
      %v6113 = vsel %vm5089, %v3843, %v5601
      %v6114 = vsel %vm5090, %v3848, %v5602
      %v6115 = vsel %vm5091, %v3851, %v5603
      %v6116 = vsel %vm5092, %v3856, %v5604
      %v6117 = vsel %vm5093, %v3859, %v5605
      %v6118 = vsel %vm5094, %v3864, %v5606
      %v6119 = vsel %vm5095, %v3867, %v5607
      %v6120 = vsel %vm5096, %v3872, %v5608
      %v6121 = vsel %vm5097, %v3875, %v5609
      %v6122 = vsel %vm5098, %v3880, %v5610
      %v6123 = vsel %vm5099, %v3883, %v5611
      %v6124 = vsel %vm5100, %v3888, %v5612
      %v6125 = vsel %vm5101, %v3891, %v5613
      %v6126 = vsel %vm5102, %v3896, %v5614
      %v6127 = vsel %vm5103, %v3899, %v5615
      %v6128 = vsel %vm5104, %v3904, %v5616
      %v6129 = vsel %vm5105, %v3907, %v5617
      %v6130 = vsel %vm5106, %v3912, %v5618
      %v6131 = vsel %vm5107, %v3915, %v5619
      %v6132 = vsel %vm5108, %v3920, %v5620
      %v6133 = vsel %vm5109, %v3923, %v5621
      %v6134 = vsel %vm5110, %v3928, %v5622
      %v6135 = vsel %vm5111, %v3931, %v5623
      %v6136 = vsel %vm5112, %v3936, %v5624
      %v6137 = vsel %vm5113, %v3939, %v5625
      %v6138 = vsel %vm5114, %v3944, %v5626
      %v6139 = vsel %vm5115, %v3947, %v5627
      %v6140 = vsel %vm5116, %v3952, %v5628
      %v6141 = vsel %vm5117, %v3955, %v5629
      %v6142 = vsel %vm5118, %v3960, %v5630
      %v6143 = vsel %vm5119, %v3963, %v5631
      %v6144 = vsel %vm5120, %v3968, %v5632
      %v6145 = vsel %vm5121, %v3971, %v5633
      %v6146 = vsel %vm5122, %v3976, %v5634
      %v6147 = vsel %vm5123, %v3979, %v5635
      %v6148 = vsel %vm5124, %v3984, %v5636
      %v6149 = vsel %vm5125, %v3987, %v5637
      %v6150 = vsel %vm5126, %v3992, %v5638
      %v6151 = vsel %vm5127, %v3995, %v5639
      %v6152 = vsel %vm5128, %v4000, %v5640
      %v6153 = vsel %vm5129, %v4003, %v5641
      %v6154 = vsel %vm5130, %v4008, %v5642
      %v6155 = vsel %vm5131, %v4011, %v5643
      %v6156 = vsel %vm5132, %v4016, %v5644
      %v6157 = vsel %vm5133, %v4019, %v5645
      %v6158 = vsel %vm5134, %v4024, %v5646
      %v6159 = vsel %vm5135, %v4027, %v5647
      %v6160 = vsel %vm5136, %v4032, %v5648
      %v6161 = vsel %vm5137, %v4035, %v5649
      %v6162 = vsel %vm5138, %v4040, %v5650
      %v6163 = vsel %vm5139, %v4043, %v5651
      %v6164 = vsel %vm5140, %v4048, %v5652
      %v6165 = vsel %vm5141, %v4051, %v5653
      %v6166 = vsel %vm5142, %v4056, %v5654
      %v6167 = vsel %vm5143, %v4059, %v5655
      %v6168 = vsel %vm5144, %v4064, %v5656
      %v6169 = vsel %vm5145, %v4067, %v5657
      %v6170 = vsel %vm5146, %v4072, %v5658
      %v6171 = vsel %vm5147, %v4075, %v5659
      %v6172 = vsel %vm5148, %v4080, %v5660
      %v6173 = vsel %vm5149, %v4083, %v5661
      %v6174 = vsel %vm5150, %v4088, %v5662
      %v6175 = vsel %vm5151, %v4091, %v5663
      %v6176 = vsel %vm5152, %v4096, %v5664
      %v6177 = vsel %vm5153, %v4099, %v5665
      %v6178 = vsel %vm5154, %v4104, %v5666
      %v6179 = vsel %vm5155, %v4107, %v5667
      %v6180 = vsel %vm5156, %v4112, %v5668
      %v6181 = vsel %vm5157, %v4115, %v5669
      %v6182 = vsel %vm5158, %v4120, %v5670
      %v6183 = vsel %vm5159, %v4123, %v5671
      %v6184 = vsel %vm5160, %v4128, %v5672
      %v6185 = vsel %vm5161, %v4131, %v5673
      %v6186 = vsel %vm5162, %v4136, %v5674
      %v6187 = vsel %vm5163, %v4139, %v5675
      %v6188 = vsel %vm5164, %v4144, %v5676
      %v6189 = vsel %vm5165, %v4147, %v5677
      %v6190 = vsel %vm5166, %v4152, %v5678
      %v6191 = vsel %vm5167, %v4155, %v5679
      %v6192 = vsel %vm5168, %v4160, %v5680
      %v6193 = vsel %vm5169, %v4163, %v5681
      %v6194 = vsel %vm5170, %v4168, %v5682
      %v6195 = vsel %vm5171, %v4171, %v5683
      %v6196 = vsel %vm5172, %v4176, %v5684
      %v6197 = vsel %vm5173, %v4179, %v5685
      %v6198 = vsel %vm5174, %v4184, %v5686
      %v6199 = vsel %vm5175, %v4187, %v5687
      %v6200 = vsel %vm5176, %v4192, %v5688
      %v6201 = vsel %vm5177, %v4195, %v5689
      %v6202 = vsel %vm5178, %v4200, %v5690
      %v6203 = vsel %vm5179, %v4203, %v5691
      %v6204 = vsel %vm5180, %v4208, %v5692
      %v6205 = vsel %vm5181, %v4211, %v5693
      %v6206 = vsel %vm5182, %v4216, %v5694
      %v6207 = vsel %vm5183, %v4219, %v5695
      %v6208 = vsel %vm5184, %v4224, %v5696
      %v6209 = vsel %vm5185, %v4227, %v5697
      %v6210 = vsel %vm5186, %v4232, %v5698
      %v6211 = vsel %vm5187, %v4235, %v5699
      %v6212 = vsel %vm5188, %v4240, %v5700
      %v6213 = vsel %vm5189, %v4243, %v5701
      %v6214 = vsel %vm5190, %v4248, %v5702
      %v6215 = vsel %vm5191, %v4251, %v5703
      %v6216 = vsel %vm5192, %v4256, %v5704
      %v6217 = vsel %vm5193, %v4259, %v5705
      %v6218 = vsel %vm5194, %v4264, %v5706
      %v6219 = vsel %vm5195, %v4267, %v5707
      %v6220 = vsel %vm5196, %v4272, %v5708
      %v6221 = vsel %vm5197, %v4275, %v5709
      %v6222 = vsel %vm5198, %v4280, %v5710
      %v6223 = vsel %vm5199, %v4283, %v5711
      %v6224 = vsel %vm5200, %v4288, %v5712
      %v6225 = vsel %vm5201, %v4291, %v5713
      %v6226 = vsel %vm5202, %v4296, %v5714
      %v6227 = vsel %vm5203, %v4299, %v5715
      %v6228 = vsel %vm5204, %v4304, %v5716
      %v6229 = vsel %vm5205, %v4307, %v5717
      %v6230 = vsel %vm5206, %v4312, %v5718
      %v6231 = vsel %vm5207, %v4315, %v5719
      %v6232 = vsel %vm5208, %v4320, %v5720
      %v6233 = vsel %vm5209, %v4323, %v5721
      %v6234 = vsel %vm5210, %v4328, %v5722
      %v6235 = vsel %vm5211, %v4331, %v5723
      %v6236 = vsel %vm5212, %v4336, %v5724
      %v6237 = vsel %vm5213, %v4339, %v5725
      %v6238 = vsel %vm5214, %v4344, %v5726
      %v6239 = vsel %vm5215, %v4347, %v5727
      %v6240 = vsel %vm5216, %v4352, %v5728
      %v6241 = vsel %vm5217, %v4355, %v5729
      %v6242 = vsel %vm5218, %v4360, %v5730
      %v6243 = vsel %vm5219, %v4363, %v5731
      %v6244 = vsel %vm5220, %v4368, %v5732
      %v6245 = vsel %vm5221, %v4371, %v5733
      %v6246 = vsel %vm5222, %v4376, %v5734
      %v6247 = vsel %vm5223, %v4379, %v5735
      %v6248 = vsel %vm5224, %v4384, %v5736
      %v6249 = vsel %vm5225, %v4387, %v5737
      %v6250 = vsel %vm5226, %v4392, %v5738
      %v6251 = vsel %vm5227, %v4395, %v5739
      %v6252 = vsel %vm5228, %v4400, %v5740
      %v6253 = vsel %vm5229, %v4403, %v5741
      %v6254 = vsel %vm5230, %v4408, %v5742
      %v6255 = vsel %vm5231, %v4411, %v5743
      %v6256 = vsel %vm5232, %v4416, %v5744
      %v6257 = vsel %vm5233, %v4419, %v5745
      %v6258 = vsel %vm5234, %v4424, %v5746
      %v6259 = vsel %vm5235, %v4427, %v5747
      %v6260 = vsel %vm5236, %v4432, %v5748
      %v6261 = vsel %vm5237, %v4435, %v5749
      %v6262 = vsel %vm5238, %v4440, %v5750
      %v6263 = vsel %vm5239, %v4443, %v5751
      %v6264 = vsel %vm5240, %v4448, %v5752
      %v6265 = vsel %vm5241, %v4451, %v5753
      %v6266 = vsel %vm5242, %v4456, %v5754
      %v6267 = vsel %vm5243, %v4459, %v5755
      %v6268 = vsel %vm5244, %v4464, %v5756
      %v6269 = vsel %vm5245, %v4467, %v5757
      %v6270 = vsel %vm5246, %v4472, %v5758
      %v6271 = vsel %vm5247, %v4475, %v5759
      %v6272 = vsel %vm5248, %v4480, %v5760
      %v6273 = vsel %vm5249, %v4483, %v5761
      %v6274 = vsel %vm5250, %v4488, %v5762
      %v6275 = vsel %vm5251, %v4491, %v5763
      %v6276 = vsel %vm5252, %v4496, %v5764
      %v6277 = vsel %vm5253, %v4499, %v5765
      %v6278 = vsel %vm5254, %v4504, %v5766
      %v6279 = vsel %vm5255, %v4507, %v5767
      %v6280 = vsel %vm5256, %v4512, %v5768
      %v6281 = vsel %vm5257, %v4515, %v5769
      %v6282 = vsel %vm5258, %v4520, %v5770
      %v6283 = vsel %vm5259, %v4523, %v5771
      %v6284 = vsel %vm5260, %v4528, %v5772
      %v6285 = vsel %vm5261, %v4531, %v5773
      %v6286 = vsel %vm5262, %v4536, %v5774
      %v6287 = vsel %vm5263, %v4539, %v5775
      %v6288 = vsel %vm5264, %v4544, %v5776
      %v6289 = vsel %vm5265, %v4547, %v5777
      %v6290 = vsel %vm5266, %v4552, %v5778
      %v6291 = vsel %vm5267, %v4555, %v5779
      %v6292 = vsel %vm5268, %v4560, %v5780
      %v6293 = vsel %vm5269, %v4563, %v5781
      %v6294 = vsel %vm5270, %v4568, %v5782
      %v6295 = vsel %vm5271, %v4571, %v5783
      %v6296 = vsel %vm5272, %v4576, %v5784
      %v6297 = vsel %vm5273, %v4579, %v5785
      %v6298 = vsel %vm5274, %v4584, %v5786
      %v6299 = vsel %vm5275, %v4587, %v5787
      %v6300 = vsel %vm5276, %v4592, %v5788
      %v6301 = vsel %vm5277, %v4595, %v5789
      %v6302 = vsel %vm5278, %v4600, %v5790
      %v6303 = vsel %vm5279, %v4603, %v5791
      %v6304 = vsel %vm5280, %v4608, %v5792
      %v6305 = vsel %vm5281, %v4611, %v5793
      %v6306 = vsel %vm5282, %v4616, %v5794
      %v6307 = vsel %vm5283, %v4619, %v5795
      %v6308 = vsel %vm5284, %v4624, %v5796
      %v6309 = vsel %vm5285, %v4627, %v5797
      %v6310 = vsel %vm5286, %v4632, %v5798
      %v6311 = vsel %vm5287, %v4635, %v5799
      %v6312 = vsel %vm5288, %v4640, %v5800
      %v6313 = vsel %vm5289, %v4643, %v5801
      %v6314 = vsel %vm5290, %v4648, %v5802
      %v6315 = vsel %vm5291, %v4651, %v5803
      %v6316 = vsel %vm5292, %v4656, %v5804
      %v6317 = vsel %vm5293, %v4659, %v5805
      %v6318 = vsel %vm5294, %v4664, %v5806
      %v6319 = vsel %vm5295, %v4667, %v5807
      %v6320 = vsel %vm5296, %v4672, %v5808
      %v6321 = vsel %vm5297, %v4675, %v5809
      %v6322 = vsel %vm5298, %v4680, %v5810
      %v6323 = vsel %vm5299, %v4683, %v5811
      %v6324 = vsel %vm5300, %v4688, %v5812
      %v6325 = vsel %vm5301, %v4691, %v5813
      %v6326 = vsel %vm5302, %v4696, %v5814
      %v6327 = vsel %vm5303, %v4699, %v5815
      %v6328 = vsel %vm5304, %v4704, %v5816
      %v6329 = vsel %vm5305, %v4707, %v5817
      %v6330 = vsel %vm5306, %v4712, %v5818
      %v6331 = vsel %vm5307, %v4715, %v5819
      %v6332 = vsel %vm5308, %v4720, %v5820
      %v6333 = vsel %vm5309, %v4723, %v5821
      %v6334 = vsel %vm5310, %v4728, %v5822
      %v6335 = vsel %vm5311, %v4731, %v5823
      %v6336 = vsel %vm5312, %v4736, %v5824
      %v6337 = vsel %vm5313, %v4739, %v5825
      %v6338 = vsel %vm5314, %v4744, %v5826
      %v6339 = vsel %vm5315, %v4747, %v5827
      %v6340 = vsel %vm5316, %v4752, %v5828
      %v6341 = vsel %vm5317, %v4755, %v5829
      %v6342 = vsel %vm5318, %v4760, %v5830
      %v6343 = vsel %vm5319, %v4763, %v5831
      %v6344 = vsel %vm5320, %v4768, %v5832
      %v6345 = vsel %vm5321, %v4771, %v5833
      %v6346 = vsel %vm5322, %v4776, %v5834
      %v6347 = vsel %vm5323, %v4779, %v5835
      %v6348 = vsel %vm5324, %v4784, %v5836
      %v6349 = vsel %vm5325, %v4787, %v5837
      %v6350 = vsel %vm5326, %v4792, %v5838
      %v6351 = vsel %vm5327, %v4795, %v5839
      %v6352 = vsel %vm5328, %v4800, %v5840
      %v6353 = vsel %vm5329, %v4803, %v5841
      %v6354 = vsel %vm5330, %v4808, %v5842
      %v6355 = vsel %vm5331, %v4811, %v5843
      %v6356 = vsel %vm5332, %v4816, %v5844
      %v6357 = vsel %vm5333, %v4819, %v5845
      %6358 = vst [vmem:[%s145] sm:$0xff] %v5846
      %6359 = vst [vmem:[%s145 + $0x8] sm:$0xff] %v5847
      %6360 = vst [vmem:[%s145 + $0x10] sm:$0xff] %v5848
      %6361 = vst [vmem:[%s145 + $0x18] sm:$0xff] %v5849
      %6362 = vst [vmem:[%s145 + $0x20] sm:$0xff] %v5850
      %6363 = vst [vmem:[%s145 + $0x28] sm:$0xff] %v5851
      %6364 = vst [vmem:[%s145 + $0x30] sm:$0xff] %v5852
      %6365 = vst [vmem:[%s145 + $0x38] sm:$0xff] %v5853
      %6366 = vst [vmem:[%s145 + $0x40] sm:$0xff] %v5854
      %6367 = vst [vmem:[%s145 + $0x48] sm:$0xff] %v5855
      %6368 = vst [vmem:[%s145 + $0x50] sm:$0xff] %v5856
      %6369 = vst [vmem:[%s145 + $0x58] sm:$0xff] %v5857
      %6370 = vst [vmem:[%s145 + $0x60] sm:$0xff] %v5858
      %6371 = vst [vmem:[%s145 + $0x68] sm:$0xff] %v5859
      %6372 = vst [vmem:[%s145 + $0x70] sm:$0xff] %v5860
      %6373 = vst [vmem:[%s145 + $0x78] sm:$0xff] %v5861
      %6374 = vst [vmem:[%s145 + $0x80] sm:$0xff] %v5862
      %6375 = vst [vmem:[%s145 + $0x88] sm:$0xff] %v5863
      %6376 = vst [vmem:[%s145 + $0x90] sm:$0xff] %v5864
      %6377 = vst [vmem:[%s145 + $0x98] sm:$0xff] %v5865
      %6378 = vst [vmem:[%s145 + $0xa0] sm:$0xff] %v5866
      %6379 = vst [vmem:[%s145 + $0xa8] sm:$0xff] %v5867
      %6380 = vst [vmem:[%s145 + $0xb0] sm:$0xff] %v5868
      %6381 = vst [vmem:[%s145 + $0xb8] sm:$0xff] %v5869
      %6382 = vst [vmem:[%s145 + $0xc0] sm:$0xff] %v5870
      %6383 = vst [vmem:[%s145 + $0xc8] sm:$0xff] %v5871
      %6384 = vst [vmem:[%s145 + $0xd0] sm:$0xff] %v5872
      %6385 = vst [vmem:[%s145 + $0xd8] sm:$0xff] %v5873
      %6386 = vst [vmem:[%s145 + $0xe0] sm:$0xff] %v5874
      %6387 = vst [vmem:[%s145 + $0xe8] sm:$0xff] %v5875
      %6388 = vst [vmem:[%s145 + $0xf0] sm:$0xff] %v5876
      %6389 = vst [vmem:[%s145 + $0xf8] sm:$0xff] %v5877
      %6390 = vst [vmem:[%s145 + $0x100] sm:$0xff] %v5878
      %6391 = vst [vmem:[%s145 + $0x108] sm:$0xff] %v5879
      %6392 = vst [vmem:[%s145 + $0x110] sm:$0xff] %v5880
      %6393 = vst [vmem:[%s145 + $0x118] sm:$0xff] %v5881
      %6394 = vst [vmem:[%s145 + $0x120] sm:$0xff] %v5882
      %6395 = vst [vmem:[%s145 + $0x128] sm:$0xff] %v5883
      %6396 = vst [vmem:[%s145 + $0x130] sm:$0xff] %v5884
      %6397 = vst [vmem:[%s145 + $0x138] sm:$0xff] %v5885
      %6398 = vst [vmem:[%s145 + $0x140] sm:$0xff] %v5886
      %6399 = vst [vmem:[%s145 + $0x148] sm:$0xff] %v5887
      %6400 = vst [vmem:[%s145 + $0x150] sm:$0xff] %v5888
      %6401 = vst [vmem:[%s145 + $0x158] sm:$0xff] %v5889
      %6402 = vst [vmem:[%s145 + $0x160] sm:$0xff] %v5890
      %6403 = vst [vmem:[%s145 + $0x168] sm:$0xff] %v5891
      %6404 = vst [vmem:[%s145 + $0x170] sm:$0xff] %v5892
      %6405 = vst [vmem:[%s145 + $0x178] sm:$0xff] %v5893
      %6406 = vst [vmem:[%s145 + $0x180] sm:$0xff] %v5894
      %6407 = vst [vmem:[%s145 + $0x188] sm:$0xff] %v5895
      %6408 = vst [vmem:[%s145 + $0x190] sm:$0xff] %v5896
      %6409 = vst [vmem:[%s145 + $0x198] sm:$0xff] %v5897
      %6410 = vst [vmem:[%s145 + $0x1a0] sm:$0xff] %v5898
      %6411 = vst [vmem:[%s145 + $0x1a8] sm:$0xff] %v5899
      %6412 = vst [vmem:[%s145 + $0x1b0] sm:$0xff] %v5900
      %6413 = vst [vmem:[%s145 + $0x1b8] sm:$0xff] %v5901
      %6414 = vst [vmem:[%s145 + $0x1c0] sm:$0xff] %v5902
      %6415 = vst [vmem:[%s145 + $0x1c8] sm:$0xff] %v5903
      %6416 = vst [vmem:[%s145 + $0x1d0] sm:$0xff] %v5904
      %6417 = vst [vmem:[%s145 + $0x1d8] sm:$0xff] %v5905
      %6418 = vst [vmem:[%s145 + $0x1e0] sm:$0xff] %v5906
      %6419 = vst [vmem:[%s145 + $0x1e8] sm:$0xff] %v5907
      %6420 = vst [vmem:[%s145 + $0x1f0] sm:$0xff] %v5908
      %6421 = vst [vmem:[%s145 + $0x1f8] sm:$0xff] %v5909
      %6422 = vst [vmem:[%s145 + $0x200] sm:$0xff] %v5910
      %6423 = vst [vmem:[%s145 + $0x208] sm:$0xff] %v5911
      %6424 = vst [vmem:[%s145 + $0x210] sm:$0xff] %v5912
      %6425 = vst [vmem:[%s145 + $0x218] sm:$0xff] %v5913
      %6426 = vst [vmem:[%s145 + $0x220] sm:$0xff] %v5914
      %6427 = vst [vmem:[%s145 + $0x228] sm:$0xff] %v5915
      %6428 = vst [vmem:[%s145 + $0x230] sm:$0xff] %v5916
      %6429 = vst [vmem:[%s145 + $0x238] sm:$0xff] %v5917
      %6430 = vst [vmem:[%s145 + $0x240] sm:$0xff] %v5918
      %6431 = vst [vmem:[%s145 + $0x248] sm:$0xff] %v5919
      %6432 = vst [vmem:[%s145 + $0x250] sm:$0xff] %v5920
      %6433 = vst [vmem:[%s145 + $0x258] sm:$0xff] %v5921
      %6434 = vst [vmem:[%s145 + $0x260] sm:$0xff] %v5922
      %6435 = vst [vmem:[%s145 + $0x268] sm:$0xff] %v5923
      %6436 = vst [vmem:[%s145 + $0x270] sm:$0xff] %v5924
      %6437 = vst [vmem:[%s145 + $0x278] sm:$0xff] %v5925
      %6438 = vst [vmem:[%s145 + $0x280] sm:$0xff] %v5926
      %6439 = vst [vmem:[%s145 + $0x288] sm:$0xff] %v5927
      %6440 = vst [vmem:[%s145 + $0x290] sm:$0xff] %v5928
      %6441 = vst [vmem:[%s145 + $0x298] sm:$0xff] %v5929
      %6442 = vst [vmem:[%s145 + $0x2a0] sm:$0xff] %v5930
      %6443 = vst [vmem:[%s145 + $0x2a8] sm:$0xff] %v5931
      %6444 = vst [vmem:[%s145 + $0x2b0] sm:$0xff] %v5932
      %6445 = vst [vmem:[%s145 + $0x2b8] sm:$0xff] %v5933
      %6446 = vst [vmem:[%s145 + $0x2c0] sm:$0xff] %v5934
      %6447 = vst [vmem:[%s145 + $0x2c8] sm:$0xff] %v5935
      %6448 = vst [vmem:[%s145 + $0x2d0] sm:$0xff] %v5936
      %6449 = vst [vmem:[%s145 + $0x2d8] sm:$0xff] %v5937
      %6450 = vst [vmem:[%s145 + $0x2e0] sm:$0xff] %v5938
      %6451 = vst [vmem:[%s145 + $0x2e8] sm:$0xff] %v5939
      %6452 = vst [vmem:[%s145 + $0x2f0] sm:$0xff] %v5940
      %6453 = vst [vmem:[%s145 + $0x2f8] sm:$0xff] %v5941
      %6454 = vst [vmem:[%s145 + $0x300] sm:$0xff] %v5942
      %6455 = vst [vmem:[%s145 + $0x308] sm:$0xff] %v5943
      %6456 = vst [vmem:[%s145 + $0x310] sm:$0xff] %v5944
      %6457 = vst [vmem:[%s145 + $0x318] sm:$0xff] %v5945
      %6458 = vst [vmem:[%s145 + $0x320] sm:$0xff] %v5946
      %6459 = vst [vmem:[%s145 + $0x328] sm:$0xff] %v5947
      %6460 = vst [vmem:[%s145 + $0x330] sm:$0xff] %v5948
      %6461 = vst [vmem:[%s145 + $0x338] sm:$0xff] %v5949
      %6462 = vst [vmem:[%s145 + $0x340] sm:$0xff] %v5950
      %6463 = vst [vmem:[%s145 + $0x348] sm:$0xff] %v5951
      %6464 = vst [vmem:[%s145 + $0x350] sm:$0xff] %v5952
      %6465 = vst [vmem:[%s145 + $0x358] sm:$0xff] %v5953
      %6466 = vst [vmem:[%s145 + $0x360] sm:$0xff] %v5954
      %6467 = vst [vmem:[%s145 + $0x368] sm:$0xff] %v5955
      %6468 = vst [vmem:[%s145 + $0x370] sm:$0xff] %v5956
      %6469 = vst [vmem:[%s145 + $0x378] sm:$0xff] %v5957
      %6470 = vst [vmem:[%s145 + $0x380] sm:$0xff] %v5958
      %6471 = vst [vmem:[%s145 + $0x388] sm:$0xff] %v5959
      %6472 = vst [vmem:[%s145 + $0x390] sm:$0xff] %v5960
      %6473 = vst [vmem:[%s145 + $0x398] sm:$0xff] %v5961
      %6474 = vst [vmem:[%s145 + $0x3a0] sm:$0xff] %v5962
      %6475 = vst [vmem:[%s145 + $0x3a8] sm:$0xff] %v5963
      %6476 = vst [vmem:[%s145 + $0x3b0] sm:$0xff] %v5964
      %6477 = vst [vmem:[%s145 + $0x3b8] sm:$0xff] %v5965
      %6478 = vst [vmem:[%s145 + $0x3c0] sm:$0xff] %v5966
      %6479 = vst [vmem:[%s145 + $0x3c8] sm:$0xff] %v5967
      %6480 = vst [vmem:[%s145 + $0x3d0] sm:$0xff] %v5968
      %6481 = vst [vmem:[%s145 + $0x3d8] sm:$0xff] %v5969
      %6482 = vst [vmem:[%s145 + $0x3e0] sm:$0xff] %v5970
      %6483 = vst [vmem:[%s145 + $0x3e8] sm:$0xff] %v5971
      %6484 = vst [vmem:[%s145 + $0x3f0] sm:$0xff] %v5972
      %6485 = vst [vmem:[%s145 + $0x3f8] sm:$0xff] %v5973
      %6486 = vst [vmem:[%s145 + $0x400] sm:$0xff] %v5974
      %6487 = vst [vmem:[%s145 + $0x408] sm:$0xff] %v5975
      %6488 = vst [vmem:[%s145 + $0x410] sm:$0xff] %v5976
      %6489 = vst [vmem:[%s145 + $0x418] sm:$0xff] %v5977
      %6490 = vst [vmem:[%s145 + $0x420] sm:$0xff] %v5978
      %6491 = vst [vmem:[%s145 + $0x428] sm:$0xff] %v5979
      %6492 = vst [vmem:[%s145 + $0x430] sm:$0xff] %v5980
      %6493 = vst [vmem:[%s145 + $0x438] sm:$0xff] %v5981
      %6494 = vst [vmem:[%s145 + $0x440] sm:$0xff] %v5982
      %6495 = vst [vmem:[%s145 + $0x448] sm:$0xff] %v5983
      %6496 = vst [vmem:[%s145 + $0x450] sm:$0xff] %v5984
      %6497 = vst [vmem:[%s145 + $0x458] sm:$0xff] %v5985
      %6498 = vst [vmem:[%s145 + $0x460] sm:$0xff] %v5986
      %6499 = vst [vmem:[%s145 + $0x468] sm:$0xff] %v5987
      %6500 = vst [vmem:[%s145 + $0x470] sm:$0xff] %v5988
      %6501 = vst [vmem:[%s145 + $0x478] sm:$0xff] %v5989
      %6502 = vst [vmem:[%s145 + $0x480] sm:$0xff] %v5990
      %6503 = vst [vmem:[%s145 + $0x488] sm:$0xff] %v5991
      %6504 = vst [vmem:[%s145 + $0x490] sm:$0xff] %v5992
      %6505 = vst [vmem:[%s145 + $0x498] sm:$0xff] %v5993
      %6506 = vst [vmem:[%s145 + $0x4a0] sm:$0xff] %v5994
      %6507 = vst [vmem:[%s145 + $0x4a8] sm:$0xff] %v5995
      %6508 = vst [vmem:[%s145 + $0x4b0] sm:$0xff] %v5996
      %6509 = vst [vmem:[%s145 + $0x4b8] sm:$0xff] %v5997
      %6510 = vst [vmem:[%s145 + $0x4c0] sm:$0xff] %v5998
      %6511 = vst [vmem:[%s145 + $0x4c8] sm:$0xff] %v5999
      %6512 = vst [vmem:[%s145 + $0x4d0] sm:$0xff] %v6000
      %6513 = vst [vmem:[%s145 + $0x4d8] sm:$0xff] %v6001
      %6514 = vst [vmem:[%s145 + $0x4e0] sm:$0xff] %v6002
      %6515 = vst [vmem:[%s145 + $0x4e8] sm:$0xff] %v6003
      %6516 = vst [vmem:[%s145 + $0x4f0] sm:$0xff] %v6004
      %6517 = vst [vmem:[%s145 + $0x4f8] sm:$0xff] %v6005
      %6518 = vst [vmem:[%s145 + $0x500] sm:$0xff] %v6006
      %6519 = vst [vmem:[%s145 + $0x508] sm:$0xff] %v6007
      %6520 = vst [vmem:[%s145 + $0x510] sm:$0xff] %v6008
      %6521 = vst [vmem:[%s145 + $0x518] sm:$0xff] %v6009
      %6522 = vst [vmem:[%s145 + $0x520] sm:$0xff] %v6010
      %6523 = vst [vmem:[%s145 + $0x528] sm:$0xff] %v6011
      %6524 = vst [vmem:[%s145 + $0x530] sm:$0xff] %v6012
      %6525 = vst [vmem:[%s145 + $0x538] sm:$0xff] %v6013
      %6526 = vst [vmem:[%s145 + $0x540] sm:$0xff] %v6014
      %6527 = vst [vmem:[%s145 + $0x548] sm:$0xff] %v6015
      %6528 = vst [vmem:[%s145 + $0x550] sm:$0xff] %v6016
      %6529 = vst [vmem:[%s145 + $0x558] sm:$0xff] %v6017
      %6530 = vst [vmem:[%s145 + $0x560] sm:$0xff] %v6018
      %6531 = vst [vmem:[%s145 + $0x568] sm:$0xff] %v6019
      %6532 = vst [vmem:[%s145 + $0x570] sm:$0xff] %v6020
      %6533 = vst [vmem:[%s145 + $0x578] sm:$0xff] %v6021
      %6534 = vst [vmem:[%s145 + $0x580] sm:$0xff] %v6022
      %6535 = vst [vmem:[%s145 + $0x588] sm:$0xff] %v6023
      %6536 = vst [vmem:[%s145 + $0x590] sm:$0xff] %v6024
      %6537 = vst [vmem:[%s145 + $0x598] sm:$0xff] %v6025
      %6538 = vst [vmem:[%s145 + $0x5a0] sm:$0xff] %v6026
      %6539 = vst [vmem:[%s145 + $0x5a8] sm:$0xff] %v6027
      %6540 = vst [vmem:[%s145 + $0x5b0] sm:$0xff] %v6028
      %6541 = vst [vmem:[%s145 + $0x5b8] sm:$0xff] %v6029
      %6542 = vst [vmem:[%s145 + $0x5c0] sm:$0xff] %v6030
      %6543 = vst [vmem:[%s145 + $0x5c8] sm:$0xff] %v6031
      %6544 = vst [vmem:[%s145 + $0x5d0] sm:$0xff] %v6032
      %6545 = vst [vmem:[%s145 + $0x5d8] sm:$0xff] %v6033
      %6546 = vst [vmem:[%s145 + $0x5e0] sm:$0xff] %v6034
      %6547 = vst [vmem:[%s145 + $0x5e8] sm:$0xff] %v6035
      %6548 = vst [vmem:[%s145 + $0x5f0] sm:$0xff] %v6036
      %6549 = vst [vmem:[%s145 + $0x5f8] sm:$0xff] %v6037
      %6550 = vst [vmem:[%s145 + $0x600] sm:$0xff] %v6038
      %6551 = vst [vmem:[%s145 + $0x608] sm:$0xff] %v6039
      %6552 = vst [vmem:[%s145 + $0x610] sm:$0xff] %v6040
      %6553 = vst [vmem:[%s145 + $0x618] sm:$0xff] %v6041
      %6554 = vst [vmem:[%s145 + $0x620] sm:$0xff] %v6042
      %6555 = vst [vmem:[%s145 + $0x628] sm:$0xff] %v6043
      %6556 = vst [vmem:[%s145 + $0x630] sm:$0xff] %v6044
      %6557 = vst [vmem:[%s145 + $0x638] sm:$0xff] %v6045
      %6558 = vst [vmem:[%s145 + $0x640] sm:$0xff] %v6046
      %6559 = vst [vmem:[%s145 + $0x648] sm:$0xff] %v6047
      %6560 = vst [vmem:[%s145 + $0x650] sm:$0xff] %v6048
      %6561 = vst [vmem:[%s145 + $0x658] sm:$0xff] %v6049
      %6562 = vst [vmem:[%s145 + $0x660] sm:$0xff] %v6050
      %6563 = vst [vmem:[%s145 + $0x668] sm:$0xff] %v6051
      %6564 = vst [vmem:[%s145 + $0x670] sm:$0xff] %v6052
      %6565 = vst [vmem:[%s145 + $0x678] sm:$0xff] %v6053
      %6566 = vst [vmem:[%s145 + $0x680] sm:$0xff] %v6054
      %6567 = vst [vmem:[%s145 + $0x688] sm:$0xff] %v6055
      %6568 = vst [vmem:[%s145 + $0x690] sm:$0xff] %v6056
      %6569 = vst [vmem:[%s145 + $0x698] sm:$0xff] %v6057
      %6570 = vst [vmem:[%s145 + $0x6a0] sm:$0xff] %v6058
      %6571 = vst [vmem:[%s145 + $0x6a8] sm:$0xff] %v6059
      %6572 = vst [vmem:[%s145 + $0x6b0] sm:$0xff] %v6060
      %6573 = vst [vmem:[%s145 + $0x6b8] sm:$0xff] %v6061
      %6574 = vst [vmem:[%s145 + $0x6c0] sm:$0xff] %v6062
      %6575 = vst [vmem:[%s145 + $0x6c8] sm:$0xff] %v6063
      %6576 = vst [vmem:[%s145 + $0x6d0] sm:$0xff] %v6064
      %6577 = vst [vmem:[%s145 + $0x6d8] sm:$0xff] %v6065
      %6578 = vst [vmem:[%s145 + $0x6e0] sm:$0xff] %v6066
      %6579 = vst [vmem:[%s145 + $0x6e8] sm:$0xff] %v6067
      %6580 = vst [vmem:[%s145 + $0x6f0] sm:$0xff] %v6068
      %6581 = vst [vmem:[%s145 + $0x6f8] sm:$0xff] %v6069
      %6582 = vst [vmem:[%s145 + $0x700] sm:$0xff] %v6070
      %6583 = vst [vmem:[%s145 + $0x708] sm:$0xff] %v6071
      %6584 = vst [vmem:[%s145 + $0x710] sm:$0xff] %v6072
      %6585 = vst [vmem:[%s145 + $0x718] sm:$0xff] %v6073
      %6586 = vst [vmem:[%s145 + $0x720] sm:$0xff] %v6074
      %6587 = vst [vmem:[%s145 + $0x728] sm:$0xff] %v6075
      %6588 = vst [vmem:[%s145 + $0x730] sm:$0xff] %v6076
      %6589 = vst [vmem:[%s145 + $0x738] sm:$0xff] %v6077
      %6590 = vst [vmem:[%s145 + $0x740] sm:$0xff] %v6078
      %6591 = vst [vmem:[%s145 + $0x748] sm:$0xff] %v6079
      %6592 = vst [vmem:[%s145 + $0x750] sm:$0xff] %v6080
      %6593 = vst [vmem:[%s145 + $0x758] sm:$0xff] %v6081
      %6594 = vst [vmem:[%s145 + $0x760] sm:$0xff] %v6082
      %6595 = vst [vmem:[%s145 + $0x768] sm:$0xff] %v6083
      %6596 = vst [vmem:[%s145 + $0x770] sm:$0xff] %v6084
      %6597 = vst [vmem:[%s145 + $0x778] sm:$0xff] %v6085
      %6598 = vst [vmem:[%s145 + $0x780] sm:$0xff] %v6086
      %6599 = vst [vmem:[%s145 + $0x788] sm:$0xff] %v6087
      %6600 = vst [vmem:[%s145 + $0x790] sm:$0xff] %v6088
      %6601 = vst [vmem:[%s145 + $0x798] sm:$0xff] %v6089
      %6602 = vst [vmem:[%s145 + $0x7a0] sm:$0xff] %v6090
      %6603 = vst [vmem:[%s145 + $0x7a8] sm:$0xff] %v6091
      %6604 = vst [vmem:[%s145 + $0x7b0] sm:$0xff] %v6092
      %6605 = vst [vmem:[%s145 + $0x7b8] sm:$0xff] %v6093
      %6606 = vst [vmem:[%s145 + $0x7c0] sm:$0xff] %v6094
      %6607 = vst [vmem:[%s145 + $0x7c8] sm:$0xff] %v6095
      %6608 = vst [vmem:[%s145 + $0x7d0] sm:$0xff] %v6096
      %6609 = vst [vmem:[%s145 + $0x7d8] sm:$0xff] %v6097
      %6610 = vst [vmem:[%s145 + $0x7e0] sm:$0xff] %v6098
      %6611 = vst [vmem:[%s145 + $0x7e8] sm:$0xff] %v6099
      %6612 = vst [vmem:[%s145 + $0x7f0] sm:$0xff] %v6100
      %6613 = vst [vmem:[%s145 + $0x7f8] sm:$0xff] %v6101
      %6614 = vst [vmem:[%s145 + $0x800] sm:$0xff] %v6102
      %6615 = vst [vmem:[%s145 + $0x808] sm:$0xff] %v6103
      %6616 = vst [vmem:[%s145 + $0x810] sm:$0xff] %v6104
      %6617 = vst [vmem:[%s145 + $0x818] sm:$0xff] %v6105
      %6618 = vst [vmem:[%s145 + $0x820] sm:$0xff] %v6106
      %6619 = vst [vmem:[%s145 + $0x828] sm:$0xff] %v6107
      %6620 = vst [vmem:[%s145 + $0x830] sm:$0xff] %v6108
      %6621 = vst [vmem:[%s145 + $0x838] sm:$0xff] %v6109
      %6622 = vst [vmem:[%s145 + $0x840] sm:$0xff] %v6110
      %6623 = vst [vmem:[%s145 + $0x848] sm:$0xff] %v6111
      %6624 = vst [vmem:[%s145 + $0x850] sm:$0xff] %v6112
      %6625 = vst [vmem:[%s145 + $0x858] sm:$0xff] %v6113
      %6626 = vst [vmem:[%s145 + $0x860] sm:$0xff] %v6114
      %6627 = vst [vmem:[%s145 + $0x868] sm:$0xff] %v6115
      %6628 = vst [vmem:[%s145 + $0x870] sm:$0xff] %v6116
      %6629 = vst [vmem:[%s145 + $0x878] sm:$0xff] %v6117
      %6630 = vst [vmem:[%s145 + $0x880] sm:$0xff] %v6118
      %6631 = vst [vmem:[%s145 + $0x888] sm:$0xff] %v6119
      %6632 = vst [vmem:[%s145 + $0x890] sm:$0xff] %v6120
      %6633 = vst [vmem:[%s145 + $0x898] sm:$0xff] %v6121
      %6634 = vst [vmem:[%s145 + $0x8a0] sm:$0xff] %v6122
      %6635 = vst [vmem:[%s145 + $0x8a8] sm:$0xff] %v6123
      %6636 = vst [vmem:[%s145 + $0x8b0] sm:$0xff] %v6124
      %6637 = vst [vmem:[%s145 + $0x8b8] sm:$0xff] %v6125
      %6638 = vst [vmem:[%s145 + $0x8c0] sm:$0xff] %v6126
      %6639 = vst [vmem:[%s145 + $0x8c8] sm:$0xff] %v6127
      %6640 = vst [vmem:[%s145 + $0x8d0] sm:$0xff] %v6128
      %6641 = vst [vmem:[%s145 + $0x8d8] sm:$0xff] %v6129
      %6642 = vst [vmem:[%s145 + $0x8e0] sm:$0xff] %v6130
      %6643 = vst [vmem:[%s145 + $0x8e8] sm:$0xff] %v6131
      %6644 = vst [vmem:[%s145 + $0x8f0] sm:$0xff] %v6132
      %6645 = vst [vmem:[%s145 + $0x8f8] sm:$0xff] %v6133
      %6646 = vst [vmem:[%s145 + $0x900] sm:$0xff] %v6134
      %6647 = vst [vmem:[%s145 + $0x908] sm:$0xff] %v6135
      %6648 = vst [vmem:[%s145 + $0x910] sm:$0xff] %v6136
      %6649 = vst [vmem:[%s145 + $0x918] sm:$0xff] %v6137
      %6650 = vst [vmem:[%s145 + $0x920] sm:$0xff] %v6138
      %6651 = vst [vmem:[%s145 + $0x928] sm:$0xff] %v6139
      %6652 = vst [vmem:[%s145 + $0x930] sm:$0xff] %v6140
      %6653 = vst [vmem:[%s145 + $0x938] sm:$0xff] %v6141
      %6654 = vst [vmem:[%s145 + $0x940] sm:$0xff] %v6142
      %6655 = vst [vmem:[%s145 + $0x948] sm:$0xff] %v6143
      %6656 = vst [vmem:[%s145 + $0x950] sm:$0xff] %v6144
      %6657 = vst [vmem:[%s145 + $0x958] sm:$0xff] %v6145
      %6658 = vst [vmem:[%s145 + $0x960] sm:$0xff] %v6146
      %6659 = vst [vmem:[%s145 + $0x968] sm:$0xff] %v6147
      %6660 = vst [vmem:[%s145 + $0x970] sm:$0xff] %v6148
      %6661 = vst [vmem:[%s145 + $0x978] sm:$0xff] %v6149
      %6662 = vst [vmem:[%s145 + $0x980] sm:$0xff] %v6150
      %6663 = vst [vmem:[%s145 + $0x988] sm:$0xff] %v6151
      %6664 = vst [vmem:[%s145 + $0x990] sm:$0xff] %v6152
      %6665 = vst [vmem:[%s145 + $0x998] sm:$0xff] %v6153
      %6666 = vst [vmem:[%s145 + $0x9a0] sm:$0xff] %v6154
      %6667 = vst [vmem:[%s145 + $0x9a8] sm:$0xff] %v6155
      %6668 = vst [vmem:[%s145 + $0x9b0] sm:$0xff] %v6156
      %6669 = vst [vmem:[%s145 + $0x9b8] sm:$0xff] %v6157
      %6670 = vst [vmem:[%s145 + $0x9c0] sm:$0xff] %v6158
      %6671 = vst [vmem:[%s145 + $0x9c8] sm:$0xff] %v6159
      %6672 = vst [vmem:[%s145 + $0x9d0] sm:$0xff] %v6160
      %6673 = vst [vmem:[%s145 + $0x9d8] sm:$0xff] %v6161
      %6674 = vst [vmem:[%s145 + $0x9e0] sm:$0xff] %v6162
      %6675 = vst [vmem:[%s145 + $0x9e8] sm:$0xff] %v6163
      %6676 = vst [vmem:[%s145 + $0x9f0] sm:$0xff] %v6164
      %6677 = vst [vmem:[%s145 + $0x9f8] sm:$0xff] %v6165
      %6678 = vst [vmem:[%s145 + $0xa00] sm:$0xff] %v6166
      %6679 = vst [vmem:[%s145 + $0xa08] sm:$0xff] %v6167
      %6680 = vst [vmem:[%s145 + $0xa10] sm:$0xff] %v6168
      %6681 = vst [vmem:[%s145 + $0xa18] sm:$0xff] %v6169
      %6682 = vst [vmem:[%s145 + $0xa20] sm:$0xff] %v6170
      %6683 = vst [vmem:[%s145 + $0xa28] sm:$0xff] %v6171
      %6684 = vst [vmem:[%s145 + $0xa30] sm:$0xff] %v6172
      %6685 = vst [vmem:[%s145 + $0xa38] sm:$0xff] %v6173
      %6686 = vst [vmem:[%s145 + $0xa40] sm:$0xff] %v6174
      %6687 = vst [vmem:[%s145 + $0xa48] sm:$0xff] %v6175
      %6688 = vst [vmem:[%s145 + $0xa50] sm:$0xff] %v6176
      %6689 = vst [vmem:[%s145 + $0xa58] sm:$0xff] %v6177
      %6690 = vst [vmem:[%s145 + $0xa60] sm:$0xff] %v6178
      %6691 = vst [vmem:[%s145 + $0xa68] sm:$0xff] %v6179
      %6692 = vst [vmem:[%s145 + $0xa70] sm:$0xff] %v6180
      %6693 = vst [vmem:[%s145 + $0xa78] sm:$0xff] %v6181
      %6694 = vst [vmem:[%s145 + $0xa80] sm:$0xff] %v6182
      %6695 = vst [vmem:[%s145 + $0xa88] sm:$0xff] %v6183
      %6696 = vst [vmem:[%s145 + $0xa90] sm:$0xff] %v6184
      %6697 = vst [vmem:[%s145 + $0xa98] sm:$0xff] %v6185
      %6698 = vst [vmem:[%s145 + $0xaa0] sm:$0xff] %v6186
      %6699 = vst [vmem:[%s145 + $0xaa8] sm:$0xff] %v6187
      %6700 = vst [vmem:[%s145 + $0xab0] sm:$0xff] %v6188
      %6701 = vst [vmem:[%s145 + $0xab8] sm:$0xff] %v6189
      %6702 = vst [vmem:[%s145 + $0xac0] sm:$0xff] %v6190
      %6703 = vst [vmem:[%s145 + $0xac8] sm:$0xff] %v6191
      %6704 = vst [vmem:[%s145 + $0xad0] sm:$0xff] %v6192
      %6705 = vst [vmem:[%s145 + $0xad8] sm:$0xff] %v6193
      %6706 = vst [vmem:[%s145 + $0xae0] sm:$0xff] %v6194
      %6707 = vst [vmem:[%s145 + $0xae8] sm:$0xff] %v6195
      %6708 = vst [vmem:[%s145 + $0xaf0] sm:$0xff] %v6196
      %6709 = vst [vmem:[%s145 + $0xaf8] sm:$0xff] %v6197
      %6710 = vst [vmem:[%s145 + $0xb00] sm:$0xff] %v6198
      %6711 = vst [vmem:[%s145 + $0xb08] sm:$0xff] %v6199
      %6712 = vst [vmem:[%s145 + $0xb10] sm:$0xff] %v6200
      %6713 = vst [vmem:[%s145 + $0xb18] sm:$0xff] %v6201
      %6714 = vst [vmem:[%s145 + $0xb20] sm:$0xff] %v6202
      %6715 = vst [vmem:[%s145 + $0xb28] sm:$0xff] %v6203
      %6716 = vst [vmem:[%s145 + $0xb30] sm:$0xff] %v6204
      %6717 = vst [vmem:[%s145 + $0xb38] sm:$0xff] %v6205
      %6718 = vst [vmem:[%s145 + $0xb40] sm:$0xff] %v6206
      %6719 = vst [vmem:[%s145 + $0xb48] sm:$0xff] %v6207
      %6720 = vst [vmem:[%s145 + $0xb50] sm:$0xff] %v6208
      %6721 = vst [vmem:[%s145 + $0xb58] sm:$0xff] %v6209
      %6722 = vst [vmem:[%s145 + $0xb60] sm:$0xff] %v6210
      %6723 = vst [vmem:[%s145 + $0xb68] sm:$0xff] %v6211
      %6724 = vst [vmem:[%s145 + $0xb70] sm:$0xff] %v6212
      %6725 = vst [vmem:[%s145 + $0xb78] sm:$0xff] %v6213
      %6726 = vst [vmem:[%s145 + $0xb80] sm:$0xff] %v6214
      %6727 = vst [vmem:[%s145 + $0xb88] sm:$0xff] %v6215
      %6728 = vst [vmem:[%s145 + $0xb90] sm:$0xff] %v6216
      %6729 = vst [vmem:[%s145 + $0xb98] sm:$0xff] %v6217
      %6730 = vst [vmem:[%s145 + $0xba0] sm:$0xff] %v6218
      %6731 = vst [vmem:[%s145 + $0xba8] sm:$0xff] %v6219
      %6732 = vst [vmem:[%s145 + $0xbb0] sm:$0xff] %v6220
      %6733 = vst [vmem:[%s145 + $0xbb8] sm:$0xff] %v6221
      %6734 = vst [vmem:[%s145 + $0xbc0] sm:$0xff] %v6222
      %6735 = vst [vmem:[%s145 + $0xbc8] sm:$0xff] %v6223
      %6736 = vst [vmem:[%s145 + $0xbd0] sm:$0xff] %v6224
      %6737 = vst [vmem:[%s145 + $0xbd8] sm:$0xff] %v6225
      %6738 = vst [vmem:[%s145 + $0xbe0] sm:$0xff] %v6226
      %6739 = vst [vmem:[%s145 + $0xbe8] sm:$0xff] %v6227
      %6740 = vst [vmem:[%s145 + $0xbf0] sm:$0xff] %v6228
      %6741 = vst [vmem:[%s145 + $0xbf8] sm:$0xff] %v6229
      %6742 = vst [vmem:[%s145 + $0xc00] sm:$0xff] %v6230
      %6743 = vst [vmem:[%s145 + $0xc08] sm:$0xff] %v6231
      %6744 = vst [vmem:[%s145 + $0xc10] sm:$0xff] %v6232
      %6745 = vst [vmem:[%s145 + $0xc18] sm:$0xff] %v6233
      %6746 = vst [vmem:[%s145 + $0xc20] sm:$0xff] %v6234
      %6747 = vst [vmem:[%s145 + $0xc28] sm:$0xff] %v6235
      %6748 = vst [vmem:[%s145 + $0xc30] sm:$0xff] %v6236
      %6749 = vst [vmem:[%s145 + $0xc38] sm:$0xff] %v6237
      %6750 = vst [vmem:[%s145 + $0xc40] sm:$0xff] %v6238
      %6751 = vst [vmem:[%s145 + $0xc48] sm:$0xff] %v6239
      %6752 = vst [vmem:[%s145 + $0xc50] sm:$0xff] %v6240
      %6753 = vst [vmem:[%s145 + $0xc58] sm:$0xff] %v6241
      %6754 = vst [vmem:[%s145 + $0xc60] sm:$0xff] %v6242
      %6755 = vst [vmem:[%s145 + $0xc68] sm:$0xff] %v6243
      %6756 = vst [vmem:[%s145 + $0xc70] sm:$0xff] %v6244
      %6757 = vst [vmem:[%s145 + $0xc78] sm:$0xff] %v6245
      %6758 = vst [vmem:[%s145 + $0xc80] sm:$0xff] %v6246
      %6759 = vst [vmem:[%s145 + $0xc88] sm:$0xff] %v6247
      %6760 = vst [vmem:[%s145 + $0xc90] sm:$0xff] %v6248
      %6761 = vst [vmem:[%s145 + $0xc98] sm:$0xff] %v6249
      %6762 = vst [vmem:[%s145 + $0xca0] sm:$0xff] %v6250
      %6763 = vst [vmem:[%s145 + $0xca8] sm:$0xff] %v6251
      %6764 = vst [vmem:[%s145 + $0xcb0] sm:$0xff] %v6252
      %6765 = vst [vmem:[%s145 + $0xcb8] sm:$0xff] %v6253
      %6766 = vst [vmem:[%s145 + $0xcc0] sm:$0xff] %v6254
      %6767 = vst [vmem:[%s145 + $0xcc8] sm:$0xff] %v6255
      %6768 = vst [vmem:[%s145 + $0xcd0] sm:$0xff] %v6256
      %6769 = vst [vmem:[%s145 + $0xcd8] sm:$0xff] %v6257
      %6770 = vst [vmem:[%s145 + $0xce0] sm:$0xff] %v6258
      %6771 = vst [vmem:[%s145 + $0xce8] sm:$0xff] %v6259
      %6772 = vst [vmem:[%s145 + $0xcf0] sm:$0xff] %v6260
      %6773 = vst [vmem:[%s145 + $0xcf8] sm:$0xff] %v6261
      %6774 = vst [vmem:[%s145 + $0xd00] sm:$0xff] %v6262
      %6775 = vst [vmem:[%s145 + $0xd08] sm:$0xff] %v6263
      %6776 = vst [vmem:[%s145 + $0xd10] sm:$0xff] %v6264
      %6777 = vst [vmem:[%s145 + $0xd18] sm:$0xff] %v6265
      %6778 = vst [vmem:[%s145 + $0xd20] sm:$0xff] %v6266
      %6779 = vst [vmem:[%s145 + $0xd28] sm:$0xff] %v6267
      %6780 = vst [vmem:[%s145 + $0xd30] sm:$0xff] %v6268
      %6781 = vst [vmem:[%s145 + $0xd38] sm:$0xff] %v6269
      %6782 = vst [vmem:[%s145 + $0xd40] sm:$0xff] %v6270
      %6783 = vst [vmem:[%s145 + $0xd48] sm:$0xff] %v6271
      %6784 = vst [vmem:[%s145 + $0xd50] sm:$0xff] %v6272
      %6785 = vst [vmem:[%s145 + $0xd58] sm:$0xff] %v6273
      %6786 = vst [vmem:[%s145 + $0xd60] sm:$0xff] %v6274
      %6787 = vst [vmem:[%s145 + $0xd68] sm:$0xff] %v6275
      %6788 = vst [vmem:[%s145 + $0xd70] sm:$0xff] %v6276
      %6789 = vst [vmem:[%s145 + $0xd78] sm:$0xff] %v6277
      %6790 = vst [vmem:[%s145 + $0xd80] sm:$0xff] %v6278
      %6791 = vst [vmem:[%s145 + $0xd88] sm:$0xff] %v6279
      %6792 = vst [vmem:[%s145 + $0xd90] sm:$0xff] %v6280
      %6793 = vst [vmem:[%s145 + $0xd98] sm:$0xff] %v6281
      %6794 = vst [vmem:[%s145 + $0xda0] sm:$0xff] %v6282
      %6795 = vst [vmem:[%s145 + $0xda8] sm:$0xff] %v6283
      %6796 = vst [vmem:[%s145 + $0xdb0] sm:$0xff] %v6284
      %6797 = vst [vmem:[%s145 + $0xdb8] sm:$0xff] %v6285
      %6798 = vst [vmem:[%s145 + $0xdc0] sm:$0xff] %v6286
      %6799 = vst [vmem:[%s145 + $0xdc8] sm:$0xff] %v6287
      %6800 = vst [vmem:[%s145 + $0xdd0] sm:$0xff] %v6288
      %6801 = vst [vmem:[%s145 + $0xdd8] sm:$0xff] %v6289
      %6802 = vst [vmem:[%s145 + $0xde0] sm:$0xff] %v6290
      %6803 = vst [vmem:[%s145 + $0xde8] sm:$0xff] %v6291
      %6804 = vst [vmem:[%s145 + $0xdf0] sm:$0xff] %v6292
      %6805 = vst [vmem:[%s145 + $0xdf8] sm:$0xff] %v6293
      %6806 = vst [vmem:[%s145 + $0xe00] sm:$0xff] %v6294
      %6807 = vst [vmem:[%s145 + $0xe08] sm:$0xff] %v6295
      %6808 = vst [vmem:[%s145 + $0xe10] sm:$0xff] %v6296
      %6809 = vst [vmem:[%s145 + $0xe18] sm:$0xff] %v6297
      %6810 = vst [vmem:[%s145 + $0xe20] sm:$0xff] %v6298
      %6811 = vst [vmem:[%s145 + $0xe28] sm:$0xff] %v6299
      %6812 = vst [vmem:[%s145 + $0xe30] sm:$0xff] %v6300
      %6813 = vst [vmem:[%s145 + $0xe38] sm:$0xff] %v6301
      %6814 = vst [vmem:[%s145 + $0xe40] sm:$0xff] %v6302
      %6815 = vst [vmem:[%s145 + $0xe48] sm:$0xff] %v6303
      %6816 = vst [vmem:[%s145 + $0xe50] sm:$0xff] %v6304
      %6817 = vst [vmem:[%s145 + $0xe58] sm:$0xff] %v6305
      %6818 = vst [vmem:[%s145 + $0xe60] sm:$0xff] %v6306
      %6819 = vst [vmem:[%s145 + $0xe68] sm:$0xff] %v6307
      %6820 = vst [vmem:[%s145 + $0xe70] sm:$0xff] %v6308
      %6821 = vst [vmem:[%s145 + $0xe78] sm:$0xff] %v6309
      %6822 = vst [vmem:[%s145 + $0xe80] sm:$0xff] %v6310
      %6823 = vst [vmem:[%s145 + $0xe88] sm:$0xff] %v6311
      %6824 = vst [vmem:[%s145 + $0xe90] sm:$0xff] %v6312
      %6825 = vst [vmem:[%s145 + $0xe98] sm:$0xff] %v6313
      %6826 = vst [vmem:[%s145 + $0xea0] sm:$0xff] %v6314
      %6827 = vst [vmem:[%s145 + $0xea8] sm:$0xff] %v6315
      %6828 = vst [vmem:[%s145 + $0xeb0] sm:$0xff] %v6316
      %6829 = vst [vmem:[%s145 + $0xeb8] sm:$0xff] %v6317
      %6830 = vst [vmem:[%s145 + $0xec0] sm:$0xff] %v6318
      %6831 = vst [vmem:[%s145 + $0xec8] sm:$0xff] %v6319
      %6832 = vst [vmem:[%s145 + $0xed0] sm:$0xff] %v6320
      %6833 = vst [vmem:[%s145 + $0xed8] sm:$0xff] %v6321
      %6834 = vst [vmem:[%s145 + $0xee0] sm:$0xff] %v6322
      %6835 = vst [vmem:[%s145 + $0xee8] sm:$0xff] %v6323
      %6836 = vst [vmem:[%s145 + $0xef0] sm:$0xff] %v6324
      %6837 = vst [vmem:[%s145 + $0xef8] sm:$0xff] %v6325
      %6838 = vst [vmem:[%s145 + $0xf00] sm:$0xff] %v6326
      %6839 = vst [vmem:[%s145 + $0xf08] sm:$0xff] %v6327
      %6840 = vst [vmem:[%s145 + $0xf10] sm:$0xff] %v6328
      %6841 = vst [vmem:[%s145 + $0xf18] sm:$0xff] %v6329
      %6842 = vst [vmem:[%s145 + $0xf20] sm:$0xff] %v6330
      %6843 = vst [vmem:[%s145 + $0xf28] sm:$0xff] %v6331
      %6844 = vst [vmem:[%s145 + $0xf30] sm:$0xff] %v6332
      %6845 = vst [vmem:[%s145 + $0xf38] sm:$0xff] %v6333
      %6846 = vst [vmem:[%s145 + $0xf40] sm:$0xff] %v6334
      %6847 = vst [vmem:[%s145 + $0xf48] sm:$0xff] %v6335
      %6848 = vst [vmem:[%s145 + $0xf50] sm:$0xff] %v6336
      %6849 = vst [vmem:[%s145 + $0xf58] sm:$0xff] %v6337
      %6850 = vst [vmem:[%s145 + $0xf60] sm:$0xff] %v6338
      %6851 = vst [vmem:[%s145 + $0xf68] sm:$0xff] %v6339
      %6852 = vst [vmem:[%s145 + $0xf70] sm:$0xff] %v6340
      %6853 = vst [vmem:[%s145 + $0xf78] sm:$0xff] %v6341
      %6854 = vst [vmem:[%s145 + $0xf80] sm:$0xff] %v6342
      %6855 = vst [vmem:[%s145 + $0xf88] sm:$0xff] %v6343
      %6856 = vst [vmem:[%s145 + $0xf90] sm:$0xff] %v6344
      %6857 = vst [vmem:[%s145 + $0xf98] sm:$0xff] %v6345
      %6858 = vst [vmem:[%s145 + $0xfa0] sm:$0xff] %v6346
      %6859 = vst [vmem:[%s145 + $0xfa8] sm:$0xff] %v6347
      %6860 = vst [vmem:[%s145 + $0xfb0] sm:$0xff] %v6348
      %6861 = vst [vmem:[%s145 + $0xfb8] sm:$0xff] %v6349
      %6862 = vst [vmem:[%s145 + $0xfc0] sm:$0xff] %v6350
      %6863 = vst [vmem:[%s145 + $0xfc8] sm:$0xff] %v6351
      %6864 = vst [vmem:[%s145 + $0xfd0] sm:$0xff] %v6352
      %6865 = vst [vmem:[%s145 + $0xfd8] sm:$0xff] %v6353
      %6866 = vst [vmem:[%s145 + $0xfe0] sm:$0xff] %v6354
      %6867 = vst [vmem:[%s145 + $0xfe8] sm:$0xff] %v6355
      %6868 = vst [vmem:[%s145 + $0xff0] sm:$0xff] %v6356
      %6869 = vst [vmem:[%s145 + $0xff8] sm:$0xff] %v6357
      %s6870 = smul.u32 512, %s13
      %p6871 = scmp.lt.s32.totalorder %s6870, 1023
      %s6872 = scalar_select %p6871, %s6870, 1023
      %s6873 = smul.addr %s6872, 8
      %s6874 = scalar_lea.vmem %s2, %s6873
      // Predicated region
      $region29: #{critic_forward.5} parent=27 // pred_check
        %p6875 = pneg %p78
      $region30: #{critic_forward.5} parent=27 // pred_check_branch
        %6877 = sbr.rel (%p6875) target = $region32
      $region31: #{critic_forward.5} parent=27 // pred_region
        %s6878 = smul.u32 512, %s13
      $region32: #{critic_forward.5} parent=27 // pred_fallthru
        _
    $region28: #{critic_forward.5} parent=5 // pred_fallthru
      _
    %p6879 = scmp.le.s32.totalorder 2, %s8
    // Predicated region
    $region33: #{critic_forward.5} parent=5 // pred_check
      %p6880 = pneg %p6879
    $region34: #{critic_forward.5} parent=5 // pred_check_branch
      %6882 = sbr.rel (%p6880) target = $region36
    $region35: #{critic_forward.5} parent=5 // pred_region
      %s6883 = ssub.s32 %s8, 2
      // Predicated region
      $region37: #{critic_forward.5} parent=35 // pred_check
        %p6884 = pneg %p84
      $region38: #{critic_forward.5} parent=35 // pred_check_branch
        %6886 = sbr.rel (%p6884) target = $region40
      $region39: #{critic_forward.5} parent=35 // pred_region
        %s6887 = smul.u32 512, %s14
        %p6888 = scmp.lt.s32.totalorder %s6887, 1023
        %s6889 = scalar_select %p6888, %s6887, 1023
        %s6890 = smul.addr %s6889, 8
        %s6891 = scalar_lea.vmem %s2, %s6890
      $region40: #{critic_forward.5} parent=35 // pred_fallthru
        _
    $region36: #{critic_forward.5} parent=5 // pred_fallthru
      _
  $region6: #{critic_forward.5} parent=0 // loop_footer
    %s12 = sadd.s32 1, %s8
  $region7: #{critic_forward.5} parent=0 // loop_footer_branch
    %7 = sbr.rel target = $region3
  $region8: #{critic_forward.5} parent=0 // loop_exit
    _

// kernel: critic_forward.6
$region0: #{critic_forward.6}
  #allocation0 [shape = 'u32[]', space=smem, size = 0x4, offset = 0x4, fixed_abs, tag = 'smem constant byte address 0x4 - core index']
  #allocation1 [shape = 'u32[144,128]{1,0:T(1,128)}', space=vmem, size = 0x12000, scoped, tag = 'internal scratch']
  %s0 = inlined_call_operand.vmem [shape: bf16[2048,128], index: 0, kind: input, shape index: {}]
  %s1 = inlined_call_operand.vmem [shape: bf16[128,128], index: 1, kind: input, shape index: {}]
  %s2 = inlined_call_operand.vmem [shape: f32[2048,128], index: 2, kind: output, shape index: {}]
  %s3 = sld [smem:[#allocation0]]
  $region41: #{critic_forward.6} parent=0
    _
  %s5 = ssub.s32 1, %s3
  %s6 = scalar_select 0, %s5, %s3
  loop: start=0, step=1, limit=4
  $region2: #{critic_forward.6} parent=0 // loop_pre_header
    _
  $region3: #{critic_forward.6} parent=0 // loop_header
    %s8 = sphi 0, %s12
    %p9 = scmp.ge.s32.totalorder %s8, 4
    %s18 = sphi 0, %s20
    %s21 = sphi 0, %s18
    %s22 = sphi 0, %s21
    %s38 = sphi 0, %s22
    %s42 = sphi 0, %s42
    %s44 = sphi 0, %s42
    %s45 = sphi 0, %s44
    %s59 = sphi 0, %s45
    %s65 = sphi 0, %s67
    %s68 = sphi 0, %s65
    %s69 = sphi 0, %s68
    %s85 = sphi 0, %s69
  $region4: #{critic_forward.6} parent=0 // loop_header_branch
    %11 = sbr.rel (%p9) target = $region8
  $region5: #{critic_forward.6} parent=0 // loop_body
    %s13 = ssub.s32 %s8, 1
    %s14 = ssub.s32 %s8, 2
    %s15 = sadd.s32 %s8, 1
    %s16 = ssub.s32 %s8, %s15
    %p17 = scmp.eq.s32.totalorder %s16, 0
    %s19 = sadd.s32 %s18, 1
    %s20 = scalar_select %p17, %s18, %s19
    %p23 = pneg %p17
    %p24 = scmp.eq.s32.totalorder %s8, 1
    %p25 = por %p23, %p24
    %p26 = scmp.ne.s32.totalorder %s18, %s21
    %p27 = scmp.eq.s32.totalorder %s8, 0
    %p28 = por %p26, %p27
    %p29 = scmp.ne.s32.totalorder %s18, %s21
    %p30 = scmp.eq.s32.totalorder %s13, 1
    %p31 = por %p29, %p30
    %p32 = scmp.ne.s32.totalorder %s21, %s22
    %p33 = scmp.eq.s32.totalorder %s13, 0
    %p34 = por %p32, %p33
    %p35 = scmp.ne.s32.totalorder %s21, %s22
    %p36 = scmp.eq.s32.totalorder %s14, 1
    %p37 = por %p35, %p36
    %p39 = scmp.ne.s32.totalorder %s22, %s38
    %p40 = scmp.eq.s32.totalorder %s14, 0
    %p41 = por %p39, %p40
    %s43 = sadd.s32 %s42, 1
    %p46 = scmp.eq.s32.totalorder %s8, 1
    %p47 = scmp.ne.s32.totalorder %s42, %s44
    %p48 = scmp.eq.s32.totalorder %s8, 0
    %p49 = por %p47, %p48
    %p50 = scmp.ne.s32.totalorder %s42, %s44
    %p51 = scmp.eq.s32.totalorder %s13, 1
    %p52 = por %p50, %p51
    %p53 = scmp.ne.s32.totalorder %s44, %s45
    %p54 = scmp.eq.s32.totalorder %s13, 0
    %p55 = por %p53, %p54
    %p56 = scmp.ne.s32.totalorder %s44, %s45
    %p57 = scmp.eq.s32.totalorder %s14, 1
    %p58 = por %p56, %p57
    %p60 = scmp.ne.s32.totalorder %s45, %s59
    %p61 = scmp.eq.s32.totalorder %s14, 0
    %p62 = por %p60, %p61
    %s63 = ssub.s32 %s8, %s15
    %p64 = scmp.eq.s32.totalorder %s63, 0
    %s66 = sadd.s32 %s65, 1
    %s67 = scalar_select %p64, %s65, %s66
    %p70 = pneg %p64
    %p71 = scmp.eq.s32.totalorder %s8, 1
    %p72 = por %p70, %p71
    %p73 = scmp.ne.s32.totalorder %s65, %s68
    %p74 = scmp.eq.s32.totalorder %s8, 0
    %p75 = por %p73, %p74
    %p76 = scmp.ne.s32.totalorder %s65, %s68
    %p77 = scmp.eq.s32.totalorder %s13, 1
    %p78 = por %p76, %p77
    %p79 = scmp.ne.s32.totalorder %s68, %s69
    %p80 = scmp.eq.s32.totalorder %s13, 0
    %p81 = por %p79, %p80
    %p82 = scmp.ne.s32.totalorder %s68, %s69
    %p83 = scmp.eq.s32.totalorder %s14, 1
    %p84 = por %p82, %p83
    %p86 = scmp.ne.s32.totalorder %s69, %s85
    %p87 = scmp.eq.s32.totalorder %s14, 0
    %p88 = por %p86, %p87
    %p89 = scmp.le.s32.totalorder 1, %s8
    %p90 = scmp.lt.s32.totalorder %s8, 3
    %p91 = pnand %p89, %p90
    %p92 = pneg %p91
    // Predicated region
    $region9: #{critic_forward.6} parent=5 // pred_check
      _
    $region10: #{critic_forward.6} parent=5 // pred_check_branch
      %94 = sbr.rel (%p91) target = $region12
    $region11: #{critic_forward.6} parent=5 // pred_region
      %s95 = ssub.s32 %s8, 1
      // Predicated region
      $region13: #{critic_forward.6} parent=11 // pred_check
        %p96 = pneg %p55
      $region14: #{critic_forward.6} parent=11 // pred_check_branch
        %98 = sbr.rel (%p96) target = $region16
      $region15: #{critic_forward.6} parent=11 // pred_region
        _
      $region16: #{critic_forward.6} parent=11 // pred_fallthru
        _
    $region12: #{critic_forward.6} parent=5 // pred_fallthru
      _
    %p99 = scmp.lt.s32.totalorder %s8, 2
    // Predicated region
    $region17: #{critic_forward.6} parent=5 // pred_check
      %p100 = pneg %p99
    $region18: #{critic_forward.6} parent=5 // pred_check_branch
      %102 = sbr.rel (%p100) target = $region20
    $region19: #{critic_forward.6} parent=5 // pred_region
      // Predicated region
      $region21: #{critic_forward.6} parent=19 // pred_check
        %p103 = pneg %p28
      $region22: #{critic_forward.6} parent=19 // pred_check_branch
        %105 = sbr.rel (%p103) target = $region24
      $region23: #{critic_forward.6} parent=19 // pred_region
        %s106 = smul.u32 128, %s8
        %p107 = scmp.lt.s32.totalorder %s106, 255
        %s108 = scalar_select %p107, %s106, 255
        %s109 = smul.addr %s108, 4
        %s110 = scalar_lea.vmem %s0, %s109
        %s111 = smul.u32 128, %s8
      $region24: #{critic_forward.6} parent=19 // pred_fallthru
        _
    $region20: #{critic_forward.6} parent=5 // pred_fallthru
      _
    %p112 = scmp.le.s32.totalorder 1, %s8
    %p113 = scmp.lt.s32.totalorder %s8, 3
    %p114 = pnand %p112, %p113
    %p115 = pneg %p114
    // Predicated region
    $region25: #{critic_forward.6} parent=5 // pred_check
      _
    $region26: #{critic_forward.6} parent=5 // pred_check_branch
      %117 = sbr.rel (%p114) target = $region28
    $region27: #{critic_forward.6} parent=5 // pred_region
      %s118 = ssub.s32 %s8, 1
      %s119 = smul.u32 128, %s13
      %p120 = scmp.lt.s32.totalorder %s119, 255
      %s121 = scalar_select %p120, %s119, 255
      %s122 = smul.addr %s121, 4
      %s123 = scalar_lea.vmem %s0, %s122
      %p124 = pneg %p34
      %p125 = pneg %p31
      %p126 = pneg %p55
      %p127 = pneg %p52
      %p128 = pneg %p81
      %p129 = pneg %p78
      %s130 = smul.u32 128, %s13
      %p131 = scmp.lt.s32.totalorder %s130, 255
      %s132 = scalar_select %p131, %s130, 255
      %s133 = smul.addr %s132, 8
      %s134 = scalar_lea.vmem %s2, %s133
      %s135 = smul.u32 128, %s13
      %p136 = scmp.lt.s32.totalorder %s135, 255
      %s137 = scalar_select %p136, %s135, 255
      %s138 = smul.addr %s137, 4
      %s139 = scalar_lea.vmem %s0, %s138
      %s140 = smul.u32 128, %s13
      %s141 = smul.u32 128, %s13
      %p142 = scmp.lt.s32.totalorder %s141, 255
      %s143 = scalar_select %p142, %s141, 255
      %s144 = smul.addr %s143, 8
      %s145 = scalar_lea.vmem %s2, %s144
      %s146 = smul.u32 128, %s13
      %v148 = vld [vmem:[%s139] sm:$0xf]
      %v149 = vld [vmem:[%s139 + $0x4] sm:$0xf]
      %v150 = vld [vmem:[%s139 + $0x8] sm:$0xf]
      %v151 = vld [vmem:[%s139 + $0xc] sm:$0xf]
      %v152 = vld [vmem:[%s139 + $0x10] sm:$0xf]
      %v153 = vld [vmem:[%s139 + $0x14] sm:$0xf]
      %v154 = vld [vmem:[%s139 + $0x18] sm:$0xf]
      %v155 = vld [vmem:[%s139 + $0x1c] sm:$0xf]
      %v156 = vld [vmem:[%s139 + $0x20] sm:$0xf]
      %v157 = vld [vmem:[%s139 + $0x24] sm:$0xf]
      %v158 = vld [vmem:[%s139 + $0x28] sm:$0xf]
      %v159 = vld [vmem:[%s139 + $0x2c] sm:$0xf]
      %v160 = vld [vmem:[%s139 + $0x30] sm:$0xf]
      %v161 = vld [vmem:[%s139 + $0x34] sm:$0xf]
      %v162 = vld [vmem:[%s139 + $0x38] sm:$0xf]
      %v163 = vld [vmem:[%s139 + $0x3c] sm:$0xf]
      %v164 = vld [vmem:[%s139 + $0x40] sm:$0xf]
      %v165 = vld [vmem:[%s139 + $0x44] sm:$0xf]
      %v166 = vld [vmem:[%s139 + $0x48] sm:$0xf]
      %v167 = vld [vmem:[%s139 + $0x4c] sm:$0xf]
      %v168 = vld [vmem:[%s139 + $0x50] sm:$0xf]
      %v169 = vld [vmem:[%s139 + $0x54] sm:$0xf]
      %v170 = vld [vmem:[%s139 + $0x58] sm:$0xf]
      %v171 = vld [vmem:[%s139 + $0x5c] sm:$0xf]
      %v172 = vld [vmem:[%s139 + $0x60] sm:$0xf]
      %v173 = vld [vmem:[%s139 + $0x64] sm:$0xf]
      %v174 = vld [vmem:[%s139 + $0x68] sm:$0xf]
      %v175 = vld [vmem:[%s139 + $0x6c] sm:$0xf]
      %v176 = vld [vmem:[%s139 + $0x70] sm:$0xf]
      %v177 = vld [vmem:[%s139 + $0x74] sm:$0xf]
      %v178 = vld [vmem:[%s139 + $0x78] sm:$0xf]
      %v179 = vld [vmem:[%s139 + $0x7c] sm:$0xf]
      %v180 = vld [vmem:[%s139 + $0x80] sm:$0xf]
      %v181 = vld [vmem:[%s139 + $0x84] sm:$0xf]
      %v182 = vld [vmem:[%s139 + $0x88] sm:$0xf]
      %v183 = vld [vmem:[%s139 + $0x8c] sm:$0xf]
      %v184 = vld [vmem:[%s139 + $0x90] sm:$0xf]
      %v185 = vld [vmem:[%s139 + $0x94] sm:$0xf]
      %v186 = vld [vmem:[%s139 + $0x98] sm:$0xf]
      %v187 = vld [vmem:[%s139 + $0x9c] sm:$0xf]
      %v188 = vld [vmem:[%s139 + $0xa0] sm:$0xf]
      %v189 = vld [vmem:[%s139 + $0xa4] sm:$0xf]
      %v190 = vld [vmem:[%s139 + $0xa8] sm:$0xf]
      %v191 = vld [vmem:[%s139 + $0xac] sm:$0xf]
      %v192 = vld [vmem:[%s139 + $0xb0] sm:$0xf]
      %v193 = vld [vmem:[%s139 + $0xb4] sm:$0xf]
      %v194 = vld [vmem:[%s139 + $0xb8] sm:$0xf]
      %v195 = vld [vmem:[%s139 + $0xbc] sm:$0xf]
      %v196 = vld [vmem:[%s139 + $0xc0] sm:$0xf]
      %v197 = vld [vmem:[%s139 + $0xc4] sm:$0xf]
      %v198 = vld [vmem:[%s139 + $0xc8] sm:$0xf]
      %v199 = vld [vmem:[%s139 + $0xcc] sm:$0xf]
      %v200 = vld [vmem:[%s139 + $0xd0] sm:$0xf]
      %v201 = vld [vmem:[%s139 + $0xd4] sm:$0xf]
      %v202 = vld [vmem:[%s139 + $0xd8] sm:$0xf]
      %v203 = vld [vmem:[%s139 + $0xdc] sm:$0xf]
      %v204 = vld [vmem:[%s139 + $0xe0] sm:$0xf]
      %v205 = vld [vmem:[%s139 + $0xe4] sm:$0xf]
      %v206 = vld [vmem:[%s139 + $0xe8] sm:$0xf]
      %v207 = vld [vmem:[%s139 + $0xec] sm:$0xf]
      %v208 = vld [vmem:[%s139 + $0xf0] sm:$0xf]
      %v209 = vld [vmem:[%s139 + $0xf4] sm:$0xf]
      %v210 = vld [vmem:[%s139 + $0xf8] sm:$0xf]
      %v211 = vld [vmem:[%s139 + $0xfc] sm:$0xf]
      %v212 = vld [vmem:[%s139 + $0x100] sm:$0xf]
      %v213 = vld [vmem:[%s139 + $0x104] sm:$0xf]
      %v214 = vld [vmem:[%s139 + $0x108] sm:$0xf]
      %v215 = vld [vmem:[%s139 + $0x10c] sm:$0xf]
      %v216 = vld [vmem:[%s139 + $0x110] sm:$0xf]
      %v217 = vld [vmem:[%s139 + $0x114] sm:$0xf]
      %v218 = vld [vmem:[%s139 + $0x118] sm:$0xf]
      %v219 = vld [vmem:[%s139 + $0x11c] sm:$0xf]
      %v220 = vld [vmem:[%s139 + $0x120] sm:$0xf]
      %v221 = vld [vmem:[%s139 + $0x124] sm:$0xf]
      %v222 = vld [vmem:[%s139 + $0x128] sm:$0xf]
      %v223 = vld [vmem:[%s139 + $0x12c] sm:$0xf]
      %v224 = vld [vmem:[%s139 + $0x130] sm:$0xf]
      %v225 = vld [vmem:[%s139 + $0x134] sm:$0xf]
      %v226 = vld [vmem:[%s139 + $0x138] sm:$0xf]
      %v227 = vld [vmem:[%s139 + $0x13c] sm:$0xf]
      %v228 = vld [vmem:[%s139 + $0x140] sm:$0xf]
      %v229 = vld [vmem:[%s139 + $0x144] sm:$0xf]
      %v230 = vld [vmem:[%s139 + $0x148] sm:$0xf]
      %v231 = vld [vmem:[%s139 + $0x14c] sm:$0xf]
      %v232 = vld [vmem:[%s139 + $0x150] sm:$0xf]
      %v233 = vld [vmem:[%s139 + $0x154] sm:$0xf]
      %v234 = vld [vmem:[%s139 + $0x158] sm:$0xf]
      %v235 = vld [vmem:[%s139 + $0x15c] sm:$0xf]
      %v236 = vld [vmem:[%s139 + $0x160] sm:$0xf]
      %v237 = vld [vmem:[%s139 + $0x164] sm:$0xf]
      %v238 = vld [vmem:[%s139 + $0x168] sm:$0xf]
      %v239 = vld [vmem:[%s139 + $0x16c] sm:$0xf]
      %v240 = vld [vmem:[%s139 + $0x170] sm:$0xf]
      %v241 = vld [vmem:[%s139 + $0x174] sm:$0xf]
      %v242 = vld [vmem:[%s139 + $0x178] sm:$0xf]
      %v243 = vld [vmem:[%s139 + $0x17c] sm:$0xf]
      %v244 = vld [vmem:[%s139 + $0x180] sm:$0xf]
      %v245 = vld [vmem:[%s139 + $0x184] sm:$0xf]
      %v246 = vld [vmem:[%s139 + $0x188] sm:$0xf]
      %v247 = vld [vmem:[%s139 + $0x18c] sm:$0xf]
      %v248 = vld [vmem:[%s139 + $0x190] sm:$0xf]
      %v249 = vld [vmem:[%s139 + $0x194] sm:$0xf]
      %v250 = vld [vmem:[%s139 + $0x198] sm:$0xf]
      %v251 = vld [vmem:[%s139 + $0x19c] sm:$0xf]
      %v252 = vld [vmem:[%s139 + $0x1a0] sm:$0xf]
      %v253 = vld [vmem:[%s139 + $0x1a4] sm:$0xf]
      %v254 = vld [vmem:[%s139 + $0x1a8] sm:$0xf]
      %v255 = vld [vmem:[%s139 + $0x1ac] sm:$0xf]
      %v256 = vld [vmem:[%s139 + $0x1b0] sm:$0xf]
      %v257 = vld [vmem:[%s139 + $0x1b4] sm:$0xf]
      %v258 = vld [vmem:[%s139 + $0x1b8] sm:$0xf]
      %v259 = vld [vmem:[%s139 + $0x1bc] sm:$0xf]
      %v260 = vld [vmem:[%s139 + $0x1c0] sm:$0xf]
      %v261 = vld [vmem:[%s139 + $0x1c4] sm:$0xf]
      %v262 = vld [vmem:[%s139 + $0x1c8] sm:$0xf]
      %v263 = vld [vmem:[%s139 + $0x1cc] sm:$0xf]
      %v264 = vld [vmem:[%s139 + $0x1d0] sm:$0xf]
      %v265 = vld [vmem:[%s139 + $0x1d4] sm:$0xf]
      %v266 = vld [vmem:[%s139 + $0x1d8] sm:$0xf]
      %v267 = vld [vmem:[%s139 + $0x1dc] sm:$0xf]
      %v268 = vld [vmem:[%s139 + $0x1e0] sm:$0xf]
      %v269 = vld [vmem:[%s139 + $0x1e4] sm:$0xf]
      %v270 = vld [vmem:[%s139 + $0x1e8] sm:$0xf]
      %v271 = vld [vmem:[%s139 + $0x1ec] sm:$0xf]
      %v272 = vld [vmem:[%s139 + $0x1f0] sm:$0xf]
      %v273 = vld [vmem:[%s139 + $0x1f4] sm:$0xf]
      %v274 = vld [vmem:[%s139 + $0x1f8] sm:$0xf]
      %v275 = vld [vmem:[%s139 + $0x1fc] sm:$0xf]
      %v276 = vld [vmem:[%s1] sm:$0xf]
      %v277 = vld [vmem:[%s1 + $0x4] sm:$0xf]
      %v278 = vld [vmem:[%s1 + $0x8] sm:$0xf]
      %v279 = vld [vmem:[%s1 + $0xc] sm:$0xf]
      %v280 = vld [vmem:[%s1 + $0x10] sm:$0xf]
      %v281 = vld [vmem:[%s1 + $0x14] sm:$0xf]
      %v282 = vld [vmem:[%s1 + $0x18] sm:$0xf]
      %v283 = vld [vmem:[%s1 + $0x1c] sm:$0xf]
      %v284 = vld [vmem:[%s1 + $0x20] sm:$0xf]
      %v285 = vld [vmem:[%s1 + $0x24] sm:$0xf]
      %v286 = vld [vmem:[%s1 + $0x28] sm:$0xf]
      %v287 = vld [vmem:[%s1 + $0x2c] sm:$0xf]
      %v288 = vld [vmem:[%s1 + $0x30] sm:$0xf]
      %v289 = vld [vmem:[%s1 + $0x34] sm:$0xf]
      %v290 = vld [vmem:[%s1 + $0x38] sm:$0xf]
      %v291 = vld [vmem:[%s1 + $0x3c] sm:$0xf]
      %v420 = vunpack.c.l.b16 %v148
      %v421 = vunpack.c.l.b16 %v149
      %v422 = vunpack.c.l.b16 %v150
      %v423 = vunpack.c.l.b16 %v151
      %v424 = vunpack.c.l.b16 %v152
      %v425 = vunpack.c.l.b16 %v153
      %v426 = vunpack.c.l.b16 %v154
      %v427 = vunpack.c.l.b16 %v155
      %v428 = vunpack.c.l.b16 %v156
      %v429 = vunpack.c.l.b16 %v157
      %v430 = vunpack.c.l.b16 %v158
      %v431 = vunpack.c.l.b16 %v159
      %v432 = vunpack.c.l.b16 %v160
      %v433 = vunpack.c.l.b16 %v161
      %v434 = vunpack.c.l.b16 %v162
      %v435 = vunpack.c.l.b16 %v163
      %v436 = vunpack.c.l.b16 %v164
      %v437 = vunpack.c.l.b16 %v165
      %v438 = vunpack.c.l.b16 %v166
      %v439 = vunpack.c.l.b16 %v167
      %v440 = vunpack.c.l.b16 %v168
      %v441 = vunpack.c.l.b16 %v169
      %v442 = vunpack.c.l.b16 %v170
      %v443 = vunpack.c.l.b16 %v171
      %v444 = vunpack.c.l.b16 %v172
      %v445 = vunpack.c.l.b16 %v173
      %v446 = vunpack.c.l.b16 %v174
      %v447 = vunpack.c.l.b16 %v175
      %v448 = vunpack.c.l.b16 %v176
      %v449 = vunpack.c.l.b16 %v177
      %v450 = vunpack.c.l.b16 %v178
      %v451 = vunpack.c.l.b16 %v179
      %v452 = vunpack.c.l.b16 %v180
      %v453 = vunpack.c.l.b16 %v181
      %v454 = vunpack.c.l.b16 %v182
      %v455 = vunpack.c.l.b16 %v183
      %v456 = vunpack.c.l.b16 %v184
      %v457 = vunpack.c.l.b16 %v185
      %v458 = vunpack.c.l.b16 %v186
      %v459 = vunpack.c.l.b16 %v187
      %v460 = vunpack.c.l.b16 %v188
      %v461 = vunpack.c.l.b16 %v189
      %v462 = vunpack.c.l.b16 %v190
      %v463 = vunpack.c.l.b16 %v191
      %v464 = vunpack.c.l.b16 %v192
      %v465 = vunpack.c.l.b16 %v193
      %v466 = vunpack.c.l.b16 %v194
      %v467 = vunpack.c.l.b16 %v195
      %v468 = vunpack.c.l.b16 %v196
      %v469 = vunpack.c.l.b16 %v197
      %v470 = vunpack.c.l.b16 %v198
      %v471 = vunpack.c.l.b16 %v199
      %v472 = vunpack.c.l.b16 %v200
      %v473 = vunpack.c.l.b16 %v201
      %v474 = vunpack.c.l.b16 %v202
      %v475 = vunpack.c.l.b16 %v203
      %v476 = vunpack.c.l.b16 %v204
      %v477 = vunpack.c.l.b16 %v205
      %v478 = vunpack.c.l.b16 %v206
      %v479 = vunpack.c.l.b16 %v207
      %v480 = vunpack.c.l.b16 %v208
      %v481 = vunpack.c.l.b16 %v209
      %v482 = vunpack.c.l.b16 %v210
      %v483 = vunpack.c.l.b16 %v211
      %v484 = vunpack.c.l.b16 %v212
      %v485 = vunpack.c.l.b16 %v213
      %v486 = vunpack.c.l.b16 %v214
      %v487 = vunpack.c.l.b16 %v215
      %v488 = vunpack.c.l.b16 %v216
      %v489 = vunpack.c.l.b16 %v217
      %v490 = vunpack.c.l.b16 %v218
      %v491 = vunpack.c.l.b16 %v219
      %v492 = vunpack.c.l.b16 %v220
      %v493 = vunpack.c.l.b16 %v221
      %v494 = vunpack.c.l.b16 %v222
      %v495 = vunpack.c.l.b16 %v223
      %v496 = vunpack.c.l.b16 %v224
      %v497 = vunpack.c.l.b16 %v225
      %v498 = vunpack.c.l.b16 %v226
      %v499 = vunpack.c.l.b16 %v227
      %v500 = vunpack.c.l.b16 %v228
      %v501 = vunpack.c.l.b16 %v229
      %v502 = vunpack.c.l.b16 %v230
      %v503 = vunpack.c.l.b16 %v231
      %v504 = vunpack.c.l.b16 %v232
      %v505 = vunpack.c.l.b16 %v233
      %v506 = vunpack.c.l.b16 %v234
      %v507 = vunpack.c.l.b16 %v235
      %v508 = vunpack.c.l.b16 %v236
      %v509 = vunpack.c.l.b16 %v237
      %v510 = vunpack.c.l.b16 %v238
      %v511 = vunpack.c.l.b16 %v239
      %v512 = vunpack.c.l.b16 %v240
      %v513 = vunpack.c.l.b16 %v241
      %v514 = vunpack.c.l.b16 %v242
      %v515 = vunpack.c.l.b16 %v243
      %v516 = vunpack.c.l.b16 %v244
      %v517 = vunpack.c.l.b16 %v245
      %v518 = vunpack.c.l.b16 %v246
      %v519 = vunpack.c.l.b16 %v247
      %v520 = vunpack.c.l.b16 %v248
      %v521 = vunpack.c.l.b16 %v249
      %v522 = vunpack.c.l.b16 %v250
      %v523 = vunpack.c.l.b16 %v251
      %v524 = vunpack.c.l.b16 %v252
      %v525 = vunpack.c.l.b16 %v253
      %v526 = vunpack.c.l.b16 %v254
      %v527 = vunpack.c.l.b16 %v255
      %v528 = vunpack.c.l.b16 %v256
      %v529 = vunpack.c.l.b16 %v257
      %v530 = vunpack.c.l.b16 %v258
      %v531 = vunpack.c.l.b16 %v259
      %v532 = vunpack.c.l.b16 %v260
      %v533 = vunpack.c.l.b16 %v261
      %v534 = vunpack.c.l.b16 %v262
      %v535 = vunpack.c.l.b16 %v263
      %v536 = vunpack.c.l.b16 %v264
      %v537 = vunpack.c.l.b16 %v265
      %v538 = vunpack.c.l.b16 %v266
      %v539 = vunpack.c.l.b16 %v267
      %v540 = vunpack.c.l.b16 %v268
      %v541 = vunpack.c.l.b16 %v269
      %v542 = vunpack.c.l.b16 %v270
      %v543 = vunpack.c.l.b16 %v271
      %v544 = vunpack.c.l.b16 %v272
      %v545 = vunpack.c.l.b16 %v273
      %v546 = vunpack.c.l.b16 %v274
      %v547 = vunpack.c.l.b16 %v275
      %v548 = vpack.c.b16 %v421, %v420
      %v549 = vpack.c.b16 %v423, %v422
      %v550 = vpack.c.b16 %v425, %v424
      %v551 = vpack.c.b16 %v427, %v426
      %v552 = vpack.c.b16 %v429, %v428
      %v553 = vpack.c.b16 %v431, %v430
      %v554 = vpack.c.b16 %v433, %v432
      %v555 = vpack.c.b16 %v435, %v434
      %v556 = vpack.c.b16 %v437, %v436
      %v557 = vpack.c.b16 %v439, %v438
      %v558 = vpack.c.b16 %v441, %v440
      %v559 = vpack.c.b16 %v443, %v442
      %v560 = vpack.c.b16 %v445, %v444
      %v561 = vpack.c.b16 %v447, %v446
      %v562 = vpack.c.b16 %v449, %v448
      %v563 = vpack.c.b16 %v451, %v450
      %v564 = vpack.c.b16 %v453, %v452
      %v565 = vpack.c.b16 %v455, %v454
      %v566 = vpack.c.b16 %v457, %v456
      %v567 = vpack.c.b16 %v459, %v458
      %v568 = vpack.c.b16 %v461, %v460
      %v569 = vpack.c.b16 %v463, %v462
      %v570 = vpack.c.b16 %v465, %v464
      %v571 = vpack.c.b16 %v467, %v466
      %v572 = vpack.c.b16 %v469, %v468
      %v573 = vpack.c.b16 %v471, %v470
      %v574 = vpack.c.b16 %v473, %v472
      %v575 = vpack.c.b16 %v475, %v474
      %v576 = vpack.c.b16 %v477, %v476
      %v577 = vpack.c.b16 %v479, %v478
      %v578 = vpack.c.b16 %v481, %v480
      %v579 = vpack.c.b16 %v483, %v482
      %v580 = vpack.c.b16 %v485, %v484
      %v581 = vpack.c.b16 %v487, %v486
      %v582 = vpack.c.b16 %v489, %v488
      %v583 = vpack.c.b16 %v491, %v490
      %v584 = vpack.c.b16 %v493, %v492
      %v585 = vpack.c.b16 %v495, %v494
      %v586 = vpack.c.b16 %v497, %v496
      %v587 = vpack.c.b16 %v499, %v498
      %v588 = vpack.c.b16 %v501, %v500
      %v589 = vpack.c.b16 %v503, %v502
      %v590 = vpack.c.b16 %v505, %v504
      %v591 = vpack.c.b16 %v507, %v506
      %v592 = vpack.c.b16 %v509, %v508
      %v593 = vpack.c.b16 %v511, %v510
      %v594 = vpack.c.b16 %v513, %v512
      %v595 = vpack.c.b16 %v515, %v514
      %v596 = vpack.c.b16 %v517, %v516
      %v597 = vpack.c.b16 %v519, %v518
      %v598 = vpack.c.b16 %v521, %v520
      %v599 = vpack.c.b16 %v523, %v522
      %v600 = vpack.c.b16 %v525, %v524
      %v601 = vpack.c.b16 %v527, %v526
      %v602 = vpack.c.b16 %v529, %v528
      %v603 = vpack.c.b16 %v531, %v530
      %v604 = vpack.c.b16 %v533, %v532
      %v605 = vpack.c.b16 %v535, %v534
      %v606 = vpack.c.b16 %v537, %v536
      %v607 = vpack.c.b16 %v539, %v538
      %v608 = vpack.c.b16 %v541, %v540
      %v609 = vpack.c.b16 %v543, %v542
      %v610 = vpack.c.b16 %v545, %v544
      %v611 = vpack.c.b16 %v547, %v546
      %v692 = vunpack.c.l.b16 %v276
      %v693 = vunpack.c.l.b16 %v277
      %v694 = vunpack.c.l.b16 %v278
      %v695 = vunpack.c.l.b16 %v279
      %v696 = vunpack.c.l.b16 %v280
      %v697 = vunpack.c.l.b16 %v281
      %v698 = vunpack.c.l.b16 %v282
      %v699 = vunpack.c.l.b16 %v283
      %v700 = vunpack.c.l.b16 %v284
      %v701 = vunpack.c.l.b16 %v285
      %v702 = vunpack.c.l.b16 %v286
      %v703 = vunpack.c.l.b16 %v287
      %v704 = vunpack.c.l.b16 %v288
      %v705 = vunpack.c.l.b16 %v289
      %v706 = vunpack.c.l.b16 %v290
      %v707 = vunpack.c.l.b16 %v291
      %v708 = vpack.c.b16 %v693, %v692
      %v709 = vpack.c.b16 %v695, %v694
      %v710 = vpack.c.b16 %v697, %v696
      %v711 = vpack.c.b16 %v699, %v698
      %v712 = vpack.c.b16 %v701, %v700
      %v713 = vpack.c.b16 %v703, %v702
      %v714 = vpack.c.b16 %v705, %v704
      %v715 = vpack.c.b16 %v707, %v706
      %724 = vmatprep.subr.bf16.mxu0 0
      %725 = vmatpush1.bf16.msra.mxu0 %v708
      %726 = vmatprep.subr.bf16.mxu0 0
      %727 = vmatpush1.bf16.msra.mxu0 %v709
      %728 = vmatprep.subr.bf16.mxu0 0
      %729 = vmatpush1.bf16.msra.mxu0 %v710
      %730 = vmatprep.subr.bf16.mxu0 0
      %731 = vmatpush1.bf16.msra.mxu0 %v711
      %732 = vmatprep.subr.bf16.mxu0 0
      %733 = vmatpush1.bf16.msra.mxu0 %v712
      %734 = vmatprep.subr.bf16.mxu0 0
      %735 = vmatpush1.bf16.msra.mxu0 %v713
      %736 = vmatprep.subr.bf16.mxu0 0
      %737 = vmatpush1.bf16.msra.mxu0 %v714
      %738 = vmatprep.subr.bf16.mxu0 0
      %739 = vmatpush1.bf16.msra.mxu0 %v715
      %740 = vmatprep.subr.bf16.mxu0 0
      %741 = vmatpush1.bf16.msra.mxu0 0
      %742 = vmatprep.subr.bf16.mxu0 0
      %743 = vmatpush1.bf16.msra.mxu0 0
      %744 = vmatprep.subr.bf16.mxu0 0
      %745 = vmatpush1.bf16.msra.mxu0 0
      %746 = vmatprep.subr.bf16.mxu0 0
      %747 = vmatpush1.bf16.msra.mxu0 0
      %748 = vmatprep.subr.bf16.mxu0 0
      %749 = vmatpush1.bf16.msra.mxu0 0
      %750 = vmatprep.subr.bf16.mxu0 0
      %751 = vmatpush1.bf16.msra.mxu0 0
      %752 = vmatprep.subr.bf16.mxu0 0
      %753 = vmatpush1.bf16.msra.mxu0 0
      %754 = vmatprep.subr.bf16.mxu0 0
      %755 = vmatpush1.bf16.msra.mxu0 0
      %756 = vmatprep.mubr.bf16.mxu0 0
      %757 = vmatmul.mubr.bf16.gmra.mrb[0].mxu0 %v548
      %v758 = vpop.f32.mrb[0].mxu0
      %v759 = vadd.f32 0.0, %v758
      %v760 = vpop.f32.mrb[0].mxu0
      %v761 = vpop.f32.mrb[0].mxu0
      %v762 = vadd.f32 0.0, %v761
      %v763 = vpop.f32.mrb[0].mxu0
      %764 = vmatprep.mubr.bf16.mxu0 0
      %765 = vmatmul.mubr.bf16.gmra.mrb[0].mxu0 %v549
      %v766 = vpop.f32.mrb[0].mxu0
      %v767 = vadd.f32 0.0, %v766
      %v768 = vpop.f32.mrb[0].mxu0
      %v769 = vpop.f32.mrb[0].mxu0
      %v770 = vadd.f32 0.0, %v769
      %v771 = vpop.f32.mrb[0].mxu0
      %772 = vmatprep.mubr.bf16.mxu0 0
      %773 = vmatmul.mubr.bf16.gmra.mrb[0].mxu0 %v550
      %v774 = vpop.f32.mrb[0].mxu0
      %v775 = vadd.f32 0.0, %v774
      %v776 = vpop.f32.mrb[0].mxu0
      %v777 = vpop.f32.mrb[0].mxu0
      %v778 = vadd.f32 0.0, %v777
      %v779 = vpop.f32.mrb[0].mxu0
      %780 = vmatprep.mubr.bf16.mxu0 0
      %781 = vmatmul.mubr.bf16.gmra.mrb[0].mxu0 %v551
      %v782 = vpop.f32.mrb[0].mxu0
      %v783 = vadd.f32 0.0, %v782
      %v784 = vpop.f32.mrb[0].mxu0
      %v785 = vpop.f32.mrb[0].mxu0
      %v786 = vadd.f32 0.0, %v785
      %v787 = vpop.f32.mrb[0].mxu0
      %788 = vmatprep.mubr.bf16.mxu0 0
      %789 = vmatmul.mubr.bf16.gmra.mrb[0].mxu0 %v552
      %v790 = vpop.f32.mrb[0].mxu0
      %v791 = vadd.f32 0.0, %v790
      %v792 = vpop.f32.mrb[0].mxu0
      %v793 = vpop.f32.mrb[0].mxu0
      %v794 = vadd.f32 0.0, %v793
      %v795 = vpop.f32.mrb[0].mxu0
      %796 = vmatprep.mubr.bf16.mxu0 0
      %797 = vmatmul.mubr.bf16.gmra.mrb[0].mxu0 %v553
      %v798 = vpop.f32.mrb[0].mxu0
      %v799 = vadd.f32 0.0, %v798
      %v800 = vpop.f32.mrb[0].mxu0
      %v801 = vpop.f32.mrb[0].mxu0
      %v802 = vadd.f32 0.0, %v801
      %v803 = vpop.f32.mrb[0].mxu0
      %804 = vmatprep.mubr.bf16.mxu0 0
      %805 = vmatmul.mubr.bf16.gmra.mrb[0].mxu0 %v554
      %v806 = vpop.f32.mrb[0].mxu0
      %v807 = vadd.f32 0.0, %v806
      %v808 = vpop.f32.mrb[0].mxu0
      %v809 = vpop.f32.mrb[0].mxu0
      %v810 = vadd.f32 0.0, %v809
      %v811 = vpop.f32.mrb[0].mxu0
      %812 = vmatprep.mubr.bf16.mxu0 0
      %813 = vmatmul.mubr.bf16.gmra.mrb[0].mxu0 %v555
      %v814 = vpop.f32.mrb[0].mxu0
      %v815 = vadd.f32 0.0, %v814
      %v816 = vpop.f32.mrb[0].mxu0
      %v817 = vpop.f32.mrb[0].mxu0
      %v818 = vadd.f32 0.0, %v817
      %v819 = vpop.f32.mrb[0].mxu0
      %820 = vmatprep.mubr.bf16.mxu0 0
      %821 = vmatmul.mubr.bf16.gmra.mrb[0].mxu0 %v556
      %v822 = vpop.f32.mrb[0].mxu0
      %v823 = vadd.f32 0.0, %v822
      %v824 = vpop.f32.mrb[0].mxu0
      %v825 = vpop.f32.mrb[0].mxu0
      %v826 = vadd.f32 0.0, %v825
      %v827 = vpop.f32.mrb[0].mxu0
      %828 = vmatprep.mubr.bf16.mxu0 0
      %829 = vmatmul.mubr.bf16.gmra.mrb[0].mxu0 %v557
      %v830 = vpop.f32.mrb[0].mxu0
      %v831 = vadd.f32 0.0, %v830
      %v832 = vpop.f32.mrb[0].mxu0
      %v833 = vpop.f32.mrb[0].mxu0
      %v834 = vadd.f32 0.0, %v833
      %v835 = vpop.f32.mrb[0].mxu0
      %836 = vmatprep.mubr.bf16.mxu0 0
      %837 = vmatmul.mubr.bf16.gmra.mrb[0].mxu0 %v558
      %v838 = vpop.f32.mrb[0].mxu0
      %v839 = vadd.f32 0.0, %v838
      %v840 = vpop.f32.mrb[0].mxu0
      %v841 = vpop.f32.mrb[0].mxu0
      %v842 = vadd.f32 0.0, %v841
      %v843 = vpop.f32.mrb[0].mxu0
      %844 = vmatprep.mubr.bf16.mxu0 0
      %845 = vmatmul.mubr.bf16.gmra.mrb[0].mxu0 %v559
      %v846 = vpop.f32.mrb[0].mxu0
      %v847 = vadd.f32 0.0, %v846
      %v848 = vpop.f32.mrb[0].mxu0
      %v849 = vpop.f32.mrb[0].mxu0
      %v850 = vadd.f32 0.0, %v849
      %v851 = vpop.f32.mrb[0].mxu0
      %852 = vmatprep.mubr.bf16.mxu0 0
      %853 = vmatmul.mubr.bf16.gmra.mrb[0].mxu0 %v560
      %v854 = vpop.f32.mrb[0].mxu0
      %v855 = vadd.f32 0.0, %v854
      %v856 = vpop.f32.mrb[0].mxu0
      %v857 = vpop.f32.mrb[0].mxu0
      %v858 = vadd.f32 0.0, %v857
      %v859 = vpop.f32.mrb[0].mxu0
      %860 = vmatprep.mubr.bf16.mxu0 0
      %861 = vmatmul.mubr.bf16.gmra.mrb[0].mxu0 %v561
      %v862 = vpop.f32.mrb[0].mxu0
      %v863 = vadd.f32 0.0, %v862
      %v864 = vpop.f32.mrb[0].mxu0
      %v865 = vpop.f32.mrb[0].mxu0
      %v866 = vadd.f32 0.0, %v865
      %v867 = vpop.f32.mrb[0].mxu0
      %868 = vmatprep.mubr.bf16.mxu0 0
      %869 = vmatmul.mubr.bf16.gmra.mrb[0].mxu0 %v562
      %v870 = vpop.f32.mrb[0].mxu0
      %v871 = vadd.f32 0.0, %v870
      %v872 = vpop.f32.mrb[0].mxu0
      %v873 = vpop.f32.mrb[0].mxu0
      %v874 = vadd.f32 0.0, %v873
      %v875 = vpop.f32.mrb[0].mxu0
      %876 = vmatprep.mubr.bf16.mxu0 0
      %877 = vmatmul.mubr.bf16.gmra.mrb[0].mxu0 %v563
      %v878 = vpop.f32.mrb[0].mxu0
      %v879 = vadd.f32 0.0, %v878
      %v880 = vpop.f32.mrb[0].mxu0
      %v881 = vpop.f32.mrb[0].mxu0
      %v882 = vadd.f32 0.0, %v881
      %v883 = vpop.f32.mrb[0].mxu0
      %884 = vmatprep.mubr.bf16.mxu0 0
      %885 = vmatmul.mubr.bf16.gmra.mrb[0].mxu0 %v564
      %v886 = vpop.f32.mrb[0].mxu0
      %v887 = vadd.f32 0.0, %v886
      %v888 = vpop.f32.mrb[0].mxu0
      %v889 = vpop.f32.mrb[0].mxu0
      %v890 = vadd.f32 0.0, %v889
      %v891 = vpop.f32.mrb[0].mxu0
      %892 = vmatprep.mubr.bf16.mxu0 0
      %893 = vmatmul.mubr.bf16.gmra.mrb[0].mxu0 %v565
      %v894 = vpop.f32.mrb[0].mxu0
      %v895 = vadd.f32 0.0, %v894
      %v896 = vpop.f32.mrb[0].mxu0
      %v897 = vpop.f32.mrb[0].mxu0
      %v898 = vadd.f32 0.0, %v897
      %v899 = vpop.f32.mrb[0].mxu0
      %900 = vmatprep.mubr.bf16.mxu0 0
      %901 = vmatmul.mubr.bf16.gmra.mrb[0].mxu0 %v566
      %v902 = vpop.f32.mrb[0].mxu0
      %v903 = vadd.f32 0.0, %v902
      %v904 = vpop.f32.mrb[0].mxu0
      %v905 = vpop.f32.mrb[0].mxu0
      %v906 = vadd.f32 0.0, %v905
      %v907 = vpop.f32.mrb[0].mxu0
      %908 = vmatprep.mubr.bf16.mxu0 0
      %909 = vmatmul.mubr.bf16.gmra.mrb[0].mxu0 %v567
      %v910 = vpop.f32.mrb[0].mxu0
      %v911 = vadd.f32 0.0, %v910
      %v912 = vpop.f32.mrb[0].mxu0
      %v913 = vpop.f32.mrb[0].mxu0
      %v914 = vadd.f32 0.0, %v913
      %v915 = vpop.f32.mrb[0].mxu0
      %916 = vmatprep.mubr.bf16.mxu0 0
      %917 = vmatmul.mubr.bf16.gmra.mrb[0].mxu0 %v568
      %v918 = vpop.f32.mrb[0].mxu0
      %v919 = vadd.f32 0.0, %v918
      %v920 = vpop.f32.mrb[0].mxu0
      %v921 = vpop.f32.mrb[0].mxu0
      %v922 = vadd.f32 0.0, %v921
      %v923 = vpop.f32.mrb[0].mxu0
      %924 = vmatprep.mubr.bf16.mxu0 0
      %925 = vmatmul.mubr.bf16.gmra.mrb[0].mxu0 %v569
      %v926 = vpop.f32.mrb[0].mxu0
      %v927 = vadd.f32 0.0, %v926
      %v928 = vpop.f32.mrb[0].mxu0
      %v929 = vpop.f32.mrb[0].mxu0
      %v930 = vadd.f32 0.0, %v929
      %v931 = vpop.f32.mrb[0].mxu0
      %932 = vmatprep.mubr.bf16.mxu0 0
      %933 = vmatmul.mubr.bf16.gmra.mrb[0].mxu0 %v570
      %v934 = vpop.f32.mrb[0].mxu0
      %v935 = vadd.f32 0.0, %v934
      %v936 = vpop.f32.mrb[0].mxu0
      %v937 = vpop.f32.mrb[0].mxu0
      %v938 = vadd.f32 0.0, %v937
      %v939 = vpop.f32.mrb[0].mxu0
      %940 = vmatprep.mubr.bf16.mxu0 0
      %941 = vmatmul.mubr.bf16.gmra.mrb[0].mxu0 %v571
      %v942 = vpop.f32.mrb[0].mxu0
      %v943 = vadd.f32 0.0, %v942
      %v944 = vpop.f32.mrb[0].mxu0
      %v945 = vpop.f32.mrb[0].mxu0
      %v946 = vadd.f32 0.0, %v945
      %v947 = vpop.f32.mrb[0].mxu0
      %948 = vmatprep.mubr.bf16.mxu0 0
      %949 = vmatmul.mubr.bf16.gmra.mrb[0].mxu0 %v572
      %v950 = vpop.f32.mrb[0].mxu0
      %v951 = vadd.f32 0.0, %v950
      %v952 = vpop.f32.mrb[0].mxu0
      %v953 = vpop.f32.mrb[0].mxu0
      %v954 = vadd.f32 0.0, %v953
      %v955 = vpop.f32.mrb[0].mxu0
      %956 = vmatprep.mubr.bf16.mxu0 0
      %957 = vmatmul.mubr.bf16.gmra.mrb[0].mxu0 %v573
      %v958 = vpop.f32.mrb[0].mxu0
      %v959 = vadd.f32 0.0, %v958
      %v960 = vpop.f32.mrb[0].mxu0
      %v961 = vpop.f32.mrb[0].mxu0
      %v962 = vadd.f32 0.0, %v961
      %v963 = vpop.f32.mrb[0].mxu0
      %964 = vmatprep.mubr.bf16.mxu0 0
      %965 = vmatmul.mubr.bf16.gmra.mrb[0].mxu0 %v574
      %v966 = vpop.f32.mrb[0].mxu0
      %v967 = vadd.f32 0.0, %v966
      %v968 = vpop.f32.mrb[0].mxu0
      %v969 = vpop.f32.mrb[0].mxu0
      %v970 = vadd.f32 0.0, %v969
      %v971 = vpop.f32.mrb[0].mxu0
      %972 = vmatprep.mubr.bf16.mxu0 0
      %973 = vmatmul.mubr.bf16.gmra.mrb[0].mxu0 %v575
      %v974 = vpop.f32.mrb[0].mxu0
      %v975 = vadd.f32 0.0, %v974
      %v976 = vpop.f32.mrb[0].mxu0
      %v977 = vpop.f32.mrb[0].mxu0
      %v978 = vadd.f32 0.0, %v977
      %v979 = vpop.f32.mrb[0].mxu0
      %980 = vmatprep.mubr.bf16.mxu0 0
      %981 = vmatmul.mubr.bf16.gmra.mrb[0].mxu0 %v576
      %v982 = vpop.f32.mrb[0].mxu0
      %v983 = vadd.f32 0.0, %v982
      %v984 = vpop.f32.mrb[0].mxu0
      %v985 = vpop.f32.mrb[0].mxu0
      %v986 = vadd.f32 0.0, %v985
      %v987 = vpop.f32.mrb[0].mxu0
      %988 = vmatprep.mubr.bf16.mxu0 0
      %989 = vmatmul.mubr.bf16.gmra.mrb[0].mxu0 %v577
      %v990 = vpop.f32.mrb[0].mxu0
      %v991 = vadd.f32 0.0, %v990
      %v992 = vpop.f32.mrb[0].mxu0
      %v993 = vpop.f32.mrb[0].mxu0
      %v994 = vadd.f32 0.0, %v993
      %v995 = vpop.f32.mrb[0].mxu0
      %996 = vmatprep.mubr.bf16.mxu0 0
      %997 = vmatmul.mubr.bf16.gmra.mrb[0].mxu0 %v578
      %v998 = vpop.f32.mrb[0].mxu0
      %v999 = vadd.f32 0.0, %v998
      %v1000 = vpop.f32.mrb[0].mxu0
      %v1001 = vpop.f32.mrb[0].mxu0
      %v1002 = vadd.f32 0.0, %v1001
      %v1003 = vpop.f32.mrb[0].mxu0
      %1004 = vmatprep.mubr.bf16.mxu0 0
      %1005 = vmatmul.mubr.bf16.gmra.mrb[0].mxu0 %v579
      %v1006 = vpop.f32.mrb[0].mxu0
      %v1007 = vadd.f32 0.0, %v1006
      %v1008 = vpop.f32.mrb[0].mxu0
      %v1009 = vpop.f32.mrb[0].mxu0
      %v1010 = vadd.f32 0.0, %v1009
      %v1011 = vpop.f32.mrb[0].mxu0
      %1012 = vmatprep.mubr.bf16.mxu0 0
      %1013 = vmatmul.mubr.bf16.gmra.mrb[0].mxu0 %v580
      %v1014 = vpop.f32.mrb[0].mxu0
      %v1015 = vadd.f32 0.0, %v1014
      %v1016 = vpop.f32.mrb[0].mxu0
      %v1017 = vpop.f32.mrb[0].mxu0
      %v1018 = vadd.f32 0.0, %v1017
      %v1019 = vpop.f32.mrb[0].mxu0
      %1020 = vmatprep.mubr.bf16.mxu0 0
      %1021 = vmatmul.mubr.bf16.gmra.mrb[0].mxu0 %v581
      %v1022 = vpop.f32.mrb[0].mxu0
      %v1023 = vadd.f32 0.0, %v1022
      %v1024 = vpop.f32.mrb[0].mxu0
      %v1025 = vpop.f32.mrb[0].mxu0
      %v1026 = vadd.f32 0.0, %v1025
      %v1027 = vpop.f32.mrb[0].mxu0
      %1028 = vmatprep.mubr.bf16.mxu0 0
      %1029 = vmatmul.mubr.bf16.gmra.mrb[0].mxu0 %v582
      %v1030 = vpop.f32.mrb[0].mxu0
      %v1031 = vadd.f32 0.0, %v1030
      %v1032 = vpop.f32.mrb[0].mxu0
      %v1033 = vpop.f32.mrb[0].mxu0
      %v1034 = vadd.f32 0.0, %v1033
      %v1035 = vpop.f32.mrb[0].mxu0
      %1036 = vmatprep.mubr.bf16.mxu0 0
      %1037 = vmatmul.mubr.bf16.gmra.mrb[0].mxu0 %v583
      %v1038 = vpop.f32.mrb[0].mxu0
      %v1039 = vadd.f32 0.0, %v1038
      %v1040 = vpop.f32.mrb[0].mxu0
      %v1041 = vpop.f32.mrb[0].mxu0
      %v1042 = vadd.f32 0.0, %v1041
      %v1043 = vpop.f32.mrb[0].mxu0
      %1044 = vmatprep.mubr.bf16.mxu0 0
      %1045 = vmatmul.mubr.bf16.gmra.mrb[0].mxu0 %v584
      %v1046 = vpop.f32.mrb[0].mxu0
      %v1047 = vadd.f32 0.0, %v1046
      %v1048 = vpop.f32.mrb[0].mxu0
      %v1049 = vpop.f32.mrb[0].mxu0
      %v1050 = vadd.f32 0.0, %v1049
      %v1051 = vpop.f32.mrb[0].mxu0
      %1052 = vmatprep.mubr.bf16.mxu0 0
      %1053 = vmatmul.mubr.bf16.gmra.mrb[0].mxu0 %v585
      %v1054 = vpop.f32.mrb[0].mxu0
      %v1055 = vadd.f32 0.0, %v1054
      %v1056 = vpop.f32.mrb[0].mxu0
      %v1057 = vpop.f32.mrb[0].mxu0
      %v1058 = vadd.f32 0.0, %v1057
      %v1059 = vpop.f32.mrb[0].mxu0
      %1060 = vmatprep.mubr.bf16.mxu0 0
      %1061 = vmatmul.mubr.bf16.gmra.mrb[0].mxu0 %v586
      %v1062 = vpop.f32.mrb[0].mxu0
      %v1063 = vadd.f32 0.0, %v1062
      %v1064 = vpop.f32.mrb[0].mxu0
      %v1065 = vpop.f32.mrb[0].mxu0
      %v1066 = vadd.f32 0.0, %v1065
      %v1067 = vpop.f32.mrb[0].mxu0
      %1068 = vmatprep.mubr.bf16.mxu0 0
      %1069 = vmatmul.mubr.bf16.gmra.mrb[0].mxu0 %v587
      %v1070 = vpop.f32.mrb[0].mxu0
      %v1071 = vadd.f32 0.0, %v1070
      %v1072 = vpop.f32.mrb[0].mxu0
      %v1073 = vpop.f32.mrb[0].mxu0
      %v1074 = vadd.f32 0.0, %v1073
      %v1075 = vpop.f32.mrb[0].mxu0
      %1076 = vmatprep.mubr.bf16.mxu0 0
      %1077 = vmatmul.mubr.bf16.gmra.mrb[0].mxu0 %v588
      %v1078 = vpop.f32.mrb[0].mxu0
      %v1079 = vadd.f32 0.0, %v1078
      %v1080 = vpop.f32.mrb[0].mxu0
      %v1081 = vpop.f32.mrb[0].mxu0
      %v1082 = vadd.f32 0.0, %v1081
      %v1083 = vpop.f32.mrb[0].mxu0
      %1084 = vmatprep.mubr.bf16.mxu0 0
      %1085 = vmatmul.mubr.bf16.gmra.mrb[0].mxu0 %v589
      %v1086 = vpop.f32.mrb[0].mxu0
      %v1087 = vadd.f32 0.0, %v1086
      %v1088 = vpop.f32.mrb[0].mxu0
      %v1089 = vpop.f32.mrb[0].mxu0
      %v1090 = vadd.f32 0.0, %v1089
      %v1091 = vpop.f32.mrb[0].mxu0
      %1092 = vmatprep.mubr.bf16.mxu0 0
      %1093 = vmatmul.mubr.bf16.gmra.mrb[0].mxu0 %v590
      %v1094 = vpop.f32.mrb[0].mxu0
      %v1095 = vadd.f32 0.0, %v1094
      %v1096 = vpop.f32.mrb[0].mxu0
      %v1097 = vpop.f32.mrb[0].mxu0
      %v1098 = vadd.f32 0.0, %v1097
      %v1099 = vpop.f32.mrb[0].mxu0
      %1100 = vmatprep.mubr.bf16.mxu0 0
      %1101 = vmatmul.mubr.bf16.gmra.mrb[0].mxu0 %v591
      %v1102 = vpop.f32.mrb[0].mxu0
      %v1103 = vadd.f32 0.0, %v1102
      %v1104 = vpop.f32.mrb[0].mxu0
      %v1105 = vpop.f32.mrb[0].mxu0
      %v1106 = vadd.f32 0.0, %v1105
      %v1107 = vpop.f32.mrb[0].mxu0
      %1108 = vmatprep.mubr.bf16.mxu0 0
      %1109 = vmatmul.mubr.bf16.gmra.mrb[0].mxu0 %v592
      %v1110 = vpop.f32.mrb[0].mxu0
      %v1111 = vadd.f32 0.0, %v1110
      %v1112 = vpop.f32.mrb[0].mxu0
      %v1113 = vpop.f32.mrb[0].mxu0
      %v1114 = vadd.f32 0.0, %v1113
      %v1115 = vpop.f32.mrb[0].mxu0
      %1116 = vmatprep.mubr.bf16.mxu0 0
      %1117 = vmatmul.mubr.bf16.gmra.mrb[0].mxu0 %v593
      %v1118 = vpop.f32.mrb[0].mxu0
      %v1119 = vadd.f32 0.0, %v1118
      %v1120 = vpop.f32.mrb[0].mxu0
      %v1121 = vpop.f32.mrb[0].mxu0
      %v1122 = vadd.f32 0.0, %v1121
      %v1123 = vpop.f32.mrb[0].mxu0
      %1124 = vmatprep.mubr.bf16.mxu0 0
      %1125 = vmatmul.mubr.bf16.gmra.mrb[0].mxu0 %v594
      %v1126 = vpop.f32.mrb[0].mxu0
      %v1127 = vadd.f32 0.0, %v1126
      %v1128 = vpop.f32.mrb[0].mxu0
      %v1129 = vpop.f32.mrb[0].mxu0
      %v1130 = vadd.f32 0.0, %v1129
      %v1131 = vpop.f32.mrb[0].mxu0
      %1132 = vmatprep.mubr.bf16.mxu0 0
      %1133 = vmatmul.mubr.bf16.gmra.mrb[0].mxu0 %v595
      %v1134 = vpop.f32.mrb[0].mxu0
      %v1135 = vadd.f32 0.0, %v1134
      %v1136 = vpop.f32.mrb[0].mxu0
      %v1137 = vpop.f32.mrb[0].mxu0
      %v1138 = vadd.f32 0.0, %v1137
      %v1139 = vpop.f32.mrb[0].mxu0
      %1140 = vmatprep.mubr.bf16.mxu0 0
      %1141 = vmatmul.mubr.bf16.gmra.mrb[0].mxu0 %v596
      %v1142 = vpop.f32.mrb[0].mxu0
      %v1143 = vadd.f32 0.0, %v1142
      %v1144 = vpop.f32.mrb[0].mxu0
      %v1145 = vpop.f32.mrb[0].mxu0
      %v1146 = vadd.f32 0.0, %v1145
      %v1147 = vpop.f32.mrb[0].mxu0
      %1148 = vmatprep.mubr.bf16.mxu0 0
      %1149 = vmatmul.mubr.bf16.gmra.mrb[0].mxu0 %v597
      %v1150 = vpop.f32.mrb[0].mxu0
      %v1151 = vadd.f32 0.0, %v1150
      %v1152 = vpop.f32.mrb[0].mxu0
      %v1153 = vpop.f32.mrb[0].mxu0
      %v1154 = vadd.f32 0.0, %v1153
      %v1155 = vpop.f32.mrb[0].mxu0
      %1156 = vmatprep.mubr.bf16.mxu0 0
      %1157 = vmatmul.mubr.bf16.gmra.mrb[0].mxu0 %v598
      %v1158 = vpop.f32.mrb[0].mxu0
      %v1159 = vadd.f32 0.0, %v1158
      %v1160 = vpop.f32.mrb[0].mxu0
      %v1161 = vpop.f32.mrb[0].mxu0
      %v1162 = vadd.f32 0.0, %v1161
      %v1163 = vpop.f32.mrb[0].mxu0
      %1164 = vmatprep.mubr.bf16.mxu0 0
      %1165 = vmatmul.mubr.bf16.gmra.mrb[0].mxu0 %v599
      %v1166 = vpop.f32.mrb[0].mxu0
      %v1167 = vadd.f32 0.0, %v1166
      %v1168 = vpop.f32.mrb[0].mxu0
      %v1169 = vpop.f32.mrb[0].mxu0
      %v1170 = vadd.f32 0.0, %v1169
      %v1171 = vpop.f32.mrb[0].mxu0
      %1172 = vmatprep.mubr.bf16.mxu0 0
      %1173 = vmatmul.mubr.bf16.gmra.mrb[0].mxu0 %v600
      %v1174 = vpop.f32.mrb[0].mxu0
      %v1175 = vadd.f32 0.0, %v1174
      %v1176 = vpop.f32.mrb[0].mxu0
      %v1177 = vpop.f32.mrb[0].mxu0
      %v1178 = vadd.f32 0.0, %v1177
      %v1179 = vpop.f32.mrb[0].mxu0
      %1180 = vmatprep.mubr.bf16.mxu0 0
      %1181 = vmatmul.mubr.bf16.gmra.mrb[0].mxu0 %v601
      %v1182 = vpop.f32.mrb[0].mxu0
      %v1183 = vadd.f32 0.0, %v1182
      %v1184 = vpop.f32.mrb[0].mxu0
      %v1185 = vpop.f32.mrb[0].mxu0
      %v1186 = vadd.f32 0.0, %v1185
      %v1187 = vpop.f32.mrb[0].mxu0
      %1188 = vmatprep.mubr.bf16.mxu0 0
      %1189 = vmatmul.mubr.bf16.gmra.mrb[0].mxu0 %v602
      %v1190 = vpop.f32.mrb[0].mxu0
      %v1191 = vadd.f32 0.0, %v1190
      %v1192 = vpop.f32.mrb[0].mxu0
      %v1193 = vpop.f32.mrb[0].mxu0
      %v1194 = vadd.f32 0.0, %v1193
      %v1195 = vpop.f32.mrb[0].mxu0
      %1196 = vmatprep.mubr.bf16.mxu0 0
      %1197 = vmatmul.mubr.bf16.gmra.mrb[0].mxu0 %v603
      %v1198 = vpop.f32.mrb[0].mxu0
      %v1199 = vadd.f32 0.0, %v1198
      %v1200 = vpop.f32.mrb[0].mxu0
      %v1201 = vpop.f32.mrb[0].mxu0
      %v1202 = vadd.f32 0.0, %v1201
      %v1203 = vpop.f32.mrb[0].mxu0
      %1204 = vmatprep.mubr.bf16.mxu0 0
      %1205 = vmatmul.mubr.bf16.gmra.mrb[0].mxu0 %v604
      %v1206 = vpop.f32.mrb[0].mxu0
      %v1207 = vadd.f32 0.0, %v1206
      %v1208 = vpop.f32.mrb[0].mxu0
      %v1209 = vpop.f32.mrb[0].mxu0
      %v1210 = vadd.f32 0.0, %v1209
      %v1211 = vpop.f32.mrb[0].mxu0
      %1212 = vmatprep.mubr.bf16.mxu0 0
      %1213 = vmatmul.mubr.bf16.gmra.mrb[0].mxu0 %v605
      %v1214 = vpop.f32.mrb[0].mxu0
      %v1215 = vadd.f32 0.0, %v1214
      %v1216 = vpop.f32.mrb[0].mxu0
      %v1217 = vpop.f32.mrb[0].mxu0
      %v1218 = vadd.f32 0.0, %v1217
      %v1219 = vpop.f32.mrb[0].mxu0
      %1220 = vmatprep.mubr.bf16.mxu0 0
      %1221 = vmatmul.mubr.bf16.gmra.mrb[0].mxu0 %v606
      %v1222 = vpop.f32.mrb[0].mxu0
      %v1223 = vadd.f32 0.0, %v1222
      %v1224 = vpop.f32.mrb[0].mxu0
      %v1225 = vpop.f32.mrb[0].mxu0
      %v1226 = vadd.f32 0.0, %v1225
      %v1227 = vpop.f32.mrb[0].mxu0
      %1228 = vmatprep.mubr.bf16.mxu0 0
      %1229 = vmatmul.mubr.bf16.gmra.mrb[0].mxu0 %v607
      %v1230 = vpop.f32.mrb[0].mxu0
      %v1231 = vadd.f32 0.0, %v1230
      %v1232 = vpop.f32.mrb[0].mxu0
      %v1233 = vpop.f32.mrb[0].mxu0
      %v1234 = vadd.f32 0.0, %v1233
      %v1235 = vpop.f32.mrb[0].mxu0
      %1236 = vmatprep.mubr.bf16.mxu0 0
      %1237 = vmatmul.mubr.bf16.gmra.mrb[0].mxu0 %v608
      %v1238 = vpop.f32.mrb[0].mxu0
      %v1239 = vadd.f32 0.0, %v1238
      %v1240 = vpop.f32.mrb[0].mxu0
      %v1241 = vpop.f32.mrb[0].mxu0
      %v1242 = vadd.f32 0.0, %v1241
      %v1243 = vpop.f32.mrb[0].mxu0
      %1244 = vmatprep.mubr.bf16.mxu0 0
      %1245 = vmatmul.mubr.bf16.gmra.mrb[0].mxu0 %v609
      %v1246 = vpop.f32.mrb[0].mxu0
      %v1247 = vadd.f32 0.0, %v1246
      %v1248 = vpop.f32.mrb[0].mxu0
      %v1249 = vpop.f32.mrb[0].mxu0
      %v1250 = vadd.f32 0.0, %v1249
      %v1251 = vpop.f32.mrb[0].mxu0
      %1252 = vmatprep.mubr.bf16.mxu0 0
      %1253 = vmatmul.mubr.bf16.gmra.mrb[0].mxu0 %v610
      %v1254 = vpop.f32.mrb[0].mxu0
      %v1255 = vadd.f32 0.0, %v1254
      %v1256 = vpop.f32.mrb[0].mxu0
      %v1257 = vpop.f32.mrb[0].mxu0
      %v1258 = vadd.f32 0.0, %v1257
      %v1259 = vpop.f32.mrb[0].mxu0
      %1260 = vmatprep.mubr.bf16.mxu0 0
      %1261 = vmatmul.mubr.bf16.gmra.mrb[0].mxu0 %v611
      %v1262 = vpop.f32.mrb[0].mxu0
      %v1263 = vadd.f32 0.0, %v1262
      %v1264 = vpop.f32.mrb[0].mxu0
      %v1265 = vpop.f32.mrb[0].mxu0
      %v1266 = vadd.f32 0.0, %v1265
      %v1267 = vpop.f32.mrb[0].mxu0
      %1268 = vdwg.mxu0
      %vm1269 = vcmp.ge.f32.partialorder %v759, 0.0
      %vm1270 = vcmp.ge.f32.partialorder %v762, 0.0
      %vm1271 = vcmp.ge.f32.partialorder %v767, 0.0
      %vm1272 = vcmp.ge.f32.partialorder %v770, 0.0
      %vm1273 = vcmp.ge.f32.partialorder %v775, 0.0
      %vm1274 = vcmp.ge.f32.partialorder %v778, 0.0
      %vm1275 = vcmp.ge.f32.partialorder %v783, 0.0
      %vm1276 = vcmp.ge.f32.partialorder %v786, 0.0
      %vm1277 = vcmp.ge.f32.partialorder %v791, 0.0
      %vm1278 = vcmp.ge.f32.partialorder %v794, 0.0
      %vm1279 = vcmp.ge.f32.partialorder %v799, 0.0
      %vm1280 = vcmp.ge.f32.partialorder %v802, 0.0
      %vm1281 = vcmp.ge.f32.partialorder %v807, 0.0
      %vm1282 = vcmp.ge.f32.partialorder %v810, 0.0
      %vm1283 = vcmp.ge.f32.partialorder %v815, 0.0
      %vm1284 = vcmp.ge.f32.partialorder %v818, 0.0
      %vm1285 = vcmp.ge.f32.partialorder %v823, 0.0
      %vm1286 = vcmp.ge.f32.partialorder %v826, 0.0
      %vm1287 = vcmp.ge.f32.partialorder %v831, 0.0
      %vm1288 = vcmp.ge.f32.partialorder %v834, 0.0
      %vm1289 = vcmp.ge.f32.partialorder %v839, 0.0
      %vm1290 = vcmp.ge.f32.partialorder %v842, 0.0
      %vm1291 = vcmp.ge.f32.partialorder %v847, 0.0
      %vm1292 = vcmp.ge.f32.partialorder %v850, 0.0
      %vm1293 = vcmp.ge.f32.partialorder %v855, 0.0
      %vm1294 = vcmp.ge.f32.partialorder %v858, 0.0
      %vm1295 = vcmp.ge.f32.partialorder %v863, 0.0
      %vm1296 = vcmp.ge.f32.partialorder %v866, 0.0
      %vm1297 = vcmp.ge.f32.partialorder %v871, 0.0
      %vm1298 = vcmp.ge.f32.partialorder %v874, 0.0
      %vm1299 = vcmp.ge.f32.partialorder %v879, 0.0
      %vm1300 = vcmp.ge.f32.partialorder %v882, 0.0
      %vm1301 = vcmp.ge.f32.partialorder %v887, 0.0
      %vm1302 = vcmp.ge.f32.partialorder %v890, 0.0
      %vm1303 = vcmp.ge.f32.partialorder %v895, 0.0
      %vm1304 = vcmp.ge.f32.partialorder %v898, 0.0
      %vm1305 = vcmp.ge.f32.partialorder %v903, 0.0
      %vm1306 = vcmp.ge.f32.partialorder %v906, 0.0
      %vm1307 = vcmp.ge.f32.partialorder %v911, 0.0
      %vm1308 = vcmp.ge.f32.partialorder %v914, 0.0
      %vm1309 = vcmp.ge.f32.partialorder %v919, 0.0
      %vm1310 = vcmp.ge.f32.partialorder %v922, 0.0
      %vm1311 = vcmp.ge.f32.partialorder %v927, 0.0
      %vm1312 = vcmp.ge.f32.partialorder %v930, 0.0
      %vm1313 = vcmp.ge.f32.partialorder %v935, 0.0
      %vm1314 = vcmp.ge.f32.partialorder %v938, 0.0
      %vm1315 = vcmp.ge.f32.partialorder %v943, 0.0
      %vm1316 = vcmp.ge.f32.partialorder %v946, 0.0
      %vm1317 = vcmp.ge.f32.partialorder %v951, 0.0
      %vm1318 = vcmp.ge.f32.partialorder %v954, 0.0
      %vm1319 = vcmp.ge.f32.partialorder %v959, 0.0
      %vm1320 = vcmp.ge.f32.partialorder %v962, 0.0
      %vm1321 = vcmp.ge.f32.partialorder %v967, 0.0
      %vm1322 = vcmp.ge.f32.partialorder %v970, 0.0
      %vm1323 = vcmp.ge.f32.partialorder %v975, 0.0
      %vm1324 = vcmp.ge.f32.partialorder %v978, 0.0
      %vm1325 = vcmp.ge.f32.partialorder %v983, 0.0
      %vm1326 = vcmp.ge.f32.partialorder %v986, 0.0
      %vm1327 = vcmp.ge.f32.partialorder %v991, 0.0
      %vm1328 = vcmp.ge.f32.partialorder %v994, 0.0
      %vm1329 = vcmp.ge.f32.partialorder %v999, 0.0
      %vm1330 = vcmp.ge.f32.partialorder %v1002, 0.0
      %vm1331 = vcmp.ge.f32.partialorder %v1007, 0.0
      %vm1332 = vcmp.ge.f32.partialorder %v1010, 0.0
      %vm1333 = vcmp.ge.f32.partialorder %v1015, 0.0
      %vm1334 = vcmp.ge.f32.partialorder %v1018, 0.0
      %vm1335 = vcmp.ge.f32.partialorder %v1023, 0.0
      %vm1336 = vcmp.ge.f32.partialorder %v1026, 0.0
      %vm1337 = vcmp.ge.f32.partialorder %v1031, 0.0
      %vm1338 = vcmp.ge.f32.partialorder %v1034, 0.0
      %vm1339 = vcmp.ge.f32.partialorder %v1039, 0.0
      %vm1340 = vcmp.ge.f32.partialorder %v1042, 0.0
      %vm1341 = vcmp.ge.f32.partialorder %v1047, 0.0
      %vm1342 = vcmp.ge.f32.partialorder %v1050, 0.0
      %vm1343 = vcmp.ge.f32.partialorder %v1055, 0.0
      %vm1344 = vcmp.ge.f32.partialorder %v1058, 0.0
      %vm1345 = vcmp.ge.f32.partialorder %v1063, 0.0
      %vm1346 = vcmp.ge.f32.partialorder %v1066, 0.0
      %vm1347 = vcmp.ge.f32.partialorder %v1071, 0.0
      %vm1348 = vcmp.ge.f32.partialorder %v1074, 0.0
      %vm1349 = vcmp.ge.f32.partialorder %v1079, 0.0
      %vm1350 = vcmp.ge.f32.partialorder %v1082, 0.0
      %vm1351 = vcmp.ge.f32.partialorder %v1087, 0.0
      %vm1352 = vcmp.ge.f32.partialorder %v1090, 0.0
      %vm1353 = vcmp.ge.f32.partialorder %v1095, 0.0
      %vm1354 = vcmp.ge.f32.partialorder %v1098, 0.0
      %vm1355 = vcmp.ge.f32.partialorder %v1103, 0.0
      %vm1356 = vcmp.ge.f32.partialorder %v1106, 0.0
      %vm1357 = vcmp.ge.f32.partialorder %v1111, 0.0
      %vm1358 = vcmp.ge.f32.partialorder %v1114, 0.0
      %vm1359 = vcmp.ge.f32.partialorder %v1119, 0.0
      %vm1360 = vcmp.ge.f32.partialorder %v1122, 0.0
      %vm1361 = vcmp.ge.f32.partialorder %v1127, 0.0
      %vm1362 = vcmp.ge.f32.partialorder %v1130, 0.0
      %vm1363 = vcmp.ge.f32.partialorder %v1135, 0.0
      %vm1364 = vcmp.ge.f32.partialorder %v1138, 0.0
      %vm1365 = vcmp.ge.f32.partialorder %v1143, 0.0
      %vm1366 = vcmp.ge.f32.partialorder %v1146, 0.0
      %vm1367 = vcmp.ge.f32.partialorder %v1151, 0.0
      %vm1368 = vcmp.ge.f32.partialorder %v1154, 0.0
      %vm1369 = vcmp.ge.f32.partialorder %v1159, 0.0
      %vm1370 = vcmp.ge.f32.partialorder %v1162, 0.0
      %vm1371 = vcmp.ge.f32.partialorder %v1167, 0.0
      %vm1372 = vcmp.ge.f32.partialorder %v1170, 0.0
      %vm1373 = vcmp.ge.f32.partialorder %v1175, 0.0
      %vm1374 = vcmp.ge.f32.partialorder %v1178, 0.0
      %vm1375 = vcmp.ge.f32.partialorder %v1183, 0.0
      %vm1376 = vcmp.ge.f32.partialorder %v1186, 0.0
      %vm1377 = vcmp.ge.f32.partialorder %v1191, 0.0
      %vm1378 = vcmp.ge.f32.partialorder %v1194, 0.0
      %vm1379 = vcmp.ge.f32.partialorder %v1199, 0.0
      %vm1380 = vcmp.ge.f32.partialorder %v1202, 0.0
      %vm1381 = vcmp.ge.f32.partialorder %v1207, 0.0
      %vm1382 = vcmp.ge.f32.partialorder %v1210, 0.0
      %vm1383 = vcmp.ge.f32.partialorder %v1215, 0.0
      %vm1384 = vcmp.ge.f32.partialorder %v1218, 0.0
      %vm1385 = vcmp.ge.f32.partialorder %v1223, 0.0
      %vm1386 = vcmp.ge.f32.partialorder %v1226, 0.0
      %vm1387 = vcmp.ge.f32.partialorder %v1231, 0.0
      %vm1388 = vcmp.ge.f32.partialorder %v1234, 0.0
      %vm1389 = vcmp.ge.f32.partialorder %v1239, 0.0
      %vm1390 = vcmp.ge.f32.partialorder %v1242, 0.0
      %vm1391 = vcmp.ge.f32.partialorder %v1247, 0.0
      %vm1392 = vcmp.ge.f32.partialorder %v1250, 0.0
      %vm1393 = vcmp.ge.f32.partialorder %v1255, 0.0
      %vm1394 = vcmp.ge.f32.partialorder %v1258, 0.0
      %vm1395 = vcmp.ge.f32.partialorder %v1263, 0.0
      %vm1396 = vcmp.ge.f32.partialorder %v1266, 0.0
      %v1397 = vmul.f32 %v759, 0.2
      %v1398 = vmul.f32 %v762, 0.2
      %v1399 = vmul.f32 %v767, 0.2
      %v1400 = vmul.f32 %v770, 0.2
      %v1401 = vmul.f32 %v775, 0.2
      %v1402 = vmul.f32 %v778, 0.2
      %v1403 = vmul.f32 %v783, 0.2
      %v1404 = vmul.f32 %v786, 0.2
      %v1405 = vmul.f32 %v791, 0.2
      %v1406 = vmul.f32 %v794, 0.2
      %v1407 = vmul.f32 %v799, 0.2
      %v1408 = vmul.f32 %v802, 0.2
      %v1409 = vmul.f32 %v807, 0.2
      %v1410 = vmul.f32 %v810, 0.2
      %v1411 = vmul.f32 %v815, 0.2
      %v1412 = vmul.f32 %v818, 0.2
      %v1413 = vmul.f32 %v823, 0.2
      %v1414 = vmul.f32 %v826, 0.2
      %v1415 = vmul.f32 %v831, 0.2
      %v1416 = vmul.f32 %v834, 0.2
      %v1417 = vmul.f32 %v839, 0.2
      %v1418 = vmul.f32 %v842, 0.2
      %v1419 = vmul.f32 %v847, 0.2
      %v1420 = vmul.f32 %v850, 0.2
      %v1421 = vmul.f32 %v855, 0.2
      %v1422 = vmul.f32 %v858, 0.2
      %v1423 = vmul.f32 %v863, 0.2
      %v1424 = vmul.f32 %v866, 0.2
      %v1425 = vmul.f32 %v871, 0.2
      %v1426 = vmul.f32 %v874, 0.2
      %v1427 = vmul.f32 %v879, 0.2
      %v1428 = vmul.f32 %v882, 0.2
      %v1429 = vmul.f32 %v887, 0.2
      %v1430 = vmul.f32 %v890, 0.2
      %v1431 = vmul.f32 %v895, 0.2
      %v1432 = vmul.f32 %v898, 0.2
      %v1433 = vmul.f32 %v903, 0.2
      %v1434 = vmul.f32 %v906, 0.2
      %v1435 = vmul.f32 %v911, 0.2
      %v1436 = vmul.f32 %v914, 0.2
      %v1437 = vmul.f32 %v919, 0.2
      %v1438 = vmul.f32 %v922, 0.2
      %v1439 = vmul.f32 %v927, 0.2
      %v1440 = vmul.f32 %v930, 0.2
      %v1441 = vmul.f32 %v935, 0.2
      %v1442 = vmul.f32 %v938, 0.2
      %v1443 = vmul.f32 %v943, 0.2
      %v1444 = vmul.f32 %v946, 0.2
      %v1445 = vmul.f32 %v951, 0.2
      %v1446 = vmul.f32 %v954, 0.2
      %v1447 = vmul.f32 %v959, 0.2
      %v1448 = vmul.f32 %v962, 0.2
      %v1449 = vmul.f32 %v967, 0.2
      %v1450 = vmul.f32 %v970, 0.2
      %v1451 = vmul.f32 %v975, 0.2
      %v1452 = vmul.f32 %v978, 0.2
      %v1453 = vmul.f32 %v983, 0.2
      %v1454 = vmul.f32 %v986, 0.2
      %v1455 = vmul.f32 %v991, 0.2
      %v1456 = vmul.f32 %v994, 0.2
      %v1457 = vmul.f32 %v999, 0.2
      %v1458 = vmul.f32 %v1002, 0.2
      %v1459 = vmul.f32 %v1007, 0.2
      %v1460 = vmul.f32 %v1010, 0.2
      %v1461 = vmul.f32 %v1015, 0.2
      %v1462 = vmul.f32 %v1018, 0.2
      %v1463 = vmul.f32 %v1023, 0.2
      %v1464 = vmul.f32 %v1026, 0.2
      %v1465 = vmul.f32 %v1031, 0.2
      %v1466 = vmul.f32 %v1034, 0.2
      %v1467 = vmul.f32 %v1039, 0.2
      %v1468 = vmul.f32 %v1042, 0.2
      %v1469 = vmul.f32 %v1047, 0.2
      %v1470 = vmul.f32 %v1050, 0.2
      %v1471 = vmul.f32 %v1055, 0.2
      %v1472 = vmul.f32 %v1058, 0.2
      %v1473 = vmul.f32 %v1063, 0.2
      %v1474 = vmul.f32 %v1066, 0.2
      %v1475 = vmul.f32 %v1071, 0.2
      %v1476 = vmul.f32 %v1074, 0.2
      %v1477 = vmul.f32 %v1079, 0.2
      %v1478 = vmul.f32 %v1082, 0.2
      %v1479 = vmul.f32 %v1087, 0.2
      %v1480 = vmul.f32 %v1090, 0.2
      %v1481 = vmul.f32 %v1095, 0.2
      %v1482 = vmul.f32 %v1098, 0.2
      %v1483 = vmul.f32 %v1103, 0.2
      %v1484 = vmul.f32 %v1106, 0.2
      %v1485 = vmul.f32 %v1111, 0.2
      %v1486 = vmul.f32 %v1114, 0.2
      %v1487 = vmul.f32 %v1119, 0.2
      %v1488 = vmul.f32 %v1122, 0.2
      %v1489 = vmul.f32 %v1127, 0.2
      %v1490 = vmul.f32 %v1130, 0.2
      %v1491 = vmul.f32 %v1135, 0.2
      %v1492 = vmul.f32 %v1138, 0.2
      %v1493 = vmul.f32 %v1143, 0.2
      %v1494 = vmul.f32 %v1146, 0.2
      %v1495 = vmul.f32 %v1151, 0.2
      %v1496 = vmul.f32 %v1154, 0.2
      %v1497 = vmul.f32 %v1159, 0.2
      %v1498 = vmul.f32 %v1162, 0.2
      %v1499 = vmul.f32 %v1167, 0.2
      %v1500 = vmul.f32 %v1170, 0.2
      %v1501 = vmul.f32 %v1175, 0.2
      %v1502 = vmul.f32 %v1178, 0.2
      %v1503 = vmul.f32 %v1183, 0.2
      %v1504 = vmul.f32 %v1186, 0.2
      %v1505 = vmul.f32 %v1191, 0.2
      %v1506 = vmul.f32 %v1194, 0.2
      %v1507 = vmul.f32 %v1199, 0.2
      %v1508 = vmul.f32 %v1202, 0.2
      %v1509 = vmul.f32 %v1207, 0.2
      %v1510 = vmul.f32 %v1210, 0.2
      %v1511 = vmul.f32 %v1215, 0.2
      %v1512 = vmul.f32 %v1218, 0.2
      %v1513 = vmul.f32 %v1223, 0.2
      %v1514 = vmul.f32 %v1226, 0.2
      %v1515 = vmul.f32 %v1231, 0.2
      %v1516 = vmul.f32 %v1234, 0.2
      %v1517 = vmul.f32 %v1239, 0.2
      %v1518 = vmul.f32 %v1242, 0.2
      %v1519 = vmul.f32 %v1247, 0.2
      %v1520 = vmul.f32 %v1250, 0.2
      %v1521 = vmul.f32 %v1255, 0.2
      %v1522 = vmul.f32 %v1258, 0.2
      %v1523 = vmul.f32 %v1263, 0.2
      %v1524 = vmul.f32 %v1266, 0.2
      %v1525 = vsel %vm1269, %v759, %v1397
      %v1526 = vsel %vm1270, %v762, %v1398
      %v1527 = vsel %vm1271, %v767, %v1399
      %v1528 = vsel %vm1272, %v770, %v1400
      %v1529 = vsel %vm1273, %v775, %v1401
      %v1530 = vsel %vm1274, %v778, %v1402
      %v1531 = vsel %vm1275, %v783, %v1403
      %v1532 = vsel %vm1276, %v786, %v1404
      %v1533 = vsel %vm1277, %v791, %v1405
      %v1534 = vsel %vm1278, %v794, %v1406
      %v1535 = vsel %vm1279, %v799, %v1407
      %v1536 = vsel %vm1280, %v802, %v1408
      %v1537 = vsel %vm1281, %v807, %v1409
      %v1538 = vsel %vm1282, %v810, %v1410
      %v1539 = vsel %vm1283, %v815, %v1411
      %v1540 = vsel %vm1284, %v818, %v1412
      %v1541 = vsel %vm1285, %v823, %v1413
      %v1542 = vsel %vm1286, %v826, %v1414
      %v1543 = vsel %vm1287, %v831, %v1415
      %v1544 = vsel %vm1288, %v834, %v1416
      %v1545 = vsel %vm1289, %v839, %v1417
      %v1546 = vsel %vm1290, %v842, %v1418
      %v1547 = vsel %vm1291, %v847, %v1419
      %v1548 = vsel %vm1292, %v850, %v1420
      %v1549 = vsel %vm1293, %v855, %v1421
      %v1550 = vsel %vm1294, %v858, %v1422
      %v1551 = vsel %vm1295, %v863, %v1423
      %v1552 = vsel %vm1296, %v866, %v1424
      %v1553 = vsel %vm1297, %v871, %v1425
      %v1554 = vsel %vm1298, %v874, %v1426
      %v1555 = vsel %vm1299, %v879, %v1427
      %v1556 = vsel %vm1300, %v882, %v1428
      %v1557 = vsel %vm1301, %v887, %v1429
      %v1558 = vsel %vm1302, %v890, %v1430
      %v1559 = vsel %vm1303, %v895, %v1431
      %v1560 = vsel %vm1304, %v898, %v1432
      %v1561 = vsel %vm1305, %v903, %v1433
      %v1562 = vsel %vm1306, %v906, %v1434
      %v1563 = vsel %vm1307, %v911, %v1435
      %v1564 = vsel %vm1308, %v914, %v1436
      %v1565 = vsel %vm1309, %v919, %v1437
      %v1566 = vsel %vm1310, %v922, %v1438
      %v1567 = vsel %vm1311, %v927, %v1439
      %v1568 = vsel %vm1312, %v930, %v1440
      %v1569 = vsel %vm1313, %v935, %v1441
      %v1570 = vsel %vm1314, %v938, %v1442
      %v1571 = vsel %vm1315, %v943, %v1443
      %v1572 = vsel %vm1316, %v946, %v1444
      %v1573 = vsel %vm1317, %v951, %v1445
      %v1574 = vsel %vm1318, %v954, %v1446
      %v1575 = vsel %vm1319, %v959, %v1447
      %v1576 = vsel %vm1320, %v962, %v1448
      %v1577 = vsel %vm1321, %v967, %v1449
      %v1578 = vsel %vm1322, %v970, %v1450
      %v1579 = vsel %vm1323, %v975, %v1451
      %v1580 = vsel %vm1324, %v978, %v1452
      %v1581 = vsel %vm1325, %v983, %v1453
      %v1582 = vsel %vm1326, %v986, %v1454
      %v1583 = vsel %vm1327, %v991, %v1455
      %v1584 = vsel %vm1328, %v994, %v1456
      %v1585 = vsel %vm1329, %v999, %v1457
      %v1586 = vsel %vm1330, %v1002, %v1458
      %v1587 = vsel %vm1331, %v1007, %v1459
      %v1588 = vsel %vm1332, %v1010, %v1460
      %v1589 = vsel %vm1333, %v1015, %v1461
      %v1590 = vsel %vm1334, %v1018, %v1462
      %v1591 = vsel %vm1335, %v1023, %v1463
      %v1592 = vsel %vm1336, %v1026, %v1464
      %v1593 = vsel %vm1337, %v1031, %v1465
      %v1594 = vsel %vm1338, %v1034, %v1466
      %v1595 = vsel %vm1339, %v1039, %v1467
      %v1596 = vsel %vm1340, %v1042, %v1468
      %v1597 = vsel %vm1341, %v1047, %v1469
      %v1598 = vsel %vm1342, %v1050, %v1470
      %v1599 = vsel %vm1343, %v1055, %v1471
      %v1600 = vsel %vm1344, %v1058, %v1472
      %v1601 = vsel %vm1345, %v1063, %v1473
      %v1602 = vsel %vm1346, %v1066, %v1474
      %v1603 = vsel %vm1347, %v1071, %v1475
      %v1604 = vsel %vm1348, %v1074, %v1476
      %v1605 = vsel %vm1349, %v1079, %v1477
      %v1606 = vsel %vm1350, %v1082, %v1478
      %v1607 = vsel %vm1351, %v1087, %v1479
      %v1608 = vsel %vm1352, %v1090, %v1480
      %v1609 = vsel %vm1353, %v1095, %v1481
      %v1610 = vsel %vm1354, %v1098, %v1482
      %v1611 = vsel %vm1355, %v1103, %v1483
      %v1612 = vsel %vm1356, %v1106, %v1484
      %v1613 = vsel %vm1357, %v1111, %v1485
      %v1614 = vsel %vm1358, %v1114, %v1486
      %v1615 = vsel %vm1359, %v1119, %v1487
      %v1616 = vsel %vm1360, %v1122, %v1488
      %v1617 = vsel %vm1361, %v1127, %v1489
      %v1618 = vsel %vm1362, %v1130, %v1490
      %v1619 = vsel %vm1363, %v1135, %v1491
      %v1620 = vsel %vm1364, %v1138, %v1492
      %v1621 = vsel %vm1365, %v1143, %v1493
      %v1622 = vsel %vm1366, %v1146, %v1494
      %v1623 = vsel %vm1367, %v1151, %v1495
      %v1624 = vsel %vm1368, %v1154, %v1496
      %v1625 = vsel %vm1369, %v1159, %v1497
      %v1626 = vsel %vm1370, %v1162, %v1498
      %v1627 = vsel %vm1371, %v1167, %v1499
      %v1628 = vsel %vm1372, %v1170, %v1500
      %v1629 = vsel %vm1373, %v1175, %v1501
      %v1630 = vsel %vm1374, %v1178, %v1502
      %v1631 = vsel %vm1375, %v1183, %v1503
      %v1632 = vsel %vm1376, %v1186, %v1504
      %v1633 = vsel %vm1377, %v1191, %v1505
      %v1634 = vsel %vm1378, %v1194, %v1506
      %v1635 = vsel %vm1379, %v1199, %v1507
      %v1636 = vsel %vm1380, %v1202, %v1508
      %v1637 = vsel %vm1381, %v1207, %v1509
      %v1638 = vsel %vm1382, %v1210, %v1510
      %v1639 = vsel %vm1383, %v1215, %v1511
      %v1640 = vsel %vm1384, %v1218, %v1512
      %v1641 = vsel %vm1385, %v1223, %v1513
      %v1642 = vsel %vm1386, %v1226, %v1514
      %v1643 = vsel %vm1387, %v1231, %v1515
      %v1644 = vsel %vm1388, %v1234, %v1516
      %v1645 = vsel %vm1389, %v1239, %v1517
      %v1646 = vsel %vm1390, %v1242, %v1518
      %v1647 = vsel %vm1391, %v1247, %v1519
      %v1648 = vsel %vm1392, %v1250, %v1520
      %v1649 = vsel %vm1393, %v1255, %v1521
      %v1650 = vsel %vm1394, %v1258, %v1522
      %v1651 = vsel %vm1395, %v1263, %v1523
      %v1652 = vsel %vm1396, %v1266, %v1524
      %1653 = vst [vmem:[%s145] sm:$0xff] %v1525
      %1654 = vst [vmem:[%s145 + $0x8] sm:$0xff] %v1526
      %1655 = vst [vmem:[%s145 + $0x10] sm:$0xff] %v1527
      %1656 = vst [vmem:[%s145 + $0x18] sm:$0xff] %v1528
      %1657 = vst [vmem:[%s145 + $0x20] sm:$0xff] %v1529
      %1658 = vst [vmem:[%s145 + $0x28] sm:$0xff] %v1530
      %1659 = vst [vmem:[%s145 + $0x30] sm:$0xff] %v1531
      %1660 = vst [vmem:[%s145 + $0x38] sm:$0xff] %v1532
      %1661 = vst [vmem:[%s145 + $0x40] sm:$0xff] %v1533
      %1662 = vst [vmem:[%s145 + $0x48] sm:$0xff] %v1534
      %1663 = vst [vmem:[%s145 + $0x50] sm:$0xff] %v1535
      %1664 = vst [vmem:[%s145 + $0x58] sm:$0xff] %v1536
      %1665 = vst [vmem:[%s145 + $0x60] sm:$0xff] %v1537
      %1666 = vst [vmem:[%s145 + $0x68] sm:$0xff] %v1538
      %1667 = vst [vmem:[%s145 + $0x70] sm:$0xff] %v1539
      %1668 = vst [vmem:[%s145 + $0x78] sm:$0xff] %v1540
      %1669 = vst [vmem:[%s145 + $0x80] sm:$0xff] %v1541
      %1670 = vst [vmem:[%s145 + $0x88] sm:$0xff] %v1542
      %1671 = vst [vmem:[%s145 + $0x90] sm:$0xff] %v1543
      %1672 = vst [vmem:[%s145 + $0x98] sm:$0xff] %v1544
      %1673 = vst [vmem:[%s145 + $0xa0] sm:$0xff] %v1545
      %1674 = vst [vmem:[%s145 + $0xa8] sm:$0xff] %v1546
      %1675 = vst [vmem:[%s145 + $0xb0] sm:$0xff] %v1547
      %1676 = vst [vmem:[%s145 + $0xb8] sm:$0xff] %v1548
      %1677 = vst [vmem:[%s145 + $0xc0] sm:$0xff] %v1549
      %1678 = vst [vmem:[%s145 + $0xc8] sm:$0xff] %v1550
      %1679 = vst [vmem:[%s145 + $0xd0] sm:$0xff] %v1551
      %1680 = vst [vmem:[%s145 + $0xd8] sm:$0xff] %v1552
      %1681 = vst [vmem:[%s145 + $0xe0] sm:$0xff] %v1553
      %1682 = vst [vmem:[%s145 + $0xe8] sm:$0xff] %v1554
      %1683 = vst [vmem:[%s145 + $0xf0] sm:$0xff] %v1555
      %1684 = vst [vmem:[%s145 + $0xf8] sm:$0xff] %v1556
      %1685 = vst [vmem:[%s145 + $0x100] sm:$0xff] %v1557
      %1686 = vst [vmem:[%s145 + $0x108] sm:$0xff] %v1558
      %1687 = vst [vmem:[%s145 + $0x110] sm:$0xff] %v1559
      %1688 = vst [vmem:[%s145 + $0x118] sm:$0xff] %v1560
      %1689 = vst [vmem:[%s145 + $0x120] sm:$0xff] %v1561
      %1690 = vst [vmem:[%s145 + $0x128] sm:$0xff] %v1562
      %1691 = vst [vmem:[%s145 + $0x130] sm:$0xff] %v1563
      %1692 = vst [vmem:[%s145 + $0x138] sm:$0xff] %v1564
      %1693 = vst [vmem:[%s145 + $0x140] sm:$0xff] %v1565
      %1694 = vst [vmem:[%s145 + $0x148] sm:$0xff] %v1566
      %1695 = vst [vmem:[%s145 + $0x150] sm:$0xff] %v1567
      %1696 = vst [vmem:[%s145 + $0x158] sm:$0xff] %v1568
      %1697 = vst [vmem:[%s145 + $0x160] sm:$0xff] %v1569
      %1698 = vst [vmem:[%s145 + $0x168] sm:$0xff] %v1570
      %1699 = vst [vmem:[%s145 + $0x170] sm:$0xff] %v1571
      %1700 = vst [vmem:[%s145 + $0x178] sm:$0xff] %v1572
      %1701 = vst [vmem:[%s145 + $0x180] sm:$0xff] %v1573
      %1702 = vst [vmem:[%s145 + $0x188] sm:$0xff] %v1574
      %1703 = vst [vmem:[%s145 + $0x190] sm:$0xff] %v1575
      %1704 = vst [vmem:[%s145 + $0x198] sm:$0xff] %v1576
      %1705 = vst [vmem:[%s145 + $0x1a0] sm:$0xff] %v1577
      %1706 = vst [vmem:[%s145 + $0x1a8] sm:$0xff] %v1578
      %1707 = vst [vmem:[%s145 + $0x1b0] sm:$0xff] %v1579
      %1708 = vst [vmem:[%s145 + $0x1b8] sm:$0xff] %v1580
      %1709 = vst [vmem:[%s145 + $0x1c0] sm:$0xff] %v1581
      %1710 = vst [vmem:[%s145 + $0x1c8] sm:$0xff] %v1582
      %1711 = vst [vmem:[%s145 + $0x1d0] sm:$0xff] %v1583
      %1712 = vst [vmem:[%s145 + $0x1d8] sm:$0xff] %v1584
      %1713 = vst [vmem:[%s145 + $0x1e0] sm:$0xff] %v1585
      %1714 = vst [vmem:[%s145 + $0x1e8] sm:$0xff] %v1586
      %1715 = vst [vmem:[%s145 + $0x1f0] sm:$0xff] %v1587
      %1716 = vst [vmem:[%s145 + $0x1f8] sm:$0xff] %v1588
      %1717 = vst [vmem:[%s145 + $0x200] sm:$0xff] %v1589
      %1718 = vst [vmem:[%s145 + $0x208] sm:$0xff] %v1590
      %1719 = vst [vmem:[%s145 + $0x210] sm:$0xff] %v1591
      %1720 = vst [vmem:[%s145 + $0x218] sm:$0xff] %v1592
      %1721 = vst [vmem:[%s145 + $0x220] sm:$0xff] %v1593
      %1722 = vst [vmem:[%s145 + $0x228] sm:$0xff] %v1594
      %1723 = vst [vmem:[%s145 + $0x230] sm:$0xff] %v1595
      %1724 = vst [vmem:[%s145 + $0x238] sm:$0xff] %v1596
      %1725 = vst [vmem:[%s145 + $0x240] sm:$0xff] %v1597
      %1726 = vst [vmem:[%s145 + $0x248] sm:$0xff] %v1598
      %1727 = vst [vmem:[%s145 + $0x250] sm:$0xff] %v1599
      %1728 = vst [vmem:[%s145 + $0x258] sm:$0xff] %v1600
      %1729 = vst [vmem:[%s145 + $0x260] sm:$0xff] %v1601
      %1730 = vst [vmem:[%s145 + $0x268] sm:$0xff] %v1602
      %1731 = vst [vmem:[%s145 + $0x270] sm:$0xff] %v1603
      %1732 = vst [vmem:[%s145 + $0x278] sm:$0xff] %v1604
      %1733 = vst [vmem:[%s145 + $0x280] sm:$0xff] %v1605
      %1734 = vst [vmem:[%s145 + $0x288] sm:$0xff] %v1606
      %1735 = vst [vmem:[%s145 + $0x290] sm:$0xff] %v1607
      %1736 = vst [vmem:[%s145 + $0x298] sm:$0xff] %v1608
      %1737 = vst [vmem:[%s145 + $0x2a0] sm:$0xff] %v1609
      %1738 = vst [vmem:[%s145 + $0x2a8] sm:$0xff] %v1610
      %1739 = vst [vmem:[%s145 + $0x2b0] sm:$0xff] %v1611
      %1740 = vst [vmem:[%s145 + $0x2b8] sm:$0xff] %v1612
      %1741 = vst [vmem:[%s145 + $0x2c0] sm:$0xff] %v1613
      %1742 = vst [vmem:[%s145 + $0x2c8] sm:$0xff] %v1614
      %1743 = vst [vmem:[%s145 + $0x2d0] sm:$0xff] %v1615
      %1744 = vst [vmem:[%s145 + $0x2d8] sm:$0xff] %v1616
      %1745 = vst [vmem:[%s145 + $0x2e0] sm:$0xff] %v1617
      %1746 = vst [vmem:[%s145 + $0x2e8] sm:$0xff] %v1618
      %1747 = vst [vmem:[%s145 + $0x2f0] sm:$0xff] %v1619
      %1748 = vst [vmem:[%s145 + $0x2f8] sm:$0xff] %v1620
      %1749 = vst [vmem:[%s145 + $0x300] sm:$0xff] %v1621
      %1750 = vst [vmem:[%s145 + $0x308] sm:$0xff] %v1622
      %1751 = vst [vmem:[%s145 + $0x310] sm:$0xff] %v1623
      %1752 = vst [vmem:[%s145 + $0x318] sm:$0xff] %v1624
      %1753 = vst [vmem:[%s145 + $0x320] sm:$0xff] %v1625
      %1754 = vst [vmem:[%s145 + $0x328] sm:$0xff] %v1626
      %1755 = vst [vmem:[%s145 + $0x330] sm:$0xff] %v1627
      %1756 = vst [vmem:[%s145 + $0x338] sm:$0xff] %v1628
      %1757 = vst [vmem:[%s145 + $0x340] sm:$0xff] %v1629
      %1758 = vst [vmem:[%s145 + $0x348] sm:$0xff] %v1630
      %1759 = vst [vmem:[%s145 + $0x350] sm:$0xff] %v1631
      %1760 = vst [vmem:[%s145 + $0x358] sm:$0xff] %v1632
      %1761 = vst [vmem:[%s145 + $0x360] sm:$0xff] %v1633
      %1762 = vst [vmem:[%s145 + $0x368] sm:$0xff] %v1634
      %1763 = vst [vmem:[%s145 + $0x370] sm:$0xff] %v1635
      %1764 = vst [vmem:[%s145 + $0x378] sm:$0xff] %v1636
      %1765 = vst [vmem:[%s145 + $0x380] sm:$0xff] %v1637
      %1766 = vst [vmem:[%s145 + $0x388] sm:$0xff] %v1638
      %1767 = vst [vmem:[%s145 + $0x390] sm:$0xff] %v1639
      %1768 = vst [vmem:[%s145 + $0x398] sm:$0xff] %v1640
      %1769 = vst [vmem:[%s145 + $0x3a0] sm:$0xff] %v1641
      %1770 = vst [vmem:[%s145 + $0x3a8] sm:$0xff] %v1642
      %1771 = vst [vmem:[%s145 + $0x3b0] sm:$0xff] %v1643
      %1772 = vst [vmem:[%s145 + $0x3b8] sm:$0xff] %v1644
      %1773 = vst [vmem:[%s145 + $0x3c0] sm:$0xff] %v1645
      %1774 = vst [vmem:[%s145 + $0x3c8] sm:$0xff] %v1646
      %1775 = vst [vmem:[%s145 + $0x3d0] sm:$0xff] %v1647
      %1776 = vst [vmem:[%s145 + $0x3d8] sm:$0xff] %v1648
      %1777 = vst [vmem:[%s145 + $0x3e0] sm:$0xff] %v1649
      %1778 = vst [vmem:[%s145 + $0x3e8] sm:$0xff] %v1650
      %1779 = vst [vmem:[%s145 + $0x3f0] sm:$0xff] %v1651
      %1780 = vst [vmem:[%s145 + $0x3f8] sm:$0xff] %v1652
      %s1781 = smul.u32 128, %s13
      %p1782 = scmp.lt.s32.totalorder %s1781, 255
      %s1783 = scalar_select %p1782, %s1781, 255
      %s1784 = smul.addr %s1783, 8
      %s1785 = scalar_lea.vmem %s2, %s1784
      // Predicated region
      $region29: #{critic_forward.6} parent=27 // pred_check
        %p1786 = pneg %p78
      $region30: #{critic_forward.6} parent=27 // pred_check_branch
        %1788 = sbr.rel (%p1786) target = $region32
      $region31: #{critic_forward.6} parent=27 // pred_region
        %s1789 = smul.u32 128, %s13
      $region32: #{critic_forward.6} parent=27 // pred_fallthru
        _
    $region28: #{critic_forward.6} parent=5 // pred_fallthru
      _
    %p1790 = scmp.le.s32.totalorder 2, %s8
    // Predicated region
    $region33: #{critic_forward.6} parent=5 // pred_check
      %p1791 = pneg %p1790
    $region34: #{critic_forward.6} parent=5 // pred_check_branch
      %1793 = sbr.rel (%p1791) target = $region36
    $region35: #{critic_forward.6} parent=5 // pred_region
      %s1794 = ssub.s32 %s8, 2
      // Predicated region
      $region37: #{critic_forward.6} parent=35 // pred_check
        %p1795 = pneg %p84
      $region38: #{critic_forward.6} parent=35 // pred_check_branch
        %1797 = sbr.rel (%p1795) target = $region40
      $region39: #{critic_forward.6} parent=35 // pred_region
        %s1798 = smul.u32 128, %s14
        %p1799 = scmp.lt.s32.totalorder %s1798, 255
        %s1800 = scalar_select %p1799, %s1798, 255
        %s1801 = smul.addr %s1800, 8
        %s1802 = scalar_lea.vmem %s2, %s1801
      $region40: #{critic_forward.6} parent=35 // pred_fallthru
        _
    $region36: #{critic_forward.6} parent=5 // pred_fallthru
      _
  $region6: #{critic_forward.6} parent=0 // loop_footer
    %s12 = sadd.s32 1, %s8
  $region7: #{critic_forward.6} parent=0 // loop_footer_branch
    %7 = sbr.rel target = $region3
  $region8: #{critic_forward.6} parent=0 // loop_exit
    _

// kernel: critic_forward.7
$region0: #{critic_forward.7}
  #allocation0 [shape = 'u32[]', space=smem, size = 0x4, offset = 0x4, fixed_abs, tag = 'smem constant byte address 0x4 - core index']
  #allocation1 [shape = 'u32[144,128]{1,0:T(1,128)}', space=vmem, size = 0x12000, scoped, tag = 'internal scratch']
  %s0 = inlined_call_operand.vmem [shape: bf16[512,256], index: 0, kind: input, shape index: {}]
  %s1 = inlined_call_operand.vmem [shape: bf16[256,128], index: 1, kind: input, shape index: {}]
  %s2 = inlined_call_operand.vmem [shape: f32[512,128], index: 2, kind: output, shape index: {}]
  %s3 = sld [smem:[#allocation0]]
  $region18: #{critic_forward.7} parent=0
    _
  %s5 = ssub.s32 1, %s3
  %s6 = scalar_select 0, %s5, %s3
  // Predicated region
  $region2: #{critic_forward.7} parent=0 // pred_check
    _
  $region3: #{critic_forward.7} parent=0 // pred_check_branch
    %8 = sbr.rel (0) target = $region5
  $region4: #{critic_forward.7} parent=0 // pred_region
    _
  $region5: #{critic_forward.7} parent=0 // pred_fallthru
    _
  // Predicated region
  $region6: #{critic_forward.7} parent=0 // pred_check
    _
  $region7: #{critic_forward.7} parent=0 // pred_check_branch
    %10 = sbr.rel (0) target = $region9
  $region8: #{critic_forward.7} parent=0 // pred_region
    _
  $region9: #{critic_forward.7} parent=0 // pred_fallthru
    _
  %v12 = vld [vmem:[%s0] sm:$0xff]
  %v13 = vld [vmem:[%s0 + $0x8] sm:$0xff]
  %v14 = vld [vmem:[%s0 + $0x10] sm:$0xff]
  %v15 = vld [vmem:[%s0 + $0x18] sm:$0xff]
  %v16 = vld [vmem:[%s0 + $0x20] sm:$0xff]
  %v17 = vld [vmem:[%s0 + $0x28] sm:$0xff]
  %v18 = vld [vmem:[%s0 + $0x30] sm:$0xff]
  %v19 = vld [vmem:[%s0 + $0x38] sm:$0xff]
  %v20 = vld [vmem:[%s0 + $0x40] sm:$0xff]
  %v21 = vld [vmem:[%s0 + $0x48] sm:$0xff]
  %v22 = vld [vmem:[%s0 + $0x50] sm:$0xff]
  %v23 = vld [vmem:[%s0 + $0x58] sm:$0xff]
  %v24 = vld [vmem:[%s0 + $0x60] sm:$0xff]
  %v25 = vld [vmem:[%s0 + $0x68] sm:$0xff]
  %v26 = vld [vmem:[%s0 + $0x70] sm:$0xff]
  %v27 = vld [vmem:[%s0 + $0x78] sm:$0xff]
  %v28 = vld [vmem:[%s0 + $0x80] sm:$0xff]
  %v29 = vld [vmem:[%s0 + $0x88] sm:$0xff]
  %v30 = vld [vmem:[%s0 + $0x90] sm:$0xff]
  %v31 = vld [vmem:[%s0 + $0x98] sm:$0xff]
  %v32 = vld [vmem:[%s0 + $0xa0] sm:$0xff]
  %v33 = vld [vmem:[%s0 + $0xa8] sm:$0xff]
  %v34 = vld [vmem:[%s0 + $0xb0] sm:$0xff]
  %v35 = vld [vmem:[%s0 + $0xb8] sm:$0xff]
  %v36 = vld [vmem:[%s0 + $0xc0] sm:$0xff]
  %v37 = vld [vmem:[%s0 + $0xc8] sm:$0xff]
  %v38 = vld [vmem:[%s0 + $0xd0] sm:$0xff]
  %v39 = vld [vmem:[%s0 + $0xd8] sm:$0xff]
  %v40 = vld [vmem:[%s0 + $0xe0] sm:$0xff]
  %v41 = vld [vmem:[%s0 + $0xe8] sm:$0xff]
  %v42 = vld [vmem:[%s0 + $0xf0] sm:$0xff]
  %v43 = vld [vmem:[%s0 + $0xf8] sm:$0xff]
  %v44 = vld [vmem:[%s0 + $0x100] sm:$0xff]
  %v45 = vld [vmem:[%s0 + $0x108] sm:$0xff]
  %v46 = vld [vmem:[%s0 + $0x110] sm:$0xff]
  %v47 = vld [vmem:[%s0 + $0x118] sm:$0xff]
  %v48 = vld [vmem:[%s0 + $0x120] sm:$0xff]
  %v49 = vld [vmem:[%s0 + $0x128] sm:$0xff]
  %v50 = vld [vmem:[%s0 + $0x130] sm:$0xff]
  %v51 = vld [vmem:[%s0 + $0x138] sm:$0xff]
  %v52 = vld [vmem:[%s0 + $0x140] sm:$0xff]
  %v53 = vld [vmem:[%s0 + $0x148] sm:$0xff]
  %v54 = vld [vmem:[%s0 + $0x150] sm:$0xff]
  %v55 = vld [vmem:[%s0 + $0x158] sm:$0xff]
  %v56 = vld [vmem:[%s0 + $0x160] sm:$0xff]
  %v57 = vld [vmem:[%s0 + $0x168] sm:$0xff]
  %v58 = vld [vmem:[%s0 + $0x170] sm:$0xff]
  %v59 = vld [vmem:[%s0 + $0x178] sm:$0xff]
  %v60 = vld [vmem:[%s0 + $0x180] sm:$0xff]
  %v61 = vld [vmem:[%s0 + $0x188] sm:$0xff]
  %v62 = vld [vmem:[%s0 + $0x190] sm:$0xff]
  %v63 = vld [vmem:[%s0 + $0x198] sm:$0xff]
  %v64 = vld [vmem:[%s0 + $0x1a0] sm:$0xff]
  %v65 = vld [vmem:[%s0 + $0x1a8] sm:$0xff]
  %v66 = vld [vmem:[%s0 + $0x1b0] sm:$0xff]
  %v67 = vld [vmem:[%s0 + $0x1b8] sm:$0xff]
  %v68 = vld [vmem:[%s0 + $0x1c0] sm:$0xff]
  %v69 = vld [vmem:[%s0 + $0x1c8] sm:$0xff]
  %v70 = vld [vmem:[%s0 + $0x1d0] sm:$0xff]
  %v71 = vld [vmem:[%s0 + $0x1d8] sm:$0xff]
  %v72 = vld [vmem:[%s0 + $0x1e0] sm:$0xff]
  %v73 = vld [vmem:[%s0 + $0x1e8] sm:$0xff]
  %v74 = vld [vmem:[%s0 + $0x1f0] sm:$0xff]
  %v75 = vld [vmem:[%s0 + $0x1f8] sm:$0xff]
  %v76 = vld [vmem:[%s1] sm:$0xf]
  %v77 = vld [vmem:[%s1 + $0x4] sm:$0xf]
  %v78 = vld [vmem:[%s1 + $0x8] sm:$0xf]
  %v79 = vld [vmem:[%s1 + $0xc] sm:$0xf]
  %v80 = vld [vmem:[%s1 + $0x10] sm:$0xf]
  %v81 = vld [vmem:[%s1 + $0x14] sm:$0xf]
  %v82 = vld [vmem:[%s1 + $0x18] sm:$0xf]
  %v83 = vld [vmem:[%s1 + $0x1c] sm:$0xf]
  %v84 = vld [vmem:[%s1 + $0x20] sm:$0xf]
  %v85 = vld [vmem:[%s1 + $0x24] sm:$0xf]
  %v86 = vld [vmem:[%s1 + $0x28] sm:$0xf]
  %v87 = vld [vmem:[%s1 + $0x2c] sm:$0xf]
  %v88 = vld [vmem:[%s1 + $0x30] sm:$0xf]
  %v89 = vld [vmem:[%s1 + $0x34] sm:$0xf]
  %v90 = vld [vmem:[%s1 + $0x38] sm:$0xf]
  %v91 = vld [vmem:[%s1 + $0x3c] sm:$0xf]
  %v92 = vld [vmem:[%s1 + $0x40] sm:$0xf]
  %v93 = vld [vmem:[%s1 + $0x44] sm:$0xf]
  %v94 = vld [vmem:[%s1 + $0x48] sm:$0xf]
  %v95 = vld [vmem:[%s1 + $0x4c] sm:$0xf]
  %v96 = vld [vmem:[%s1 + $0x50] sm:$0xf]
  %v97 = vld [vmem:[%s1 + $0x54] sm:$0xf]
  %v98 = vld [vmem:[%s1 + $0x58] sm:$0xf]
  %v99 = vld [vmem:[%s1 + $0x5c] sm:$0xf]
  %v100 = vld [vmem:[%s1 + $0x60] sm:$0xf]
  %v101 = vld [vmem:[%s1 + $0x64] sm:$0xf]
  %v102 = vld [vmem:[%s1 + $0x68] sm:$0xf]
  %v103 = vld [vmem:[%s1 + $0x6c] sm:$0xf]
  %v104 = vld [vmem:[%s1 + $0x70] sm:$0xf]
  %v105 = vld [vmem:[%s1 + $0x74] sm:$0xf]
  %v106 = vld [vmem:[%s1 + $0x78] sm:$0xf]
  %v107 = vld [vmem:[%s1 + $0x7c] sm:$0xf]
  %v172 = vunpack.c.l.b16 %v12
  %v173 = vunpack.c.h.b16 %v12
  %v174 = vunpack.c.l.b16 %v13
  %v175 = vunpack.c.h.b16 %v13
  %v176 = vunpack.c.l.b16 %v14
  %v177 = vunpack.c.h.b16 %v14
  %v178 = vunpack.c.l.b16 %v15
  %v179 = vunpack.c.h.b16 %v15
  %v180 = vunpack.c.l.b16 %v16
  %v181 = vunpack.c.h.b16 %v16
  %v182 = vunpack.c.l.b16 %v17
  %v183 = vunpack.c.h.b16 %v17
  %v184 = vunpack.c.l.b16 %v18
  %v185 = vunpack.c.h.b16 %v18
  %v186 = vunpack.c.l.b16 %v19
  %v187 = vunpack.c.h.b16 %v19
  %v188 = vunpack.c.l.b16 %v20
  %v189 = vunpack.c.h.b16 %v20
  %v190 = vunpack.c.l.b16 %v21
  %v191 = vunpack.c.h.b16 %v21
  %v192 = vunpack.c.l.b16 %v22
  %v193 = vunpack.c.h.b16 %v22
  %v194 = vunpack.c.l.b16 %v23
  %v195 = vunpack.c.h.b16 %v23
  %v196 = vunpack.c.l.b16 %v24
  %v197 = vunpack.c.h.b16 %v24
  %v198 = vunpack.c.l.b16 %v25
  %v199 = vunpack.c.h.b16 %v25
  %v200 = vunpack.c.l.b16 %v26
  %v201 = vunpack.c.h.b16 %v26
  %v202 = vunpack.c.l.b16 %v27
  %v203 = vunpack.c.h.b16 %v27
  %v204 = vunpack.c.l.b16 %v28
  %v205 = vunpack.c.h.b16 %v28
  %v206 = vunpack.c.l.b16 %v29
  %v207 = vunpack.c.h.b16 %v29
  %v208 = vunpack.c.l.b16 %v30
  %v209 = vunpack.c.h.b16 %v30
  %v210 = vunpack.c.l.b16 %v31
  %v211 = vunpack.c.h.b16 %v31
  %v212 = vunpack.c.l.b16 %v32
  %v213 = vunpack.c.h.b16 %v32
  %v214 = vunpack.c.l.b16 %v33
  %v215 = vunpack.c.h.b16 %v33
  %v216 = vunpack.c.l.b16 %v34
  %v217 = vunpack.c.h.b16 %v34
  %v218 = vunpack.c.l.b16 %v35
  %v219 = vunpack.c.h.b16 %v35
  %v220 = vunpack.c.l.b16 %v36
  %v221 = vunpack.c.h.b16 %v36
  %v222 = vunpack.c.l.b16 %v37
  %v223 = vunpack.c.h.b16 %v37
  %v224 = vunpack.c.l.b16 %v38
  %v225 = vunpack.c.h.b16 %v38
  %v226 = vunpack.c.l.b16 %v39
  %v227 = vunpack.c.h.b16 %v39
  %v228 = vunpack.c.l.b16 %v40
  %v229 = vunpack.c.h.b16 %v40
  %v230 = vunpack.c.l.b16 %v41
  %v231 = vunpack.c.h.b16 %v41
  %v232 = vunpack.c.l.b16 %v42
  %v233 = vunpack.c.h.b16 %v42
  %v234 = vunpack.c.l.b16 %v43
  %v235 = vunpack.c.h.b16 %v43
  %v236 = vunpack.c.l.b16 %v44
  %v237 = vunpack.c.h.b16 %v44
  %v238 = vunpack.c.l.b16 %v45
  %v239 = vunpack.c.h.b16 %v45
  %v240 = vunpack.c.l.b16 %v46
  %v241 = vunpack.c.h.b16 %v46
  %v242 = vunpack.c.l.b16 %v47
  %v243 = vunpack.c.h.b16 %v47
  %v244 = vunpack.c.l.b16 %v48
  %v245 = vunpack.c.h.b16 %v48
  %v246 = vunpack.c.l.b16 %v49
  %v247 = vunpack.c.h.b16 %v49
  %v248 = vunpack.c.l.b16 %v50
  %v249 = vunpack.c.h.b16 %v50
  %v250 = vunpack.c.l.b16 %v51
  %v251 = vunpack.c.h.b16 %v51
  %v252 = vunpack.c.l.b16 %v52
  %v253 = vunpack.c.h.b16 %v52
  %v254 = vunpack.c.l.b16 %v53
  %v255 = vunpack.c.h.b16 %v53
  %v256 = vunpack.c.l.b16 %v54
  %v257 = vunpack.c.h.b16 %v54
  %v258 = vunpack.c.l.b16 %v55
  %v259 = vunpack.c.h.b16 %v55
  %v260 = vunpack.c.l.b16 %v56
  %v261 = vunpack.c.h.b16 %v56
  %v262 = vunpack.c.l.b16 %v57
  %v263 = vunpack.c.h.b16 %v57
  %v264 = vunpack.c.l.b16 %v58
  %v265 = vunpack.c.h.b16 %v58
  %v266 = vunpack.c.l.b16 %v59
  %v267 = vunpack.c.h.b16 %v59
  %v268 = vunpack.c.l.b16 %v60
  %v269 = vunpack.c.h.b16 %v60
  %v270 = vunpack.c.l.b16 %v61
  %v271 = vunpack.c.h.b16 %v61
  %v272 = vunpack.c.l.b16 %v62
  %v273 = vunpack.c.h.b16 %v62
  %v274 = vunpack.c.l.b16 %v63
  %v275 = vunpack.c.h.b16 %v63
  %v276 = vunpack.c.l.b16 %v64
  %v277 = vunpack.c.h.b16 %v64
  %v278 = vunpack.c.l.b16 %v65
  %v279 = vunpack.c.h.b16 %v65
  %v280 = vunpack.c.l.b16 %v66
  %v281 = vunpack.c.h.b16 %v66
  %v282 = vunpack.c.l.b16 %v67
  %v283 = vunpack.c.h.b16 %v67
  %v284 = vunpack.c.l.b16 %v68
  %v285 = vunpack.c.h.b16 %v68
  %v286 = vunpack.c.l.b16 %v69
  %v287 = vunpack.c.h.b16 %v69
  %v288 = vunpack.c.l.b16 %v70
  %v289 = vunpack.c.h.b16 %v70
  %v290 = vunpack.c.l.b16 %v71
  %v291 = vunpack.c.h.b16 %v71
  %v292 = vunpack.c.l.b16 %v72
  %v293 = vunpack.c.h.b16 %v72
  %v294 = vunpack.c.l.b16 %v73
  %v295 = vunpack.c.h.b16 %v73
  %v296 = vunpack.c.l.b16 %v74
  %v297 = vunpack.c.h.b16 %v74
  %v298 = vunpack.c.l.b16 %v75
  %v299 = vunpack.c.h.b16 %v75
  %v300 = vpack.c.b16 %v174, %v172
  %v301 = vpack.c.b16 %v175, %v173
  %v302 = vpack.c.b16 %v178, %v176
  %v303 = vpack.c.b16 %v179, %v177
  %v304 = vpack.c.b16 %v182, %v180
  %v305 = vpack.c.b16 %v183, %v181
  %v306 = vpack.c.b16 %v186, %v184
  %v307 = vpack.c.b16 %v187, %v185
  %v308 = vpack.c.b16 %v190, %v188
  %v309 = vpack.c.b16 %v191, %v189
  %v310 = vpack.c.b16 %v194, %v192
  %v311 = vpack.c.b16 %v195, %v193
  %v312 = vpack.c.b16 %v198, %v196
  %v313 = vpack.c.b16 %v199, %v197
  %v314 = vpack.c.b16 %v202, %v200
  %v315 = vpack.c.b16 %v203, %v201
  %v316 = vpack.c.b16 %v206, %v204
  %v317 = vpack.c.b16 %v207, %v205
  %v318 = vpack.c.b16 %v210, %v208
  %v319 = vpack.c.b16 %v211, %v209
  %v320 = vpack.c.b16 %v214, %v212
  %v321 = vpack.c.b16 %v215, %v213
  %v322 = vpack.c.b16 %v218, %v216
  %v323 = vpack.c.b16 %v219, %v217
  %v324 = vpack.c.b16 %v222, %v220
  %v325 = vpack.c.b16 %v223, %v221
  %v326 = vpack.c.b16 %v226, %v224
  %v327 = vpack.c.b16 %v227, %v225
  %v328 = vpack.c.b16 %v230, %v228
  %v329 = vpack.c.b16 %v231, %v229
  %v330 = vpack.c.b16 %v234, %v232
  %v331 = vpack.c.b16 %v235, %v233
  %v332 = vpack.c.b16 %v238, %v236
  %v333 = vpack.c.b16 %v239, %v237
  %v334 = vpack.c.b16 %v242, %v240
  %v335 = vpack.c.b16 %v243, %v241
  %v336 = vpack.c.b16 %v246, %v244
  %v337 = vpack.c.b16 %v247, %v245
  %v338 = vpack.c.b16 %v250, %v248
  %v339 = vpack.c.b16 %v251, %v249
  %v340 = vpack.c.b16 %v254, %v252
  %v341 = vpack.c.b16 %v255, %v253
  %v342 = vpack.c.b16 %v258, %v256
  %v343 = vpack.c.b16 %v259, %v257
  %v344 = vpack.c.b16 %v262, %v260
  %v345 = vpack.c.b16 %v263, %v261
  %v346 = vpack.c.b16 %v266, %v264
  %v347 = vpack.c.b16 %v267, %v265
  %v348 = vpack.c.b16 %v270, %v268
  %v349 = vpack.c.b16 %v271, %v269
  %v350 = vpack.c.b16 %v274, %v272
  %v351 = vpack.c.b16 %v275, %v273
  %v352 = vpack.c.b16 %v278, %v276
  %v353 = vpack.c.b16 %v279, %v277
  %v354 = vpack.c.b16 %v282, %v280
  %v355 = vpack.c.b16 %v283, %v281
  %v356 = vpack.c.b16 %v286, %v284
  %v357 = vpack.c.b16 %v287, %v285
  %v358 = vpack.c.b16 %v290, %v288
  %v359 = vpack.c.b16 %v291, %v289
  %v360 = vpack.c.b16 %v294, %v292
  %v361 = vpack.c.b16 %v295, %v293
  %v362 = vpack.c.b16 %v298, %v296
  %v363 = vpack.c.b16 %v299, %v297
  %v460 = vunpack.c.l.b16 %v76
  %v461 = vunpack.c.l.b16 %v77
  %v462 = vunpack.c.l.b16 %v78
  %v463 = vunpack.c.l.b16 %v79
  %v464 = vunpack.c.l.b16 %v80
  %v465 = vunpack.c.l.b16 %v81
  %v466 = vunpack.c.l.b16 %v82
  %v467 = vunpack.c.l.b16 %v83
  %v468 = vunpack.c.l.b16 %v84
  %v469 = vunpack.c.l.b16 %v85
  %v470 = vunpack.c.l.b16 %v86
  %v471 = vunpack.c.l.b16 %v87
  %v472 = vunpack.c.l.b16 %v88
  %v473 = vunpack.c.l.b16 %v89
  %v474 = vunpack.c.l.b16 %v90
  %v475 = vunpack.c.l.b16 %v91
  %v476 = vunpack.c.l.b16 %v92
  %v477 = vunpack.c.l.b16 %v93
  %v478 = vunpack.c.l.b16 %v94
  %v479 = vunpack.c.l.b16 %v95
  %v480 = vunpack.c.l.b16 %v96
  %v481 = vunpack.c.l.b16 %v97
  %v482 = vunpack.c.l.b16 %v98
  %v483 = vunpack.c.l.b16 %v99
  %v484 = vunpack.c.l.b16 %v100
  %v485 = vunpack.c.l.b16 %v101
  %v486 = vunpack.c.l.b16 %v102
  %v487 = vunpack.c.l.b16 %v103
  %v488 = vunpack.c.l.b16 %v104
  %v489 = vunpack.c.l.b16 %v105
  %v490 = vunpack.c.l.b16 %v106
  %v491 = vunpack.c.l.b16 %v107
  %v492 = vpack.c.b16 %v461, %v460
  %v493 = vpack.c.b16 %v463, %v462
  %v494 = vpack.c.b16 %v465, %v464
  %v495 = vpack.c.b16 %v467, %v466
  %v496 = vpack.c.b16 %v469, %v468
  %v497 = vpack.c.b16 %v471, %v470
  %v498 = vpack.c.b16 %v473, %v472
  %v499 = vpack.c.b16 %v475, %v474
  %v500 = vpack.c.b16 %v477, %v476
  %v501 = vpack.c.b16 %v479, %v478
  %v502 = vpack.c.b16 %v481, %v480
  %v503 = vpack.c.b16 %v483, %v482
  %v504 = vpack.c.b16 %v485, %v484
  %v505 = vpack.c.b16 %v487, %v486
  %v506 = vpack.c.b16 %v489, %v488
  %v507 = vpack.c.b16 %v491, %v490
  %524 = vmatprep.subr.bf16.mxu0 0
  %525 = vmatpush1.bf16.msra.mxu0 %v492
  %526 = vmatprep.subr.bf16.mxu0 0
  %527 = vmatpush1.bf16.msra.mxu0 %v493
  %528 = vmatprep.subr.bf16.mxu0 0
  %529 = vmatpush1.bf16.msra.mxu0 %v494
  %530 = vmatprep.subr.bf16.mxu0 0
  %531 = vmatpush1.bf16.msra.mxu0 %v495
  %532 = vmatprep.subr.bf16.mxu0 0
  %533 = vmatpush1.bf16.msra.mxu0 %v496
  %534 = vmatprep.subr.bf16.mxu0 0
  %535 = vmatpush1.bf16.msra.mxu0 %v497
  %536 = vmatprep.subr.bf16.mxu0 0
  %537 = vmatpush1.bf16.msra.mxu0 %v498
  %538 = vmatprep.subr.bf16.mxu0 0
  %539 = vmatpush1.bf16.msra.mxu0 %v499
  %540 = vmatprep.subr.bf16.mxu0 0
  %541 = vmatpush1.bf16.msra.mxu0 %v500
  %542 = vmatprep.subr.bf16.mxu0 0
  %543 = vmatpush1.bf16.msra.mxu0 %v501
  %544 = vmatprep.subr.bf16.mxu0 0
  %545 = vmatpush1.bf16.msra.mxu0 %v502
  %546 = vmatprep.subr.bf16.mxu0 0
  %547 = vmatpush1.bf16.msra.mxu0 %v503
  %548 = vmatprep.subr.bf16.mxu0 0
  %549 = vmatpush1.bf16.msra.mxu0 %v504
  %550 = vmatprep.subr.bf16.mxu0 0
  %551 = vmatpush1.bf16.msra.mxu0 %v505
  %552 = vmatprep.subr.bf16.mxu0 0
  %553 = vmatpush1.bf16.msra.mxu0 %v506
  %554 = vmatprep.subr.bf16.mxu0 0
  %555 = vmatpush1.bf16.msra.mxu0 %v507
  %556 = vmatprep.mubr.bf16.mxu0 %v301
  %557 = vmatmul.mubr.bf16.gmra.mrb[0].mxu0 %v300
  %v558 = vpop.f32.mrb[0].mxu0
  %v559 = vadd.f32 0.0, %v558
  %v560 = vpop.f32.mrb[0].mxu0
  %v561 = vpop.f32.mrb[0].mxu0
  %v562 = vadd.f32 0.0, %v561
  %v563 = vpop.f32.mrb[0].mxu0
  %564 = vmatprep.mubr.bf16.mxu0 %v303
  %565 = vmatmul.mubr.bf16.gmra.mrb[0].mxu0 %v302
  %v566 = vpop.f32.mrb[0].mxu0
  %v567 = vadd.f32 0.0, %v566
  %v568 = vpop.f32.mrb[0].mxu0
  %v569 = vpop.f32.mrb[0].mxu0
  %v570 = vadd.f32 0.0, %v569
  %v571 = vpop.f32.mrb[0].mxu0
  %572 = vmatprep.mubr.bf16.mxu0 %v305
  %573 = vmatmul.mubr.bf16.gmra.mrb[0].mxu0 %v304
  %v574 = vpop.f32.mrb[0].mxu0
  %v575 = vadd.f32 0.0, %v574
  %v576 = vpop.f32.mrb[0].mxu0
  %v577 = vpop.f32.mrb[0].mxu0
  %v578 = vadd.f32 0.0, %v577
  %v579 = vpop.f32.mrb[0].mxu0
  %580 = vmatprep.mubr.bf16.mxu0 %v307
  %581 = vmatmul.mubr.bf16.gmra.mrb[0].mxu0 %v306
  %v582 = vpop.f32.mrb[0].mxu0
  %v583 = vadd.f32 0.0, %v582
  %v584 = vpop.f32.mrb[0].mxu0
  %v585 = vpop.f32.mrb[0].mxu0
  %v586 = vadd.f32 0.0, %v585
  %v587 = vpop.f32.mrb[0].mxu0
  %588 = vmatprep.mubr.bf16.mxu0 %v309
  %589 = vmatmul.mubr.bf16.gmra.mrb[0].mxu0 %v308
  %v590 = vpop.f32.mrb[0].mxu0
  %v591 = vadd.f32 0.0, %v590
  %v592 = vpop.f32.mrb[0].mxu0
  %v593 = vpop.f32.mrb[0].mxu0
  %v594 = vadd.f32 0.0, %v593
  %v595 = vpop.f32.mrb[0].mxu0
  %596 = vmatprep.mubr.bf16.mxu0 %v311
  %597 = vmatmul.mubr.bf16.gmra.mrb[0].mxu0 %v310
  %v598 = vpop.f32.mrb[0].mxu0
  %v599 = vadd.f32 0.0, %v598
  %v600 = vpop.f32.mrb[0].mxu0
  %v601 = vpop.f32.mrb[0].mxu0
  %v602 = vadd.f32 0.0, %v601
  %v603 = vpop.f32.mrb[0].mxu0
  %604 = vmatprep.mubr.bf16.mxu0 %v313
  %605 = vmatmul.mubr.bf16.gmra.mrb[0].mxu0 %v312
  %v606 = vpop.f32.mrb[0].mxu0
  %v607 = vadd.f32 0.0, %v606
  %v608 = vpop.f32.mrb[0].mxu0
  %v609 = vpop.f32.mrb[0].mxu0
  %v610 = vadd.f32 0.0, %v609
  %v611 = vpop.f32.mrb[0].mxu0
  %612 = vmatprep.mubr.bf16.mxu0 %v315
  %613 = vmatmul.mubr.bf16.gmra.mrb[0].mxu0 %v314
  %v614 = vpop.f32.mrb[0].mxu0
  %v615 = vadd.f32 0.0, %v614
  %v616 = vpop.f32.mrb[0].mxu0
  %v617 = vpop.f32.mrb[0].mxu0
  %v618 = vadd.f32 0.0, %v617
  %v619 = vpop.f32.mrb[0].mxu0
  %620 = vmatprep.mubr.bf16.mxu0 %v317
  %621 = vmatmul.mubr.bf16.gmra.mrb[0].mxu0 %v316
  %v622 = vpop.f32.mrb[0].mxu0
  %v623 = vadd.f32 0.0, %v622
  %v624 = vpop.f32.mrb[0].mxu0
  %v625 = vpop.f32.mrb[0].mxu0
  %v626 = vadd.f32 0.0, %v625
  %v627 = vpop.f32.mrb[0].mxu0
  %628 = vmatprep.mubr.bf16.mxu0 %v319
  %629 = vmatmul.mubr.bf16.gmra.mrb[0].mxu0 %v318
  %v630 = vpop.f32.mrb[0].mxu0
  %v631 = vadd.f32 0.0, %v630
  %v632 = vpop.f32.mrb[0].mxu0
  %v633 = vpop.f32.mrb[0].mxu0
  %v634 = vadd.f32 0.0, %v633
  %v635 = vpop.f32.mrb[0].mxu0
  %636 = vmatprep.mubr.bf16.mxu0 %v321
  %637 = vmatmul.mubr.bf16.gmra.mrb[0].mxu0 %v320
  %v638 = vpop.f32.mrb[0].mxu0
  %v639 = vadd.f32 0.0, %v638
  %v640 = vpop.f32.mrb[0].mxu0
  %v641 = vpop.f32.mrb[0].mxu0
  %v642 = vadd.f32 0.0, %v641
  %v643 = vpop.f32.mrb[0].mxu0
  %644 = vmatprep.mubr.bf16.mxu0 %v323
  %645 = vmatmul.mubr.bf16.gmra.mrb[0].mxu0 %v322
  %v646 = vpop.f32.mrb[0].mxu0
  %v647 = vadd.f32 0.0, %v646
  %v648 = vpop.f32.mrb[0].mxu0
  %v649 = vpop.f32.mrb[0].mxu0
  %v650 = vadd.f32 0.0, %v649
  %v651 = vpop.f32.mrb[0].mxu0
  %652 = vmatprep.mubr.bf16.mxu0 %v325
  %653 = vmatmul.mubr.bf16.gmra.mrb[0].mxu0 %v324
  %v654 = vpop.f32.mrb[0].mxu0
  %v655 = vadd.f32 0.0, %v654
  %v656 = vpop.f32.mrb[0].mxu0
  %v657 = vpop.f32.mrb[0].mxu0
  %v658 = vadd.f32 0.0, %v657
  %v659 = vpop.f32.mrb[0].mxu0
  %660 = vmatprep.mubr.bf16.mxu0 %v327
  %661 = vmatmul.mubr.bf16.gmra.mrb[0].mxu0 %v326
  %v662 = vpop.f32.mrb[0].mxu0
  %v663 = vadd.f32 0.0, %v662
  %v664 = vpop.f32.mrb[0].mxu0
  %v665 = vpop.f32.mrb[0].mxu0
  %v666 = vadd.f32 0.0, %v665
  %v667 = vpop.f32.mrb[0].mxu0
  %668 = vmatprep.mubr.bf16.mxu0 %v329
  %669 = vmatmul.mubr.bf16.gmra.mrb[0].mxu0 %v328
  %v670 = vpop.f32.mrb[0].mxu0
  %v671 = vadd.f32 0.0, %v670
  %v672 = vpop.f32.mrb[0].mxu0
  %v673 = vpop.f32.mrb[0].mxu0
  %v674 = vadd.f32 0.0, %v673
  %v675 = vpop.f32.mrb[0].mxu0
  %676 = vmatprep.mubr.bf16.mxu0 %v331
  %677 = vmatmul.mubr.bf16.gmra.mrb[0].mxu0 %v330
  %v678 = vpop.f32.mrb[0].mxu0
  %v679 = vadd.f32 0.0, %v678
  %v680 = vpop.f32.mrb[0].mxu0
  %v681 = vpop.f32.mrb[0].mxu0
  %v682 = vadd.f32 0.0, %v681
  %v683 = vpop.f32.mrb[0].mxu0
  %684 = vmatprep.mubr.bf16.mxu0 %v333
  %685 = vmatmul.mubr.bf16.gmra.mrb[0].mxu0 %v332
  %v686 = vpop.f32.mrb[0].mxu0
  %v687 = vadd.f32 0.0, %v686
  %v688 = vpop.f32.mrb[0].mxu0
  %v689 = vpop.f32.mrb[0].mxu0
  %v690 = vadd.f32 0.0, %v689
  %v691 = vpop.f32.mrb[0].mxu0
  %692 = vmatprep.mubr.bf16.mxu0 %v335
  %693 = vmatmul.mubr.bf16.gmra.mrb[0].mxu0 %v334
  %v694 = vpop.f32.mrb[0].mxu0
  %v695 = vadd.f32 0.0, %v694
  %v696 = vpop.f32.mrb[0].mxu0
  %v697 = vpop.f32.mrb[0].mxu0
  %v698 = vadd.f32 0.0, %v697
  %v699 = vpop.f32.mrb[0].mxu0
  %700 = vmatprep.mubr.bf16.mxu0 %v337
  %701 = vmatmul.mubr.bf16.gmra.mrb[0].mxu0 %v336
  %v702 = vpop.f32.mrb[0].mxu0
  %v703 = vadd.f32 0.0, %v702
  %v704 = vpop.f32.mrb[0].mxu0
  %v705 = vpop.f32.mrb[0].mxu0
  %v706 = vadd.f32 0.0, %v705
  %v707 = vpop.f32.mrb[0].mxu0
  %708 = vmatprep.mubr.bf16.mxu0 %v339
  %709 = vmatmul.mubr.bf16.gmra.mrb[0].mxu0 %v338
  %v710 = vpop.f32.mrb[0].mxu0
  %v711 = vadd.f32 0.0, %v710
  %v712 = vpop.f32.mrb[0].mxu0
  %v713 = vpop.f32.mrb[0].mxu0
  %v714 = vadd.f32 0.0, %v713
  %v715 = vpop.f32.mrb[0].mxu0
  %716 = vmatprep.mubr.bf16.mxu0 %v341
  %717 = vmatmul.mubr.bf16.gmra.mrb[0].mxu0 %v340
  %v718 = vpop.f32.mrb[0].mxu0
  %v719 = vadd.f32 0.0, %v718
  %v720 = vpop.f32.mrb[0].mxu0
  %v721 = vpop.f32.mrb[0].mxu0
  %v722 = vadd.f32 0.0, %v721
  %v723 = vpop.f32.mrb[0].mxu0
  %724 = vmatprep.mubr.bf16.mxu0 %v343
  %725 = vmatmul.mubr.bf16.gmra.mrb[0].mxu0 %v342
  %v726 = vpop.f32.mrb[0].mxu0
  %v727 = vadd.f32 0.0, %v726
  %v728 = vpop.f32.mrb[0].mxu0
  %v729 = vpop.f32.mrb[0].mxu0
  %v730 = vadd.f32 0.0, %v729
  %v731 = vpop.f32.mrb[0].mxu0
  %732 = vmatprep.mubr.bf16.mxu0 %v345
  %733 = vmatmul.mubr.bf16.gmra.mrb[0].mxu0 %v344
  %v734 = vpop.f32.mrb[0].mxu0
  %v735 = vadd.f32 0.0, %v734
  %v736 = vpop.f32.mrb[0].mxu0
  %v737 = vpop.f32.mrb[0].mxu0
  %v738 = vadd.f32 0.0, %v737
  %v739 = vpop.f32.mrb[0].mxu0
  %740 = vmatprep.mubr.bf16.mxu0 %v347
  %741 = vmatmul.mubr.bf16.gmra.mrb[0].mxu0 %v346
  %v742 = vpop.f32.mrb[0].mxu0
  %v743 = vadd.f32 0.0, %v742
  %v744 = vpop.f32.mrb[0].mxu0
  %v745 = vpop.f32.mrb[0].mxu0
  %v746 = vadd.f32 0.0, %v745
  %v747 = vpop.f32.mrb[0].mxu0
  %748 = vmatprep.mubr.bf16.mxu0 %v349
  %749 = vmatmul.mubr.bf16.gmra.mrb[0].mxu0 %v348
  %v750 = vpop.f32.mrb[0].mxu0
  %v751 = vadd.f32 0.0, %v750
  %v752 = vpop.f32.mrb[0].mxu0
  %v753 = vpop.f32.mrb[0].mxu0
  %v754 = vadd.f32 0.0, %v753
  %v755 = vpop.f32.mrb[0].mxu0
  %756 = vmatprep.mubr.bf16.mxu0 %v351
  %757 = vmatmul.mubr.bf16.gmra.mrb[0].mxu0 %v350
  %v758 = vpop.f32.mrb[0].mxu0
  %v759 = vadd.f32 0.0, %v758
  %v760 = vpop.f32.mrb[0].mxu0
  %v761 = vpop.f32.mrb[0].mxu0
  %v762 = vadd.f32 0.0, %v761
  %v763 = vpop.f32.mrb[0].mxu0
  %764 = vmatprep.mubr.bf16.mxu0 %v353
  %765 = vmatmul.mubr.bf16.gmra.mrb[0].mxu0 %v352
  %v766 = vpop.f32.mrb[0].mxu0
  %v767 = vadd.f32 0.0, %v766
  %v768 = vpop.f32.mrb[0].mxu0
  %v769 = vpop.f32.mrb[0].mxu0
  %v770 = vadd.f32 0.0, %v769
  %v771 = vpop.f32.mrb[0].mxu0
  %772 = vmatprep.mubr.bf16.mxu0 %v355
  %773 = vmatmul.mubr.bf16.gmra.mrb[0].mxu0 %v354
  %v774 = vpop.f32.mrb[0].mxu0
  %v775 = vadd.f32 0.0, %v774
  %v776 = vpop.f32.mrb[0].mxu0
  %v777 = vpop.f32.mrb[0].mxu0
  %v778 = vadd.f32 0.0, %v777
  %v779 = vpop.f32.mrb[0].mxu0
  %780 = vmatprep.mubr.bf16.mxu0 %v357
  %781 = vmatmul.mubr.bf16.gmra.mrb[0].mxu0 %v356
  %v782 = vpop.f32.mrb[0].mxu0
  %v783 = vadd.f32 0.0, %v782
  %v784 = vpop.f32.mrb[0].mxu0
  %v785 = vpop.f32.mrb[0].mxu0
  %v786 = vadd.f32 0.0, %v785
  %v787 = vpop.f32.mrb[0].mxu0
  %788 = vmatprep.mubr.bf16.mxu0 %v359
  %789 = vmatmul.mubr.bf16.gmra.mrb[0].mxu0 %v358
  %v790 = vpop.f32.mrb[0].mxu0
  %v791 = vadd.f32 0.0, %v790
  %v792 = vpop.f32.mrb[0].mxu0
  %v793 = vpop.f32.mrb[0].mxu0
  %v794 = vadd.f32 0.0, %v793
  %v795 = vpop.f32.mrb[0].mxu0
  %796 = vmatprep.mubr.bf16.mxu0 %v361
  %797 = vmatmul.mubr.bf16.gmra.mrb[0].mxu0 %v360
  %v798 = vpop.f32.mrb[0].mxu0
  %v799 = vadd.f32 0.0, %v798
  %v800 = vpop.f32.mrb[0].mxu0
  %v801 = vpop.f32.mrb[0].mxu0
  %v802 = vadd.f32 0.0, %v801
  %v803 = vpop.f32.mrb[0].mxu0
  %804 = vmatprep.mubr.bf16.mxu0 %v363
  %805 = vmatmul.mubr.bf16.gmra.mrb[0].mxu0 %v362
  %v806 = vpop.f32.mrb[0].mxu0
  %v807 = vadd.f32 0.0, %v806
  %v808 = vpop.f32.mrb[0].mxu0
  %v809 = vpop.f32.mrb[0].mxu0
  %v810 = vadd.f32 0.0, %v809
  %v811 = vpop.f32.mrb[0].mxu0
  %812 = vdwg.mxu0
  %vm813 = vcmp.ge.f32.partialorder %v559, 0.0
  %vm814 = vcmp.ge.f32.partialorder %v562, 0.0
  %vm815 = vcmp.ge.f32.partialorder %v567, 0.0
  %vm816 = vcmp.ge.f32.partialorder %v570, 0.0
  %vm817 = vcmp.ge.f32.partialorder %v575, 0.0
  %vm818 = vcmp.ge.f32.partialorder %v578, 0.0
  %vm819 = vcmp.ge.f32.partialorder %v583, 0.0
  %vm820 = vcmp.ge.f32.partialorder %v586, 0.0
  %vm821 = vcmp.ge.f32.partialorder %v591, 0.0
  %vm822 = vcmp.ge.f32.partialorder %v594, 0.0
  %vm823 = vcmp.ge.f32.partialorder %v599, 0.0
  %vm824 = vcmp.ge.f32.partialorder %v602, 0.0
  %vm825 = vcmp.ge.f32.partialorder %v607, 0.0
  %vm826 = vcmp.ge.f32.partialorder %v610, 0.0
  %vm827 = vcmp.ge.f32.partialorder %v615, 0.0
  %vm828 = vcmp.ge.f32.partialorder %v618, 0.0
  %vm829 = vcmp.ge.f32.partialorder %v623, 0.0
  %vm830 = vcmp.ge.f32.partialorder %v626, 0.0
  %vm831 = vcmp.ge.f32.partialorder %v631, 0.0
  %vm832 = vcmp.ge.f32.partialorder %v634, 0.0
  %vm833 = vcmp.ge.f32.partialorder %v639, 0.0
  %vm834 = vcmp.ge.f32.partialorder %v642, 0.0
  %vm835 = vcmp.ge.f32.partialorder %v647, 0.0
  %vm836 = vcmp.ge.f32.partialorder %v650, 0.0
  %vm837 = vcmp.ge.f32.partialorder %v655, 0.0
  %vm838 = vcmp.ge.f32.partialorder %v658, 0.0
  %vm839 = vcmp.ge.f32.partialorder %v663, 0.0
  %vm840 = vcmp.ge.f32.partialorder %v666, 0.0
  %vm841 = vcmp.ge.f32.partialorder %v671, 0.0
  %vm842 = vcmp.ge.f32.partialorder %v674, 0.0
  %vm843 = vcmp.ge.f32.partialorder %v679, 0.0
  %vm844 = vcmp.ge.f32.partialorder %v682, 0.0
  %vm845 = vcmp.ge.f32.partialorder %v687, 0.0
  %vm846 = vcmp.ge.f32.partialorder %v690, 0.0
  %vm847 = vcmp.ge.f32.partialorder %v695, 0.0
  %vm848 = vcmp.ge.f32.partialorder %v698, 0.0
  %vm849 = vcmp.ge.f32.partialorder %v703, 0.0
  %vm850 = vcmp.ge.f32.partialorder %v706, 0.0
  %vm851 = vcmp.ge.f32.partialorder %v711, 0.0
  %vm852 = vcmp.ge.f32.partialorder %v714, 0.0
  %vm853 = vcmp.ge.f32.partialorder %v719, 0.0
  %vm854 = vcmp.ge.f32.partialorder %v722, 0.0
  %vm855 = vcmp.ge.f32.partialorder %v727, 0.0
  %vm856 = vcmp.ge.f32.partialorder %v730, 0.0
  %vm857 = vcmp.ge.f32.partialorder %v735, 0.0
  %vm858 = vcmp.ge.f32.partialorder %v738, 0.0
  %vm859 = vcmp.ge.f32.partialorder %v743, 0.0
  %vm860 = vcmp.ge.f32.partialorder %v746, 0.0
  %vm861 = vcmp.ge.f32.partialorder %v751, 0.0
  %vm862 = vcmp.ge.f32.partialorder %v754, 0.0
  %vm863 = vcmp.ge.f32.partialorder %v759, 0.0
  %vm864 = vcmp.ge.f32.partialorder %v762, 0.0
  %vm865 = vcmp.ge.f32.partialorder %v767, 0.0
  %vm866 = vcmp.ge.f32.partialorder %v770, 0.0
  %vm867 = vcmp.ge.f32.partialorder %v775, 0.0
  %vm868 = vcmp.ge.f32.partialorder %v778, 0.0
  %vm869 = vcmp.ge.f32.partialorder %v783, 0.0
  %vm870 = vcmp.ge.f32.partialorder %v786, 0.0
  %vm871 = vcmp.ge.f32.partialorder %v791, 0.0
  %vm872 = vcmp.ge.f32.partialorder %v794, 0.0
  %vm873 = vcmp.ge.f32.partialorder %v799, 0.0
  %vm874 = vcmp.ge.f32.partialorder %v802, 0.0
  %vm875 = vcmp.ge.f32.partialorder %v807, 0.0
  %vm876 = vcmp.ge.f32.partialorder %v810, 0.0
  %v877 = vmul.f32 %v559, 0.2
  %v878 = vmul.f32 %v562, 0.2
  %v879 = vmul.f32 %v567, 0.2
  %v880 = vmul.f32 %v570, 0.2
  %v881 = vmul.f32 %v575, 0.2
  %v882 = vmul.f32 %v578, 0.2
  %v883 = vmul.f32 %v583, 0.2
  %v884 = vmul.f32 %v586, 0.2
  %v885 = vmul.f32 %v591, 0.2
  %v886 = vmul.f32 %v594, 0.2
  %v887 = vmul.f32 %v599, 0.2
  %v888 = vmul.f32 %v602, 0.2
  %v889 = vmul.f32 %v607, 0.2
  %v890 = vmul.f32 %v610, 0.2
  %v891 = vmul.f32 %v615, 0.2
  %v892 = vmul.f32 %v618, 0.2
  %v893 = vmul.f32 %v623, 0.2
  %v894 = vmul.f32 %v626, 0.2
  %v895 = vmul.f32 %v631, 0.2
  %v896 = vmul.f32 %v634, 0.2
  %v897 = vmul.f32 %v639, 0.2
  %v898 = vmul.f32 %v642, 0.2
  %v899 = vmul.f32 %v647, 0.2
  %v900 = vmul.f32 %v650, 0.2
  %v901 = vmul.f32 %v655, 0.2
  %v902 = vmul.f32 %v658, 0.2
  %v903 = vmul.f32 %v663, 0.2
  %v904 = vmul.f32 %v666, 0.2
  %v905 = vmul.f32 %v671, 0.2
  %v906 = vmul.f32 %v674, 0.2
  %v907 = vmul.f32 %v679, 0.2
  %v908 = vmul.f32 %v682, 0.2
  %v909 = vmul.f32 %v687, 0.2
  %v910 = vmul.f32 %v690, 0.2
  %v911 = vmul.f32 %v695, 0.2
  %v912 = vmul.f32 %v698, 0.2
  %v913 = vmul.f32 %v703, 0.2
  %v914 = vmul.f32 %v706, 0.2
  %v915 = vmul.f32 %v711, 0.2
  %v916 = vmul.f32 %v714, 0.2
  %v917 = vmul.f32 %v719, 0.2
  %v918 = vmul.f32 %v722, 0.2
  %v919 = vmul.f32 %v727, 0.2
  %v920 = vmul.f32 %v730, 0.2
  %v921 = vmul.f32 %v735, 0.2
  %v922 = vmul.f32 %v738, 0.2
  %v923 = vmul.f32 %v743, 0.2
  %v924 = vmul.f32 %v746, 0.2
  %v925 = vmul.f32 %v751, 0.2
  %v926 = vmul.f32 %v754, 0.2
  %v927 = vmul.f32 %v759, 0.2
  %v928 = vmul.f32 %v762, 0.2
  %v929 = vmul.f32 %v767, 0.2
  %v930 = vmul.f32 %v770, 0.2
  %v931 = vmul.f32 %v775, 0.2
  %v932 = vmul.f32 %v778, 0.2
  %v933 = vmul.f32 %v783, 0.2
  %v934 = vmul.f32 %v786, 0.2
  %v935 = vmul.f32 %v791, 0.2
  %v936 = vmul.f32 %v794, 0.2
  %v937 = vmul.f32 %v799, 0.2
  %v938 = vmul.f32 %v802, 0.2
  %v939 = vmul.f32 %v807, 0.2
  %v940 = vmul.f32 %v810, 0.2
  %v941 = vsel %vm813, %v559, %v877
  %v942 = vsel %vm814, %v562, %v878
  %v943 = vsel %vm815, %v567, %v879
  %v944 = vsel %vm816, %v570, %v880
  %v945 = vsel %vm817, %v575, %v881
  %v946 = vsel %vm818, %v578, %v882
  %v947 = vsel %vm819, %v583, %v883
  %v948 = vsel %vm820, %v586, %v884
  %v949 = vsel %vm821, %v591, %v885
  %v950 = vsel %vm822, %v594, %v886
  %v951 = vsel %vm823, %v599, %v887
  %v952 = vsel %vm824, %v602, %v888
  %v953 = vsel %vm825, %v607, %v889
  %v954 = vsel %vm826, %v610, %v890
  %v955 = vsel %vm827, %v615, %v891
  %v956 = vsel %vm828, %v618, %v892
  %v957 = vsel %vm829, %v623, %v893
  %v958 = vsel %vm830, %v626, %v894
  %v959 = vsel %vm831, %v631, %v895
  %v960 = vsel %vm832, %v634, %v896
  %v961 = vsel %vm833, %v639, %v897
  %v962 = vsel %vm834, %v642, %v898
  %v963 = vsel %vm835, %v647, %v899
  %v964 = vsel %vm836, %v650, %v900
  %v965 = vsel %vm837, %v655, %v901
  %v966 = vsel %vm838, %v658, %v902
  %v967 = vsel %vm839, %v663, %v903
  %v968 = vsel %vm840, %v666, %v904
  %v969 = vsel %vm841, %v671, %v905
  %v970 = vsel %vm842, %v674, %v906
  %v971 = vsel %vm843, %v679, %v907
  %v972 = vsel %vm844, %v682, %v908
  %v973 = vsel %vm845, %v687, %v909
  %v974 = vsel %vm846, %v690, %v910
  %v975 = vsel %vm847, %v695, %v911
  %v976 = vsel %vm848, %v698, %v912
  %v977 = vsel %vm849, %v703, %v913
  %v978 = vsel %vm850, %v706, %v914
  %v979 = vsel %vm851, %v711, %v915
  %v980 = vsel %vm852, %v714, %v916
  %v981 = vsel %vm853, %v719, %v917
  %v982 = vsel %vm854, %v722, %v918
  %v983 = vsel %vm855, %v727, %v919
  %v984 = vsel %vm856, %v730, %v920
  %v985 = vsel %vm857, %v735, %v921
  %v986 = vsel %vm858, %v738, %v922
  %v987 = vsel %vm859, %v743, %v923
  %v988 = vsel %vm860, %v746, %v924
  %v989 = vsel %vm861, %v751, %v925
  %v990 = vsel %vm862, %v754, %v926
  %v991 = vsel %vm863, %v759, %v927
  %v992 = vsel %vm864, %v762, %v928
  %v993 = vsel %vm865, %v767, %v929
  %v994 = vsel %vm866, %v770, %v930
  %v995 = vsel %vm867, %v775, %v931
  %v996 = vsel %vm868, %v778, %v932
  %v997 = vsel %vm869, %v783, %v933
  %v998 = vsel %vm870, %v786, %v934
  %v999 = vsel %vm871, %v791, %v935
  %v1000 = vsel %vm872, %v794, %v936
  %v1001 = vsel %vm873, %v799, %v937
  %v1002 = vsel %vm874, %v802, %v938
  %v1003 = vsel %vm875, %v807, %v939
  %v1004 = vsel %vm876, %v810, %v940
  %1005 = vst [vmem:[%s2] sm:$0xff] %v941
  %1006 = vst [vmem:[%s2 + $0x8] sm:$0xff] %v942
  %1007 = vst [vmem:[%s2 + $0x10] sm:$0xff] %v943
  %1008 = vst [vmem:[%s2 + $0x18] sm:$0xff] %v944
  %1009 = vst [vmem:[%s2 + $0x20] sm:$0xff] %v945
  %1010 = vst [vmem:[%s2 + $0x28] sm:$0xff] %v946
  %1011 = vst [vmem:[%s2 + $0x30] sm:$0xff] %v947
  %1012 = vst [vmem:[%s2 + $0x38] sm:$0xff] %v948
  %1013 = vst [vmem:[%s2 + $0x40] sm:$0xff] %v949
  %1014 = vst [vmem:[%s2 + $0x48] sm:$0xff] %v950
  %1015 = vst [vmem:[%s2 + $0x50] sm:$0xff] %v951
  %1016 = vst [vmem:[%s2 + $0x58] sm:$0xff] %v952
  %1017 = vst [vmem:[%s2 + $0x60] sm:$0xff] %v953
  %1018 = vst [vmem:[%s2 + $0x68] sm:$0xff] %v954
  %1019 = vst [vmem:[%s2 + $0x70] sm:$0xff] %v955
  %1020 = vst [vmem:[%s2 + $0x78] sm:$0xff] %v956
  %1021 = vst [vmem:[%s2 + $0x80] sm:$0xff] %v957
  %1022 = vst [vmem:[%s2 + $0x88] sm:$0xff] %v958
  %1023 = vst [vmem:[%s2 + $0x90] sm:$0xff] %v959
  %1024 = vst [vmem:[%s2 + $0x98] sm:$0xff] %v960
  %1025 = vst [vmem:[%s2 + $0xa0] sm:$0xff] %v961
  %1026 = vst [vmem:[%s2 + $0xa8] sm:$0xff] %v962
  %1027 = vst [vmem:[%s2 + $0xb0] sm:$0xff] %v963
  %1028 = vst [vmem:[%s2 + $0xb8] sm:$0xff] %v964
  %1029 = vst [vmem:[%s2 + $0xc0] sm:$0xff] %v965
  %1030 = vst [vmem:[%s2 + $0xc8] sm:$0xff] %v966
  %1031 = vst [vmem:[%s2 + $0xd0] sm:$0xff] %v967
  %1032 = vst [vmem:[%s2 + $0xd8] sm:$0xff] %v968
  %1033 = vst [vmem:[%s2 + $0xe0] sm:$0xff] %v969
  %1034 = vst [vmem:[%s2 + $0xe8] sm:$0xff] %v970
  %1035 = vst [vmem:[%s2 + $0xf0] sm:$0xff] %v971
  %1036 = vst [vmem:[%s2 + $0xf8] sm:$0xff] %v972
  %1037 = vst [vmem:[%s2 + $0x100] sm:$0xff] %v973
  %1038 = vst [vmem:[%s2 + $0x108] sm:$0xff] %v974
  %1039 = vst [vmem:[%s2 + $0x110] sm:$0xff] %v975
  %1040 = vst [vmem:[%s2 + $0x118] sm:$0xff] %v976
  %1041 = vst [vmem:[%s2 + $0x120] sm:$0xff] %v977
  %1042 = vst [vmem:[%s2 + $0x128] sm:$0xff] %v978
  %1043 = vst [vmem:[%s2 + $0x130] sm:$0xff] %v979
  %1044 = vst [vmem:[%s2 + $0x138] sm:$0xff] %v980
  %1045 = vst [vmem:[%s2 + $0x140] sm:$0xff] %v981
  %1046 = vst [vmem:[%s2 + $0x148] sm:$0xff] %v982
  %1047 = vst [vmem:[%s2 + $0x150] sm:$0xff] %v983
  %1048 = vst [vmem:[%s2 + $0x158] sm:$0xff] %v984
  %1049 = vst [vmem:[%s2 + $0x160] sm:$0xff] %v985
  %1050 = vst [vmem:[%s2 + $0x168] sm:$0xff] %v986
  %1051 = vst [vmem:[%s2 + $0x170] sm:$0xff] %v987
  %1052 = vst [vmem:[%s2 + $0x178] sm:$0xff] %v988
  %1053 = vst [vmem:[%s2 + $0x180] sm:$0xff] %v989
  %1054 = vst [vmem:[%s2 + $0x188] sm:$0xff] %v990
  %1055 = vst [vmem:[%s2 + $0x190] sm:$0xff] %v991
  %1056 = vst [vmem:[%s2 + $0x198] sm:$0xff] %v992
  %1057 = vst [vmem:[%s2 + $0x1a0] sm:$0xff] %v993
  %1058 = vst [vmem:[%s2 + $0x1a8] sm:$0xff] %v994
  %1059 = vst [vmem:[%s2 + $0x1b0] sm:$0xff] %v995
  %1060 = vst [vmem:[%s2 + $0x1b8] sm:$0xff] %v996
  %1061 = vst [vmem:[%s2 + $0x1c0] sm:$0xff] %v997
  %1062 = vst [vmem:[%s2 + $0x1c8] sm:$0xff] %v998
  %1063 = vst [vmem:[%s2 + $0x1d0] sm:$0xff] %v999
  %1064 = vst [vmem:[%s2 + $0x1d8] sm:$0xff] %v1000
  %1065 = vst [vmem:[%s2 + $0x1e0] sm:$0xff] %v1001
  %1066 = vst [vmem:[%s2 + $0x1e8] sm:$0xff] %v1002
  %1067 = vst [vmem:[%s2 + $0x1f0] sm:$0xff] %v1003
  %1068 = vst [vmem:[%s2 + $0x1f8] sm:$0xff] %v1004
  // Predicated region
  $region10: #{critic_forward.7} parent=0 // pred_check
    _
  $region11: #{critic_forward.7} parent=0 // pred_check_branch
    %1070 = sbr.rel (0) target = $region13
  $region12: #{critic_forward.7} parent=0 // pred_region
    _
  $region13: #{critic_forward.7} parent=0 // pred_fallthru
    _
  // Predicated region
  $region14: #{critic_forward.7} parent=0 // pred_check
    _
  $region15: #{critic_forward.7} parent=0 // pred_check_branch
    %1072 = sbr.rel (0) target = $region17
  $region16: #{critic_forward.7} parent=0 // pred_region
    _
  $region17: #{critic_forward.7} parent=0 // pred_fallthru
    _

// kernel: critic_forward.8
$region0: #{critic_forward.8}
  #allocation0 [shape = 'u32[]', space=smem, size = 0x4, offset = 0x4, fixed_abs, tag = 'smem constant byte address 0x4 - core index']
  #allocation1 [shape = 'u32[144,128]{1,0:T(1,128)}', space=vmem, size = 0x12000, scoped, tag = 'internal scratch']
  %s0 = inlined_call_operand.vmem [shape: bf16[128,512], index: 0, kind: input, shape index: {}]
  %s1 = inlined_call_operand.vmem [shape: bf16[512,128], index: 1, kind: input, shape index: {}]
  %s2 = inlined_call_operand.vmem [shape: f32[128,128], index: 2, kind: output, shape index: {}]
  %s3 = sld [smem:[#allocation0]]
  $region18: #{critic_forward.8} parent=0
    _
  %s5 = ssub.s32 1, %s3
  %s6 = scalar_select 0, %s5, %s3
  // Predicated region
  $region2: #{critic_forward.8} parent=0 // pred_check
    _
  $region3: #{critic_forward.8} parent=0 // pred_check_branch
    %8 = sbr.rel (0) target = $region5
  $region4: #{critic_forward.8} parent=0 // pred_region
    _
  $region5: #{critic_forward.8} parent=0 // pred_fallthru
    _
  // Predicated region
  $region6: #{critic_forward.8} parent=0 // pred_check
    _
  $region7: #{critic_forward.8} parent=0 // pred_check_branch
    %10 = sbr.rel (0) target = $region9
  $region8: #{critic_forward.8} parent=0 // pred_region
    _
  $region9: #{critic_forward.8} parent=0 // pred_fallthru
    _
  %v12 = vld [vmem:[%s0] sm:$0xff]
  %v13 = vld [vmem:[%s0 + $0x8] sm:$0xff]
  %v14 = vld [vmem:[%s0 + $0x10] sm:$0xff]
  %v15 = vld [vmem:[%s0 + $0x18] sm:$0xff]
  %v16 = vld [vmem:[%s0 + $0x20] sm:$0xff]
  %v17 = vld [vmem:[%s0 + $0x28] sm:$0xff]
  %v18 = vld [vmem:[%s0 + $0x30] sm:$0xff]
  %v19 = vld [vmem:[%s0 + $0x38] sm:$0xff]
  %v20 = vld [vmem:[%s0 + $0x40] sm:$0xff]
  %v21 = vld [vmem:[%s0 + $0x48] sm:$0xff]
  %v22 = vld [vmem:[%s0 + $0x50] sm:$0xff]
  %v23 = vld [vmem:[%s0 + $0x58] sm:$0xff]
  %v24 = vld [vmem:[%s0 + $0x60] sm:$0xff]
  %v25 = vld [vmem:[%s0 + $0x68] sm:$0xff]
  %v26 = vld [vmem:[%s0 + $0x70] sm:$0xff]
  %v27 = vld [vmem:[%s0 + $0x78] sm:$0xff]
  %v28 = vld [vmem:[%s0 + $0x80] sm:$0xff]
  %v29 = vld [vmem:[%s0 + $0x88] sm:$0xff]
  %v30 = vld [vmem:[%s0 + $0x90] sm:$0xff]
  %v31 = vld [vmem:[%s0 + $0x98] sm:$0xff]
  %v32 = vld [vmem:[%s0 + $0xa0] sm:$0xff]
  %v33 = vld [vmem:[%s0 + $0xa8] sm:$0xff]
  %v34 = vld [vmem:[%s0 + $0xb0] sm:$0xff]
  %v35 = vld [vmem:[%s0 + $0xb8] sm:$0xff]
  %v36 = vld [vmem:[%s0 + $0xc0] sm:$0xff]
  %v37 = vld [vmem:[%s0 + $0xc8] sm:$0xff]
  %v38 = vld [vmem:[%s0 + $0xd0] sm:$0xff]
  %v39 = vld [vmem:[%s0 + $0xd8] sm:$0xff]
  %v40 = vld [vmem:[%s0 + $0xe0] sm:$0xff]
  %v41 = vld [vmem:[%s0 + $0xe8] sm:$0xff]
  %v42 = vld [vmem:[%s0 + $0xf0] sm:$0xff]
  %v43 = vld [vmem:[%s0 + $0xf8] sm:$0xff]
  %v44 = vld [vmem:[%s1] sm:$0xf]
  %v45 = vld [vmem:[%s1 + $0x4] sm:$0xf]
  %v46 = vld [vmem:[%s1 + $0x8] sm:$0xf]
  %v47 = vld [vmem:[%s1 + $0xc] sm:$0xf]
  %v48 = vld [vmem:[%s1 + $0x10] sm:$0xf]
  %v49 = vld [vmem:[%s1 + $0x14] sm:$0xf]
  %v50 = vld [vmem:[%s1 + $0x18] sm:$0xf]
  %v51 = vld [vmem:[%s1 + $0x1c] sm:$0xf]
  %v52 = vld [vmem:[%s1 + $0x20] sm:$0xf]
  %v53 = vld [vmem:[%s1 + $0x24] sm:$0xf]
  %v54 = vld [vmem:[%s1 + $0x28] sm:$0xf]
  %v55 = vld [vmem:[%s1 + $0x2c] sm:$0xf]
  %v56 = vld [vmem:[%s1 + $0x30] sm:$0xf]
  %v57 = vld [vmem:[%s1 + $0x34] sm:$0xf]
  %v58 = vld [vmem:[%s1 + $0x38] sm:$0xf]
  %v59 = vld [vmem:[%s1 + $0x3c] sm:$0xf]
  %v60 = vld [vmem:[%s1 + $0x40] sm:$0xf]
  %v61 = vld [vmem:[%s1 + $0x44] sm:$0xf]
  %v62 = vld [vmem:[%s1 + $0x48] sm:$0xf]
  %v63 = vld [vmem:[%s1 + $0x4c] sm:$0xf]
  %v64 = vld [vmem:[%s1 + $0x50] sm:$0xf]
  %v65 = vld [vmem:[%s1 + $0x54] sm:$0xf]
  %v66 = vld [vmem:[%s1 + $0x58] sm:$0xf]
  %v67 = vld [vmem:[%s1 + $0x5c] sm:$0xf]
  %v68 = vld [vmem:[%s1 + $0x60] sm:$0xf]
  %v69 = vld [vmem:[%s1 + $0x64] sm:$0xf]
  %v70 = vld [vmem:[%s1 + $0x68] sm:$0xf]
  %v71 = vld [vmem:[%s1 + $0x6c] sm:$0xf]
  %v72 = vld [vmem:[%s1 + $0x70] sm:$0xf]
  %v73 = vld [vmem:[%s1 + $0x74] sm:$0xf]
  %v74 = vld [vmem:[%s1 + $0x78] sm:$0xf]
  %v75 = vld [vmem:[%s1 + $0x7c] sm:$0xf]
  %v76 = vld [vmem:[%s1 + $0x80] sm:$0xf]
  %v77 = vld [vmem:[%s1 + $0x84] sm:$0xf]
  %v78 = vld [vmem:[%s1 + $0x88] sm:$0xf]
  %v79 = vld [vmem:[%s1 + $0x8c] sm:$0xf]
  %v80 = vld [vmem:[%s1 + $0x90] sm:$0xf]
  %v81 = vld [vmem:[%s1 + $0x94] sm:$0xf]
  %v82 = vld [vmem:[%s1 + $0x98] sm:$0xf]
  %v83 = vld [vmem:[%s1 + $0x9c] sm:$0xf]
  %v84 = vld [vmem:[%s1 + $0xa0] sm:$0xf]
  %v85 = vld [vmem:[%s1 + $0xa4] sm:$0xf]
  %v86 = vld [vmem:[%s1 + $0xa8] sm:$0xf]
  %v87 = vld [vmem:[%s1 + $0xac] sm:$0xf]
  %v88 = vld [vmem:[%s1 + $0xb0] sm:$0xf]
  %v89 = vld [vmem:[%s1 + $0xb4] sm:$0xf]
  %v90 = vld [vmem:[%s1 + $0xb8] sm:$0xf]
  %v91 = vld [vmem:[%s1 + $0xbc] sm:$0xf]
  %v92 = vld [vmem:[%s1 + $0xc0] sm:$0xf]
  %v93 = vld [vmem:[%s1 + $0xc4] sm:$0xf]
  %v94 = vld [vmem:[%s1 + $0xc8] sm:$0xf]
  %v95 = vld [vmem:[%s1 + $0xcc] sm:$0xf]
  %v96 = vld [vmem:[%s1 + $0xd0] sm:$0xf]
  %v97 = vld [vmem:[%s1 + $0xd4] sm:$0xf]
  %v98 = vld [vmem:[%s1 + $0xd8] sm:$0xf]
  %v99 = vld [vmem:[%s1 + $0xdc] sm:$0xf]
  %v100 = vld [vmem:[%s1 + $0xe0] sm:$0xf]
  %v101 = vld [vmem:[%s1 + $0xe4] sm:$0xf]
  %v102 = vld [vmem:[%s1 + $0xe8] sm:$0xf]
  %v103 = vld [vmem:[%s1 + $0xec] sm:$0xf]
  %v104 = vld [vmem:[%s1 + $0xf0] sm:$0xf]
  %v105 = vld [vmem:[%s1 + $0xf4] sm:$0xf]
  %v106 = vld [vmem:[%s1 + $0xf8] sm:$0xf]
  %v107 = vld [vmem:[%s1 + $0xfc] sm:$0xf]
  %v140 = vunpack.c.l.b16 %v12
  %v141 = vunpack.c.h.b16 %v12
  %v142 = vunpack.c.l.b16 %v13
  %v143 = vunpack.c.h.b16 %v13
  %v144 = vunpack.c.l.b16 %v14
  %v145 = vunpack.c.h.b16 %v14
  %v146 = vunpack.c.l.b16 %v15
  %v147 = vunpack.c.h.b16 %v15
  %v148 = vunpack.c.l.b16 %v16
  %v149 = vunpack.c.h.b16 %v16
  %v150 = vunpack.c.l.b16 %v17
  %v151 = vunpack.c.h.b16 %v17
  %v152 = vunpack.c.l.b16 %v18
  %v153 = vunpack.c.h.b16 %v18
  %v154 = vunpack.c.l.b16 %v19
  %v155 = vunpack.c.h.b16 %v19
  %v156 = vunpack.c.l.b16 %v20
  %v157 = vunpack.c.h.b16 %v20
  %v158 = vunpack.c.l.b16 %v21
  %v159 = vunpack.c.h.b16 %v21
  %v160 = vunpack.c.l.b16 %v22
  %v161 = vunpack.c.h.b16 %v22
  %v162 = vunpack.c.l.b16 %v23
  %v163 = vunpack.c.h.b16 %v23
  %v164 = vunpack.c.l.b16 %v24
  %v165 = vunpack.c.h.b16 %v24
  %v166 = vunpack.c.l.b16 %v25
  %v167 = vunpack.c.h.b16 %v25
  %v168 = vunpack.c.l.b16 %v26
  %v169 = vunpack.c.h.b16 %v26
  %v170 = vunpack.c.l.b16 %v27
  %v171 = vunpack.c.h.b16 %v27
  %v172 = vunpack.c.l.b16 %v28
  %v173 = vunpack.c.h.b16 %v28
  %v174 = vunpack.c.l.b16 %v29
  %v175 = vunpack.c.h.b16 %v29
  %v176 = vunpack.c.l.b16 %v30
  %v177 = vunpack.c.h.b16 %v30
  %v178 = vunpack.c.l.b16 %v31
  %v179 = vunpack.c.h.b16 %v31
  %v180 = vunpack.c.l.b16 %v32
  %v181 = vunpack.c.h.b16 %v32
  %v182 = vunpack.c.l.b16 %v33
  %v183 = vunpack.c.h.b16 %v33
  %v184 = vunpack.c.l.b16 %v34
  %v185 = vunpack.c.h.b16 %v34
  %v186 = vunpack.c.l.b16 %v35
  %v187 = vunpack.c.h.b16 %v35
  %v188 = vunpack.c.l.b16 %v36
  %v189 = vunpack.c.h.b16 %v36
  %v190 = vunpack.c.l.b16 %v37
  %v191 = vunpack.c.h.b16 %v37
  %v192 = vunpack.c.l.b16 %v38
  %v193 = vunpack.c.h.b16 %v38
  %v194 = vunpack.c.l.b16 %v39
  %v195 = vunpack.c.h.b16 %v39
  %v196 = vunpack.c.l.b16 %v40
  %v197 = vunpack.c.h.b16 %v40
  %v198 = vunpack.c.l.b16 %v41
  %v199 = vunpack.c.h.b16 %v41
  %v200 = vunpack.c.l.b16 %v42
  %v201 = vunpack.c.h.b16 %v42
  %v202 = vunpack.c.l.b16 %v43
  %v203 = vunpack.c.h.b16 %v43
  %v204 = vpack.c.b16 %v144, %v140
  %v205 = vpack.c.b16 %v145, %v141
  %v206 = vpack.c.b16 %v146, %v142
  %v207 = vpack.c.b16 %v147, %v143
  %v208 = vpack.c.b16 %v152, %v148
  %v209 = vpack.c.b16 %v153, %v149
  %v210 = vpack.c.b16 %v154, %v150
  %v211 = vpack.c.b16 %v155, %v151
  %v212 = vpack.c.b16 %v160, %v156
  %v213 = vpack.c.b16 %v161, %v157
  %v214 = vpack.c.b16 %v162, %v158
  %v215 = vpack.c.b16 %v163, %v159
  %v216 = vpack.c.b16 %v168, %v164
  %v217 = vpack.c.b16 %v169, %v165
  %v218 = vpack.c.b16 %v170, %v166
  %v219 = vpack.c.b16 %v171, %v167
  %v220 = vpack.c.b16 %v176, %v172
  %v221 = vpack.c.b16 %v177, %v173
  %v222 = vpack.c.b16 %v178, %v174
  %v223 = vpack.c.b16 %v179, %v175
  %v224 = vpack.c.b16 %v184, %v180
  %v225 = vpack.c.b16 %v185, %v181
  %v226 = vpack.c.b16 %v186, %v182
  %v227 = vpack.c.b16 %v187, %v183
  %v228 = vpack.c.b16 %v192, %v188
  %v229 = vpack.c.b16 %v193, %v189
  %v230 = vpack.c.b16 %v194, %v190
  %v231 = vpack.c.b16 %v195, %v191
  %v232 = vpack.c.b16 %v200, %v196
  %v233 = vpack.c.b16 %v201, %v197
  %v234 = vpack.c.b16 %v202, %v198
  %v235 = vpack.c.b16 %v203, %v199
  %v332 = vunpack.c.l.b16 %v44
  %v333 = vunpack.c.l.b16 %v45
  %v334 = vunpack.c.l.b16 %v46
  %v335 = vunpack.c.l.b16 %v47
  %v336 = vunpack.c.l.b16 %v48
  %v337 = vunpack.c.l.b16 %v49
  %v338 = vunpack.c.l.b16 %v50
  %v339 = vunpack.c.l.b16 %v51
  %v340 = vunpack.c.l.b16 %v52
  %v341 = vunpack.c.l.b16 %v53
  %v342 = vunpack.c.l.b16 %v54
  %v343 = vunpack.c.l.b16 %v55
  %v344 = vunpack.c.l.b16 %v56
  %v345 = vunpack.c.l.b16 %v57
  %v346 = vunpack.c.l.b16 %v58
  %v347 = vunpack.c.l.b16 %v59
  %v348 = vunpack.c.l.b16 %v60
  %v349 = vunpack.c.l.b16 %v61
  %v350 = vunpack.c.l.b16 %v62
  %v351 = vunpack.c.l.b16 %v63
  %v352 = vunpack.c.l.b16 %v64
  %v353 = vunpack.c.l.b16 %v65
  %v354 = vunpack.c.l.b16 %v66
  %v355 = vunpack.c.l.b16 %v67
  %v356 = vunpack.c.l.b16 %v68
  %v357 = vunpack.c.l.b16 %v69
  %v358 = vunpack.c.l.b16 %v70
  %v359 = vunpack.c.l.b16 %v71
  %v360 = vunpack.c.l.b16 %v72
  %v361 = vunpack.c.l.b16 %v73
  %v362 = vunpack.c.l.b16 %v74
  %v363 = vunpack.c.l.b16 %v75
  %v364 = vunpack.c.l.b16 %v76
  %v365 = vunpack.c.l.b16 %v77
  %v366 = vunpack.c.l.b16 %v78
  %v367 = vunpack.c.l.b16 %v79
  %v368 = vunpack.c.l.b16 %v80
  %v369 = vunpack.c.l.b16 %v81
  %v370 = vunpack.c.l.b16 %v82
  %v371 = vunpack.c.l.b16 %v83
  %v372 = vunpack.c.l.b16 %v84
  %v373 = vunpack.c.l.b16 %v85
  %v374 = vunpack.c.l.b16 %v86
  %v375 = vunpack.c.l.b16 %v87
  %v376 = vunpack.c.l.b16 %v88
  %v377 = vunpack.c.l.b16 %v89
  %v378 = vunpack.c.l.b16 %v90
  %v379 = vunpack.c.l.b16 %v91
  %v380 = vunpack.c.l.b16 %v92
  %v381 = vunpack.c.l.b16 %v93
  %v382 = vunpack.c.l.b16 %v94
  %v383 = vunpack.c.l.b16 %v95
  %v384 = vunpack.c.l.b16 %v96
  %v385 = vunpack.c.l.b16 %v97
  %v386 = vunpack.c.l.b16 %v98
  %v387 = vunpack.c.l.b16 %v99
  %v388 = vunpack.c.l.b16 %v100
  %v389 = vunpack.c.l.b16 %v101
  %v390 = vunpack.c.l.b16 %v102
  %v391 = vunpack.c.l.b16 %v103
  %v392 = vunpack.c.l.b16 %v104
  %v393 = vunpack.c.l.b16 %v105
  %v394 = vunpack.c.l.b16 %v106
  %v395 = vunpack.c.l.b16 %v107
  %v396 = vpack.c.b16 %v333, %v332
  %v397 = vpack.c.b16 %v335, %v334
  %v398 = vpack.c.b16 %v337, %v336
  %v399 = vpack.c.b16 %v339, %v338
  %v400 = vpack.c.b16 %v341, %v340
  %v401 = vpack.c.b16 %v343, %v342
  %v402 = vpack.c.b16 %v345, %v344
  %v403 = vpack.c.b16 %v347, %v346
  %v404 = vpack.c.b16 %v349, %v348
  %v405 = vpack.c.b16 %v351, %v350
  %v406 = vpack.c.b16 %v353, %v352
  %v407 = vpack.c.b16 %v355, %v354
  %v408 = vpack.c.b16 %v357, %v356
  %v409 = vpack.c.b16 %v359, %v358
  %v410 = vpack.c.b16 %v361, %v360
  %v411 = vpack.c.b16 %v363, %v362
  %v412 = vpack.c.b16 %v365, %v364
  %v413 = vpack.c.b16 %v367, %v366
  %v414 = vpack.c.b16 %v369, %v368
  %v415 = vpack.c.b16 %v371, %v370
  %v416 = vpack.c.b16 %v373, %v372
  %v417 = vpack.c.b16 %v375, %v374
  %v418 = vpack.c.b16 %v377, %v376
  %v419 = vpack.c.b16 %v379, %v378
  %v420 = vpack.c.b16 %v381, %v380
  %v421 = vpack.c.b16 %v383, %v382
  %v422 = vpack.c.b16 %v385, %v384
  %v423 = vpack.c.b16 %v387, %v386
  %v424 = vpack.c.b16 %v389, %v388
  %v425 = vpack.c.b16 %v391, %v390
  %v426 = vpack.c.b16 %v393, %v392
  %v427 = vpack.c.b16 %v395, %v394
  %460 = vmatprep.subr.bf16.mxu0 0
  %461 = vmatpush1.bf16.msra.mxu0 %v396
  %462 = vmatprep.subr.bf16.mxu0 0
  %463 = vmatpush1.bf16.msra.mxu0 %v397
  %464 = vmatprep.subr.bf16.mxu0 0
  %465 = vmatpush1.bf16.msra.mxu0 %v398
  %466 = vmatprep.subr.bf16.mxu0 0
  %467 = vmatpush1.bf16.msra.mxu0 %v399
  %468 = vmatprep.subr.bf16.mxu0 0
  %469 = vmatpush1.bf16.msra.mxu0 %v400
  %470 = vmatprep.subr.bf16.mxu0 0
  %471 = vmatpush1.bf16.msra.mxu0 %v401
  %472 = vmatprep.subr.bf16.mxu0 0
  %473 = vmatpush1.bf16.msra.mxu0 %v402
  %474 = vmatprep.subr.bf16.mxu0 0
  %475 = vmatpush1.bf16.msra.mxu0 %v403
  %476 = vmatprep.subr.bf16.mxu0 0
  %477 = vmatpush1.bf16.msra.mxu0 %v404
  %478 = vmatprep.subr.bf16.mxu0 0
  %479 = vmatpush1.bf16.msra.mxu0 %v405
  %480 = vmatprep.subr.bf16.mxu0 0
  %481 = vmatpush1.bf16.msra.mxu0 %v406
  %482 = vmatprep.subr.bf16.mxu0 0
  %483 = vmatpush1.bf16.msra.mxu0 %v407
  %484 = vmatprep.subr.bf16.mxu0 0
  %485 = vmatpush1.bf16.msra.mxu0 %v408
  %486 = vmatprep.subr.bf16.mxu0 0
  %487 = vmatpush1.bf16.msra.mxu0 %v409
  %488 = vmatprep.subr.bf16.mxu0 0
  %489 = vmatpush1.bf16.msra.mxu0 %v410
  %490 = vmatprep.subr.bf16.mxu0 0
  %491 = vmatpush1.bf16.msra.mxu0 %v411
  %492 = vmatprep.mubr.bf16.mxu0 %v205
  %493 = vmatmul.mubr.bf16.gmra.mrb[0].mxu0 %v204
  %v494 = vpop.f32.mrb[0].mxu0
  %v495 = vadd.f32 0.0, %v494
  %v496 = vpop.f32.mrb[0].mxu0
  %v497 = vpop.f32.mrb[0].mxu0
  %v498 = vadd.f32 0.0, %v497
  %v499 = vpop.f32.mrb[0].mxu0
  %500 = vmatprep.mubr.bf16.mxu0 %v209
  %501 = vmatmul.mubr.bf16.gmra.mrb[0].mxu0 %v208
  %v502 = vpop.f32.mrb[0].mxu0
  %v503 = vadd.f32 0.0, %v502
  %v504 = vpop.f32.mrb[0].mxu0
  %v505 = vpop.f32.mrb[0].mxu0
  %v506 = vadd.f32 0.0, %v505
  %v507 = vpop.f32.mrb[0].mxu0
  %508 = vmatprep.mubr.bf16.mxu0 %v213
  %509 = vmatmul.mubr.bf16.gmra.mrb[0].mxu0 %v212
  %v510 = vpop.f32.mrb[0].mxu0
  %v511 = vadd.f32 0.0, %v510
  %v512 = vpop.f32.mrb[0].mxu0
  %v513 = vpop.f32.mrb[0].mxu0
  %v514 = vadd.f32 0.0, %v513
  %v515 = vpop.f32.mrb[0].mxu0
  %516 = vmatprep.mubr.bf16.mxu0 %v217
  %517 = vmatmul.mubr.bf16.gmra.mrb[0].mxu0 %v216
  %v518 = vpop.f32.mrb[0].mxu0
  %v519 = vadd.f32 0.0, %v518
  %v520 = vpop.f32.mrb[0].mxu0
  %v521 = vpop.f32.mrb[0].mxu0
  %v522 = vadd.f32 0.0, %v521
  %v523 = vpop.f32.mrb[0].mxu0
  %524 = vmatprep.mubr.bf16.mxu0 %v221
  %525 = vmatmul.mubr.bf16.gmra.mrb[0].mxu0 %v220
  %v526 = vpop.f32.mrb[0].mxu0
  %v527 = vadd.f32 0.0, %v526
  %v528 = vpop.f32.mrb[0].mxu0
  %v529 = vpop.f32.mrb[0].mxu0
  %v530 = vadd.f32 0.0, %v529
  %v531 = vpop.f32.mrb[0].mxu0
  %532 = vmatprep.mubr.bf16.mxu0 %v225
  %533 = vmatmul.mubr.bf16.gmra.mrb[0].mxu0 %v224
  %v534 = vpop.f32.mrb[0].mxu0
  %v535 = vadd.f32 0.0, %v534
  %v536 = vpop.f32.mrb[0].mxu0
  %v537 = vpop.f32.mrb[0].mxu0
  %v538 = vadd.f32 0.0, %v537
  %v539 = vpop.f32.mrb[0].mxu0
  %540 = vmatprep.mubr.bf16.mxu0 %v229
  %541 = vmatmul.mubr.bf16.gmra.mrb[0].mxu0 %v228
  %v542 = vpop.f32.mrb[0].mxu0
  %v543 = vadd.f32 0.0, %v542
  %v544 = vpop.f32.mrb[0].mxu0
  %v545 = vpop.f32.mrb[0].mxu0
  %v546 = vadd.f32 0.0, %v545
  %v547 = vpop.f32.mrb[0].mxu0
  %548 = vmatprep.mubr.bf16.mxu0 %v233
  %549 = vmatmul.mubr.bf16.gmra.mrb[0].mxu0 %v232
  %v550 = vpop.f32.mrb[0].mxu0
  %v551 = vadd.f32 0.0, %v550
  %v552 = vpop.f32.mrb[0].mxu0
  %v553 = vpop.f32.mrb[0].mxu0
  %v554 = vadd.f32 0.0, %v553
  %v555 = vpop.f32.mrb[0].mxu0
  %556 = vdwg.mxu0
  %557 = vmatprep.subr.bf16.mxu0 0
  %558 = vmatpush1.bf16.msra.mxu0 %v412
  %559 = vmatprep.subr.bf16.mxu0 0
  %560 = vmatpush1.bf16.msra.mxu0 %v413
  %561 = vmatprep.subr.bf16.mxu0 0
  %562 = vmatpush1.bf16.msra.mxu0 %v414
  %563 = vmatprep.subr.bf16.mxu0 0
  %564 = vmatpush1.bf16.msra.mxu0 %v415
  %565 = vmatprep.subr.bf16.mxu0 0
  %566 = vmatpush1.bf16.msra.mxu0 %v416
  %567 = vmatprep.subr.bf16.mxu0 0
  %568 = vmatpush1.bf16.msra.mxu0 %v417
  %569 = vmatprep.subr.bf16.mxu0 0
  %570 = vmatpush1.bf16.msra.mxu0 %v418
  %571 = vmatprep.subr.bf16.mxu0 0
  %572 = vmatpush1.bf16.msra.mxu0 %v419
  %573 = vmatprep.subr.bf16.mxu0 0
  %574 = vmatpush1.bf16.msra.mxu0 %v420
  %575 = vmatprep.subr.bf16.mxu0 0
  %576 = vmatpush1.bf16.msra.mxu0 %v421
  %577 = vmatprep.subr.bf16.mxu0 0
  %578 = vmatpush1.bf16.msra.mxu0 %v422
  %579 = vmatprep.subr.bf16.mxu0 0
  %580 = vmatpush1.bf16.msra.mxu0 %v423
  %581 = vmatprep.subr.bf16.mxu0 0
  %582 = vmatpush1.bf16.msra.mxu0 %v424
  %583 = vmatprep.subr.bf16.mxu0 0
  %584 = vmatpush1.bf16.msra.mxu0 %v425
  %585 = vmatprep.subr.bf16.mxu0 0
  %586 = vmatpush1.bf16.msra.mxu0 %v426
  %587 = vmatprep.subr.bf16.mxu0 0
  %588 = vmatpush1.bf16.msra.mxu0 %v427
  %589 = vmatprep.mubr.bf16.mxu0 %v207
  %590 = vmatmul.mubr.bf16.gmra.mrb[0].mxu0 %v206
  %v591 = vpop.f32.mrb[0].mxu0
  %v592 = vadd.f32 %v495, %v591
  %v593 = vpop.f32.mrb[0].mxu0
  %v594 = vpop.f32.mrb[0].mxu0
  %v595 = vadd.f32 %v498, %v594
  %v596 = vpop.f32.mrb[0].mxu0
  %597 = vmatprep.mubr.bf16.mxu0 %v211
  %598 = vmatmul.mubr.bf16.gmra.mrb[0].mxu0 %v210
  %v599 = vpop.f32.mrb[0].mxu0
  %v600 = vadd.f32 %v503, %v599
  %v601 = vpop.f32.mrb[0].mxu0
  %v602 = vpop.f32.mrb[0].mxu0
  %v603 = vadd.f32 %v506, %v602
  %v604 = vpop.f32.mrb[0].mxu0
  %605 = vmatprep.mubr.bf16.mxu0 %v215
  %606 = vmatmul.mubr.bf16.gmra.mrb[0].mxu0 %v214
  %v607 = vpop.f32.mrb[0].mxu0
  %v608 = vadd.f32 %v511, %v607
  %v609 = vpop.f32.mrb[0].mxu0
  %v610 = vpop.f32.mrb[0].mxu0
  %v611 = vadd.f32 %v514, %v610
  %v612 = vpop.f32.mrb[0].mxu0
  %613 = vmatprep.mubr.bf16.mxu0 %v219
  %614 = vmatmul.mubr.bf16.gmra.mrb[0].mxu0 %v218
  %v615 = vpop.f32.mrb[0].mxu0
  %v616 = vadd.f32 %v519, %v615
  %v617 = vpop.f32.mrb[0].mxu0
  %v618 = vpop.f32.mrb[0].mxu0
  %v619 = vadd.f32 %v522, %v618
  %v620 = vpop.f32.mrb[0].mxu0
  %621 = vmatprep.mubr.bf16.mxu0 %v223
  %622 = vmatmul.mubr.bf16.gmra.mrb[0].mxu0 %v222
  %v623 = vpop.f32.mrb[0].mxu0
  %v624 = vadd.f32 %v527, %v623
  %v625 = vpop.f32.mrb[0].mxu0
  %v626 = vpop.f32.mrb[0].mxu0
  %v627 = vadd.f32 %v530, %v626
  %v628 = vpop.f32.mrb[0].mxu0
  %629 = vmatprep.mubr.bf16.mxu0 %v227
  %630 = vmatmul.mubr.bf16.gmra.mrb[0].mxu0 %v226
  %v631 = vpop.f32.mrb[0].mxu0
  %v632 = vadd.f32 %v535, %v631
  %v633 = vpop.f32.mrb[0].mxu0
  %v634 = vpop.f32.mrb[0].mxu0
  %v635 = vadd.f32 %v538, %v634
  %v636 = vpop.f32.mrb[0].mxu0
  %637 = vmatprep.mubr.bf16.mxu0 %v231
  %638 = vmatmul.mubr.bf16.gmra.mrb[0].mxu0 %v230
  %v639 = vpop.f32.mrb[0].mxu0
  %v640 = vadd.f32 %v543, %v639
  %v641 = vpop.f32.mrb[0].mxu0
  %v642 = vpop.f32.mrb[0].mxu0
  %v643 = vadd.f32 %v546, %v642
  %v644 = vpop.f32.mrb[0].mxu0
  %645 = vmatprep.mubr.bf16.mxu0 %v235
  %646 = vmatmul.mubr.bf16.gmra.mrb[0].mxu0 %v234
  %v647 = vpop.f32.mrb[0].mxu0
  %v648 = vadd.f32 %v551, %v647
  %v649 = vpop.f32.mrb[0].mxu0
  %v650 = vpop.f32.mrb[0].mxu0
  %v651 = vadd.f32 %v554, %v650
  %v652 = vpop.f32.mrb[0].mxu0
  %653 = vdwg.mxu0
  %vm654 = vcmp.ge.f32.partialorder %v592, 0.0
  %vm655 = vcmp.ge.f32.partialorder %v595, 0.0
  %vm656 = vcmp.ge.f32.partialorder %v600, 0.0
  %vm657 = vcmp.ge.f32.partialorder %v603, 0.0
  %vm658 = vcmp.ge.f32.partialorder %v608, 0.0
  %vm659 = vcmp.ge.f32.partialorder %v611, 0.0
  %vm660 = vcmp.ge.f32.partialorder %v616, 0.0
  %vm661 = vcmp.ge.f32.partialorder %v619, 0.0
  %vm662 = vcmp.ge.f32.partialorder %v624, 0.0
  %vm663 = vcmp.ge.f32.partialorder %v627, 0.0
  %vm664 = vcmp.ge.f32.partialorder %v632, 0.0
  %vm665 = vcmp.ge.f32.partialorder %v635, 0.0
  %vm666 = vcmp.ge.f32.partialorder %v640, 0.0
  %vm667 = vcmp.ge.f32.partialorder %v643, 0.0
  %vm668 = vcmp.ge.f32.partialorder %v648, 0.0
  %vm669 = vcmp.ge.f32.partialorder %v651, 0.0
  %v670 = vmul.f32 %v592, 0.2
  %v671 = vmul.f32 %v595, 0.2
  %v672 = vmul.f32 %v600, 0.2
  %v673 = vmul.f32 %v603, 0.2
  %v674 = vmul.f32 %v608, 0.2
  %v675 = vmul.f32 %v611, 0.2
  %v676 = vmul.f32 %v616, 0.2
  %v677 = vmul.f32 %v619, 0.2
  %v678 = vmul.f32 %v624, 0.2
  %v679 = vmul.f32 %v627, 0.2
  %v680 = vmul.f32 %v632, 0.2
  %v681 = vmul.f32 %v635, 0.2
  %v682 = vmul.f32 %v640, 0.2
  %v683 = vmul.f32 %v643, 0.2
  %v684 = vmul.f32 %v648, 0.2
  %v685 = vmul.f32 %v651, 0.2
  %v686 = vsel %vm654, %v592, %v670
  %v687 = vsel %vm655, %v595, %v671
  %v688 = vsel %vm656, %v600, %v672
  %v689 = vsel %vm657, %v603, %v673
  %v690 = vsel %vm658, %v608, %v674
  %v691 = vsel %vm659, %v611, %v675
  %v692 = vsel %vm660, %v616, %v676
  %v693 = vsel %vm661, %v619, %v677
  %v694 = vsel %vm662, %v624, %v678
  %v695 = vsel %vm663, %v627, %v679
  %v696 = vsel %vm664, %v632, %v680
  %v697 = vsel %vm665, %v635, %v681
  %v698 = vsel %vm666, %v640, %v682
  %v699 = vsel %vm667, %v643, %v683
  %v700 = vsel %vm668, %v648, %v684
  %v701 = vsel %vm669, %v651, %v685
  %702 = vst [vmem:[%s2] sm:$0xff] %v686
  %703 = vst [vmem:[%s2 + $0x8] sm:$0xff] %v687
  %704 = vst [vmem:[%s2 + $0x10] sm:$0xff] %v688
  %705 = vst [vmem:[%s2 + $0x18] sm:$0xff] %v689
  %706 = vst [vmem:[%s2 + $0x20] sm:$0xff] %v690
  %707 = vst [vmem:[%s2 + $0x28] sm:$0xff] %v691
  %708 = vst [vmem:[%s2 + $0x30] sm:$0xff] %v692
  %709 = vst [vmem:[%s2 + $0x38] sm:$0xff] %v693
  %710 = vst [vmem:[%s2 + $0x40] sm:$0xff] %v694
  %711 = vst [vmem:[%s2 + $0x48] sm:$0xff] %v695
  %712 = vst [vmem:[%s2 + $0x50] sm:$0xff] %v696
  %713 = vst [vmem:[%s2 + $0x58] sm:$0xff] %v697
  %714 = vst [vmem:[%s2 + $0x60] sm:$0xff] %v698
  %715 = vst [vmem:[%s2 + $0x68] sm:$0xff] %v699
  %716 = vst [vmem:[%s2 + $0x70] sm:$0xff] %v700
  %717 = vst [vmem:[%s2 + $0x78] sm:$0xff] %v701
  // Predicated region
  $region10: #{critic_forward.8} parent=0 // pred_check
    _
  $region11: #{critic_forward.8} parent=0 // pred_check_branch
    %719 = sbr.rel (0) target = $region13
  $region12: #{critic_forward.8} parent=0 // pred_region
    _
  $region13: #{critic_forward.8} parent=0 // pred_fallthru
    _
  // Predicated region
  $region14: #{critic_forward.8} parent=0 // pred_check
    _
  $region15: #{critic_forward.8} parent=0 // pred_check_branch
    %721 = sbr.rel (0) target = $region17
  $region16: #{critic_forward.8} parent=0 // pred_region
    _
  $region17: #{critic_forward.8} parent=0 // pred_fallthru
    _

// kernel: critic_forward.9
$region0: #{critic_forward.9}
  #allocation0 [shape = 'u32[]', space=smem, size = 0x4, offset = 0x4, fixed_abs, tag = 'smem constant byte address 0x4 - core index']
  #allocation1 [shape = 'u32[144,128]{1,0:T(1,128)}', space=vmem, size = 0x12000, scoped, tag = 'internal scratch']
  %s0 = inlined_call_operand.vmem [shape: bf16[32,1024], index: 0, kind: input, shape index: {}]
  %s1 = inlined_call_operand.vmem [shape: bf16[1024,128], index: 1, kind: input, shape index: {}]
  %s2 = inlined_call_operand.vmem [shape: f32[32,128], index: 2, kind: output, shape index: {}]
  %s3 = sld [smem:[#allocation0]]
  $region18: #{critic_forward.9} parent=0
    _
  %s5 = ssub.s32 1, %s3
  %s6 = scalar_select 0, %s5, %s3
  // Predicated region
  $region2: #{critic_forward.9} parent=0 // pred_check
    _
  $region3: #{critic_forward.9} parent=0 // pred_check_branch
    %8 = sbr.rel (0) target = $region5
  $region4: #{critic_forward.9} parent=0 // pred_region
    _
  $region5: #{critic_forward.9} parent=0 // pred_fallthru
    _
  // Predicated region
  $region6: #{critic_forward.9} parent=0 // pred_check
    _
  $region7: #{critic_forward.9} parent=0 // pred_check_branch
    %10 = sbr.rel (0) target = $region9
  $region8: #{critic_forward.9} parent=0 // pred_region
    _
  $region9: #{critic_forward.9} parent=0 // pred_fallthru
    _
  %v12 = vld [vmem:[%s0] sm:$0xff]
  %v13 = vld [vmem:[%s0 + $0x8] sm:$0xff]
  %v14 = vld [vmem:[%s0 + $0x10] sm:$0xff]
  %v15 = vld [vmem:[%s0 + $0x18] sm:$0xff]
  %v16 = vld [vmem:[%s0 + $0x20] sm:$0xff]
  %v17 = vld [vmem:[%s0 + $0x28] sm:$0xff]
  %v18 = vld [vmem:[%s0 + $0x30] sm:$0xff]
  %v19 = vld [vmem:[%s0 + $0x38] sm:$0xff]
  %v20 = vld [vmem:[%s0 + $0x40] sm:$0xff]
  %v21 = vld [vmem:[%s0 + $0x48] sm:$0xff]
  %v22 = vld [vmem:[%s0 + $0x50] sm:$0xff]
  %v23 = vld [vmem:[%s0 + $0x58] sm:$0xff]
  %v24 = vld [vmem:[%s0 + $0x60] sm:$0xff]
  %v25 = vld [vmem:[%s0 + $0x68] sm:$0xff]
  %v26 = vld [vmem:[%s0 + $0x70] sm:$0xff]
  %v27 = vld [vmem:[%s0 + $0x78] sm:$0xff]
  %v28 = vld [vmem:[%s1] sm:$0xf]
  %v29 = vld [vmem:[%s1 + $0x4] sm:$0xf]
  %v30 = vld [vmem:[%s1 + $0x8] sm:$0xf]
  %v31 = vld [vmem:[%s1 + $0xc] sm:$0xf]
  %v32 = vld [vmem:[%s1 + $0x10] sm:$0xf]
  %v33 = vld [vmem:[%s1 + $0x14] sm:$0xf]
  %v34 = vld [vmem:[%s1 + $0x18] sm:$0xf]
  %v35 = vld [vmem:[%s1 + $0x1c] sm:$0xf]
  %v36 = vld [vmem:[%s1 + $0x20] sm:$0xf]
  %v37 = vld [vmem:[%s1 + $0x24] sm:$0xf]
  %v38 = vld [vmem:[%s1 + $0x28] sm:$0xf]
  %v39 = vld [vmem:[%s1 + $0x2c] sm:$0xf]
  %v40 = vld [vmem:[%s1 + $0x30] sm:$0xf]
  %v41 = vld [vmem:[%s1 + $0x34] sm:$0xf]
  %v42 = vld [vmem:[%s1 + $0x38] sm:$0xf]
  %v43 = vld [vmem:[%s1 + $0x3c] sm:$0xf]
  %v44 = vld [vmem:[%s1 + $0x40] sm:$0xf]
  %v45 = vld [vmem:[%s1 + $0x44] sm:$0xf]
  %v46 = vld [vmem:[%s1 + $0x48] sm:$0xf]
  %v47 = vld [vmem:[%s1 + $0x4c] sm:$0xf]
  %v48 = vld [vmem:[%s1 + $0x50] sm:$0xf]
  %v49 = vld [vmem:[%s1 + $0x54] sm:$0xf]
  %v50 = vld [vmem:[%s1 + $0x58] sm:$0xf]
  %v51 = vld [vmem:[%s1 + $0x5c] sm:$0xf]
  %v52 = vld [vmem:[%s1 + $0x60] sm:$0xf]
  %v53 = vld [vmem:[%s1 + $0x64] sm:$0xf]
  %v54 = vld [vmem:[%s1 + $0x68] sm:$0xf]
  %v55 = vld [vmem:[%s1 + $0x6c] sm:$0xf]
  %v56 = vld [vmem:[%s1 + $0x70] sm:$0xf]
  %v57 = vld [vmem:[%s1 + $0x74] sm:$0xf]
  %v58 = vld [vmem:[%s1 + $0x78] sm:$0xf]
  %v59 = vld [vmem:[%s1 + $0x7c] sm:$0xf]
  %v60 = vld [vmem:[%s1 + $0x80] sm:$0xf]
  %v61 = vld [vmem:[%s1 + $0x84] sm:$0xf]
  %v62 = vld [vmem:[%s1 + $0x88] sm:$0xf]
  %v63 = vld [vmem:[%s1 + $0x8c] sm:$0xf]
  %v64 = vld [vmem:[%s1 + $0x90] sm:$0xf]
  %v65 = vld [vmem:[%s1 + $0x94] sm:$0xf]
  %v66 = vld [vmem:[%s1 + $0x98] sm:$0xf]
  %v67 = vld [vmem:[%s1 + $0x9c] sm:$0xf]
  %v68 = vld [vmem:[%s1 + $0xa0] sm:$0xf]
  %v69 = vld [vmem:[%s1 + $0xa4] sm:$0xf]
  %v70 = vld [vmem:[%s1 + $0xa8] sm:$0xf]
  %v71 = vld [vmem:[%s1 + $0xac] sm:$0xf]
  %v72 = vld [vmem:[%s1 + $0xb0] sm:$0xf]
  %v73 = vld [vmem:[%s1 + $0xb4] sm:$0xf]
  %v74 = vld [vmem:[%s1 + $0xb8] sm:$0xf]
  %v75 = vld [vmem:[%s1 + $0xbc] sm:$0xf]
  %v76 = vld [vmem:[%s1 + $0xc0] sm:$0xf]
  %v77 = vld [vmem:[%s1 + $0xc4] sm:$0xf]
  %v78 = vld [vmem:[%s1 + $0xc8] sm:$0xf]
  %v79 = vld [vmem:[%s1 + $0xcc] sm:$0xf]
  %v80 = vld [vmem:[%s1 + $0xd0] sm:$0xf]
  %v81 = vld [vmem:[%s1 + $0xd4] sm:$0xf]
  %v82 = vld [vmem:[%s1 + $0xd8] sm:$0xf]
  %v83 = vld [vmem:[%s1 + $0xdc] sm:$0xf]
  %v84 = vld [vmem:[%s1 + $0xe0] sm:$0xf]
  %v85 = vld [vmem:[%s1 + $0xe4] sm:$0xf]
  %v86 = vld [vmem:[%s1 + $0xe8] sm:$0xf]
  %v87 = vld [vmem:[%s1 + $0xec] sm:$0xf]
  %v88 = vld [vmem:[%s1 + $0xf0] sm:$0xf]
  %v89 = vld [vmem:[%s1 + $0xf4] sm:$0xf]
  %v90 = vld [vmem:[%s1 + $0xf8] sm:$0xf]
  %v91 = vld [vmem:[%s1 + $0xfc] sm:$0xf]
  %v92 = vld [vmem:[%s1 + $0x100] sm:$0xf]
  %v93 = vld [vmem:[%s1 + $0x104] sm:$0xf]
  %v94 = vld [vmem:[%s1 + $0x108] sm:$0xf]
  %v95 = vld [vmem:[%s1 + $0x10c] sm:$0xf]
  %v96 = vld [vmem:[%s1 + $0x110] sm:$0xf]
  %v97 = vld [vmem:[%s1 + $0x114] sm:$0xf]
  %v98 = vld [vmem:[%s1 + $0x118] sm:$0xf]
  %v99 = vld [vmem:[%s1 + $0x11c] sm:$0xf]
  %v100 = vld [vmem:[%s1 + $0x120] sm:$0xf]
  %v101 = vld [vmem:[%s1 + $0x124] sm:$0xf]
  %v102 = vld [vmem:[%s1 + $0x128] sm:$0xf]
  %v103 = vld [vmem:[%s1 + $0x12c] sm:$0xf]
  %v104 = vld [vmem:[%s1 + $0x130] sm:$0xf]
  %v105 = vld [vmem:[%s1 + $0x134] sm:$0xf]
  %v106 = vld [vmem:[%s1 + $0x138] sm:$0xf]
  %v107 = vld [vmem:[%s1 + $0x13c] sm:$0xf]
  %v108 = vld [vmem:[%s1 + $0x140] sm:$0xf]
  %v109 = vld [vmem:[%s1 + $0x144] sm:$0xf]
  %v110 = vld [vmem:[%s1 + $0x148] sm:$0xf]
  %v111 = vld [vmem:[%s1 + $0x14c] sm:$0xf]
  %v112 = vld [vmem:[%s1 + $0x150] sm:$0xf]
  %v113 = vld [vmem:[%s1 + $0x154] sm:$0xf]
  %v114 = vld [vmem:[%s1 + $0x158] sm:$0xf]
  %v115 = vld [vmem:[%s1 + $0x15c] sm:$0xf]
  %v116 = vld [vmem:[%s1 + $0x160] sm:$0xf]
  %v117 = vld [vmem:[%s1 + $0x164] sm:$0xf]
  %v118 = vld [vmem:[%s1 + $0x168] sm:$0xf]
  %v119 = vld [vmem:[%s1 + $0x16c] sm:$0xf]
  %v120 = vld [vmem:[%s1 + $0x170] sm:$0xf]
  %v121 = vld [vmem:[%s1 + $0x174] sm:$0xf]
  %v122 = vld [vmem:[%s1 + $0x178] sm:$0xf]
  %v123 = vld [vmem:[%s1 + $0x17c] sm:$0xf]
  %v124 = vld [vmem:[%s1 + $0x180] sm:$0xf]
  %v125 = vld [vmem:[%s1 + $0x184] sm:$0xf]
  %v126 = vld [vmem:[%s1 + $0x188] sm:$0xf]
  %v127 = vld [vmem:[%s1 + $0x18c] sm:$0xf]
  %v128 = vld [vmem:[%s1 + $0x190] sm:$0xf]
  %v129 = vld [vmem:[%s1 + $0x194] sm:$0xf]
  %v130 = vld [vmem:[%s1 + $0x198] sm:$0xf]
  %v131 = vld [vmem:[%s1 + $0x19c] sm:$0xf]
  %v132 = vld [vmem:[%s1 + $0x1a0] sm:$0xf]
  %v133 = vld [vmem:[%s1 + $0x1a4] sm:$0xf]
  %v134 = vld [vmem:[%s1 + $0x1a8] sm:$0xf]
  %v135 = vld [vmem:[%s1 + $0x1ac] sm:$0xf]
  %v136 = vld [vmem:[%s1 + $0x1b0] sm:$0xf]
  %v137 = vld [vmem:[%s1 + $0x1b4] sm:$0xf]
  %v138 = vld [vmem:[%s1 + $0x1b8] sm:$0xf]
  %v139 = vld [vmem:[%s1 + $0x1bc] sm:$0xf]
  %v140 = vld [vmem:[%s1 + $0x1c0] sm:$0xf]
  %v141 = vld [vmem:[%s1 + $0x1c4] sm:$0xf]
  %v142 = vld [vmem:[%s1 + $0x1c8] sm:$0xf]
  %v143 = vld [vmem:[%s1 + $0x1cc] sm:$0xf]
  %v144 = vld [vmem:[%s1 + $0x1d0] sm:$0xf]
  %v145 = vld [vmem:[%s1 + $0x1d4] sm:$0xf]
  %v146 = vld [vmem:[%s1 + $0x1d8] sm:$0xf]
  %v147 = vld [vmem:[%s1 + $0x1dc] sm:$0xf]
  %v148 = vld [vmem:[%s1 + $0x1e0] sm:$0xf]
  %v149 = vld [vmem:[%s1 + $0x1e4] sm:$0xf]
  %v150 = vld [vmem:[%s1 + $0x1e8] sm:$0xf]
  %v151 = vld [vmem:[%s1 + $0x1ec] sm:$0xf]
  %v152 = vld [vmem:[%s1 + $0x1f0] sm:$0xf]
  %v153 = vld [vmem:[%s1 + $0x1f4] sm:$0xf]
  %v154 = vld [vmem:[%s1 + $0x1f8] sm:$0xf]
  %v155 = vld [vmem:[%s1 + $0x1fc] sm:$0xf]
  %v172 = vunpack.c.l.b16 %v12
  %v173 = vunpack.c.h.b16 %v12
  %v174 = vunpack.c.l.b16 %v13
  %v175 = vunpack.c.h.b16 %v13
  %v176 = vunpack.c.l.b16 %v14
  %v177 = vunpack.c.h.b16 %v14
  %v178 = vunpack.c.l.b16 %v15
  %v179 = vunpack.c.h.b16 %v15
  %v180 = vunpack.c.l.b16 %v16
  %v181 = vunpack.c.h.b16 %v16
  %v182 = vunpack.c.l.b16 %v17
  %v183 = vunpack.c.h.b16 %v17
  %v184 = vunpack.c.l.b16 %v18
  %v185 = vunpack.c.h.b16 %v18
  %v186 = vunpack.c.l.b16 %v19
  %v187 = vunpack.c.h.b16 %v19
  %v188 = vunpack.c.l.b16 %v20
  %v189 = vunpack.c.h.b16 %v20
  %v190 = vunpack.c.l.b16 %v21
  %v191 = vunpack.c.h.b16 %v21
  %v192 = vunpack.c.l.b16 %v22
  %v193 = vunpack.c.h.b16 %v22
  %v194 = vunpack.c.l.b16 %v23
  %v195 = vunpack.c.h.b16 %v23
  %v196 = vunpack.c.l.b16 %v24
  %v197 = vunpack.c.h.b16 %v24
  %v198 = vunpack.c.l.b16 %v25
  %v199 = vunpack.c.h.b16 %v25
  %v200 = vunpack.c.l.b16 %v26
  %v201 = vunpack.c.h.b16 %v26
  %v202 = vunpack.c.l.b16 %v27
  %v203 = vunpack.c.h.b16 %v27
  %v204 = vpack.c.b16 %v180, %v172
  %v205 = vpack.c.b16 %v181, %v173
  %v206 = vpack.c.b16 %v182, %v174
  %v207 = vpack.c.b16 %v183, %v175
  %v208 = vpack.c.b16 %v184, %v176
  %v209 = vpack.c.b16 %v185, %v177
  %v210 = vpack.c.b16 %v186, %v178
  %v211 = vpack.c.b16 %v187, %v179
  %v212 = vpack.c.b16 %v196, %v188
  %v213 = vpack.c.b16 %v197, %v189
  %v214 = vpack.c.b16 %v198, %v190
  %v215 = vpack.c.b16 %v199, %v191
  %v216 = vpack.c.b16 %v200, %v192
  %v217 = vpack.c.b16 %v201, %v193
  %v218 = vpack.c.b16 %v202, %v194
  %v219 = vpack.c.b16 %v203, %v195
  %v364 = vunpack.c.l.b16 %v28
  %v365 = vunpack.c.l.b16 %v29
  %v366 = vunpack.c.l.b16 %v30
  %v367 = vunpack.c.l.b16 %v31
  %v368 = vunpack.c.l.b16 %v32
  %v369 = vunpack.c.l.b16 %v33
  %v370 = vunpack.c.l.b16 %v34
  %v371 = vunpack.c.l.b16 %v35
  %v372 = vunpack.c.l.b16 %v36
  %v373 = vunpack.c.l.b16 %v37
  %v374 = vunpack.c.l.b16 %v38
  %v375 = vunpack.c.l.b16 %v39
  %v376 = vunpack.c.l.b16 %v40
  %v377 = vunpack.c.l.b16 %v41
  %v378 = vunpack.c.l.b16 %v42
  %v379 = vunpack.c.l.b16 %v43
  %v380 = vunpack.c.l.b16 %v44
  %v381 = vunpack.c.l.b16 %v45
  %v382 = vunpack.c.l.b16 %v46
  %v383 = vunpack.c.l.b16 %v47
  %v384 = vunpack.c.l.b16 %v48
  %v385 = vunpack.c.l.b16 %v49
  %v386 = vunpack.c.l.b16 %v50
  %v387 = vunpack.c.l.b16 %v51
  %v388 = vunpack.c.l.b16 %v52
  %v389 = vunpack.c.l.b16 %v53
  %v390 = vunpack.c.l.b16 %v54
  %v391 = vunpack.c.l.b16 %v55
  %v392 = vunpack.c.l.b16 %v56
  %v393 = vunpack.c.l.b16 %v57
  %v394 = vunpack.c.l.b16 %v58
  %v395 = vunpack.c.l.b16 %v59
  %v396 = vunpack.c.l.b16 %v60
  %v397 = vunpack.c.l.b16 %v61
  %v398 = vunpack.c.l.b16 %v62
  %v399 = vunpack.c.l.b16 %v63
  %v400 = vunpack.c.l.b16 %v64
  %v401 = vunpack.c.l.b16 %v65
  %v402 = vunpack.c.l.b16 %v66
  %v403 = vunpack.c.l.b16 %v67
  %v404 = vunpack.c.l.b16 %v68
  %v405 = vunpack.c.l.b16 %v69
  %v406 = vunpack.c.l.b16 %v70
  %v407 = vunpack.c.l.b16 %v71
  %v408 = vunpack.c.l.b16 %v72
  %v409 = vunpack.c.l.b16 %v73
  %v410 = vunpack.c.l.b16 %v74
  %v411 = vunpack.c.l.b16 %v75
  %v412 = vunpack.c.l.b16 %v76
  %v413 = vunpack.c.l.b16 %v77
  %v414 = vunpack.c.l.b16 %v78
  %v415 = vunpack.c.l.b16 %v79
  %v416 = vunpack.c.l.b16 %v80
  %v417 = vunpack.c.l.b16 %v81
  %v418 = vunpack.c.l.b16 %v82
  %v419 = vunpack.c.l.b16 %v83
  %v420 = vunpack.c.l.b16 %v84
  %v421 = vunpack.c.l.b16 %v85
  %v422 = vunpack.c.l.b16 %v86
  %v423 = vunpack.c.l.b16 %v87
  %v424 = vunpack.c.l.b16 %v88
  %v425 = vunpack.c.l.b16 %v89
  %v426 = vunpack.c.l.b16 %v90
  %v427 = vunpack.c.l.b16 %v91
  %v428 = vunpack.c.l.b16 %v92
  %v429 = vunpack.c.l.b16 %v93
  %v430 = vunpack.c.l.b16 %v94
  %v431 = vunpack.c.l.b16 %v95
  %v432 = vunpack.c.l.b16 %v96
  %v433 = vunpack.c.l.b16 %v97
  %v434 = vunpack.c.l.b16 %v98
  %v435 = vunpack.c.l.b16 %v99
  %v436 = vunpack.c.l.b16 %v100
  %v437 = vunpack.c.l.b16 %v101
  %v438 = vunpack.c.l.b16 %v102
  %v439 = vunpack.c.l.b16 %v103
  %v440 = vunpack.c.l.b16 %v104
  %v441 = vunpack.c.l.b16 %v105
  %v442 = vunpack.c.l.b16 %v106
  %v443 = vunpack.c.l.b16 %v107
  %v444 = vunpack.c.l.b16 %v108
  %v445 = vunpack.c.l.b16 %v109
  %v446 = vunpack.c.l.b16 %v110
  %v447 = vunpack.c.l.b16 %v111
  %v448 = vunpack.c.l.b16 %v112
  %v449 = vunpack.c.l.b16 %v113
  %v450 = vunpack.c.l.b16 %v114
  %v451 = vunpack.c.l.b16 %v115
  %v452 = vunpack.c.l.b16 %v116
  %v453 = vunpack.c.l.b16 %v117
  %v454 = vunpack.c.l.b16 %v118
  %v455 = vunpack.c.l.b16 %v119
  %v456 = vunpack.c.l.b16 %v120
  %v457 = vunpack.c.l.b16 %v121
  %v458 = vunpack.c.l.b16 %v122
  %v459 = vunpack.c.l.b16 %v123
  %v460 = vunpack.c.l.b16 %v124
  %v461 = vunpack.c.l.b16 %v125
  %v462 = vunpack.c.l.b16 %v126
  %v463 = vunpack.c.l.b16 %v127
  %v464 = vunpack.c.l.b16 %v128
  %v465 = vunpack.c.l.b16 %v129
  %v466 = vunpack.c.l.b16 %v130
  %v467 = vunpack.c.l.b16 %v131
  %v468 = vunpack.c.l.b16 %v132
  %v469 = vunpack.c.l.b16 %v133
  %v470 = vunpack.c.l.b16 %v134
  %v471 = vunpack.c.l.b16 %v135
  %v472 = vunpack.c.l.b16 %v136
  %v473 = vunpack.c.l.b16 %v137
  %v474 = vunpack.c.l.b16 %v138
  %v475 = vunpack.c.l.b16 %v139
  %v476 = vunpack.c.l.b16 %v140
  %v477 = vunpack.c.l.b16 %v141
  %v478 = vunpack.c.l.b16 %v142
  %v479 = vunpack.c.l.b16 %v143
  %v480 = vunpack.c.l.b16 %v144
  %v481 = vunpack.c.l.b16 %v145
  %v482 = vunpack.c.l.b16 %v146
  %v483 = vunpack.c.l.b16 %v147
  %v484 = vunpack.c.l.b16 %v148
  %v485 = vunpack.c.l.b16 %v149
  %v486 = vunpack.c.l.b16 %v150
  %v487 = vunpack.c.l.b16 %v151
  %v488 = vunpack.c.l.b16 %v152
  %v489 = vunpack.c.l.b16 %v153
  %v490 = vunpack.c.l.b16 %v154
  %v491 = vunpack.c.l.b16 %v155
  %v492 = vpack.c.b16 %v365, %v364
  %v493 = vpack.c.b16 %v367, %v366
  %v494 = vpack.c.b16 %v369, %v368
  %v495 = vpack.c.b16 %v371, %v370
  %v496 = vpack.c.b16 %v373, %v372
  %v497 = vpack.c.b16 %v375, %v374
  %v498 = vpack.c.b16 %v377, %v376
  %v499 = vpack.c.b16 %v379, %v378
  %v500 = vpack.c.b16 %v381, %v380
  %v501 = vpack.c.b16 %v383, %v382
  %v502 = vpack.c.b16 %v385, %v384
  %v503 = vpack.c.b16 %v387, %v386
  %v504 = vpack.c.b16 %v389, %v388
  %v505 = vpack.c.b16 %v391, %v390
  %v506 = vpack.c.b16 %v393, %v392
  %v507 = vpack.c.b16 %v395, %v394
  %v508 = vpack.c.b16 %v397, %v396
  %v509 = vpack.c.b16 %v399, %v398
  %v510 = vpack.c.b16 %v401, %v400
  %v511 = vpack.c.b16 %v403, %v402
  %v512 = vpack.c.b16 %v405, %v404
  %v513 = vpack.c.b16 %v407, %v406
  %v514 = vpack.c.b16 %v409, %v408
  %v515 = vpack.c.b16 %v411, %v410
  %v516 = vpack.c.b16 %v413, %v412
  %v517 = vpack.c.b16 %v415, %v414
  %v518 = vpack.c.b16 %v417, %v416
  %v519 = vpack.c.b16 %v419, %v418
  %v520 = vpack.c.b16 %v421, %v420
  %v521 = vpack.c.b16 %v423, %v422
  %v522 = vpack.c.b16 %v425, %v424
  %v523 = vpack.c.b16 %v427, %v426
  %v524 = vpack.c.b16 %v429, %v428
  %v525 = vpack.c.b16 %v431, %v430
  %v526 = vpack.c.b16 %v433, %v432
  %v527 = vpack.c.b16 %v435, %v434
  %v528 = vpack.c.b16 %v437, %v436
  %v529 = vpack.c.b16 %v439, %v438
  %v530 = vpack.c.b16 %v441, %v440
  %v531 = vpack.c.b16 %v443, %v442
  %v532 = vpack.c.b16 %v445, %v444
  %v533 = vpack.c.b16 %v447, %v446
  %v534 = vpack.c.b16 %v449, %v448
  %v535 = vpack.c.b16 %v451, %v450
  %v536 = vpack.c.b16 %v453, %v452
  %v537 = vpack.c.b16 %v455, %v454
  %v538 = vpack.c.b16 %v457, %v456
  %v539 = vpack.c.b16 %v459, %v458
  %v540 = vpack.c.b16 %v461, %v460
  %v541 = vpack.c.b16 %v463, %v462
  %v542 = vpack.c.b16 %v465, %v464
  %v543 = vpack.c.b16 %v467, %v466
  %v544 = vpack.c.b16 %v469, %v468
  %v545 = vpack.c.b16 %v471, %v470
  %v546 = vpack.c.b16 %v473, %v472
  %v547 = vpack.c.b16 %v475, %v474
  %v548 = vpack.c.b16 %v477, %v476
  %v549 = vpack.c.b16 %v479, %v478
  %v550 = vpack.c.b16 %v481, %v480
  %v551 = vpack.c.b16 %v483, %v482
  %v552 = vpack.c.b16 %v485, %v484
  %v553 = vpack.c.b16 %v487, %v486
  %v554 = vpack.c.b16 %v489, %v488
  %v555 = vpack.c.b16 %v491, %v490
  %620 = vmatprep.subr.bf16.mxu0 0
  %621 = vmatpush1.bf16.msra.mxu0 %v492
  %622 = vmatprep.subr.bf16.mxu0 0
  %623 = vmatpush1.bf16.msra.mxu0 %v493
  %624 = vmatprep.subr.bf16.mxu0 0
  %625 = vmatpush1.bf16.msra.mxu0 %v494
  %626 = vmatprep.subr.bf16.mxu0 0
  %627 = vmatpush1.bf16.msra.mxu0 %v495
  %628 = vmatprep.subr.bf16.mxu0 0
  %629 = vmatpush1.bf16.msra.mxu0 %v496
  %630 = vmatprep.subr.bf16.mxu0 0
  %631 = vmatpush1.bf16.msra.mxu0 %v497
  %632 = vmatprep.subr.bf16.mxu0 0
  %633 = vmatpush1.bf16.msra.mxu0 %v498
  %634 = vmatprep.subr.bf16.mxu0 0
  %635 = vmatpush1.bf16.msra.mxu0 %v499
  %636 = vmatprep.subr.bf16.mxu0 0
  %637 = vmatpush1.bf16.msra.mxu0 %v500
  %638 = vmatprep.subr.bf16.mxu0 0
  %639 = vmatpush1.bf16.msra.mxu0 %v501
  %640 = vmatprep.subr.bf16.mxu0 0
  %641 = vmatpush1.bf16.msra.mxu0 %v502
  %642 = vmatprep.subr.bf16.mxu0 0
  %643 = vmatpush1.bf16.msra.mxu0 %v503
  %644 = vmatprep.subr.bf16.mxu0 0
  %645 = vmatpush1.bf16.msra.mxu0 %v504
  %646 = vmatprep.subr.bf16.mxu0 0
  %647 = vmatpush1.bf16.msra.mxu0 %v505
  %648 = vmatprep.subr.bf16.mxu0 0
  %649 = vmatpush1.bf16.msra.mxu0 %v506
  %650 = vmatprep.subr.bf16.mxu0 0
  %651 = vmatpush1.bf16.msra.mxu0 %v507
  %652 = vmatprep.mubr.bf16.mxu0 %v205
  %653 = vmatmul.mubr.bf16.gmra.mrb[0].mxu0 %v204
  %v654 = vpop.f32.mrb[0].mxu0
  %v655 = vadd.f32 0.0, %v654
  %v656 = vpop.f32.mrb[0].mxu0
  %v657 = vpop.f32.mrb[0].mxu0
  %v658 = vadd.f32 0.0, %v657
  %v659 = vpop.f32.mrb[0].mxu0
  %660 = vmatprep.mubr.bf16.mxu0 %v213
  %661 = vmatmul.mubr.bf16.gmra.mrb[0].mxu0 %v212
  %v662 = vpop.f32.mrb[0].mxu0
  %v663 = vadd.f32 0.0, %v662
  %v664 = vpop.f32.mrb[0].mxu0
  %v665 = vpop.f32.mrb[0].mxu0
  %v666 = vadd.f32 0.0, %v665
  %v667 = vpop.f32.mrb[0].mxu0
  %668 = vdwg.mxu0
  %669 = vmatprep.subr.bf16.mxu0 0
  %670 = vmatpush1.bf16.msra.mxu0 %v508
  %671 = vmatprep.subr.bf16.mxu0 0
  %672 = vmatpush1.bf16.msra.mxu0 %v509
  %673 = vmatprep.subr.bf16.mxu0 0
  %674 = vmatpush1.bf16.msra.mxu0 %v510
  %675 = vmatprep.subr.bf16.mxu0 0
  %676 = vmatpush1.bf16.msra.mxu0 %v511
  %677 = vmatprep.subr.bf16.mxu0 0
  %678 = vmatpush1.bf16.msra.mxu0 %v512
  %679 = vmatprep.subr.bf16.mxu0 0
  %680 = vmatpush1.bf16.msra.mxu0 %v513
  %681 = vmatprep.subr.bf16.mxu0 0
  %682 = vmatpush1.bf16.msra.mxu0 %v514
  %683 = vmatprep.subr.bf16.mxu0 0
  %684 = vmatpush1.bf16.msra.mxu0 %v515
  %685 = vmatprep.subr.bf16.mxu0 0
  %686 = vmatpush1.bf16.msra.mxu0 %v516
  %687 = vmatprep.subr.bf16.mxu0 0
  %688 = vmatpush1.bf16.msra.mxu0 %v517
  %689 = vmatprep.subr.bf16.mxu0 0
  %690 = vmatpush1.bf16.msra.mxu0 %v518
  %691 = vmatprep.subr.bf16.mxu0 0
  %692 = vmatpush1.bf16.msra.mxu0 %v519
  %693 = vmatprep.subr.bf16.mxu0 0
  %694 = vmatpush1.bf16.msra.mxu0 %v520
  %695 = vmatprep.subr.bf16.mxu0 0
  %696 = vmatpush1.bf16.msra.mxu0 %v521
  %697 = vmatprep.subr.bf16.mxu0 0
  %698 = vmatpush1.bf16.msra.mxu0 %v522
  %699 = vmatprep.subr.bf16.mxu0 0
  %700 = vmatpush1.bf16.msra.mxu0 %v523
  %701 = vmatprep.mubr.bf16.mxu0 %v207
  %702 = vmatmul.mubr.bf16.gmra.mrb[0].mxu0 %v206
  %v703 = vpop.f32.mrb[0].mxu0
  %v704 = vadd.f32 %v655, %v703
  %v705 = vpop.f32.mrb[0].mxu0
  %v706 = vpop.f32.mrb[0].mxu0
  %v707 = vadd.f32 %v658, %v706
  %v708 = vpop.f32.mrb[0].mxu0
  %709 = vmatprep.mubr.bf16.mxu0 %v215
  %710 = vmatmul.mubr.bf16.gmra.mrb[0].mxu0 %v214
  %v711 = vpop.f32.mrb[0].mxu0
  %v712 = vadd.f32 %v663, %v711
  %v713 = vpop.f32.mrb[0].mxu0
  %v714 = vpop.f32.mrb[0].mxu0
  %v715 = vadd.f32 %v666, %v714
  %v716 = vpop.f32.mrb[0].mxu0
  %717 = vdwg.mxu0
  %718 = vmatprep.subr.bf16.mxu0 0
  %719 = vmatpush1.bf16.msra.mxu0 %v524
  %720 = vmatprep.subr.bf16.mxu0 0
  %721 = vmatpush1.bf16.msra.mxu0 %v525
  %722 = vmatprep.subr.bf16.mxu0 0
  %723 = vmatpush1.bf16.msra.mxu0 %v526
  %724 = vmatprep.subr.bf16.mxu0 0
  %725 = vmatpush1.bf16.msra.mxu0 %v527
  %726 = vmatprep.subr.bf16.mxu0 0
  %727 = vmatpush1.bf16.msra.mxu0 %v528
  %728 = vmatprep.subr.bf16.mxu0 0
  %729 = vmatpush1.bf16.msra.mxu0 %v529
  %730 = vmatprep.subr.bf16.mxu0 0
  %731 = vmatpush1.bf16.msra.mxu0 %v530
  %732 = vmatprep.subr.bf16.mxu0 0
  %733 = vmatpush1.bf16.msra.mxu0 %v531
  %734 = vmatprep.subr.bf16.mxu0 0
  %735 = vmatpush1.bf16.msra.mxu0 %v532
  %736 = vmatprep.subr.bf16.mxu0 0
  %737 = vmatpush1.bf16.msra.mxu0 %v533
  %738 = vmatprep.subr.bf16.mxu0 0
  %739 = vmatpush1.bf16.msra.mxu0 %v534
  %740 = vmatprep.subr.bf16.mxu0 0
  %741 = vmatpush1.bf16.msra.mxu0 %v535
  %742 = vmatprep.subr.bf16.mxu0 0
  %743 = vmatpush1.bf16.msra.mxu0 %v536
  %744 = vmatprep.subr.bf16.mxu0 0
  %745 = vmatpush1.bf16.msra.mxu0 %v537
  %746 = vmatprep.subr.bf16.mxu0 0
  %747 = vmatpush1.bf16.msra.mxu0 %v538
  %748 = vmatprep.subr.bf16.mxu0 0
  %749 = vmatpush1.bf16.msra.mxu0 %v539
  %750 = vmatprep.mubr.bf16.mxu0 %v209
  %751 = vmatmul.mubr.bf16.gmra.mrb[0].mxu0 %v208
  %v752 = vpop.f32.mrb[0].mxu0
  %v753 = vadd.f32 %v704, %v752
  %v754 = vpop.f32.mrb[0].mxu0
  %v755 = vpop.f32.mrb[0].mxu0
  %v756 = vadd.f32 %v707, %v755
  %v757 = vpop.f32.mrb[0].mxu0
  %758 = vmatprep.mubr.bf16.mxu0 %v217
  %759 = vmatmul.mubr.bf16.gmra.mrb[0].mxu0 %v216
  %v760 = vpop.f32.mrb[0].mxu0
  %v761 = vadd.f32 %v712, %v760
  %v762 = vpop.f32.mrb[0].mxu0
  %v763 = vpop.f32.mrb[0].mxu0
  %v764 = vadd.f32 %v715, %v763
  %v765 = vpop.f32.mrb[0].mxu0
  %766 = vdwg.mxu0
  %767 = vmatprep.subr.bf16.mxu0 0
  %768 = vmatpush1.bf16.msra.mxu0 %v540
  %769 = vmatprep.subr.bf16.mxu0 0
  %770 = vmatpush1.bf16.msra.mxu0 %v541
  %771 = vmatprep.subr.bf16.mxu0 0
  %772 = vmatpush1.bf16.msra.mxu0 %v542
  %773 = vmatprep.subr.bf16.mxu0 0
  %774 = vmatpush1.bf16.msra.mxu0 %v543
  %775 = vmatprep.subr.bf16.mxu0 0
  %776 = vmatpush1.bf16.msra.mxu0 %v544
  %777 = vmatprep.subr.bf16.mxu0 0
  %778 = vmatpush1.bf16.msra.mxu0 %v545
  %779 = vmatprep.subr.bf16.mxu0 0
  %780 = vmatpush1.bf16.msra.mxu0 %v546
  %781 = vmatprep.subr.bf16.mxu0 0
  %782 = vmatpush1.bf16.msra.mxu0 %v547
  %783 = vmatprep.subr.bf16.mxu0 0
  %784 = vmatpush1.bf16.msra.mxu0 %v548
  %785 = vmatprep.subr.bf16.mxu0 0
  %786 = vmatpush1.bf16.msra.mxu0 %v549
  %787 = vmatprep.subr.bf16.mxu0 0
  %788 = vmatpush1.bf16.msra.mxu0 %v550
  %789 = vmatprep.subr.bf16.mxu0 0
  %790 = vmatpush1.bf16.msra.mxu0 %v551
  %791 = vmatprep.subr.bf16.mxu0 0
  %792 = vmatpush1.bf16.msra.mxu0 %v552
  %793 = vmatprep.subr.bf16.mxu0 0
  %794 = vmatpush1.bf16.msra.mxu0 %v553
  %795 = vmatprep.subr.bf16.mxu0 0
  %796 = vmatpush1.bf16.msra.mxu0 %v554
  %797 = vmatprep.subr.bf16.mxu0 0
  %798 = vmatpush1.bf16.msra.mxu0 %v555
  %799 = vmatprep.mubr.bf16.mxu0 %v211
  %800 = vmatmul.mubr.bf16.gmra.mrb[0].mxu0 %v210
  %v801 = vpop.f32.mrb[0].mxu0
  %v802 = vadd.f32 %v753, %v801
  %v803 = vpop.f32.mrb[0].mxu0
  %v804 = vpop.f32.mrb[0].mxu0
  %v805 = vadd.f32 %v756, %v804
  %v806 = vpop.f32.mrb[0].mxu0
  %807 = vmatprep.mubr.bf16.mxu0 %v219
  %808 = vmatmul.mubr.bf16.gmra.mrb[0].mxu0 %v218
  %v809 = vpop.f32.mrb[0].mxu0
  %v810 = vadd.f32 %v761, %v809
  %v811 = vpop.f32.mrb[0].mxu0
  %v812 = vpop.f32.mrb[0].mxu0
  %v813 = vadd.f32 %v764, %v812
  %v814 = vpop.f32.mrb[0].mxu0
  %815 = vdwg.mxu0
  %vm816 = vcmp.ge.f32.partialorder %v802, 0.0
  %vm817 = vcmp.ge.f32.partialorder %v805, 0.0
  %vm818 = vcmp.ge.f32.partialorder %v810, 0.0
  %vm819 = vcmp.ge.f32.partialorder %v813, 0.0
  %v820 = vmul.f32 %v802, 0.2
  %v821 = vmul.f32 %v805, 0.2
  %v822 = vmul.f32 %v810, 0.2
  %v823 = vmul.f32 %v813, 0.2
  %v824 = vsel %vm816, %v802, %v820
  %v825 = vsel %vm817, %v805, %v821
  %v826 = vsel %vm818, %v810, %v822
  %v827 = vsel %vm819, %v813, %v823
  %828 = vst [vmem:[%s2] sm:$0xff] %v824
  %829 = vst [vmem:[%s2 + $0x8] sm:$0xff] %v825
  %830 = vst [vmem:[%s2 + $0x10] sm:$0xff] %v826
  %831 = vst [vmem:[%s2 + $0x18] sm:$0xff] %v827
  // Predicated region
  $region10: #{critic_forward.9} parent=0 // pred_check
    _
  $region11: #{critic_forward.9} parent=0 // pred_check_branch
    %833 = sbr.rel (0) target = $region13
  $region12: #{critic_forward.9} parent=0 // pred_region
    _
  $region13: #{critic_forward.9} parent=0 // pred_fallthru
    _
  // Predicated region
  $region14: #{critic_forward.9} parent=0 // pred_check
    _
  $region15: #{critic_forward.9} parent=0 // pred_check_branch
    %835 = sbr.rel (0) target = $region17
  $region16: #{critic_forward.9} parent=0 // pred_region
    _
  $region17: #{critic_forward.9} parent=0 // pred_fallthru
    _

</llo_original>
